<compile_context>
chip_gen: v5e
topology: v5e:2x2
jax: 0.10.0
libtpu: 0.0.40
codegen_flags: <defaults>
</compile_context>

<pallas_src>
import jax
import jax.numpy as jnp
from jax.experimental import pallas as pl
from jax.experimental.pallas import tpu as pltpu

EPS = 1e-5


def _double_conv_kernel(x_ref, w1_ref, g1_ref, be1_ref, w2_ref, g2_ref, be2_ref,
                        out_ref, xpad_ref, im1_ref, midp_ref, im2_ref):
    # x_ref:   [N, H, W, Cin]          unpadded input (f32)
    # w1_ref:  [9*Cin,  Cmid] bf16     im2col weights, row = (ky*3+kx)*Cin + ci
    # w2_ref:  [9*Cmid, Cout] bf16
    # g*/be*:  [1, C] f32              BN gamma / beta
    # out_ref: [N, H, W, Cout]
    # scratch: xpad [N,H+2,W+2,Cin], im1 [N,H,W,9*Cin],
    #          midp [N,H+2,W+2,Cmid], im2 [N,H,W,9*Cmid]   (all f32 VMEM)
    N, H, W, Cin = x_ref.shape
    Hp, Wp = H + 2, W + 2
    Cmid = w1_ref.shape[1]
    Cout = w2_ref.shape[1]
    M = N * H * W
    inv_m = 1.0 / M

    def zero_halo(pref, C):
        # Only the 1-pixel border is zeroed (not the whole buffer).
        pref[:, 0:1, :, :] = jnp.zeros((N, 1, Wp, C), jnp.float32)
        pref[:, Hp - 1:Hp, :, :] = jnp.zeros((N, 1, Wp, C), jnp.float32)
        pref[:, :, 0:1, :] = jnp.zeros((N, Hp, 1, C), jnp.float32)
        pref[:, :, Wp - 1:Wp, :] = jnp.zeros((N, Hp, 1, C), jnp.float32)

    def im2col(src_pad_ref, dst_ref, C):
        # dst[n, h, w, (ky*3+kx)*C + c] = src_pad[n, h+ky, w+kx, c]
        for ky in range(3):
            for kx in range(3):
                t = ky * 3 + kx
                dst_ref[:, :, :, t * C:(t + 1) * C] = \
                    src_pad_ref[:, ky:ky + H, kx:kx + W, :]

    def bn_relu(acc, g_row, b_row):
        # Training-mode batch stats (biased variance) over all N*H*W rows,
        # fused into a single scale/shift + ReLU pass over the data.
        mean = jnp.sum(acc, axis=0, keepdims=True) * inv_m
        var = jnp.sum(acc * acc, axis=0, keepdims=True) * inv_m - mean * mean
        scale = g_row * jax.lax.rsqrt(var + EPS)
        shift = b_row - scale * mean
        return jnp.maximum(acc * scale + shift, 0.0)

    # ---- conv1 (one im2col matmul) + BN + ReLU ------------------------------
    zero_halo(xpad_ref, Cin)
    xpad_ref[:, 1:H + 1, 1:W + 1, :] = x_ref[...]
    im2col(xpad_ref, im1_ref, Cin)
    a1 = im1_ref[...].reshape(M, 9 * Cin).astype(jnp.bfloat16)
    acc1 = jnp.dot(a1, w1_ref[...], preferred_element_type=jnp.float32)
    y1 = bn_relu(acc1, g1_ref[...], be1_ref[...])

    # ---- conv2 (one im2col matmul) + BN + ReLU ------------------------------
    zero_halo(midp_ref, Cmid)
    midp_ref[:, 1:H + 1, 1:W + 1, :] = y1.reshape(N, H, W, Cmid)
    im2col(midp_ref, im2_ref, Cmid)
    a2 = im2_ref[...].reshape(M, 9 * Cmid).astype(jnp.bfloat16)
    acc2 = jnp.dot(a2, w2_ref[...], preferred_element_type=jnp.float32)
    y2 = bn_relu(acc2, g2_ref[...], be2_ref[...])

    out_ref[...] = y2.reshape(N, H, W, Cout).astype(out_ref.dtype)


def double_conv(x_nchw, params):
    """Fused Pallas DoubleConv. x_nchw: [N, Cin, H, W] -> [N, Cout, H, W]."""
    w1, cb1, g1, be1, w2, cb2, g2, be2 = params
    # Per-channel conv biases are cancelled exactly by the BatchNorm mean
    # subtraction -> not passed to the kernel (saves 2 full VPU passes + DMA).
    del cb1, cb2
    N, Cin, H, W = x_nchw.shape
    Cmid = w1.shape[0]
    Cout = w2.shape[0]

    x = jnp.transpose(x_nchw, (0, 2, 3, 1))                     # NCHW -> NHWC

    # PyTorch OIHW -> im2col weight [9*Cin, Cout]; pre-cast to bf16 so the MXU
    # runs its native single-pass path (accumulation stays f32 in-kernel).
    w1_t = jnp.transpose(w1, (2, 3, 1, 0)).reshape(9 * Cin, Cmid).astype(jnp.bfloat16)
    w2_t = jnp.transpose(w2, (2, 3, 1, 0)).reshape(9 * Cmid, Cout).astype(jnp.bfloat16)
    row = lambda v: v.reshape(1, -1).astype(jnp.float32)

    vmem = pl.BlockSpec(memory_space=pltpu.MemorySpace.VMEM)
    out_nhwc = pl.pallas_call(
        _double_conv_kernel,
        out_shape=jax.ShapeDtypeStruct((N, H, W, Cout), x.dtype),
        in_specs=[vmem] * 7,
        out_specs=vmem,
        scratch_shapes=[
            pltpu.VMEM((N, H + 2, W + 2, Cin), jnp.float32),    # padded x
            pltpu.VMEM((N, H, W, 9 * Cin), jnp.float32),        # im2col conv1
            pltpu.VMEM((N, H + 2, W + 2, Cmid), jnp.float32),   # padded ReLU(BN1)
            pltpu.VMEM((N, H, W, 9 * Cmid), jnp.float32),       # im2col conv2
        ],
        # Explicit VMEM budget (tiny problem; re-derive per-tile for v7x 64MiB
        # when the tiled two-pass-BN variant is added).
        compiler_params=pltpu.CompilerParams(vmem_limit_bytes=32 * 1024 * 1024),
    )(x, w1_t, row(g1), row(be1), w2_t, row(g2), row(be2))
    return jnp.transpose(out_nhwc, (0, 3, 1, 2))                # NHWC -> NCHW


def _reference_double_conv(x, params):
    """Pure-JAX f32 reference (NCHW) mirroring the PyTorch module in train mode."""
    w1, cb1, g1, be1, w2, cb2, g2, be2 = params

    def conv(x, w, b):
        y = jax.lax.conv_general_dilated(
            x, w, window_strides=(1, 1), padding=((1, 1), (1, 1)),
            dimension_numbers=('NCHW', 'OIHW', 'NCHW'),
            precision=jax.lax.Precision.HIGHEST)
        return y + b[None, :, None, None]

    def bn_relu(y, g, be):
        mean = jnp.mean(y, axis=(0, 2, 3), keepdims=True)
        var = jnp.mean((y - mean) ** 2, axis=(0, 2, 3), keepdims=True)
        yn = g[None, :, None, None] * (y - mean) * jax.lax.rsqrt(var + EPS) \
             + be[None, :, None, None]
        return jnp.maximum(yn, 0.0)

    y = bn_relu(conv(x, w1, cb1), g1, be1)
    return bn_relu(conv(y, w2, cb2), g2, be2)


if __name__ == "__main__":
    N, Cin, Cout, H, W = 2, 4, 8, 16, 16

    key = jax.random.PRNGKey(0)
    ks = jax.random.split(key, 9)
    x = jax.random.normal(ks[0], (N, Cin, H, W), jnp.float32)
    w1 = 0.1 * jax.random.normal(ks[1], (Cout, Cin, 3, 3), jnp.float32)
    cb1 = 0.1 * jax.random.normal(ks[2], (Cout,), jnp.float32)
    g1 = 1.0 + 0.1 * jax.random.normal(ks[3], (Cout,), jnp.float32)
    be1 = 0.1 * jax.random.normal(ks[4], (Cout,), jnp.float32)
    w2 = 0.1 * jax.random.normal(ks[5], (Cout, Cout, 3, 3), jnp.float32)
    cb2 = 0.1 * jax.random.normal(ks[6], (Cout,), jnp.float32)
    g2 = 1.0 + 0.1 * jax.random.normal(ks[7], (Cout,), jnp.float32)
    be2 = 0.1 * jax.random.normal(ks[8], (Cout,), jnp.float32)
    params = (w1, cb1, g1, be1, w2, cb2, g2, be2)

    out = jax.block_until_ready(jax.jit(double_conv)(x, params))
    ref = jax.block_until_ready(_reference_double_conv(x, params))

    assert out.shape == (N, Cout, H, W), out.shape
    # bf16 MXU operands (f32 accumulation) vs. a full-f32 reference: worst-case
    # elementwise deviation through two conv+BN stages on these unit-scale
    # activations is ~1e-2, so compare at 3e-2.
    assert jnp.allclose(out, ref, atol=3e-2, rtol=3e-2), \
        float(jnp.max(jnp.abs(out - ref)))
    print("KERNEL_OK")
</pallas_src>

<mosaic_0001>
module attributes {stable_mosaic.version = 11 : i64} {
  func.func @_double_conv_kernel(%arg0: memref<2x16x16x4xf32, #tpu.memory_space<vmem>>, %arg1: memref<36x8xbf16, #tpu.memory_space<vmem>>, %arg2: memref<1x8xf32, #tpu.memory_space<vmem>>, %arg3: memref<1x8xf32, #tpu.memory_space<vmem>>, %arg4: memref<72x8xbf16, #tpu.memory_space<vmem>>, %arg5: memref<1x8xf32, #tpu.memory_space<vmem>>, %arg6: memref<1x8xf32, #tpu.memory_space<vmem>>, %arg7: memref<2x16x16x8xf32, #tpu.memory_space<vmem>>, %arg8: memref<2x18x18x4xf32, #tpu.memory_space<vmem>>, %arg9: memref<2x16x16x36xf32, #tpu.memory_space<vmem>>, %arg10: memref<2x18x18x8xf32, #tpu.memory_space<vmem>>, %arg11: memref<2x16x16x72xf32, #tpu.memory_space<vmem>>) attributes {dimension_semantics = [], scalar_prefetch = 0 : i64, scratch_operands = 4 : i64, tpu.core_type = #tpu.core_type<tc>} {
    %cst = arith.constant 0.000000e+00 : f32
    %0 = vector.broadcast %cst : f32 to vector<2x1x18x4xf32>
    %c0 = arith.constant 0 : index
    %c0_0 = arith.constant 0 : index
    %c0_1 = arith.constant 0 : index
    %c0_2 = arith.constant 0 : index
    %1 = vector.load %arg8[%c0, %c0_0, %c0_1, %c0_2] : memref<2x18x18x4xf32, #tpu.memory_space<vmem>>, vector<2x1x18x4xf32>
    tpu.vector_store %arg8[%c0, %c0_0, %c0_1, %c0_2], %0 {strides = array<i32>} : memref<2x18x18x4xf32, #tpu.memory_space<vmem>>, vector<2x1x18x4xf32>,
    %cst_3 = arith.constant 0.000000e+00 : f32
    %2 = vector.broadcast %cst_3 : f32 to vector<2x1x18x4xf32>
    %c0_4 = arith.constant 0 : index
    %c17 = arith.constant 17 : index
    %c0_5 = arith.constant 0 : index
    %c0_6 = arith.constant 0 : index
    %3 = vector.load %arg8[%c0_4, %c17, %c0_5, %c0_6] : memref<2x18x18x4xf32, #tpu.memory_space<vmem>>, vector<2x1x18x4xf32>
    tpu.vector_store %arg8[%c0_4, %c17, %c0_5, %c0_6], %2 {strides = array<i32>} : memref<2x18x18x4xf32, #tpu.memory_space<vmem>>, vector<2x1x18x4xf32>,
    %cst_7 = arith.constant 0.000000e+00 : f32
    %4 = vector.broadcast %cst_7 : f32 to vector<2x18x1x4xf32>
    %c0_8 = arith.constant 0 : index
    %c0_9 = arith.constant 0 : index
    %c0_10 = arith.constant 0 : index
    %c0_11 = arith.constant 0 : index
    %5 = vector.load %arg8[%c0_8, %c0_9, %c0_10, %c0_11] : memref<2x18x18x4xf32, #tpu.memory_space<vmem>>, vector<2x18x1x4xf32>
    tpu.vector_store %arg8[%c0_8, %c0_9, %c0_10, %c0_11], %4 {strides = array<i32>} : memref<2x18x18x4xf32, #tpu.memory_space<vmem>>, vector<2x18x1x4xf32>,
    %cst_12 = arith.constant 0.000000e+00 : f32
    %6 = vector.broadcast %cst_12 : f32 to vector<2x18x1x4xf32>
    %c0_13 = arith.constant 0 : index
    %c0_14 = arith.constant 0 : index
    %c17_15 = arith.constant 17 : index
    %c0_16 = arith.constant 0 : index
    %7 = vector.load %arg8[%c0_13, %c0_14, %c17_15, %c0_16] : memref<2x18x18x4xf32, #tpu.memory_space<vmem>>, vector<2x18x1x4xf32>
    tpu.vector_store %arg8[%c0_13, %c0_14, %c17_15, %c0_16], %6 {strides = array<i32>} : memref<2x18x18x4xf32, #tpu.memory_space<vmem>>, vector<2x18x1x4xf32>,
    %c0_17 = arith.constant 0 : index
    %c0_18 = arith.constant 0 : index
    %c0_19 = arith.constant 0 : index
    %c0_20 = arith.constant 0 : index
    %8 = vector.load %arg0[%c0_17, %c0_18, %c0_19, %c0_20] : memref<2x16x16x4xf32, #tpu.memory_space<vmem>>, vector<2x16x16x4xf32>
    %c0_21 = arith.constant 0 : index
    %c1 = arith.constant 1 : index
    %c1_22 = arith.constant 1 : index
    %c0_23 = arith.constant 0 : index
    %9 = vector.load %arg8[%c0_21, %c1, %c1_22, %c0_23] : memref<2x18x18x4xf32, #tpu.memory_space<vmem>>, vector<2x16x16x4xf32>
    tpu.vector_store %arg8[%c0_21, %c1, %c1_22, %c0_23], %8 {strides = array<i32>} : memref<2x18x18x4xf32, #tpu.memory_space<vmem>>, vector<2x16x16x4xf32>,
    %c0_24 = arith.constant 0 : index
    %c0_25 = arith.constant 0 : index
    %c0_26 = arith.constant 0 : index
    %c0_27 = arith.constant 0 : index
    %10 = vector.load %arg8[%c0_24, %c0_25, %c0_26, %c0_27] : memref<2x18x18x4xf32, #tpu.memory_space<vmem>>, vector<2x16x16x4xf32>
    %c0_28 = arith.constant 0 : index
    %c0_29 = arith.constant 0 : index
    %c0_30 = arith.constant 0 : index
    %c0_31 = arith.constant 0 : index
    %11 = vector.load %arg9[%c0_28, %c0_29, %c0_30, %c0_31] : memref<2x16x16x36xf32, #tpu.memory_space<vmem>>, vector<2x16x16x4xf32>
    tpu.vector_store %arg9[%c0_28, %c0_29, %c0_30, %c0_31], %10 {strides = array<i32>} : memref<2x16x16x36xf32, #tpu.memory_space<vmem>>, vector<2x16x16x4xf32>,
    %c0_32 = arith.constant 0 : index
    %c0_33 = arith.constant 0 : index
    %c1_34 = arith.constant 1 : index
    %c0_35 = arith.constant 0 : index
    %12 = vector.load %arg8[%c0_32, %c0_33, %c1_34, %c0_35] : memref<2x18x18x4xf32, #tpu.memory_space<vmem>>, vector<2x16x16x4xf32>
    %c0_36 = arith.constant 0 : index
    %c0_37 = arith.constant 0 : index
    %c0_38 = arith.constant 0 : index
    %c4 = arith.constant 4 : index
    %13 = vector.load %arg9[%c0_36, %c0_37, %c0_38, %c4] : memref<2x16x16x36xf32, #tpu.memory_space<vmem>>, vector<2x16x16x4xf32>
    tpu.vector_store %arg9[%c0_36, %c0_37, %c0_38, %c4], %12 {strides = array<i32>} : memref<2x16x16x36xf32, #tpu.memory_space<vmem>>, vector<2x16x16x4xf32>,
    %c0_39 = arith.constant 0 : index
    %c0_40 = arith.constant 0 : index
    %c2 = arith.constant 2 : index
    %c0_41 = arith.constant 0 : index
    %14 = vector.load %arg8[%c0_39, %c0_40, %c2, %c0_41] : memref<2x18x18x4xf32, #tpu.memory_space<vmem>>, vector<2x16x16x4xf32>
    %c0_42 = arith.constant 0 : index
    %c0_43 = arith.constant 0 : index
    %c0_44 = arith.constant 0 : index
    %c8 = arith.constant 8 : index
    %15 = vector.load %arg9[%c0_42, %c0_43, %c0_44, %c8] : memref<2x16x16x36xf32, #tpu.memory_space<vmem>>, vector<2x16x16x4xf32>
    tpu.vector_store %arg9[%c0_42, %c0_43, %c0_44, %c8], %14 {strides = array<i32>} : memref<2x16x16x36xf32, #tpu.memory_space<vmem>>, vector<2x16x16x4xf32>,
    %c0_45 = arith.constant 0 : index
    %c1_46 = arith.constant 1 : index
    %c0_47 = arith.constant 0 : index
    %c0_48 = arith.constant 0 : index
    %16 = vector.load %arg8[%c0_45, %c1_46, %c0_47, %c0_48] : memref<2x18x18x4xf32, #tpu.memory_space<vmem>>, vector<2x16x16x4xf32>
    %c0_49 = arith.constant 0 : index
    %c0_50 = arith.constant 0 : index
    %c0_51 = arith.constant 0 : index
    %c12 = arith.constant 12 : index
    %17 = vector.load %arg9[%c0_49, %c0_50, %c0_51, %c12] : memref<2x16x16x36xf32, #tpu.memory_space<vmem>>, vector<2x16x16x4xf32>
    tpu.vector_store %arg9[%c0_49, %c0_50, %c0_51, %c12], %16 {strides = array<i32>} : memref<2x16x16x36xf32, #tpu.memory_space<vmem>>, vector<2x16x16x4xf32>,
    %c0_52 = arith.constant 0 : index
    %c1_53 = arith.constant 1 : index
    %c1_54 = arith.constant 1 : index
    %c0_55 = arith.constant 0 : index
    %18 = vector.load %arg8[%c0_52, %c1_53, %c1_54, %c0_55] : memref<2x18x18x4xf32, #tpu.memory_space<vmem>>, vector<2x16x16x4xf32>
    %c0_56 = arith.constant 0 : index
    %c0_57 = arith.constant 0 : index
    %c0_58 = arith.constant 0 : index
    %c16 = arith.constant 16 : index
    %19 = vector.load %arg9[%c0_56, %c0_57, %c0_58, %c16] : memref<2x16x16x36xf32, #tpu.memory_space<vmem>>, vector<2x16x16x4xf32>
    tpu.vector_store %arg9[%c0_56, %c0_57, %c0_58, %c16], %18 {strides = array<i32>} : memref<2x16x16x36xf32, #tpu.memory_space<vmem>>, vector<2x16x16x4xf32>,
    %c0_59 = arith.constant 0 : index
    %c1_60 = arith.constant 1 : index
    %c2_61 = arith.constant 2 : index
    %c0_62 = arith.constant 0 : index
    %20 = vector.load %arg8[%c0_59, %c1_60, %c2_61, %c0_62] : memref<2x18x18x4xf32, #tpu.memory_space<vmem>>, vector<2x16x16x4xf32>
    %c0_63 = arith.constant 0 : index
    %c0_64 = arith.constant 0 : index
    %c0_65 = arith.constant 0 : index
    %c20 = arith.constant 20 : index
    %21 = vector.load %arg9[%c0_63, %c0_64, %c0_65, %c20] : memref<2x16x16x36xf32, #tpu.memory_space<vmem>>, vector<2x16x16x4xf32>
    tpu.vector_store %arg9[%c0_63, %c0_64, %c0_65, %c20], %20 {strides = array<i32>} : memref<2x16x16x36xf32, #tpu.memory_space<vmem>>, vector<2x16x16x4xf32>,
    %c0_66 = arith.constant 0 : index
    %c2_67 = arith.constant 2 : index
    %c0_68 = arith.constant 0 : index
    %c0_69 = arith.constant 0 : index
    %22 = vector.load %arg8[%c0_66, %c2_67, %c0_68, %c0_69] : memref<2x18x18x4xf32, #tpu.memory_space<vmem>>, vector<2x16x16x4xf32>
    %c0_70 = arith.constant 0 : index
    %c0_71 = arith.constant 0 : index
    %c0_72 = arith.constant 0 : index
    %c24 = arith.constant 24 : index
    %23 = vector.load %arg9[%c0_70, %c0_71, %c0_72, %c24] : memref<2x16x16x36xf32, #tpu.memory_space<vmem>>, vector<2x16x16x4xf32>
    tpu.vector_store %arg9[%c0_70, %c0_71, %c0_72, %c24], %22 {strides = array<i32>} : memref<2x16x16x36xf32, #tpu.memory_space<vmem>>, vector<2x16x16x4xf32>,
    %c0_73 = arith.constant 0 : index
    %c2_74 = arith.constant 2 : index
    %c1_75 = arith.constant 1 : index
    %c0_76 = arith.constant 0 : index
    %24 = vector.load %arg8[%c0_73, %c2_74, %c1_75, %c0_76] : memref<2x18x18x4xf32, #tpu.memory_space<vmem>>, vector<2x16x16x4xf32>
    %c0_77 = arith.constant 0 : index
    %c0_78 = arith.constant 0 : index
    %c0_79 = arith.constant 0 : index
    %c28 = arith.constant 28 : index
    %25 = vector.load %arg9[%c0_77, %c0_78, %c0_79, %c28] : memref<2x16x16x36xf32, #tpu.memory_space<vmem>>, vector<2x16x16x4xf32>
    tpu.vector_store %arg9[%c0_77, %c0_78, %c0_79, %c28], %24 {strides = array<i32>} : memref<2x16x16x36xf32, #tpu.memory_space<vmem>>, vector<2x16x16x4xf32>,
    %c0_80 = arith.constant 0 : index
    %c2_81 = arith.constant 2 : index
    %c2_82 = arith.constant 2 : index
    %c0_83 = arith.constant 0 : index
    %26 = vector.load %arg8[%c0_80, %c2_81, %c2_82, %c0_83] : memref<2x18x18x4xf32, #tpu.memory_space<vmem>>, vector<2x16x16x4xf32>
    %c0_84 = arith.constant 0 : index
    %c0_85 = arith.constant 0 : index
    %c0_86 = arith.constant 0 : index
    %c32 = arith.constant 32 : index
    %27 = vector.load %arg9[%c0_84, %c0_85, %c0_86, %c32] : memref<2x16x16x36xf32, #tpu.memory_space<vmem>>, vector<2x16x16x4xf32>
    tpu.vector_store %arg9[%c0_84, %c0_85, %c0_86, %c32], %26 {strides = array<i32>} : memref<2x16x16x36xf32, #tpu.memory_space<vmem>>, vector<2x16x16x4xf32>,
    %c0_87 = arith.constant 0 : index
    %c0_88 = arith.constant 0 : index
    %c0_89 = arith.constant 0 : index
    %c0_90 = arith.constant 0 : index
    %28 = vector.load %arg9[%c0_87, %c0_88, %c0_89, %c0_90] : memref<2x16x16x36xf32, #tpu.memory_space<vmem>>, vector<2x16x16x36xf32>
    %29 = vector.shape_cast %28 : vector<2x16x16x36xf32> to vector<512x36xf32>
    %30 = arith.truncf %29 : vector<512x36xf32> to vector<512x36xbf16>
    %c0_91 = arith.constant 0 : index
    %c0_92 = arith.constant 0 : index
    %31 = vector.load %arg1[%c0_91, %c0_92] : memref<36x8xbf16, #tpu.memory_space<vmem>>, vector<36x8xbf16>
    %cst_93 = arith.constant dense<0.000000e+00> : vector<512x8xf32>
    %32 = tpu.matmul %30, %31, %cst_93 {dimension_numbers = #tpu.dot_dimension_numbers<[1], [0], [0], [1], [0, 0, 1, 1], [], []>} : vector<512x36xbf16>, vector<36x8xbf16>, vector<512x8xf32> -> vector<512x8xf32>
    %c0_94 = arith.constant 0 : index
    %c0_95 = arith.constant 0 : index
    %33 = vector.load %arg2[%c0_94, %c0_95] : memref<1x8xf32, #tpu.memory_space<vmem>>, vector<1x8xf32>
    %c0_96 = arith.constant 0 : index
    %c0_97 = arith.constant 0 : index
    %34 = vector.load %arg3[%c0_96, %c0_97] : memref<1x8xf32, #tpu.memory_space<vmem>>, vector<1x8xf32>
    %cst_98 = arith.constant dense<0.000000e+00> : vector<8xf32>
    %35 = vector.multi_reduction <add>, %32, %cst_98 [0] : vector<512x8xf32> to vector<8xf32>
    %36 = vector.shape_cast %35 : vector<8xf32> to vector<1x8xf32>
    %cst_99 = arith.constant 0.001953125 : f32
    %37 = vector.broadcast %cst_99 : f32 to vector<1x8xf32>
    %38 = arith.mulf %36, %37 : vector<1x8xf32>
    %39 = arith.mulf %32, %32 : vector<512x8xf32>
    %cst_100 = arith.constant dense<0.000000e+00> : vector<8xf32>
    %40 = vector.multi_reduction <add>, %39, %cst_100 [0] : vector<512x8xf32> to vector<8xf32>
    %41 = vector.shape_cast %40 : vector<8xf32> to vector<1x8xf32>
    %cst_101 = arith.constant 0.001953125 : f32
    %42 = vector.broadcast %cst_101 : f32 to vector<1x8xf32>
    %43 = arith.mulf %41, %42 : vector<1x8xf32>
    %44 = arith.mulf %38, %38 : vector<1x8xf32>
    %45 = arith.subf %43, %44 : vector<1x8xf32>
    %cst_102 = arith.constant 9.99999974E-6 : f32
    %46 = vector.broadcast %cst_102 : f32 to vector<1x8xf32>
    %47 = arith.addf %45, %46 : vector<1x8xf32>
    %48 = math.rsqrt %47 : vector<1x8xf32>
    %49 = arith.mulf %33, %48 : vector<1x8xf32>
    %50 = arith.mulf %49, %38 : vector<1x8xf32>
    %51 = arith.subf %34, %50 : vector<1x8xf32>
    %52 = vector.broadcast %49 : vector<1x8xf32> to vector<512x8xf32>
    %53 = arith.mulf %32, %52 : vector<512x8xf32>
    %54 = vector.broadcast %51 : vector<1x8xf32> to vector<512x8xf32>
    %55 = arith.addf %53, %54 : vector<512x8xf32>
    %cst_103 = arith.constant 0.000000e+00 : f32
    %56 = vector.broadcast %cst_103 : f32 to vector<512x8xf32>
    %57 = arith.maximumf %55, %56 : vector<512x8xf32>
    %cst_104 = arith.constant 0.000000e+00 : f32
    %58 = vector.broadcast %cst_104 : f32 to vector<2x1x18x8xf32>
    %c0_105 = arith.constant 0 : index
    %c0_106 = arith.constant 0 : index
    %c0_107 = arith.constant 0 : index
    %c0_108 = arith.constant 0 : index
    %59 = vector.load %arg10[%c0_105, %c0_106, %c0_107, %c0_108] : memref<2x18x18x8xf32, #tpu.memory_space<vmem>>, vector<2x1x18x8xf32>
    tpu.vector_store %arg10[%c0_105, %c0_106, %c0_107, %c0_108], %58 {strides = array<i32>} : memref<2x18x18x8xf32, #tpu.memory_space<vmem>>, vector<2x1x18x8xf32>,
    %cst_109 = arith.constant 0.000000e+00 : f32
    %60 = vector.broadcast %cst_109 : f32 to vector<2x1x18x8xf32>
    %c0_110 = arith.constant 0 : index
    %c17_111 = arith.constant 17 : index
    %c0_112 = arith.constant 0 : index
    %c0_113 = arith.constant 0 : index
    %61 = vector.load %arg10[%c0_110, %c17_111, %c0_112, %c0_113] : memref<2x18x18x8xf32, #tpu.memory_space<vmem>>, vector<2x1x18x8xf32>
    tpu.vector_store %arg10[%c0_110, %c17_111, %c0_112, %c0_113], %60 {strides = array<i32>} : memref<2x18x18x8xf32, #tpu.memory_space<vmem>>, vector<2x1x18x8xf32>,
    %cst_114 = arith.constant 0.000000e+00 : f32
    %62 = vector.broadcast %cst_114 : f32 to vector<2x18x1x8xf32>
    %c0_115 = arith.constant 0 : index
    %c0_116 = arith.constant 0 : index
    %c0_117 = arith.constant 0 : index
    %c0_118 = arith.constant 0 : index
    %63 = vector.load %arg10[%c0_115, %c0_116, %c0_117, %c0_118] : memref<2x18x18x8xf32, #tpu.memory_space<vmem>>, vector<2x18x1x8xf32>
    tpu.vector_store %arg10[%c0_115, %c0_116, %c0_117, %c0_118], %62 {strides = array<i32>} : memref<2x18x18x8xf32, #tpu.memory_space<vmem>>, vector<2x18x1x8xf32>,
    %cst_119 = arith.constant 0.000000e+00 : f32
    %64 = vector.broadcast %cst_119 : f32 to vector<2x18x1x8xf32>
    %c0_120 = arith.constant 0 : index
    %c0_121 = arith.constant 0 : index
    %c17_122 = arith.constant 17 : index
    %c0_123 = arith.constant 0 : index
    %65 = vector.load %arg10[%c0_120, %c0_121, %c17_122, %c0_123] : memref<2x18x18x8xf32, #tpu.memory_space<vmem>>, vector<2x18x1x8xf32>
    tpu.vector_store %arg10[%c0_120, %c0_121, %c17_122, %c0_123], %64 {strides = array<i32>} : memref<2x18x18x8xf32, #tpu.memory_space<vmem>>, vector<2x18x1x8xf32>,
    %66 = vector.shape_cast %57 : vector<512x8xf32> to vector<2x16x16x8xf32>
    %c0_124 = arith.constant 0 : index
    %c1_125 = arith.constant 1 : index
    %c1_126 = arith.constant 1 : index
    %c0_127 = arith.constant 0 : index
    %67 = vector.load %arg10[%c0_124, %c1_125, %c1_126, %c0_127] : memref<2x18x18x8xf32, #tpu.memory_space<vmem>>, vector<2x16x16x8xf32>
    tpu.vector_store %arg10[%c0_124, %c1_125, %c1_126, %c0_127], %66 {strides = array<i32>} : memref<2x18x18x8xf32, #tpu.memory_space<vmem>>, vector<2x16x16x8xf32>,
    %c0_128 = arith.constant 0 : index
    %c0_129 = arith.constant 0 : index
    %c0_130 = arith.constant 0 : index
    %c0_131 = arith.constant 0 : index
    %68 = vector.load %arg10[%c0_128, %c0_129, %c0_130, %c0_131] : memref<2x18x18x8xf32, #tpu.memory_space<vmem>>, vector<2x16x16x8xf32>
    %c0_132 = arith.constant 0 : index
    %c0_133 = arith.constant 0 : index
    %c0_134 = arith.constant 0 : index
    %c0_135 = arith.constant 0 : index
    %69 = vector.load %arg11[%c0_132, %c0_133, %c0_134, %c0_135] : memref<2x16x16x72xf32, #tpu.memory_space<vmem>>, vector<2x16x16x8xf32>
    tpu.vector_store %arg11[%c0_132, %c0_133, %c0_134, %c0_135], %68 {strides = array<i32>} : memref<2x16x16x72xf32, #tpu.memory_space<vmem>>, vector<2x16x16x8xf32>,
    %c0_136 = arith.constant 0 : index
    %c0_137 = arith.constant 0 : index
    %c1_138 = arith.constant 1 : index
    %c0_139 = arith.constant 0 : index
    %70 = vector.load %arg10[%c0_136, %c0_137, %c1_138, %c0_139] : memref<2x18x18x8xf32, #tpu.memory_space<vmem>>, vector<2x16x16x8xf32>
    %c0_140 = arith.constant 0 : index
    %c0_141 = arith.constant 0 : index
    %c0_142 = arith.constant 0 : index
    %c8_143 = arith.constant 8 : index
    %71 = vector.load %arg11[%c0_140, %c0_141, %c0_142, %c8_143] : memref<2x16x16x72xf32, #tpu.memory_space<vmem>>, vector<2x16x16x8xf32>
    tpu.vector_store %arg11[%c0_140, %c0_141, %c0_142, %c8_143], %70 {strides = array<i32>} : memref<2x16x16x72xf32, #tpu.memory_space<vmem>>, vector<2x16x16x8xf32>,
    %c0_144 = arith.constant 0 : index
    %c0_145 = arith.constant 0 : index
    %c2_146 = arith.constant 2 : index
    %c0_147 = arith.constant 0 : index
    %72 = vector.load %arg10[%c0_144, %c0_145, %c2_146, %c0_147] : memref<2x18x18x8xf32, #tpu.memory_space<vmem>>, vector<2x16x16x8xf32>
    %c0_148 = arith.constant 0 : index
    %c0_149 = arith.constant 0 : index
    %c0_150 = arith.constant 0 : index
    %c16_151 = arith.constant 16 : index
    %73 = vector.load %arg11[%c0_148, %c0_149, %c0_150, %c16_151] : memref<2x16x16x72xf32, #tpu.memory_space<vmem>>, vector<2x16x16x8xf32>
    tpu.vector_store %arg11[%c0_148, %c0_149, %c0_150, %c16_151], %72 {strides = array<i32>} : memref<2x16x16x72xf32, #tpu.memory_space<vmem>>, vector<2x16x16x8xf32>,
    %c0_152 = arith.constant 0 : index
    %c1_153 = arith.constant 1 : index
    %c0_154 = arith.constant 0 : index
    %c0_155 = arith.constant 0 : index
    %74 = vector.load %arg10[%c0_152, %c1_153, %c0_154, %c0_155] : memref<2x18x18x8xf32, #tpu.memory_space<vmem>>, vector<2x16x16x8xf32>
    %c0_156 = arith.constant 0 : index
    %c0_157 = arith.constant 0 : index
    %c0_158 = arith.constant 0 : index
    %c24_159 = arith.constant 24 : index
    %75 = vector.load %arg11[%c0_156, %c0_157, %c0_158, %c24_159] : memref<2x16x16x72xf32, #tpu.memory_space<vmem>>, vector<2x16x16x8xf32>
    tpu.vector_store %arg11[%c0_156, %c0_157, %c0_158, %c24_159], %74 {strides = array<i32>} : memref<2x16x16x72xf32, #tpu.memory_space<vmem>>, vector<2x16x16x8xf32>,
    %c0_160 = arith.constant 0 : index
    %c1_161 = arith.constant 1 : index
    %c1_162 = arith.constant 1 : index
    %c0_163 = arith.constant 0 : index
    %76 = vector.load %arg10[%c0_160, %c1_161, %c1_162, %c0_163] : memref<2x18x18x8xf32, #tpu.memory_space<vmem>>, vector<2x16x16x8xf32>
    %c0_164 = arith.constant 0 : index
    %c0_165 = arith.constant 0 : index
    %c0_166 = arith.constant 0 : index
    %c32_167 = arith.constant 32 : index
    %77 = vector.load %arg11[%c0_164, %c0_165, %c0_166, %c32_167] : memref<2x16x16x72xf32, #tpu.memory_space<vmem>>, vector<2x16x16x8xf32>
    tpu.vector_store %arg11[%c0_164, %c0_165, %c0_166, %c32_167], %76 {strides = array<i32>} : memref<2x16x16x72xf32, #tpu.memory_space<vmem>>, vector<2x16x16x8xf32>,
    %c0_168 = arith.constant 0 : index
    %c1_169 = arith.constant 1 : index
    %c2_170 = arith.constant 2 : index
    %c0_171 = arith.constant 0 : index
    %78 = vector.load %arg10[%c0_168, %c1_169, %c2_170, %c0_171] : memref<2x18x18x8xf32, #tpu.memory_space<vmem>>, vector<2x16x16x8xf32>
    %c0_172 = arith.constant 0 : index
    %c0_173 = arith.constant 0 : index
    %c0_174 = arith.constant 0 : index
    %c40 = arith.constant 40 : index
    %79 = vector.load %arg11[%c0_172, %c0_173, %c0_174, %c40] : memref<2x16x16x72xf32, #tpu.memory_space<vmem>>, vector<2x16x16x8xf32>
    tpu.vector_store %arg11[%c0_172, %c0_173, %c0_174, %c40], %78 {strides = array<i32>} : memref<2x16x16x72xf32, #tpu.memory_space<vmem>>, vector<2x16x16x8xf32>,
    %c0_175 = arith.constant 0 : index
    %c2_176 = arith.constant 2 : index
    %c0_177 = arith.constant 0 : index
    %c0_178 = arith.constant 0 : index
    %80 = vector.load %arg10[%c0_175, %c2_176, %c0_177, %c0_178] : memref<2x18x18x8xf32, #tpu.memory_space<vmem>>, vector<2x16x16x8xf32>
    %c0_179 = arith.constant 0 : index
    %c0_180 = arith.constant 0 : index
    %c0_181 = arith.constant 0 : index
    %c48 = arith.constant 48 : index
    %81 = vector.load %arg11[%c0_179, %c0_180, %c0_181, %c48] : memref<2x16x16x72xf32, #tpu.memory_space<vmem>>, vector<2x16x16x8xf32>
    tpu.vector_store %arg11[%c0_179, %c0_180, %c0_181, %c48], %80 {strides = array<i32>} : memref<2x16x16x72xf32, #tpu.memory_space<vmem>>, vector<2x16x16x8xf32>,
    %c0_182 = arith.constant 0 : index
    %c2_183 = arith.constant 2 : index
    %c1_184 = arith.constant 1 : index
    %c0_185 = arith.constant 0 : index
    %82 = vector.load %arg10[%c0_182, %c2_183, %c1_184, %c0_185] : memref<2x18x18x8xf32, #tpu.memory_space<vmem>>, vector<2x16x16x8xf32>
    %c0_186 = arith.constant 0 : index
    %c0_187 = arith.constant 0 : index
    %c0_188 = arith.constant 0 : index
    %c56 = arith.constant 56 : index
    %83 = vector.load %arg11[%c0_186, %c0_187, %c0_188, %c56] : memref<2x16x16x72xf32, #tpu.memory_space<vmem>>, vector<2x16x16x8xf32>
    tpu.vector_store %arg11[%c0_186, %c0_187, %c0_188, %c56], %82 {strides = array<i32>} : memref<2x16x16x72xf32, #tpu.memory_space<vmem>>, vector<2x16x16x8xf32>,
    %c0_189 = arith.constant 0 : index
    %c2_190 = arith.constant 2 : index
    %c2_191 = arith.constant 2 : index
    %c0_192 = arith.constant 0 : index
    %84 = vector.load %arg10[%c0_189, %c2_190, %c2_191, %c0_192] : memref<2x18x18x8xf32, #tpu.memory_space<vmem>>, vector<2x16x16x8xf32>
    %c0_193 = arith.constant 0 : index
    %c0_194 = arith.constant 0 : index
    %c0_195 = arith.constant 0 : index
    %c64 = arith.constant 64 : index
    %85 = vector.load %arg11[%c0_193, %c0_194, %c0_195, %c64] : memref<2x16x16x72xf32, #tpu.memory_space<vmem>>, vector<2x16x16x8xf32>
    tpu.vector_store %arg11[%c0_193, %c0_194, %c0_195, %c64], %84 {strides = array<i32>} : memref<2x16x16x72xf32, #tpu.memory_space<vmem>>, vector<2x16x16x8xf32>,
    %c0_196 = arith.constant 0 : index
    %c0_197 = arith.constant 0 : index
    %c0_198 = arith.constant 0 : index
    %c0_199 = arith.constant 0 : index
    %86 = vector.load %arg11[%c0_196, %c0_197, %c0_198, %c0_199] : memref<2x16x16x72xf32, #tpu.memory_space<vmem>>, vector<2x16x16x72xf32>
    %87 = vector.shape_cast %86 : vector<2x16x16x72xf32> to vector<512x72xf32>
    %88 = arith.truncf %87 : vector<512x72xf32> to vector<512x72xbf16>
    %c0_200 = arith.constant 0 : index
    %c0_201 = arith.constant 0 : index
    %89 = vector.load %arg4[%c0_200, %c0_201] : memref<72x8xbf16, #tpu.memory_space<vmem>>, vector<72x8xbf16>
    %cst_202 = arith.constant dense<0.000000e+00> : vector<512x8xf32>
    %90 = tpu.matmul %88, %89, %cst_202 {dimension_numbers = #tpu.dot_dimension_numbers<[1], [0], [0], [1], [0, 0, 1, 1], [], []>} : vector<512x72xbf16>, vector<72x8xbf16>, vector<512x8xf32> -> vector<512x8xf32>
    %c0_203 = arith.constant 0 : index
    %c0_204 = arith.constant 0 : index
    %91 = vector.load %arg5[%c0_203, %c0_204] : memref<1x8xf32, #tpu.memory_space<vmem>>, vector<1x8xf32>
    %c0_205 = arith.constant 0 : index
    %c0_206 = arith.constant 0 : index
    %92 = vector.load %arg6[%c0_205, %c0_206] : memref<1x8xf32, #tpu.memory_space<vmem>>, vector<1x8xf32>
    %cst_207 = arith.constant dense<0.000000e+00> : vector<8xf32>
    %93 = vector.multi_reduction <add>, %90, %cst_207 [0] : vector<512x8xf32> to vector<8xf32>
    %94 = vector.shape_cast %93 : vector<8xf32> to vector<1x8xf32>
    %cst_208 = arith.constant 0.001953125 : f32
    %95 = vector.broadcast %cst_208 : f32 to vector<1x8xf32>
    %96 = arith.mulf %94, %95 : vector<1x8xf32>
    %97 = arith.mulf %90, %90 : vector<512x8xf32>
    %cst_209 = arith.constant dense<0.000000e+00> : vector<8xf32>
    %98 = vector.multi_reduction <add>, %97, %cst_209 [0] : vector<512x8xf32> to vector<8xf32>
    %99 = vector.shape_cast %98 : vector<8xf32> to vector<1x8xf32>
    %cst_210 = arith.constant 0.001953125 : f32
    %100 = vector.broadcast %cst_210 : f32 to vector<1x8xf32>
    %101 = arith.mulf %99, %100 : vector<1x8xf32>
    %102 = arith.mulf %96, %96 : vector<1x8xf32>
    %103 = arith.subf %101, %102 : vector<1x8xf32>
    %cst_211 = arith.constant 9.99999974E-6 : f32
    %104 = vector.broadcast %cst_211 : f32 to vector<1x8xf32>
    %105 = arith.addf %103, %104 : vector<1x8xf32>
    %106 = math.rsqrt %105 : vector<1x8xf32>
    %107 = arith.mulf %91, %106 : vector<1x8xf32>
    %108 = arith.mulf %107, %96 : vector<1x8xf32>
    %109 = arith.subf %92, %108 : vector<1x8xf32>
    %110 = vector.broadcast %107 : vector<1x8xf32> to vector<512x8xf32>
    %111 = arith.mulf %90, %110 : vector<512x8xf32>
    %112 = vector.broadcast %109 : vector<1x8xf32> to vector<512x8xf32>
    %113 = arith.addf %111, %112 : vector<512x8xf32>
    %cst_212 = arith.constant 0.000000e+00 : f32
    %114 = vector.broadcast %cst_212 : f32 to vector<512x8xf32>
    %115 = arith.maximumf %113, %114 : vector<512x8xf32>
    %116 = vector.shape_cast %115 : vector<512x8xf32> to vector<2x16x16x8xf32>
    %c0_213 = arith.constant 0 : index
    %c0_214 = arith.constant 0 : index
    %c0_215 = arith.constant 0 : index
    %c0_216 = arith.constant 0 : index
    %117 = vector.load %arg7[%c0_213, %c0_214, %c0_215, %c0_216] : memref<2x16x16x8xf32, #tpu.memory_space<vmem>>, vector<2x16x16x8xf32>
    tpu.vector_store %arg7[%c0_213, %c0_214, %c0_215, %c0_216], %116 {strides = array<i32>} : memref<2x16x16x8xf32, #tpu.memory_space<vmem>>, vector<2x16x16x8xf32>,
    return
  }
}

</mosaic_0001>

<llo_original>
// kernel: double_conv.1
$region0: #{double_conv.1}
  #allocation0 [shape = 'u32[]', space=smem, size = 0x4, offset = 0x4, fixed_abs, tag = 'smem constant byte address 0x4 - core index']
  #allocation1 [shape = 'u32[72,128]{1,0:T(1,128)}', space=vmem, size = 0x9000, scoped, tag = 'internal scratch']
  #allocation2 [shape = 'f32[2,18,18,4]{3,2,1,0:T(8,128)}', space=vmem, size = 0x6c000, scoped, tag = 'scratch operand']
  #allocation3 [shape = 'f32[2,16,16,36]{3,2,1,0:T(8,128)}', space=vmem, size = 0x40000, scoped, tag = 'scratch operand']
  #allocation4 [shape = 'f32[2,18,18,8]{3,2,1,0:T(8,128)}', space=vmem, size = 0x6c000, scoped, tag = 'scratch operand']
  #allocation5 [shape = 'f32[2,16,16,72]{3,2,1,0:T(8,128)}', space=vmem, size = 0x40000, scoped, tag = 'scratch operand']
  %s0 = inlined_call_operand.vmem [shape: f32[2,16,16,4], index: 0, kind: input, shape index: {}]
  %s1 = inlined_call_operand.vmem [shape: bf16[36,8], index: 1, kind: input, shape index: {}]
  %s2 = inlined_call_operand.vmem [shape: f32[1,8], index: 2, kind: input, shape index: {}]
  %s3 = inlined_call_operand.vmem [shape: f32[1,8], index: 3, kind: input, shape index: {}]
  %s4 = inlined_call_operand.vmem [shape: bf16[72,8], index: 4, kind: input, shape index: {}]
  %s5 = inlined_call_operand.vmem [shape: f32[1,8], index: 5, kind: input, shape index: {}]
  %s6 = inlined_call_operand.vmem [shape: f32[1,8], index: 6, kind: input, shape index: {}]
  %s7 = inlined_call_operand.vmem [shape: f32[2,16,16,8], index: 7, kind: output, shape index: {}]
  %s8 = sld [smem:[#allocation0]]
  $region38: #{double_conv.1} parent=0
    _
  %s10 = ssub.s32 1, %s8
  %s11 = scalar_select 0, %s10, %s8
  // Predicated region
  $region2: #{double_conv.1} parent=0 // pred_check
    _
  $region3: #{double_conv.1} parent=0 // pred_check_branch
    %13 = sbr.rel (0) target = $region5
  $region4: #{double_conv.1} parent=0 // pred_region
    _
  $region5: #{double_conv.1} parent=0 // pred_fallthru
    _
  // Predicated region
  $region6: #{double_conv.1} parent=0 // pred_check
    _
  $region7: #{double_conv.1} parent=0 // pred_check_branch
    %15 = sbr.rel (0) target = $region9
  $region8: #{double_conv.1} parent=0 // pred_region
    _
  $region9: #{double_conv.1} parent=0 // pred_fallthru
    _
  // Predicated region
  $region10: #{double_conv.1} parent=0 // pred_check
    _
  $region11: #{double_conv.1} parent=0 // pred_check_branch
    %17 = sbr.rel (0) target = $region13
  $region12: #{double_conv.1} parent=0 // pred_region
    _
  $region13: #{double_conv.1} parent=0 // pred_fallthru
    _
  // Predicated region
  $region14: #{double_conv.1} parent=0 // pred_check
    _
  $region15: #{double_conv.1} parent=0 // pred_check_branch
    %19 = sbr.rel (0) target = $region17
  $region16: #{double_conv.1} parent=0 // pred_region
    _
  $region17: #{double_conv.1} parent=0 // pred_fallthru
    _
  // Predicated region
  $region18: #{double_conv.1} parent=0 // pred_check
    _
  $region19: #{double_conv.1} parent=0 // pred_check_branch
    %21 = sbr.rel (0) target = $region21
  $region20: #{double_conv.1} parent=0 // pred_region
    _
  $region21: #{double_conv.1} parent=0 // pred_fallthru
    _
  // Predicated region
  $region22: #{double_conv.1} parent=0 // pred_check
    _
  $region23: #{double_conv.1} parent=0 // pred_check_branch
    %23 = sbr.rel (0) target = $region25
  $region24: #{double_conv.1} parent=0 // pred_region
    _
  $region25: #{double_conv.1} parent=0 // pred_fallthru
    _
  // Predicated region
  $region26: #{double_conv.1} parent=0 // pred_check
    _
  $region27: #{double_conv.1} parent=0 // pred_check_branch
    %25 = sbr.rel (0) target = $region29
  $region28: #{double_conv.1} parent=0 // pred_region
    _
  $region29: #{double_conv.1} parent=0 // pred_fallthru
    _
  %vm27 = vcmask 31744
  %28 = vst.msk [vmem:[#allocation2] sm:$0xff] %vm27, 0.0
  %29 = vst.msk [vmem:[#allocation2 + $0x8] sm:$0xff] %vm27, 0.0
  %vm30 = vcmask 25600
  %31 = vst.msk [vmem:[#allocation2 + $0x10] sm:$0x3] %vm30, 0.0
  %32 = vst.msk [vmem:[#allocation2 + $0x1b0] sm:$0xff] %vm27, 0.0
  %33 = vst.msk [vmem:[#allocation2 + $0x1b8] sm:$0xff] %vm27, 0.0
  %34 = vst.msk [vmem:[#allocation2 + $0x1c0] sm:$0x3] %vm30, 0.0
  %s35 = scalar_lea.vmem [#allocation2], 408
  %36 = vst.msk [vmem:[%s35] sm:$0xff] %vm27, 0.0
  %37 = vst.msk [vmem:[%s35 + $0x8] sm:$0xff] %vm27, 0.0
  %38 = vst.msk [vmem:[%s35 + $0x10] sm:$0x3] %vm30, 0.0
  %39 = vst.msk [vmem:[%s35 + $0x1b0] sm:$0xff] %vm27, 0.0
  %40 = vst.msk [vmem:[%s35 + $0x1b8] sm:$0xff] %vm27, 0.0
  %41 = vst.msk [vmem:[%s35 + $0x1c0] sm:$0x3] %vm30, 0.0
  %vm42 = vcmask 24576
  %43 = vst.msk [vmem:[#allocation2] sm:$0x1] %vm42, 0.0
  %44 = vst.msk [vmem:[#allocation2 + $0x18] sm:$0x1] %vm42, 0.0
  %45 = vst.msk [vmem:[#allocation2 + $0x30] sm:$0x1] %vm42, 0.0
  %46 = vst.msk [vmem:[#allocation2 + $0x48] sm:$0x1] %vm42, 0.0
  %47 = vst.msk [vmem:[#allocation2 + $0x60] sm:$0x1] %vm42, 0.0
  %48 = vst.msk [vmem:[#allocation2 + $0x78] sm:$0x1] %vm42, 0.0
  %49 = vst.msk [vmem:[#allocation2 + $0x90] sm:$0x1] %vm42, 0.0
  %50 = vst.msk [vmem:[#allocation2 + $0xa8] sm:$0x1] %vm42, 0.0
  %51 = vst.msk [vmem:[#allocation2 + $0xc0] sm:$0x1] %vm42, 0.0
  %52 = vst.msk [vmem:[#allocation2 + $0xd8] sm:$0x1] %vm42, 0.0
  %53 = vst.msk [vmem:[#allocation2 + $0xf0] sm:$0x1] %vm42, 0.0
  %54 = vst.msk [vmem:[#allocation2 + $0x108] sm:$0x1] %vm42, 0.0
  %55 = vst.msk [vmem:[#allocation2 + $0x120] sm:$0x1] %vm42, 0.0
  %56 = vst.msk [vmem:[#allocation2 + $0x138] sm:$0x1] %vm42, 0.0
  %57 = vst.msk [vmem:[#allocation2 + $0x150] sm:$0x1] %vm42, 0.0
  %58 = vst.msk [vmem:[#allocation2 + $0x168] sm:$0x1] %vm42, 0.0
  %59 = vst.msk [vmem:[#allocation2 + $0x180] sm:$0x1] %vm42, 0.0
  %60 = vst.msk [vmem:[#allocation2 + $0x198] sm:$0x1] %vm42, 0.0
  %61 = vst.msk [vmem:[#allocation2 + $0x1b0] sm:$0x1] %vm42, 0.0
  %62 = vst.msk [vmem:[#allocation2 + $0x1c8] sm:$0x1] %vm42, 0.0
  %63 = vst.msk [vmem:[#allocation2 + $0x1e0] sm:$0x1] %vm42, 0.0
  %64 = vst.msk [vmem:[#allocation2 + $0x1f8] sm:$0x1] %vm42, 0.0
  %65 = vst.msk [vmem:[#allocation2 + $0x210] sm:$0x1] %vm42, 0.0
  %66 = vst.msk [vmem:[#allocation2 + $0x228] sm:$0x1] %vm42, 0.0
  %67 = vst.msk [vmem:[#allocation2 + $0x240] sm:$0x1] %vm42, 0.0
  %68 = vst.msk [vmem:[#allocation2 + $0x258] sm:$0x1] %vm42, 0.0
  %69 = vst.msk [vmem:[#allocation2 + $0x270] sm:$0x1] %vm42, 0.0
  %70 = vst.msk [vmem:[#allocation2 + $0x288] sm:$0x1] %vm42, 0.0
  %71 = vst.msk [vmem:[#allocation2 + $0x2a0] sm:$0x1] %vm42, 0.0
  %72 = vst.msk [vmem:[#allocation2 + $0x2b8] sm:$0x1] %vm42, 0.0
  %73 = vst.msk [vmem:[#allocation2 + $0x2d0] sm:$0x1] %vm42, 0.0
  %74 = vst.msk [vmem:[#allocation2 + $0x2e8] sm:$0x1] %vm42, 0.0
  %75 = vst.msk [vmem:[#allocation2 + $0x300] sm:$0x1] %vm42, 0.0
  %76 = vst.msk [vmem:[#allocation2 + $0x318] sm:$0x1] %vm42, 0.0
  %77 = vst.msk [vmem:[#allocation2 + $0x330] sm:$0x1] %vm42, 0.0
  %78 = vst.msk [vmem:[#allocation2 + $0x348] sm:$0x1] %vm42, 0.0
  %79 = vst.msk [vmem:[#allocation2 + $0x11] sm:$0x1] %vm42, 0.0
  %80 = vst.msk [vmem:[#allocation2 + $0x29] sm:$0x1] %vm42, 0.0
  %81 = vst.msk [vmem:[#allocation2 + $0x41] sm:$0x1] %vm42, 0.0
  %82 = vst.msk [vmem:[#allocation2 + $0x59] sm:$0x1] %vm42, 0.0
  %83 = vst.msk [vmem:[#allocation2 + $0x71] sm:$0x1] %vm42, 0.0
  %84 = vst.msk [vmem:[#allocation2 + $0x89] sm:$0x1] %vm42, 0.0
  %85 = vst.msk [vmem:[#allocation2 + $0xa1] sm:$0x1] %vm42, 0.0
  %86 = vst.msk [vmem:[#allocation2 + $0xb9] sm:$0x1] %vm42, 0.0
  %87 = vst.msk [vmem:[#allocation2 + $0xd1] sm:$0x1] %vm42, 0.0
  %88 = vst.msk [vmem:[#allocation2 + $0xe9] sm:$0x1] %vm42, 0.0
  %89 = vst.msk [vmem:[#allocation2 + $0x101] sm:$0x1] %vm42, 0.0
  %90 = vst.msk [vmem:[#allocation2 + $0x119] sm:$0x1] %vm42, 0.0
  %91 = vst.msk [vmem:[#allocation2 + $0x131] sm:$0x1] %vm42, 0.0
  %92 = vst.msk [vmem:[#allocation2 + $0x149] sm:$0x1] %vm42, 0.0
  %93 = vst.msk [vmem:[#allocation2 + $0x161] sm:$0x1] %vm42, 0.0
  %94 = vst.msk [vmem:[#allocation2 + $0x179] sm:$0x1] %vm42, 0.0
  %95 = vst.msk [vmem:[#allocation2 + $0x191] sm:$0x1] %vm42, 0.0
  %96 = vst.msk [vmem:[#allocation2 + $0x1a9] sm:$0x1] %vm42, 0.0
  %97 = vst.msk [vmem:[#allocation2 + $0x1c1] sm:$0x1] %vm42, 0.0
  %98 = vst.msk [vmem:[#allocation2 + $0x1d9] sm:$0x1] %vm42, 0.0
  %99 = vst.msk [vmem:[#allocation2 + $0x1f1] sm:$0x1] %vm42, 0.0
  %100 = vst.msk [vmem:[#allocation2 + $0x209] sm:$0x1] %vm42, 0.0
  %101 = vst.msk [vmem:[#allocation2 + $0x221] sm:$0x1] %vm42, 0.0
  %102 = vst.msk [vmem:[#allocation2 + $0x239] sm:$0x1] %vm42, 0.0
  %103 = vst.msk [vmem:[#allocation2 + $0x251] sm:$0x1] %vm42, 0.0
  %104 = vst.msk [vmem:[#allocation2 + $0x269] sm:$0x1] %vm42, 0.0
  %105 = vst.msk [vmem:[#allocation2 + $0x281] sm:$0x1] %vm42, 0.0
  %106 = vst.msk [vmem:[#allocation2 + $0x299] sm:$0x1] %vm42, 0.0
  %107 = vst.msk [vmem:[#allocation2 + $0x2b1] sm:$0x1] %vm42, 0.0
  %108 = vst.msk [vmem:[#allocation2 + $0x2c9] sm:$0x1] %vm42, 0.0
  %109 = vst.msk [vmem:[#allocation2 + $0x2e1] sm:$0x1] %vm42, 0.0
  %110 = vst.msk [vmem:[#allocation2 + $0x2f9] sm:$0x1] %vm42, 0.0
  %111 = vst.msk [vmem:[#allocation2 + $0x311] sm:$0x1] %vm42, 0.0
  %112 = vst.msk [vmem:[#allocation2 + $0x329] sm:$0x1] %vm42, 0.0
  %113 = vst.msk [vmem:[#allocation2 + $0x341] sm:$0x1] %vm42, 0.0
  %114 = vst.msk [vmem:[#allocation2 + $0x359] sm:$0x1] %vm42, 0.0
  %v115 = vld [vmem:[%s0] sm:$0xff]
  %v116 = vld [vmem:[%s0 + $0x8] sm:$0xff]
  %v117 = vld [vmem:[%s0 + $0x10] sm:$0xff]
  %v118 = vld [vmem:[%s0 + $0x18] sm:$0xff]
  %v119 = vld [vmem:[%s0 + $0x20] sm:$0xff]
  %v120 = vld [vmem:[%s0 + $0x28] sm:$0xff]
  %v121 = vld [vmem:[%s0 + $0x30] sm:$0xff]
  %v122 = vld [vmem:[%s0 + $0x38] sm:$0xff]
  %v123 = vld [vmem:[%s0 + $0x40] sm:$0xff]
  %v124 = vld [vmem:[%s0 + $0x48] sm:$0xff]
  %v125 = vld [vmem:[%s0 + $0x50] sm:$0xff]
  %v126 = vld [vmem:[%s0 + $0x58] sm:$0xff]
  %v127 = vld [vmem:[%s0 + $0x60] sm:$0xff]
  %v128 = vld [vmem:[%s0 + $0x68] sm:$0xff]
  %v129 = vld [vmem:[%s0 + $0x70] sm:$0xff]
  %v130 = vld [vmem:[%s0 + $0x78] sm:$0xff]
  %v131 = vld [vmem:[%s0 + $0x80] sm:$0xff]
  %v132 = vld [vmem:[%s0 + $0x88] sm:$0xff]
  %v133 = vld [vmem:[%s0 + $0x90] sm:$0xff]
  %v134 = vld [vmem:[%s0 + $0x98] sm:$0xff]
  %v135 = vld [vmem:[%s0 + $0xa0] sm:$0xff]
  %v136 = vld [vmem:[%s0 + $0xa8] sm:$0xff]
  %v137 = vld [vmem:[%s0 + $0xb0] sm:$0xff]
  %v138 = vld [vmem:[%s0 + $0xb8] sm:$0xff]
  %v139 = vld [vmem:[%s0 + $0xc0] sm:$0xff]
  %v140 = vld [vmem:[%s0 + $0xc8] sm:$0xff]
  %v141 = vld [vmem:[%s0 + $0xd0] sm:$0xff]
  %v142 = vld [vmem:[%s0 + $0xd8] sm:$0xff]
  %v143 = vld [vmem:[%s0 + $0xe0] sm:$0xff]
  %v144 = vld [vmem:[%s0 + $0xe8] sm:$0xff]
  %v145 = vld [vmem:[%s0 + $0xf0] sm:$0xff]
  %v146 = vld [vmem:[%s0 + $0xf8] sm:$0xff]
  %v147 = vld [vmem:[%s0 + $0x100] sm:$0xff]
  %v148 = vld [vmem:[%s0 + $0x108] sm:$0xff]
  %v149 = vld [vmem:[%s0 + $0x110] sm:$0xff]
  %v150 = vld [vmem:[%s0 + $0x118] sm:$0xff]
  %v151 = vld [vmem:[%s0 + $0x120] sm:$0xff]
  %v152 = vld [vmem:[%s0 + $0x128] sm:$0xff]
  %v153 = vld [vmem:[%s0 + $0x130] sm:$0xff]
  %v154 = vld [vmem:[%s0 + $0x138] sm:$0xff]
  %v155 = vld [vmem:[%s0 + $0x140] sm:$0xff]
  %v156 = vld [vmem:[%s0 + $0x148] sm:$0xff]
  %v157 = vld [vmem:[%s0 + $0x150] sm:$0xff]
  %v158 = vld [vmem:[%s0 + $0x158] sm:$0xff]
  %v159 = vld [vmem:[%s0 + $0x160] sm:$0xff]
  %v160 = vld [vmem:[%s0 + $0x168] sm:$0xff]
  %v161 = vld [vmem:[%s0 + $0x170] sm:$0xff]
  %v162 = vld [vmem:[%s0 + $0x178] sm:$0xff]
  %v163 = vld [vmem:[%s0 + $0x180] sm:$0xff]
  %v164 = vld [vmem:[%s0 + $0x188] sm:$0xff]
  %v165 = vld [vmem:[%s0 + $0x190] sm:$0xff]
  %v166 = vld [vmem:[%s0 + $0x198] sm:$0xff]
  %v167 = vld [vmem:[%s0 + $0x1a0] sm:$0xff]
  %v168 = vld [vmem:[%s0 + $0x1a8] sm:$0xff]
  %v169 = vld [vmem:[%s0 + $0x1b0] sm:$0xff]
  %v170 = vld [vmem:[%s0 + $0x1b8] sm:$0xff]
  %v171 = vld [vmem:[%s0 + $0x1c0] sm:$0xff]
  %v172 = vld [vmem:[%s0 + $0x1c8] sm:$0xff]
  %v173 = vld [vmem:[%s0 + $0x1d0] sm:$0xff]
  %v174 = vld [vmem:[%s0 + $0x1d8] sm:$0xff]
  %v175 = vld [vmem:[%s0 + $0x1e0] sm:$0xff]
  %v176 = vld [vmem:[%s0 + $0x1e8] sm:$0xff]
  %v177 = vld [vmem:[%s0 + $0x1f0] sm:$0xff]
  %v178 = vld [vmem:[%s0 + $0x1f8] sm:$0xff]
  %s179 = scalar_lea.vmem [#allocation2], 24
  %180 = vst.msk [vmem:[%s179 + $0x1] sm:$0xff] %vm27, %v115
  %181 = vst.msk [vmem:[%s179 + $0x9] sm:$0xff] %vm27, %v116
  %182 = vst.msk [vmem:[%s179 + $0x19] sm:$0xff] %vm27, %v117
  %183 = vst.msk [vmem:[%s179 + $0x21] sm:$0xff] %vm27, %v118
  %184 = vst.msk [vmem:[%s179 + $0x31] sm:$0xff] %vm27, %v119
  %185 = vst.msk [vmem:[%s179 + $0x39] sm:$0xff] %vm27, %v120
  %186 = vst.msk [vmem:[%s179 + $0x49] sm:$0xff] %vm27, %v121
  %187 = vst.msk [vmem:[%s179 + $0x51] sm:$0xff] %vm27, %v122
  %188 = vst.msk [vmem:[%s179 + $0x61] sm:$0xff] %vm27, %v123
  %189 = vst.msk [vmem:[%s179 + $0x69] sm:$0xff] %vm27, %v124
  %190 = vst.msk [vmem:[%s179 + $0x79] sm:$0xff] %vm27, %v125
  %191 = vst.msk [vmem:[%s179 + $0x81] sm:$0xff] %vm27, %v126
  %192 = vst.msk [vmem:[%s179 + $0x91] sm:$0xff] %vm27, %v127
  %193 = vst.msk [vmem:[%s179 + $0x99] sm:$0xff] %vm27, %v128
  %194 = vst.msk [vmem:[%s179 + $0xa9] sm:$0xff] %vm27, %v129
  %195 = vst.msk [vmem:[%s179 + $0xb1] sm:$0xff] %vm27, %v130
  %196 = vst.msk [vmem:[%s179 + $0xc1] sm:$0xff] %vm27, %v131
  %197 = vst.msk [vmem:[%s179 + $0xc9] sm:$0xff] %vm27, %v132
  %198 = vst.msk [vmem:[%s179 + $0xd9] sm:$0xff] %vm27, %v133
  %199 = vst.msk [vmem:[%s179 + $0xe1] sm:$0xff] %vm27, %v134
  %200 = vst.msk [vmem:[%s179 + $0xf1] sm:$0xff] %vm27, %v135
  %201 = vst.msk [vmem:[%s179 + $0xf9] sm:$0xff] %vm27, %v136
  %202 = vst.msk [vmem:[%s179 + $0x109] sm:$0xff] %vm27, %v137
  %203 = vst.msk [vmem:[%s179 + $0x111] sm:$0xff] %vm27, %v138
  %204 = vst.msk [vmem:[%s179 + $0x121] sm:$0xff] %vm27, %v139
  %205 = vst.msk [vmem:[%s179 + $0x129] sm:$0xff] %vm27, %v140
  %206 = vst.msk [vmem:[%s179 + $0x139] sm:$0xff] %vm27, %v141
  %207 = vst.msk [vmem:[%s179 + $0x141] sm:$0xff] %vm27, %v142
  %208 = vst.msk [vmem:[%s179 + $0x151] sm:$0xff] %vm27, %v143
  %209 = vst.msk [vmem:[%s179 + $0x159] sm:$0xff] %vm27, %v144
  %210 = vst.msk [vmem:[%s179 + $0x169] sm:$0xff] %vm27, %v145
  %211 = vst.msk [vmem:[%s179 + $0x171] sm:$0xff] %vm27, %v146
  %212 = vst.msk [vmem:[%s179 + $0x1b1] sm:$0xff] %vm27, %v147
  %213 = vst.msk [vmem:[%s179 + $0x1b9] sm:$0xff] %vm27, %v148
  %214 = vst.msk [vmem:[%s179 + $0x1c9] sm:$0xff] %vm27, %v149
  %215 = vst.msk [vmem:[%s179 + $0x1d1] sm:$0xff] %vm27, %v150
  %216 = vst.msk [vmem:[%s179 + $0x1e1] sm:$0xff] %vm27, %v151
  %217 = vst.msk [vmem:[%s179 + $0x1e9] sm:$0xff] %vm27, %v152
  %218 = vst.msk [vmem:[%s179 + $0x1f9] sm:$0xff] %vm27, %v153
  %219 = vst.msk [vmem:[%s179 + $0x201] sm:$0xff] %vm27, %v154
  %220 = vst.msk [vmem:[%s179 + $0x211] sm:$0xff] %vm27, %v155
  %221 = vst.msk [vmem:[%s179 + $0x219] sm:$0xff] %vm27, %v156
  %222 = vst.msk [vmem:[%s179 + $0x229] sm:$0xff] %vm27, %v157
  %223 = vst.msk [vmem:[%s179 + $0x231] sm:$0xff] %vm27, %v158
  %224 = vst.msk [vmem:[%s179 + $0x241] sm:$0xff] %vm27, %v159
  %225 = vst.msk [vmem:[%s179 + $0x249] sm:$0xff] %vm27, %v160
  %226 = vst.msk [vmem:[%s179 + $0x259] sm:$0xff] %vm27, %v161
  %227 = vst.msk [vmem:[%s179 + $0x261] sm:$0xff] %vm27, %v162
  %228 = vst.msk [vmem:[%s179 + $0x271] sm:$0xff] %vm27, %v163
  %229 = vst.msk [vmem:[%s179 + $0x279] sm:$0xff] %vm27, %v164
  %230 = vst.msk [vmem:[%s179 + $0x289] sm:$0xff] %vm27, %v165
  %231 = vst.msk [vmem:[%s179 + $0x291] sm:$0xff] %vm27, %v166
  %232 = vst.msk [vmem:[%s179 + $0x2a1] sm:$0xff] %vm27, %v167
  %233 = vst.msk [vmem:[%s179 + $0x2a9] sm:$0xff] %vm27, %v168
  %234 = vst.msk [vmem:[%s179 + $0x2b9] sm:$0xff] %vm27, %v169
  %235 = vst.msk [vmem:[%s179 + $0x2c1] sm:$0xff] %vm27, %v170
  %236 = vst.msk [vmem:[%s179 + $0x2d1] sm:$0xff] %vm27, %v171
  %237 = vst.msk [vmem:[%s179 + $0x2d9] sm:$0xff] %vm27, %v172
  %238 = vst.msk [vmem:[%s179 + $0x2e9] sm:$0xff] %vm27, %v173
  %239 = vst.msk [vmem:[%s179 + $0x2f1] sm:$0xff] %vm27, %v174
  %240 = vst.msk [vmem:[%s179 + $0x301] sm:$0xff] %vm27, %v175
  %241 = vst.msk [vmem:[%s179 + $0x309] sm:$0xff] %vm27, %v176
  %242 = vst.msk [vmem:[%s179 + $0x319] sm:$0xff] %vm27, %v177
  %243 = vst.msk [vmem:[%s179 + $0x321] sm:$0xff] %vm27, %v178
  %v244 = vld [vmem:[#allocation2] sm:$0xff]
  %v245 = vld [vmem:[#allocation2 + $0x8] sm:$0xff]
  %v246 = vld [vmem:[#allocation2 + $0x18] sm:$0xff]
  %v247 = vld [vmem:[#allocation2 + $0x20] sm:$0xff]
  %v248 = vld [vmem:[#allocation2 + $0x30] sm:$0xff]
  %v249 = vld [vmem:[#allocation2 + $0x38] sm:$0xff]
  %v250 = vld [vmem:[#allocation2 + $0x48] sm:$0xff]
  %v251 = vld [vmem:[#allocation2 + $0x50] sm:$0xff]
  %v252 = vld [vmem:[#allocation2 + $0x60] sm:$0xff]
  %v253 = vld [vmem:[#allocation2 + $0x68] sm:$0xff]
  %v254 = vld [vmem:[#allocation2 + $0x78] sm:$0xff]
  %v255 = vld [vmem:[#allocation2 + $0x80] sm:$0xff]
  %v256 = vld [vmem:[#allocation2 + $0x90] sm:$0xff]
  %v257 = vld [vmem:[#allocation2 + $0x98] sm:$0xff]
  %v258 = vld [vmem:[#allocation2 + $0xa8] sm:$0xff]
  %v259 = vld [vmem:[#allocation2 + $0xb0] sm:$0xff]
  %v260 = vld [vmem:[#allocation2 + $0xc0] sm:$0xff]
  %v261 = vld [vmem:[#allocation2 + $0xc8] sm:$0xff]
  %v262 = vld [vmem:[#allocation2 + $0xd8] sm:$0xff]
  %v263 = vld [vmem:[#allocation2 + $0xe0] sm:$0xff]
  %v264 = vld [vmem:[#allocation2 + $0xf0] sm:$0xff]
  %v265 = vld [vmem:[#allocation2 + $0xf8] sm:$0xff]
  %v266 = vld [vmem:[#allocation2 + $0x108] sm:$0xff]
  %v267 = vld [vmem:[#allocation2 + $0x110] sm:$0xff]
  %v268 = vld [vmem:[#allocation2 + $0x120] sm:$0xff]
  %v269 = vld [vmem:[#allocation2 + $0x128] sm:$0xff]
  %v270 = vld [vmem:[#allocation2 + $0x138] sm:$0xff]
  %v271 = vld [vmem:[#allocation2 + $0x140] sm:$0xff]
  %v272 = vld [vmem:[#allocation2 + $0x150] sm:$0xff]
  %v273 = vld [vmem:[#allocation2 + $0x158] sm:$0xff]
  %v274 = vld [vmem:[#allocation2 + $0x168] sm:$0xff]
  %v275 = vld [vmem:[#allocation2 + $0x170] sm:$0xff]
  %v276 = vld [vmem:[#allocation2 + $0x1b0] sm:$0xff]
  %v277 = vld [vmem:[#allocation2 + $0x1b8] sm:$0xff]
  %v278 = vld [vmem:[#allocation2 + $0x1c8] sm:$0xff]
  %v279 = vld [vmem:[#allocation2 + $0x1d0] sm:$0xff]
  %v280 = vld [vmem:[#allocation2 + $0x1e0] sm:$0xff]
  %v281 = vld [vmem:[#allocation2 + $0x1e8] sm:$0xff]
  %v282 = vld [vmem:[#allocation2 + $0x1f8] sm:$0xff]
  %v283 = vld [vmem:[#allocation2 + $0x200] sm:$0xff]
  %v284 = vld [vmem:[#allocation2 + $0x210] sm:$0xff]
  %v285 = vld [vmem:[#allocation2 + $0x218] sm:$0xff]
  %v286 = vld [vmem:[#allocation2 + $0x228] sm:$0xff]
  %v287 = vld [vmem:[#allocation2 + $0x230] sm:$0xff]
  %v288 = vld [vmem:[#allocation2 + $0x240] sm:$0xff]
  %v289 = vld [vmem:[#allocation2 + $0x248] sm:$0xff]
  %v290 = vld [vmem:[#allocation2 + $0x258] sm:$0xff]
  %v291 = vld [vmem:[#allocation2 + $0x260] sm:$0xff]
  %v292 = vld [vmem:[#allocation2 + $0x270] sm:$0xff]
  %v293 = vld [vmem:[#allocation2 + $0x278] sm:$0xff]
  %v294 = vld [vmem:[#allocation2 + $0x288] sm:$0xff]
  %v295 = vld [vmem:[#allocation2 + $0x290] sm:$0xff]
  %v296 = vld [vmem:[#allocation2 + $0x2a0] sm:$0xff]
  %v297 = vld [vmem:[#allocation2 + $0x2a8] sm:$0xff]
  %v298 = vld [vmem:[#allocation2 + $0x2b8] sm:$0xff]
  %v299 = vld [vmem:[#allocation2 + $0x2c0] sm:$0xff]
  %v300 = vld [vmem:[#allocation2 + $0x2d0] sm:$0xff]
  %v301 = vld [vmem:[#allocation2 + $0x2d8] sm:$0xff]
  %v302 = vld [vmem:[#allocation2 + $0x2e8] sm:$0xff]
  %v303 = vld [vmem:[#allocation2 + $0x2f0] sm:$0xff]
  %v304 = vld [vmem:[#allocation2 + $0x300] sm:$0xff]
  %v305 = vld [vmem:[#allocation2 + $0x308] sm:$0xff]
  %v306 = vld [vmem:[#allocation2 + $0x318] sm:$0xff]
  %v307 = vld [vmem:[#allocation2 + $0x320] sm:$0xff]
  %308 = vst.msk [vmem:[#allocation3] sm:$0xff] %vm27, %v244
  %309 = vst.msk [vmem:[#allocation3 + $0x8] sm:$0xff] %vm27, %v245
  %310 = vst.msk [vmem:[#allocation3 + $0x10] sm:$0xff] %vm27, %v246
  %311 = vst.msk [vmem:[#allocation3 + $0x18] sm:$0xff] %vm27, %v247
  %312 = vst.msk [vmem:[#allocation3 + $0x20] sm:$0xff] %vm27, %v248
  %313 = vst.msk [vmem:[#allocation3 + $0x28] sm:$0xff] %vm27, %v249
  %314 = vst.msk [vmem:[#allocation3 + $0x30] sm:$0xff] %vm27, %v250
  %315 = vst.msk [vmem:[#allocation3 + $0x38] sm:$0xff] %vm27, %v251
  %316 = vst.msk [vmem:[#allocation3 + $0x40] sm:$0xff] %vm27, %v252
  %317 = vst.msk [vmem:[#allocation3 + $0x48] sm:$0xff] %vm27, %v253
  %318 = vst.msk [vmem:[#allocation3 + $0x50] sm:$0xff] %vm27, %v254
  %319 = vst.msk [vmem:[#allocation3 + $0x58] sm:$0xff] %vm27, %v255
  %320 = vst.msk [vmem:[#allocation3 + $0x60] sm:$0xff] %vm27, %v256
  %321 = vst.msk [vmem:[#allocation3 + $0x68] sm:$0xff] %vm27, %v257
  %322 = vst.msk [vmem:[#allocation3 + $0x70] sm:$0xff] %vm27, %v258
  %323 = vst.msk [vmem:[#allocation3 + $0x78] sm:$0xff] %vm27, %v259
  %324 = vst.msk [vmem:[#allocation3 + $0x80] sm:$0xff] %vm27, %v260
  %325 = vst.msk [vmem:[#allocation3 + $0x88] sm:$0xff] %vm27, %v261
  %326 = vst.msk [vmem:[#allocation3 + $0x90] sm:$0xff] %vm27, %v262
  %327 = vst.msk [vmem:[#allocation3 + $0x98] sm:$0xff] %vm27, %v263
  %328 = vst.msk [vmem:[#allocation3 + $0xa0] sm:$0xff] %vm27, %v264
  %329 = vst.msk [vmem:[#allocation3 + $0xa8] sm:$0xff] %vm27, %v265
  %330 = vst.msk [vmem:[#allocation3 + $0xb0] sm:$0xff] %vm27, %v266
  %331 = vst.msk [vmem:[#allocation3 + $0xb8] sm:$0xff] %vm27, %v267
  %332 = vst.msk [vmem:[#allocation3 + $0xc0] sm:$0xff] %vm27, %v268
  %333 = vst.msk [vmem:[#allocation3 + $0xc8] sm:$0xff] %vm27, %v269
  %334 = vst.msk [vmem:[#allocation3 + $0xd0] sm:$0xff] %vm27, %v270
  %335 = vst.msk [vmem:[#allocation3 + $0xd8] sm:$0xff] %vm27, %v271
  %336 = vst.msk [vmem:[#allocation3 + $0xe0] sm:$0xff] %vm27, %v272
  %337 = vst.msk [vmem:[#allocation3 + $0xe8] sm:$0xff] %vm27, %v273
  %338 = vst.msk [vmem:[#allocation3 + $0xf0] sm:$0xff] %vm27, %v274
  %339 = vst.msk [vmem:[#allocation3 + $0xf8] sm:$0xff] %vm27, %v275
  %340 = vst.msk [vmem:[#allocation3 + $0x100] sm:$0xff] %vm27, %v276
  %341 = vst.msk [vmem:[#allocation3 + $0x108] sm:$0xff] %vm27, %v277
  %342 = vst.msk [vmem:[#allocation3 + $0x110] sm:$0xff] %vm27, %v278
  %343 = vst.msk [vmem:[#allocation3 + $0x118] sm:$0xff] %vm27, %v279
  %344 = vst.msk [vmem:[#allocation3 + $0x120] sm:$0xff] %vm27, %v280
  %345 = vst.msk [vmem:[#allocation3 + $0x128] sm:$0xff] %vm27, %v281
  %346 = vst.msk [vmem:[#allocation3 + $0x130] sm:$0xff] %vm27, %v282
  %347 = vst.msk [vmem:[#allocation3 + $0x138] sm:$0xff] %vm27, %v283
  %348 = vst.msk [vmem:[#allocation3 + $0x140] sm:$0xff] %vm27, %v284
  %349 = vst.msk [vmem:[#allocation3 + $0x148] sm:$0xff] %vm27, %v285
  %350 = vst.msk [vmem:[#allocation3 + $0x150] sm:$0xff] %vm27, %v286
  %351 = vst.msk [vmem:[#allocation3 + $0x158] sm:$0xff] %vm27, %v287
  %352 = vst.msk [vmem:[#allocation3 + $0x160] sm:$0xff] %vm27, %v288
  %353 = vst.msk [vmem:[#allocation3 + $0x168] sm:$0xff] %vm27, %v289
  %354 = vst.msk [vmem:[#allocation3 + $0x170] sm:$0xff] %vm27, %v290
  %355 = vst.msk [vmem:[#allocation3 + $0x178] sm:$0xff] %vm27, %v291
  %356 = vst.msk [vmem:[#allocation3 + $0x180] sm:$0xff] %vm27, %v292
  %357 = vst.msk [vmem:[#allocation3 + $0x188] sm:$0xff] %vm27, %v293
  %358 = vst.msk [vmem:[#allocation3 + $0x190] sm:$0xff] %vm27, %v294
  %359 = vst.msk [vmem:[#allocation3 + $0x198] sm:$0xff] %vm27, %v295
  %360 = vst.msk [vmem:[#allocation3 + $0x1a0] sm:$0xff] %vm27, %v296
  %361 = vst.msk [vmem:[#allocation3 + $0x1a8] sm:$0xff] %vm27, %v297
  %362 = vst.msk [vmem:[#allocation3 + $0x1b0] sm:$0xff] %vm27, %v298
  %363 = vst.msk [vmem:[#allocation3 + $0x1b8] sm:$0xff] %vm27, %v299
  %364 = vst.msk [vmem:[#allocation3 + $0x1c0] sm:$0xff] %vm27, %v300
  %365 = vst.msk [vmem:[#allocation3 + $0x1c8] sm:$0xff] %vm27, %v301
  %366 = vst.msk [vmem:[#allocation3 + $0x1d0] sm:$0xff] %vm27, %v302
  %367 = vst.msk [vmem:[#allocation3 + $0x1d8] sm:$0xff] %vm27, %v303
  %368 = vst.msk [vmem:[#allocation3 + $0x1e0] sm:$0xff] %vm27, %v304
  %369 = vst.msk [vmem:[#allocation3 + $0x1e8] sm:$0xff] %vm27, %v305
  %370 = vst.msk [vmem:[#allocation3 + $0x1f0] sm:$0xff] %vm27, %v306
  %371 = vst.msk [vmem:[#allocation3 + $0x1f8] sm:$0xff] %vm27, %v307
  %v372 = vld [vmem:[#allocation2 + $0x1] sm:$0xff]
  %v373 = vld [vmem:[#allocation2 + $0x9] sm:$0xff]
  %v374 = vld [vmem:[#allocation2 + $0x19] sm:$0xff]
  %v375 = vld [vmem:[#allocation2 + $0x21] sm:$0xff]
  %v376 = vld [vmem:[#allocation2 + $0x31] sm:$0xff]
  %v377 = vld [vmem:[#allocation2 + $0x39] sm:$0xff]
  %v378 = vld [vmem:[#allocation2 + $0x49] sm:$0xff]
  %v379 = vld [vmem:[#allocation2 + $0x51] sm:$0xff]
  %v380 = vld [vmem:[#allocation2 + $0x61] sm:$0xff]
  %v381 = vld [vmem:[#allocation2 + $0x69] sm:$0xff]
  %v382 = vld [vmem:[#allocation2 + $0x79] sm:$0xff]
  %v383 = vld [vmem:[#allocation2 + $0x81] sm:$0xff]
  %v384 = vld [vmem:[#allocation2 + $0x91] sm:$0xff]
  %v385 = vld [vmem:[#allocation2 + $0x99] sm:$0xff]
  %v386 = vld [vmem:[#allocation2 + $0xa9] sm:$0xff]
  %v387 = vld [vmem:[#allocation2 + $0xb1] sm:$0xff]
  %v388 = vld [vmem:[#allocation2 + $0xc1] sm:$0xff]
  %v389 = vld [vmem:[#allocation2 + $0xc9] sm:$0xff]
  %v390 = vld [vmem:[#allocation2 + $0xd9] sm:$0xff]
  %v391 = vld [vmem:[#allocation2 + $0xe1] sm:$0xff]
  %v392 = vld [vmem:[#allocation2 + $0xf1] sm:$0xff]
  %v393 = vld [vmem:[#allocation2 + $0xf9] sm:$0xff]
  %v394 = vld [vmem:[#allocation2 + $0x109] sm:$0xff]
  %v395 = vld [vmem:[#allocation2 + $0x111] sm:$0xff]
  %v396 = vld [vmem:[#allocation2 + $0x121] sm:$0xff]
  %v397 = vld [vmem:[#allocation2 + $0x129] sm:$0xff]
  %v398 = vld [vmem:[#allocation2 + $0x139] sm:$0xff]
  %v399 = vld [vmem:[#allocation2 + $0x141] sm:$0xff]
  %v400 = vld [vmem:[#allocation2 + $0x151] sm:$0xff]
  %v401 = vld [vmem:[#allocation2 + $0x159] sm:$0xff]
  %v402 = vld [vmem:[#allocation2 + $0x169] sm:$0xff]
  %v403 = vld [vmem:[#allocation2 + $0x171] sm:$0xff]
  %v404 = vld [vmem:[#allocation2 + $0x1b1] sm:$0xff]
  %v405 = vld [vmem:[#allocation2 + $0x1b9] sm:$0xff]
  %v406 = vld [vmem:[#allocation2 + $0x1c9] sm:$0xff]
  %v407 = vld [vmem:[#allocation2 + $0x1d1] sm:$0xff]
  %v408 = vld [vmem:[#allocation2 + $0x1e1] sm:$0xff]
  %v409 = vld [vmem:[#allocation2 + $0x1e9] sm:$0xff]
  %v410 = vld [vmem:[#allocation2 + $0x1f9] sm:$0xff]
  %v411 = vld [vmem:[#allocation2 + $0x201] sm:$0xff]
  %v412 = vld [vmem:[#allocation2 + $0x211] sm:$0xff]
  %v413 = vld [vmem:[#allocation2 + $0x219] sm:$0xff]
  %v414 = vld [vmem:[#allocation2 + $0x229] sm:$0xff]
  %v415 = vld [vmem:[#allocation2 + $0x231] sm:$0xff]
  %v416 = vld [vmem:[#allocation2 + $0x241] sm:$0xff]
  %v417 = vld [vmem:[#allocation2 + $0x249] sm:$0xff]
  %v418 = vld [vmem:[#allocation2 + $0x259] sm:$0xff]
  %v419 = vld [vmem:[#allocation2 + $0x261] sm:$0xff]
  %v420 = vld [vmem:[#allocation2 + $0x271] sm:$0xff]
  %v421 = vld [vmem:[#allocation2 + $0x279] sm:$0xff]
  %v422 = vld [vmem:[#allocation2 + $0x289] sm:$0xff]
  %v423 = vld [vmem:[#allocation2 + $0x291] sm:$0xff]
  %v424 = vld [vmem:[#allocation2 + $0x2a1] sm:$0xff]
  %v425 = vld [vmem:[#allocation2 + $0x2a9] sm:$0xff]
  %v426 = vld [vmem:[#allocation2 + $0x2b9] sm:$0xff]
  %v427 = vld [vmem:[#allocation2 + $0x2c1] sm:$0xff]
  %v428 = vld [vmem:[#allocation2 + $0x2d1] sm:$0xff]
  %v429 = vld [vmem:[#allocation2 + $0x2d9] sm:$0xff]
  %v430 = vld [vmem:[#allocation2 + $0x2e9] sm:$0xff]
  %v431 = vld [vmem:[#allocation2 + $0x2f1] sm:$0xff]
  %v432 = vld [vmem:[#allocation2 + $0x301] sm:$0xff]
  %v433 = vld [vmem:[#allocation2 + $0x309] sm:$0xff]
  %v434 = vld [vmem:[#allocation2 + $0x319] sm:$0xff]
  %v435 = vld [vmem:[#allocation2 + $0x321] sm:$0xff]
  %500 = vrot.lane.b32.xlu0 %v372, 4
  %v501 = vpop.permute.xlu0 %500
  %502 = vrot.lane.b32.xlu0 %v373, 4
  %v503 = vpop.permute.xlu0 %502
  %504 = vrot.lane.b32.xlu0 %v374, 4
  %v505 = vpop.permute.xlu0 %504
  %506 = vrot.lane.b32.xlu0 %v375, 4
  %v507 = vpop.permute.xlu0 %506
  %508 = vrot.lane.b32.xlu0 %v376, 4
  %v509 = vpop.permute.xlu0 %508
  %510 = vrot.lane.b32.xlu0 %v377, 4
  %v511 = vpop.permute.xlu0 %510
  %512 = vrot.lane.b32.xlu0 %v378, 4
  %v513 = vpop.permute.xlu0 %512
  %514 = vrot.lane.b32.xlu0 %v379, 4
  %v515 = vpop.permute.xlu0 %514
  %516 = vrot.lane.b32.xlu0 %v380, 4
  %v517 = vpop.permute.xlu0 %516
  %518 = vrot.lane.b32.xlu0 %v381, 4
  %v519 = vpop.permute.xlu0 %518
  %520 = vrot.lane.b32.xlu0 %v382, 4
  %v521 = vpop.permute.xlu0 %520
  %522 = vrot.lane.b32.xlu0 %v383, 4
  %v523 = vpop.permute.xlu0 %522
  %524 = vrot.lane.b32.xlu0 %v384, 4
  %v525 = vpop.permute.xlu0 %524
  %526 = vrot.lane.b32.xlu0 %v385, 4
  %v527 = vpop.permute.xlu0 %526
  %528 = vrot.lane.b32.xlu0 %v386, 4
  %v529 = vpop.permute.xlu0 %528
  %530 = vrot.lane.b32.xlu0 %v387, 4
  %v531 = vpop.permute.xlu0 %530
  %532 = vrot.lane.b32.xlu0 %v388, 4
  %v533 = vpop.permute.xlu0 %532
  %534 = vrot.lane.b32.xlu0 %v389, 4
  %v535 = vpop.permute.xlu0 %534
  %536 = vrot.lane.b32.xlu0 %v390, 4
  %v537 = vpop.permute.xlu0 %536
  %538 = vrot.lane.b32.xlu0 %v391, 4
  %v539 = vpop.permute.xlu0 %538
  %540 = vrot.lane.b32.xlu0 %v392, 4
  %v541 = vpop.permute.xlu0 %540
  %542 = vrot.lane.b32.xlu0 %v393, 4
  %v543 = vpop.permute.xlu0 %542
  %544 = vrot.lane.b32.xlu0 %v394, 4
  %v545 = vpop.permute.xlu0 %544
  %546 = vrot.lane.b32.xlu0 %v395, 4
  %v547 = vpop.permute.xlu0 %546
  %548 = vrot.lane.b32.xlu0 %v396, 4
  %v549 = vpop.permute.xlu0 %548
  %550 = vrot.lane.b32.xlu0 %v397, 4
  %v551 = vpop.permute.xlu0 %550
  %552 = vrot.lane.b32.xlu0 %v398, 4
  %v553 = vpop.permute.xlu0 %552
  %554 = vrot.lane.b32.xlu0 %v399, 4
  %v555 = vpop.permute.xlu0 %554
  %556 = vrot.lane.b32.xlu0 %v400, 4
  %v557 = vpop.permute.xlu0 %556
  %558 = vrot.lane.b32.xlu0 %v401, 4
  %v559 = vpop.permute.xlu0 %558
  %560 = vrot.lane.b32.xlu0 %v402, 4
  %v561 = vpop.permute.xlu0 %560
  %562 = vrot.lane.b32.xlu0 %v403, 4
  %v563 = vpop.permute.xlu0 %562
  %564 = vrot.lane.b32.xlu0 %v404, 4
  %v565 = vpop.permute.xlu0 %564
  %566 = vrot.lane.b32.xlu0 %v405, 4
  %v567 = vpop.permute.xlu0 %566
  %568 = vrot.lane.b32.xlu0 %v406, 4
  %v569 = vpop.permute.xlu0 %568
  %570 = vrot.lane.b32.xlu0 %v407, 4
  %v571 = vpop.permute.xlu0 %570
  %572 = vrot.lane.b32.xlu0 %v408, 4
  %v573 = vpop.permute.xlu0 %572
  %574 = vrot.lane.b32.xlu0 %v409, 4
  %v575 = vpop.permute.xlu0 %574
  %576 = vrot.lane.b32.xlu0 %v410, 4
  %v577 = vpop.permute.xlu0 %576
  %578 = vrot.lane.b32.xlu0 %v411, 4
  %v579 = vpop.permute.xlu0 %578
  %580 = vrot.lane.b32.xlu0 %v412, 4
  %v581 = vpop.permute.xlu0 %580
  %582 = vrot.lane.b32.xlu0 %v413, 4
  %v583 = vpop.permute.xlu0 %582
  %584 = vrot.lane.b32.xlu0 %v414, 4
  %v585 = vpop.permute.xlu0 %584
  %586 = vrot.lane.b32.xlu0 %v415, 4
  %v587 = vpop.permute.xlu0 %586
  %588 = vrot.lane.b32.xlu0 %v416, 4
  %v589 = vpop.permute.xlu0 %588
  %590 = vrot.lane.b32.xlu0 %v417, 4
  %v591 = vpop.permute.xlu0 %590
  %592 = vrot.lane.b32.xlu0 %v418, 4
  %v593 = vpop.permute.xlu0 %592
  %594 = vrot.lane.b32.xlu0 %v419, 4
  %v595 = vpop.permute.xlu0 %594
  %596 = vrot.lane.b32.xlu0 %v420, 4
  %v597 = vpop.permute.xlu0 %596
  %598 = vrot.lane.b32.xlu0 %v421, 4
  %v599 = vpop.permute.xlu0 %598
  %600 = vrot.lane.b32.xlu0 %v422, 4
  %v601 = vpop.permute.xlu0 %600
  %602 = vrot.lane.b32.xlu0 %v423, 4
  %v603 = vpop.permute.xlu0 %602
  %604 = vrot.lane.b32.xlu0 %v424, 4
  %v605 = vpop.permute.xlu0 %604
  %606 = vrot.lane.b32.xlu0 %v425, 4
  %v607 = vpop.permute.xlu0 %606
  %608 = vrot.lane.b32.xlu0 %v426, 4
  %v609 = vpop.permute.xlu0 %608
  %610 = vrot.lane.b32.xlu0 %v427, 4
  %v611 = vpop.permute.xlu0 %610
  %612 = vrot.lane.b32.xlu0 %v428, 4
  %v613 = vpop.permute.xlu0 %612
  %614 = vrot.lane.b32.xlu0 %v429, 4
  %v615 = vpop.permute.xlu0 %614
  %616 = vrot.lane.b32.xlu0 %v430, 4
  %v617 = vpop.permute.xlu0 %616
  %618 = vrot.lane.b32.xlu0 %v431, 4
  %v619 = vpop.permute.xlu0 %618
  %620 = vrot.lane.b32.xlu0 %v432, 4
  %v621 = vpop.permute.xlu0 %620
  %622 = vrot.lane.b32.xlu0 %v433, 4
  %v623 = vpop.permute.xlu0 %622
  %624 = vrot.lane.b32.xlu0 %v434, 4
  %v625 = vpop.permute.xlu0 %624
  %626 = vrot.lane.b32.xlu0 %v435, 4
  %v627 = vpop.permute.xlu0 %626
  %vm692 = vcmask 64544
  %693 = vst.msk [vmem:[#allocation3] sm:$0xff] %vm692, %v501
  %694 = vst.msk [vmem:[#allocation3 + $0x8] sm:$0xff] %vm692, %v503
  %695 = vst.msk [vmem:[#allocation3 + $0x10] sm:$0xff] %vm692, %v505
  %696 = vst.msk [vmem:[#allocation3 + $0x18] sm:$0xff] %vm692, %v507
  %697 = vst.msk [vmem:[#allocation3 + $0x20] sm:$0xff] %vm692, %v509
  %698 = vst.msk [vmem:[#allocation3 + $0x28] sm:$0xff] %vm692, %v511
  %699 = vst.msk [vmem:[#allocation3 + $0x30] sm:$0xff] %vm692, %v513
  %700 = vst.msk [vmem:[#allocation3 + $0x38] sm:$0xff] %vm692, %v515
  %701 = vst.msk [vmem:[#allocation3 + $0x40] sm:$0xff] %vm692, %v517
  %702 = vst.msk [vmem:[#allocation3 + $0x48] sm:$0xff] %vm692, %v519
  %703 = vst.msk [vmem:[#allocation3 + $0x50] sm:$0xff] %vm692, %v521
  %704 = vst.msk [vmem:[#allocation3 + $0x58] sm:$0xff] %vm692, %v523
  %705 = vst.msk [vmem:[#allocation3 + $0x60] sm:$0xff] %vm692, %v525
  %706 = vst.msk [vmem:[#allocation3 + $0x68] sm:$0xff] %vm692, %v527
  %707 = vst.msk [vmem:[#allocation3 + $0x70] sm:$0xff] %vm692, %v529
  %708 = vst.msk [vmem:[#allocation3 + $0x78] sm:$0xff] %vm692, %v531
  %709 = vst.msk [vmem:[#allocation3 + $0x80] sm:$0xff] %vm692, %v533
  %710 = vst.msk [vmem:[#allocation3 + $0x88] sm:$0xff] %vm692, %v535
  %711 = vst.msk [vmem:[#allocation3 + $0x90] sm:$0xff] %vm692, %v537
  %712 = vst.msk [vmem:[#allocation3 + $0x98] sm:$0xff] %vm692, %v539
  %713 = vst.msk [vmem:[#allocation3 + $0xa0] sm:$0xff] %vm692, %v541
  %714 = vst.msk [vmem:[#allocation3 + $0xa8] sm:$0xff] %vm692, %v543
  %715 = vst.msk [vmem:[#allocation3 + $0xb0] sm:$0xff] %vm692, %v545
  %716 = vst.msk [vmem:[#allocation3 + $0xb8] sm:$0xff] %vm692, %v547
  %717 = vst.msk [vmem:[#allocation3 + $0xc0] sm:$0xff] %vm692, %v549
  %718 = vst.msk [vmem:[#allocation3 + $0xc8] sm:$0xff] %vm692, %v551
  %719 = vst.msk [vmem:[#allocation3 + $0xd0] sm:$0xff] %vm692, %v553
  %720 = vst.msk [vmem:[#allocation3 + $0xd8] sm:$0xff] %vm692, %v555
  %721 = vst.msk [vmem:[#allocation3 + $0xe0] sm:$0xff] %vm692, %v557
  %722 = vst.msk [vmem:[#allocation3 + $0xe8] sm:$0xff] %vm692, %v559
  %723 = vst.msk [vmem:[#allocation3 + $0xf0] sm:$0xff] %vm692, %v561
  %724 = vst.msk [vmem:[#allocation3 + $0xf8] sm:$0xff] %vm692, %v563
  %725 = vst.msk [vmem:[#allocation3 + $0x100] sm:$0xff] %vm692, %v565
  %726 = vst.msk [vmem:[#allocation3 + $0x108] sm:$0xff] %vm692, %v567
  %727 = vst.msk [vmem:[#allocation3 + $0x110] sm:$0xff] %vm692, %v569
  %728 = vst.msk [vmem:[#allocation3 + $0x118] sm:$0xff] %vm692, %v571
  %729 = vst.msk [vmem:[#allocation3 + $0x120] sm:$0xff] %vm692, %v573
  %730 = vst.msk [vmem:[#allocation3 + $0x128] sm:$0xff] %vm692, %v575
  %731 = vst.msk [vmem:[#allocation3 + $0x130] sm:$0xff] %vm692, %v577
  %732 = vst.msk [vmem:[#allocation3 + $0x138] sm:$0xff] %vm692, %v579
  %733 = vst.msk [vmem:[#allocation3 + $0x140] sm:$0xff] %vm692, %v581
  %734 = vst.msk [vmem:[#allocation3 + $0x148] sm:$0xff] %vm692, %v583
  %735 = vst.msk [vmem:[#allocation3 + $0x150] sm:$0xff] %vm692, %v585
  %736 = vst.msk [vmem:[#allocation3 + $0x158] sm:$0xff] %vm692, %v587
  %737 = vst.msk [vmem:[#allocation3 + $0x160] sm:$0xff] %vm692, %v589
  %738 = vst.msk [vmem:[#allocation3 + $0x168] sm:$0xff] %vm692, %v591
  %739 = vst.msk [vmem:[#allocation3 + $0x170] sm:$0xff] %vm692, %v593
  %740 = vst.msk [vmem:[#allocation3 + $0x178] sm:$0xff] %vm692, %v595
  %741 = vst.msk [vmem:[#allocation3 + $0x180] sm:$0xff] %vm692, %v597
  %742 = vst.msk [vmem:[#allocation3 + $0x188] sm:$0xff] %vm692, %v599
  %743 = vst.msk [vmem:[#allocation3 + $0x190] sm:$0xff] %vm692, %v601
  %744 = vst.msk [vmem:[#allocation3 + $0x198] sm:$0xff] %vm692, %v603
  %745 = vst.msk [vmem:[#allocation3 + $0x1a0] sm:$0xff] %vm692, %v605
  %746 = vst.msk [vmem:[#allocation3 + $0x1a8] sm:$0xff] %vm692, %v607
  %747 = vst.msk [vmem:[#allocation3 + $0x1b0] sm:$0xff] %vm692, %v609
  %748 = vst.msk [vmem:[#allocation3 + $0x1b8] sm:$0xff] %vm692, %v611
  %749 = vst.msk [vmem:[#allocation3 + $0x1c0] sm:$0xff] %vm692, %v613
  %750 = vst.msk [vmem:[#allocation3 + $0x1c8] sm:$0xff] %vm692, %v615
  %751 = vst.msk [vmem:[#allocation3 + $0x1d0] sm:$0xff] %vm692, %v617
  %752 = vst.msk [vmem:[#allocation3 + $0x1d8] sm:$0xff] %vm692, %v619
  %753 = vst.msk [vmem:[#allocation3 + $0x1e0] sm:$0xff] %vm692, %v621
  %754 = vst.msk [vmem:[#allocation3 + $0x1e8] sm:$0xff] %vm692, %v623
  %755 = vst.msk [vmem:[#allocation3 + $0x1f0] sm:$0xff] %vm692, %v625
  %756 = vst.msk [vmem:[#allocation3 + $0x1f8] sm:$0xff] %vm692, %v627
  %v757 = vld [vmem:[#allocation2 + $0x2] sm:$0xff]
  %v758 = vld [vmem:[#allocation2 + $0xa] sm:$0xff]
  %v759 = vld [vmem:[#allocation2 + $0x1a] sm:$0xff]
  %v760 = vld [vmem:[#allocation2 + $0x22] sm:$0xff]
  %v761 = vld [vmem:[#allocation2 + $0x32] sm:$0xff]
  %v762 = vld [vmem:[#allocation2 + $0x3a] sm:$0xff]
  %v763 = vld [vmem:[#allocation2 + $0x4a] sm:$0xff]
  %v764 = vld [vmem:[#allocation2 + $0x52] sm:$0xff]
  %v765 = vld [vmem:[#allocation2 + $0x62] sm:$0xff]
  %v766 = vld [vmem:[#allocation2 + $0x6a] sm:$0xff]
  %v767 = vld [vmem:[#allocation2 + $0x7a] sm:$0xff]
  %v768 = vld [vmem:[#allocation2 + $0x82] sm:$0xff]
  %v769 = vld [vmem:[#allocation2 + $0x92] sm:$0xff]
  %v770 = vld [vmem:[#allocation2 + $0x9a] sm:$0xff]
  %v771 = vld [vmem:[#allocation2 + $0xaa] sm:$0xff]
  %v772 = vld [vmem:[#allocation2 + $0xb2] sm:$0xff]
  %v773 = vld [vmem:[#allocation2 + $0xc2] sm:$0xff]
  %v774 = vld [vmem:[#allocation2 + $0xca] sm:$0xff]
  %v775 = vld [vmem:[#allocation2 + $0xda] sm:$0xff]
  %v776 = vld [vmem:[#allocation2 + $0xe2] sm:$0xff]
  %v777 = vld [vmem:[#allocation2 + $0xf2] sm:$0xff]
  %v778 = vld [vmem:[#allocation2 + $0xfa] sm:$0xff]
  %v779 = vld [vmem:[#allocation2 + $0x10a] sm:$0xff]
  %v780 = vld [vmem:[#allocation2 + $0x112] sm:$0xff]
  %v781 = vld [vmem:[#allocation2 + $0x122] sm:$0xff]
  %v782 = vld [vmem:[#allocation2 + $0x12a] sm:$0xff]
  %v783 = vld [vmem:[#allocation2 + $0x13a] sm:$0xff]
  %v784 = vld [vmem:[#allocation2 + $0x142] sm:$0xff]
  %v785 = vld [vmem:[#allocation2 + $0x152] sm:$0xff]
  %v786 = vld [vmem:[#allocation2 + $0x15a] sm:$0xff]
  %v787 = vld [vmem:[#allocation2 + $0x16a] sm:$0xff]
  %v788 = vld [vmem:[#allocation2 + $0x172] sm:$0xff]
  %v789 = vld [vmem:[#allocation2 + $0x1b2] sm:$0xff]
  %v790 = vld [vmem:[#allocation2 + $0x1ba] sm:$0xff]
  %v791 = vld [vmem:[#allocation2 + $0x1ca] sm:$0xff]
  %v792 = vld [vmem:[#allocation2 + $0x1d2] sm:$0xff]
  %v793 = vld [vmem:[#allocation2 + $0x1e2] sm:$0xff]
  %v794 = vld [vmem:[#allocation2 + $0x1ea] sm:$0xff]
  %v795 = vld [vmem:[#allocation2 + $0x1fa] sm:$0xff]
  %v796 = vld [vmem:[#allocation2 + $0x202] sm:$0xff]
  %v797 = vld [vmem:[#allocation2 + $0x212] sm:$0xff]
  %v798 = vld [vmem:[#allocation2 + $0x21a] sm:$0xff]
  %v799 = vld [vmem:[#allocation2 + $0x22a] sm:$0xff]
  %v800 = vld [vmem:[#allocation2 + $0x232] sm:$0xff]
  %v801 = vld [vmem:[#allocation2 + $0x242] sm:$0xff]
  %v802 = vld [vmem:[#allocation2 + $0x24a] sm:$0xff]
  %v803 = vld [vmem:[#allocation2 + $0x25a] sm:$0xff]
  %v804 = vld [vmem:[#allocation2 + $0x262] sm:$0xff]
  %v805 = vld [vmem:[#allocation2 + $0x272] sm:$0xff]
  %v806 = vld [vmem:[#allocation2 + $0x27a] sm:$0xff]
  %v807 = vld [vmem:[#allocation2 + $0x28a] sm:$0xff]
  %v808 = vld [vmem:[#allocation2 + $0x292] sm:$0xff]
  %v809 = vld [vmem:[#allocation2 + $0x2a2] sm:$0xff]
  %v810 = vld [vmem:[#allocation2 + $0x2aa] sm:$0xff]
  %v811 = vld [vmem:[#allocation2 + $0x2ba] sm:$0xff]
  %v812 = vld [vmem:[#allocation2 + $0x2c2] sm:$0xff]
  %v813 = vld [vmem:[#allocation2 + $0x2d2] sm:$0xff]
  %v814 = vld [vmem:[#allocation2 + $0x2da] sm:$0xff]
  %v815 = vld [vmem:[#allocation2 + $0x2ea] sm:$0xff]
  %v816 = vld [vmem:[#allocation2 + $0x2f2] sm:$0xff]
  %v817 = vld [vmem:[#allocation2 + $0x302] sm:$0xff]
  %v818 = vld [vmem:[#allocation2 + $0x30a] sm:$0xff]
  %v819 = vld [vmem:[#allocation2 + $0x31a] sm:$0xff]
  %v820 = vld [vmem:[#allocation2 + $0x322] sm:$0xff]
  %885 = vrot.lane.b32.xlu0 %v757, 8
  %v886 = vpop.permute.xlu0 %885
  %887 = vrot.lane.b32.xlu0 %v758, 8
  %v888 = vpop.permute.xlu0 %887
  %889 = vrot.lane.b32.xlu0 %v759, 8
  %v890 = vpop.permute.xlu0 %889
  %891 = vrot.lane.b32.xlu0 %v760, 8
  %v892 = vpop.permute.xlu0 %891
  %893 = vrot.lane.b32.xlu0 %v761, 8
  %v894 = vpop.permute.xlu0 %893
  %895 = vrot.lane.b32.xlu0 %v762, 8
  %v896 = vpop.permute.xlu0 %895
  %897 = vrot.lane.b32.xlu0 %v763, 8
  %v898 = vpop.permute.xlu0 %897
  %899 = vrot.lane.b32.xlu0 %v764, 8
  %v900 = vpop.permute.xlu0 %899
  %901 = vrot.lane.b32.xlu0 %v765, 8
  %v902 = vpop.permute.xlu0 %901
  %903 = vrot.lane.b32.xlu0 %v766, 8
  %v904 = vpop.permute.xlu0 %903
  %905 = vrot.lane.b32.xlu0 %v767, 8
  %v906 = vpop.permute.xlu0 %905
  %907 = vrot.lane.b32.xlu0 %v768, 8
  %v908 = vpop.permute.xlu0 %907
  %909 = vrot.lane.b32.xlu0 %v769, 8
  %v910 = vpop.permute.xlu0 %909
  %911 = vrot.lane.b32.xlu0 %v770, 8
  %v912 = vpop.permute.xlu0 %911
  %913 = vrot.lane.b32.xlu0 %v771, 8
  %v914 = vpop.permute.xlu0 %913
  %915 = vrot.lane.b32.xlu0 %v772, 8
  %v916 = vpop.permute.xlu0 %915
  %917 = vrot.lane.b32.xlu0 %v773, 8
  %v918 = vpop.permute.xlu0 %917
  %919 = vrot.lane.b32.xlu0 %v774, 8
  %v920 = vpop.permute.xlu0 %919
  %921 = vrot.lane.b32.xlu0 %v775, 8
  %v922 = vpop.permute.xlu0 %921
  %923 = vrot.lane.b32.xlu0 %v776, 8
  %v924 = vpop.permute.xlu0 %923
  %925 = vrot.lane.b32.xlu0 %v777, 8
  %v926 = vpop.permute.xlu0 %925
  %927 = vrot.lane.b32.xlu0 %v778, 8
  %v928 = vpop.permute.xlu0 %927
  %929 = vrot.lane.b32.xlu0 %v779, 8
  %v930 = vpop.permute.xlu0 %929
  %931 = vrot.lane.b32.xlu0 %v780, 8
  %v932 = vpop.permute.xlu0 %931
  %933 = vrot.lane.b32.xlu0 %v781, 8
  %v934 = vpop.permute.xlu0 %933
  %935 = vrot.lane.b32.xlu0 %v782, 8
  %v936 = vpop.permute.xlu0 %935
  %937 = vrot.lane.b32.xlu0 %v783, 8
  %v938 = vpop.permute.xlu0 %937
  %939 = vrot.lane.b32.xlu0 %v784, 8
  %v940 = vpop.permute.xlu0 %939
  %941 = vrot.lane.b32.xlu0 %v785, 8
  %v942 = vpop.permute.xlu0 %941
  %943 = vrot.lane.b32.xlu0 %v786, 8
  %v944 = vpop.permute.xlu0 %943
  %945 = vrot.lane.b32.xlu0 %v787, 8
  %v946 = vpop.permute.xlu0 %945
  %947 = vrot.lane.b32.xlu0 %v788, 8
  %v948 = vpop.permute.xlu0 %947
  %949 = vrot.lane.b32.xlu0 %v789, 8
  %v950 = vpop.permute.xlu0 %949
  %951 = vrot.lane.b32.xlu0 %v790, 8
  %v952 = vpop.permute.xlu0 %951
  %953 = vrot.lane.b32.xlu0 %v791, 8
  %v954 = vpop.permute.xlu0 %953
  %955 = vrot.lane.b32.xlu0 %v792, 8
  %v956 = vpop.permute.xlu0 %955
  %957 = vrot.lane.b32.xlu0 %v793, 8
  %v958 = vpop.permute.xlu0 %957
  %959 = vrot.lane.b32.xlu0 %v794, 8
  %v960 = vpop.permute.xlu0 %959
  %961 = vrot.lane.b32.xlu0 %v795, 8
  %v962 = vpop.permute.xlu0 %961
  %963 = vrot.lane.b32.xlu0 %v796, 8
  %v964 = vpop.permute.xlu0 %963
  %965 = vrot.lane.b32.xlu0 %v797, 8
  %v966 = vpop.permute.xlu0 %965
  %967 = vrot.lane.b32.xlu0 %v798, 8
  %v968 = vpop.permute.xlu0 %967
  %969 = vrot.lane.b32.xlu0 %v799, 8
  %v970 = vpop.permute.xlu0 %969
  %971 = vrot.lane.b32.xlu0 %v800, 8
  %v972 = vpop.permute.xlu0 %971
  %973 = vrot.lane.b32.xlu0 %v801, 8
  %v974 = vpop.permute.xlu0 %973
  %975 = vrot.lane.b32.xlu0 %v802, 8
  %v976 = vpop.permute.xlu0 %975
  %977 = vrot.lane.b32.xlu0 %v803, 8
  %v978 = vpop.permute.xlu0 %977
  %979 = vrot.lane.b32.xlu0 %v804, 8
  %v980 = vpop.permute.xlu0 %979
  %981 = vrot.lane.b32.xlu0 %v805, 8
  %v982 = vpop.permute.xlu0 %981
  %983 = vrot.lane.b32.xlu0 %v806, 8
  %v984 = vpop.permute.xlu0 %983
  %985 = vrot.lane.b32.xlu0 %v807, 8
  %v986 = vpop.permute.xlu0 %985
  %987 = vrot.lane.b32.xlu0 %v808, 8
  %v988 = vpop.permute.xlu0 %987
  %989 = vrot.lane.b32.xlu0 %v809, 8
  %v990 = vpop.permute.xlu0 %989
  %991 = vrot.lane.b32.xlu0 %v810, 8
  %v992 = vpop.permute.xlu0 %991
  %993 = vrot.lane.b32.xlu0 %v811, 8
  %v994 = vpop.permute.xlu0 %993
  %995 = vrot.lane.b32.xlu0 %v812, 8
  %v996 = vpop.permute.xlu0 %995
  %997 = vrot.lane.b32.xlu0 %v813, 8
  %v998 = vpop.permute.xlu0 %997
  %999 = vrot.lane.b32.xlu0 %v814, 8
  %v1000 = vpop.permute.xlu0 %999
  %1001 = vrot.lane.b32.xlu0 %v815, 8
  %v1002 = vpop.permute.xlu0 %1001
  %1003 = vrot.lane.b32.xlu0 %v816, 8
  %v1004 = vpop.permute.xlu0 %1003
  %1005 = vrot.lane.b32.xlu0 %v817, 8
  %v1006 = vpop.permute.xlu0 %1005
  %1007 = vrot.lane.b32.xlu0 %v818, 8
  %v1008 = vpop.permute.xlu0 %1007
  %1009 = vrot.lane.b32.xlu0 %v819, 8
  %v1010 = vpop.permute.xlu0 %1009
  %1011 = vrot.lane.b32.xlu0 %v820, 8
  %v1012 = vpop.permute.xlu0 %1011
  %vm1077 = vcmask 97344
  %1078 = vst.msk [vmem:[#allocation3] sm:$0xff] %vm1077, %v886
  %1079 = vst.msk [vmem:[#allocation3 + $0x8] sm:$0xff] %vm1077, %v888
  %1080 = vst.msk [vmem:[#allocation3 + $0x10] sm:$0xff] %vm1077, %v890
  %1081 = vst.msk [vmem:[#allocation3 + $0x18] sm:$0xff] %vm1077, %v892
  %1082 = vst.msk [vmem:[#allocation3 + $0x20] sm:$0xff] %vm1077, %v894
  %1083 = vst.msk [vmem:[#allocation3 + $0x28] sm:$0xff] %vm1077, %v896
  %1084 = vst.msk [vmem:[#allocation3 + $0x30] sm:$0xff] %vm1077, %v898
  %1085 = vst.msk [vmem:[#allocation3 + $0x38] sm:$0xff] %vm1077, %v900
  %1086 = vst.msk [vmem:[#allocation3 + $0x40] sm:$0xff] %vm1077, %v902
  %1087 = vst.msk [vmem:[#allocation3 + $0x48] sm:$0xff] %vm1077, %v904
  %1088 = vst.msk [vmem:[#allocation3 + $0x50] sm:$0xff] %vm1077, %v906
  %1089 = vst.msk [vmem:[#allocation3 + $0x58] sm:$0xff] %vm1077, %v908
  %1090 = vst.msk [vmem:[#allocation3 + $0x60] sm:$0xff] %vm1077, %v910
  %1091 = vst.msk [vmem:[#allocation3 + $0x68] sm:$0xff] %vm1077, %v912
  %1092 = vst.msk [vmem:[#allocation3 + $0x70] sm:$0xff] %vm1077, %v914
  %1093 = vst.msk [vmem:[#allocation3 + $0x78] sm:$0xff] %vm1077, %v916
  %1094 = vst.msk [vmem:[#allocation3 + $0x80] sm:$0xff] %vm1077, %v918
  %1095 = vst.msk [vmem:[#allocation3 + $0x88] sm:$0xff] %vm1077, %v920
  %1096 = vst.msk [vmem:[#allocation3 + $0x90] sm:$0xff] %vm1077, %v922
  %1097 = vst.msk [vmem:[#allocation3 + $0x98] sm:$0xff] %vm1077, %v924
  %1098 = vst.msk [vmem:[#allocation3 + $0xa0] sm:$0xff] %vm1077, %v926
  %1099 = vst.msk [vmem:[#allocation3 + $0xa8] sm:$0xff] %vm1077, %v928
  %1100 = vst.msk [vmem:[#allocation3 + $0xb0] sm:$0xff] %vm1077, %v930
  %1101 = vst.msk [vmem:[#allocation3 + $0xb8] sm:$0xff] %vm1077, %v932
  %1102 = vst.msk [vmem:[#allocation3 + $0xc0] sm:$0xff] %vm1077, %v934
  %1103 = vst.msk [vmem:[#allocation3 + $0xc8] sm:$0xff] %vm1077, %v936
  %1104 = vst.msk [vmem:[#allocation3 + $0xd0] sm:$0xff] %vm1077, %v938
  %1105 = vst.msk [vmem:[#allocation3 + $0xd8] sm:$0xff] %vm1077, %v940
  %1106 = vst.msk [vmem:[#allocation3 + $0xe0] sm:$0xff] %vm1077, %v942
  %1107 = vst.msk [vmem:[#allocation3 + $0xe8] sm:$0xff] %vm1077, %v944
  %1108 = vst.msk [vmem:[#allocation3 + $0xf0] sm:$0xff] %vm1077, %v946
  %1109 = vst.msk [vmem:[#allocation3 + $0xf8] sm:$0xff] %vm1077, %v948
  %1110 = vst.msk [vmem:[#allocation3 + $0x100] sm:$0xff] %vm1077, %v950
  %1111 = vst.msk [vmem:[#allocation3 + $0x108] sm:$0xff] %vm1077, %v952
  %1112 = vst.msk [vmem:[#allocation3 + $0x110] sm:$0xff] %vm1077, %v954
  %1113 = vst.msk [vmem:[#allocation3 + $0x118] sm:$0xff] %vm1077, %v956
  %1114 = vst.msk [vmem:[#allocation3 + $0x120] sm:$0xff] %vm1077, %v958
  %1115 = vst.msk [vmem:[#allocation3 + $0x128] sm:$0xff] %vm1077, %v960
  %1116 = vst.msk [vmem:[#allocation3 + $0x130] sm:$0xff] %vm1077, %v962
  %1117 = vst.msk [vmem:[#allocation3 + $0x138] sm:$0xff] %vm1077, %v964
  %1118 = vst.msk [vmem:[#allocation3 + $0x140] sm:$0xff] %vm1077, %v966
  %1119 = vst.msk [vmem:[#allocation3 + $0x148] sm:$0xff] %vm1077, %v968
  %1120 = vst.msk [vmem:[#allocation3 + $0x150] sm:$0xff] %vm1077, %v970
  %1121 = vst.msk [vmem:[#allocation3 + $0x158] sm:$0xff] %vm1077, %v972
  %1122 = vst.msk [vmem:[#allocation3 + $0x160] sm:$0xff] %vm1077, %v974
  %1123 = vst.msk [vmem:[#allocation3 + $0x168] sm:$0xff] %vm1077, %v976
  %1124 = vst.msk [vmem:[#allocation3 + $0x170] sm:$0xff] %vm1077, %v978
  %1125 = vst.msk [vmem:[#allocation3 + $0x178] sm:$0xff] %vm1077, %v980
  %1126 = vst.msk [vmem:[#allocation3 + $0x180] sm:$0xff] %vm1077, %v982
  %1127 = vst.msk [vmem:[#allocation3 + $0x188] sm:$0xff] %vm1077, %v984
  %1128 = vst.msk [vmem:[#allocation3 + $0x190] sm:$0xff] %vm1077, %v986
  %1129 = vst.msk [vmem:[#allocation3 + $0x198] sm:$0xff] %vm1077, %v988
  %1130 = vst.msk [vmem:[#allocation3 + $0x1a0] sm:$0xff] %vm1077, %v990
  %1131 = vst.msk [vmem:[#allocation3 + $0x1a8] sm:$0xff] %vm1077, %v992
  %1132 = vst.msk [vmem:[#allocation3 + $0x1b0] sm:$0xff] %vm1077, %v994
  %1133 = vst.msk [vmem:[#allocation3 + $0x1b8] sm:$0xff] %vm1077, %v996
  %1134 = vst.msk [vmem:[#allocation3 + $0x1c0] sm:$0xff] %vm1077, %v998
  %1135 = vst.msk [vmem:[#allocation3 + $0x1c8] sm:$0xff] %vm1077, %v1000
  %1136 = vst.msk [vmem:[#allocation3 + $0x1d0] sm:$0xff] %vm1077, %v1002
  %1137 = vst.msk [vmem:[#allocation3 + $0x1d8] sm:$0xff] %vm1077, %v1004
  %1138 = vst.msk [vmem:[#allocation3 + $0x1e0] sm:$0xff] %vm1077, %v1006
  %1139 = vst.msk [vmem:[#allocation3 + $0x1e8] sm:$0xff] %vm1077, %v1008
  %1140 = vst.msk [vmem:[#allocation3 + $0x1f0] sm:$0xff] %vm1077, %v1010
  %1141 = vst.msk [vmem:[#allocation3 + $0x1f8] sm:$0xff] %vm1077, %v1012
  %v1142 = vld [vmem:[%s179] sm:$0xff]
  %v1143 = vld [vmem:[%s179 + $0x8] sm:$0xff]
  %v1144 = vld [vmem:[%s179 + $0x18] sm:$0xff]
  %v1145 = vld [vmem:[%s179 + $0x20] sm:$0xff]
  %v1146 = vld [vmem:[%s179 + $0x30] sm:$0xff]
  %v1147 = vld [vmem:[%s179 + $0x38] sm:$0xff]
  %v1148 = vld [vmem:[%s179 + $0x48] sm:$0xff]
  %v1149 = vld [vmem:[%s179 + $0x50] sm:$0xff]
  %v1150 = vld [vmem:[%s179 + $0x60] sm:$0xff]
  %v1151 = vld [vmem:[%s179 + $0x68] sm:$0xff]
  %v1152 = vld [vmem:[%s179 + $0x78] sm:$0xff]
  %v1153 = vld [vmem:[%s179 + $0x80] sm:$0xff]
  %v1154 = vld [vmem:[%s179 + $0x90] sm:$0xff]
  %v1155 = vld [vmem:[%s179 + $0x98] sm:$0xff]
  %v1156 = vld [vmem:[%s179 + $0xa8] sm:$0xff]
  %v1157 = vld [vmem:[%s179 + $0xb0] sm:$0xff]
  %v1158 = vld [vmem:[%s179 + $0xc0] sm:$0xff]
  %v1159 = vld [vmem:[%s179 + $0xc8] sm:$0xff]
  %v1160 = vld [vmem:[%s179 + $0xd8] sm:$0xff]
  %v1161 = vld [vmem:[%s179 + $0xe0] sm:$0xff]
  %v1162 = vld [vmem:[%s179 + $0xf0] sm:$0xff]
  %v1163 = vld [vmem:[%s179 + $0xf8] sm:$0xff]
  %v1164 = vld [vmem:[%s179 + $0x108] sm:$0xff]
  %v1165 = vld [vmem:[%s179 + $0x110] sm:$0xff]
  %v1166 = vld [vmem:[%s179 + $0x120] sm:$0xff]
  %v1167 = vld [vmem:[%s179 + $0x128] sm:$0xff]
  %v1168 = vld [vmem:[%s179 + $0x138] sm:$0xff]
  %v1169 = vld [vmem:[%s179 + $0x140] sm:$0xff]
  %v1170 = vld [vmem:[%s179 + $0x150] sm:$0xff]
  %v1171 = vld [vmem:[%s179 + $0x158] sm:$0xff]
  %v1172 = vld [vmem:[%s179 + $0x168] sm:$0xff]
  %v1173 = vld [vmem:[%s179 + $0x170] sm:$0xff]
  %v1174 = vld [vmem:[%s179 + $0x1b0] sm:$0xff]
  %v1175 = vld [vmem:[%s179 + $0x1b8] sm:$0xff]
  %v1176 = vld [vmem:[%s179 + $0x1c8] sm:$0xff]
  %v1177 = vld [vmem:[%s179 + $0x1d0] sm:$0xff]
  %v1178 = vld [vmem:[%s179 + $0x1e0] sm:$0xff]
  %v1179 = vld [vmem:[%s179 + $0x1e8] sm:$0xff]
  %v1180 = vld [vmem:[%s179 + $0x1f8] sm:$0xff]
  %v1181 = vld [vmem:[%s179 + $0x200] sm:$0xff]
  %v1182 = vld [vmem:[%s179 + $0x210] sm:$0xff]
  %v1183 = vld [vmem:[%s179 + $0x218] sm:$0xff]
  %v1184 = vld [vmem:[%s179 + $0x228] sm:$0xff]
  %v1185 = vld [vmem:[%s179 + $0x230] sm:$0xff]
  %v1186 = vld [vmem:[%s179 + $0x240] sm:$0xff]
  %v1187 = vld [vmem:[%s179 + $0x248] sm:$0xff]
  %v1188 = vld [vmem:[%s179 + $0x258] sm:$0xff]
  %v1189 = vld [vmem:[%s179 + $0x260] sm:$0xff]
  %v1190 = vld [vmem:[%s179 + $0x270] sm:$0xff]
  %v1191 = vld [vmem:[%s179 + $0x278] sm:$0xff]
  %v1192 = vld [vmem:[%s179 + $0x288] sm:$0xff]
  %v1193 = vld [vmem:[%s179 + $0x290] sm:$0xff]
  %v1194 = vld [vmem:[%s179 + $0x2a0] sm:$0xff]
  %v1195 = vld [vmem:[%s179 + $0x2a8] sm:$0xff]
  %v1196 = vld [vmem:[%s179 + $0x2b8] sm:$0xff]
  %v1197 = vld [vmem:[%s179 + $0x2c0] sm:$0xff]
  %v1198 = vld [vmem:[%s179 + $0x2d0] sm:$0xff]
  %v1199 = vld [vmem:[%s179 + $0x2d8] sm:$0xff]
  %v1200 = vld [vmem:[%s179 + $0x2e8] sm:$0xff]
  %v1201 = vld [vmem:[%s179 + $0x2f0] sm:$0xff]
  %v1202 = vld [vmem:[%s179 + $0x300] sm:$0xff]
  %v1203 = vld [vmem:[%s179 + $0x308] sm:$0xff]
  %v1204 = vld [vmem:[%s179 + $0x318] sm:$0xff]
  %v1205 = vld [vmem:[%s179 + $0x320] sm:$0xff]
  %1270 = vrot.lane.b32.xlu0 %v1142, 12
  %v1271 = vpop.permute.xlu0 %1270
  %1272 = vrot.lane.b32.xlu0 %v1143, 12
  %v1273 = vpop.permute.xlu0 %1272
  %1274 = vrot.lane.b32.xlu0 %v1144, 12
  %v1275 = vpop.permute.xlu0 %1274
  %1276 = vrot.lane.b32.xlu0 %v1145, 12
  %v1277 = vpop.permute.xlu0 %1276
  %1278 = vrot.lane.b32.xlu0 %v1146, 12
  %v1279 = vpop.permute.xlu0 %1278
  %1280 = vrot.lane.b32.xlu0 %v1147, 12
  %v1281 = vpop.permute.xlu0 %1280
  %1282 = vrot.lane.b32.xlu0 %v1148, 12
  %v1283 = vpop.permute.xlu0 %1282
  %1284 = vrot.lane.b32.xlu0 %v1149, 12
  %v1285 = vpop.permute.xlu0 %1284
  %1286 = vrot.lane.b32.xlu0 %v1150, 12
  %v1287 = vpop.permute.xlu0 %1286
  %1288 = vrot.lane.b32.xlu0 %v1151, 12
  %v1289 = vpop.permute.xlu0 %1288
  %1290 = vrot.lane.b32.xlu0 %v1152, 12
  %v1291 = vpop.permute.xlu0 %1290
  %1292 = vrot.lane.b32.xlu0 %v1153, 12
  %v1293 = vpop.permute.xlu0 %1292
  %1294 = vrot.lane.b32.xlu0 %v1154, 12
  %v1295 = vpop.permute.xlu0 %1294
  %1296 = vrot.lane.b32.xlu0 %v1155, 12
  %v1297 = vpop.permute.xlu0 %1296
  %1298 = vrot.lane.b32.xlu0 %v1156, 12
  %v1299 = vpop.permute.xlu0 %1298
  %1300 = vrot.lane.b32.xlu0 %v1157, 12
  %v1301 = vpop.permute.xlu0 %1300
  %1302 = vrot.lane.b32.xlu0 %v1158, 12
  %v1303 = vpop.permute.xlu0 %1302
  %1304 = vrot.lane.b32.xlu0 %v1159, 12
  %v1305 = vpop.permute.xlu0 %1304
  %1306 = vrot.lane.b32.xlu0 %v1160, 12
  %v1307 = vpop.permute.xlu0 %1306
  %1308 = vrot.lane.b32.xlu0 %v1161, 12
  %v1309 = vpop.permute.xlu0 %1308
  %1310 = vrot.lane.b32.xlu0 %v1162, 12
  %v1311 = vpop.permute.xlu0 %1310
  %1312 = vrot.lane.b32.xlu0 %v1163, 12
  %v1313 = vpop.permute.xlu0 %1312
  %1314 = vrot.lane.b32.xlu0 %v1164, 12
  %v1315 = vpop.permute.xlu0 %1314
  %1316 = vrot.lane.b32.xlu0 %v1165, 12
  %v1317 = vpop.permute.xlu0 %1316
  %1318 = vrot.lane.b32.xlu0 %v1166, 12
  %v1319 = vpop.permute.xlu0 %1318
  %1320 = vrot.lane.b32.xlu0 %v1167, 12
  %v1321 = vpop.permute.xlu0 %1320
  %1322 = vrot.lane.b32.xlu0 %v1168, 12
  %v1323 = vpop.permute.xlu0 %1322
  %1324 = vrot.lane.b32.xlu0 %v1169, 12
  %v1325 = vpop.permute.xlu0 %1324
  %1326 = vrot.lane.b32.xlu0 %v1170, 12
  %v1327 = vpop.permute.xlu0 %1326
  %1328 = vrot.lane.b32.xlu0 %v1171, 12
  %v1329 = vpop.permute.xlu0 %1328
  %1330 = vrot.lane.b32.xlu0 %v1172, 12
  %v1331 = vpop.permute.xlu0 %1330
  %1332 = vrot.lane.b32.xlu0 %v1173, 12
  %v1333 = vpop.permute.xlu0 %1332
  %1334 = vrot.lane.b32.xlu0 %v1174, 12
  %v1335 = vpop.permute.xlu0 %1334
  %1336 = vrot.lane.b32.xlu0 %v1175, 12
  %v1337 = vpop.permute.xlu0 %1336
  %1338 = vrot.lane.b32.xlu0 %v1176, 12
  %v1339 = vpop.permute.xlu0 %1338
  %1340 = vrot.lane.b32.xlu0 %v1177, 12
  %v1341 = vpop.permute.xlu0 %1340
  %1342 = vrot.lane.b32.xlu0 %v1178, 12
  %v1343 = vpop.permute.xlu0 %1342
  %1344 = vrot.lane.b32.xlu0 %v1179, 12
  %v1345 = vpop.permute.xlu0 %1344
  %1346 = vrot.lane.b32.xlu0 %v1180, 12
  %v1347 = vpop.permute.xlu0 %1346
  %1348 = vrot.lane.b32.xlu0 %v1181, 12
  %v1349 = vpop.permute.xlu0 %1348
  %1350 = vrot.lane.b32.xlu0 %v1182, 12
  %v1351 = vpop.permute.xlu0 %1350
  %1352 = vrot.lane.b32.xlu0 %v1183, 12
  %v1353 = vpop.permute.xlu0 %1352
  %1354 = vrot.lane.b32.xlu0 %v1184, 12
  %v1355 = vpop.permute.xlu0 %1354
  %1356 = vrot.lane.b32.xlu0 %v1185, 12
  %v1357 = vpop.permute.xlu0 %1356
  %1358 = vrot.lane.b32.xlu0 %v1186, 12
  %v1359 = vpop.permute.xlu0 %1358
  %1360 = vrot.lane.b32.xlu0 %v1187, 12
  %v1361 = vpop.permute.xlu0 %1360
  %1362 = vrot.lane.b32.xlu0 %v1188, 12
  %v1363 = vpop.permute.xlu0 %1362
  %1364 = vrot.lane.b32.xlu0 %v1189, 12
  %v1365 = vpop.permute.xlu0 %1364
  %1366 = vrot.lane.b32.xlu0 %v1190, 12
  %v1367 = vpop.permute.xlu0 %1366
  %1368 = vrot.lane.b32.xlu0 %v1191, 12
  %v1369 = vpop.permute.xlu0 %1368
  %1370 = vrot.lane.b32.xlu0 %v1192, 12
  %v1371 = vpop.permute.xlu0 %1370
  %1372 = vrot.lane.b32.xlu0 %v1193, 12
  %v1373 = vpop.permute.xlu0 %1372
  %1374 = vrot.lane.b32.xlu0 %v1194, 12
  %v1375 = vpop.permute.xlu0 %1374
  %1376 = vrot.lane.b32.xlu0 %v1195, 12
  %v1377 = vpop.permute.xlu0 %1376
  %1378 = vrot.lane.b32.xlu0 %v1196, 12
  %v1379 = vpop.permute.xlu0 %1378
  %1380 = vrot.lane.b32.xlu0 %v1197, 12
  %v1381 = vpop.permute.xlu0 %1380
  %1382 = vrot.lane.b32.xlu0 %v1198, 12
  %v1383 = vpop.permute.xlu0 %1382
  %1384 = vrot.lane.b32.xlu0 %v1199, 12
  %v1385 = vpop.permute.xlu0 %1384
  %1386 = vrot.lane.b32.xlu0 %v1200, 12
  %v1387 = vpop.permute.xlu0 %1386
  %1388 = vrot.lane.b32.xlu0 %v1201, 12
  %v1389 = vpop.permute.xlu0 %1388
  %1390 = vrot.lane.b32.xlu0 %v1202, 12
  %v1391 = vpop.permute.xlu0 %1390
  %1392 = vrot.lane.b32.xlu0 %v1203, 12
  %v1393 = vpop.permute.xlu0 %1392
  %1394 = vrot.lane.b32.xlu0 %v1204, 12
  %v1395 = vpop.permute.xlu0 %1394
  %1396 = vrot.lane.b32.xlu0 %v1205, 12
  %v1397 = vpop.permute.xlu0 %1396
  %vm1462 = vcmask 130144
  %1463 = vst.msk [vmem:[#allocation3] sm:$0xff] %vm1462, %v1271
  %1464 = vst.msk [vmem:[#allocation3 + $0x8] sm:$0xff] %vm1462, %v1273
  %1465 = vst.msk [vmem:[#allocation3 + $0x10] sm:$0xff] %vm1462, %v1275
  %1466 = vst.msk [vmem:[#allocation3 + $0x18] sm:$0xff] %vm1462, %v1277
  %1467 = vst.msk [vmem:[#allocation3 + $0x20] sm:$0xff] %vm1462, %v1279
  %1468 = vst.msk [vmem:[#allocation3 + $0x28] sm:$0xff] %vm1462, %v1281
  %1469 = vst.msk [vmem:[#allocation3 + $0x30] sm:$0xff] %vm1462, %v1283
  %1470 = vst.msk [vmem:[#allocation3 + $0x38] sm:$0xff] %vm1462, %v1285
  %1471 = vst.msk [vmem:[#allocation3 + $0x40] sm:$0xff] %vm1462, %v1287
  %1472 = vst.msk [vmem:[#allocation3 + $0x48] sm:$0xff] %vm1462, %v1289
  %1473 = vst.msk [vmem:[#allocation3 + $0x50] sm:$0xff] %vm1462, %v1291
  %1474 = vst.msk [vmem:[#allocation3 + $0x58] sm:$0xff] %vm1462, %v1293
  %1475 = vst.msk [vmem:[#allocation3 + $0x60] sm:$0xff] %vm1462, %v1295
  %1476 = vst.msk [vmem:[#allocation3 + $0x68] sm:$0xff] %vm1462, %v1297
  %1477 = vst.msk [vmem:[#allocation3 + $0x70] sm:$0xff] %vm1462, %v1299
  %1478 = vst.msk [vmem:[#allocation3 + $0x78] sm:$0xff] %vm1462, %v1301
  %1479 = vst.msk [vmem:[#allocation3 + $0x80] sm:$0xff] %vm1462, %v1303
  %1480 = vst.msk [vmem:[#allocation3 + $0x88] sm:$0xff] %vm1462, %v1305
  %1481 = vst.msk [vmem:[#allocation3 + $0x90] sm:$0xff] %vm1462, %v1307
  %1482 = vst.msk [vmem:[#allocation3 + $0x98] sm:$0xff] %vm1462, %v1309
  %1483 = vst.msk [vmem:[#allocation3 + $0xa0] sm:$0xff] %vm1462, %v1311
  %1484 = vst.msk [vmem:[#allocation3 + $0xa8] sm:$0xff] %vm1462, %v1313
  %1485 = vst.msk [vmem:[#allocation3 + $0xb0] sm:$0xff] %vm1462, %v1315
  %1486 = vst.msk [vmem:[#allocation3 + $0xb8] sm:$0xff] %vm1462, %v1317
  %1487 = vst.msk [vmem:[#allocation3 + $0xc0] sm:$0xff] %vm1462, %v1319
  %1488 = vst.msk [vmem:[#allocation3 + $0xc8] sm:$0xff] %vm1462, %v1321
  %1489 = vst.msk [vmem:[#allocation3 + $0xd0] sm:$0xff] %vm1462, %v1323
  %1490 = vst.msk [vmem:[#allocation3 + $0xd8] sm:$0xff] %vm1462, %v1325
  %1491 = vst.msk [vmem:[#allocation3 + $0xe0] sm:$0xff] %vm1462, %v1327
  %1492 = vst.msk [vmem:[#allocation3 + $0xe8] sm:$0xff] %vm1462, %v1329
  %1493 = vst.msk [vmem:[#allocation3 + $0xf0] sm:$0xff] %vm1462, %v1331
  %1494 = vst.msk [vmem:[#allocation3 + $0xf8] sm:$0xff] %vm1462, %v1333
  %1495 = vst.msk [vmem:[#allocation3 + $0x100] sm:$0xff] %vm1462, %v1335
  %1496 = vst.msk [vmem:[#allocation3 + $0x108] sm:$0xff] %vm1462, %v1337
  %1497 = vst.msk [vmem:[#allocation3 + $0x110] sm:$0xff] %vm1462, %v1339
  %1498 = vst.msk [vmem:[#allocation3 + $0x118] sm:$0xff] %vm1462, %v1341
  %1499 = vst.msk [vmem:[#allocation3 + $0x120] sm:$0xff] %vm1462, %v1343
  %1500 = vst.msk [vmem:[#allocation3 + $0x128] sm:$0xff] %vm1462, %v1345
  %1501 = vst.msk [vmem:[#allocation3 + $0x130] sm:$0xff] %vm1462, %v1347
  %1502 = vst.msk [vmem:[#allocation3 + $0x138] sm:$0xff] %vm1462, %v1349
  %1503 = vst.msk [vmem:[#allocation3 + $0x140] sm:$0xff] %vm1462, %v1351
  %1504 = vst.msk [vmem:[#allocation3 + $0x148] sm:$0xff] %vm1462, %v1353
  %1505 = vst.msk [vmem:[#allocation3 + $0x150] sm:$0xff] %vm1462, %v1355
  %1506 = vst.msk [vmem:[#allocation3 + $0x158] sm:$0xff] %vm1462, %v1357
  %1507 = vst.msk [vmem:[#allocation3 + $0x160] sm:$0xff] %vm1462, %v1359
  %1508 = vst.msk [vmem:[#allocation3 + $0x168] sm:$0xff] %vm1462, %v1361
  %1509 = vst.msk [vmem:[#allocation3 + $0x170] sm:$0xff] %vm1462, %v1363
  %1510 = vst.msk [vmem:[#allocation3 + $0x178] sm:$0xff] %vm1462, %v1365
  %1511 = vst.msk [vmem:[#allocation3 + $0x180] sm:$0xff] %vm1462, %v1367
  %1512 = vst.msk [vmem:[#allocation3 + $0x188] sm:$0xff] %vm1462, %v1369
  %1513 = vst.msk [vmem:[#allocation3 + $0x190] sm:$0xff] %vm1462, %v1371
  %1514 = vst.msk [vmem:[#allocation3 + $0x198] sm:$0xff] %vm1462, %v1373
  %1515 = vst.msk [vmem:[#allocation3 + $0x1a0] sm:$0xff] %vm1462, %v1375
  %1516 = vst.msk [vmem:[#allocation3 + $0x1a8] sm:$0xff] %vm1462, %v1377
  %1517 = vst.msk [vmem:[#allocation3 + $0x1b0] sm:$0xff] %vm1462, %v1379
  %1518 = vst.msk [vmem:[#allocation3 + $0x1b8] sm:$0xff] %vm1462, %v1381
  %1519 = vst.msk [vmem:[#allocation3 + $0x1c0] sm:$0xff] %vm1462, %v1383
  %1520 = vst.msk [vmem:[#allocation3 + $0x1c8] sm:$0xff] %vm1462, %v1385
  %1521 = vst.msk [vmem:[#allocation3 + $0x1d0] sm:$0xff] %vm1462, %v1387
  %1522 = vst.msk [vmem:[#allocation3 + $0x1d8] sm:$0xff] %vm1462, %v1389
  %1523 = vst.msk [vmem:[#allocation3 + $0x1e0] sm:$0xff] %vm1462, %v1391
  %1524 = vst.msk [vmem:[#allocation3 + $0x1e8] sm:$0xff] %vm1462, %v1393
  %1525 = vst.msk [vmem:[#allocation3 + $0x1f0] sm:$0xff] %vm1462, %v1395
  %1526 = vst.msk [vmem:[#allocation3 + $0x1f8] sm:$0xff] %vm1462, %v1397
  %v1527 = vld [vmem:[%s179 + $0x1] sm:$0xff]
  %v1528 = vld [vmem:[%s179 + $0x9] sm:$0xff]
  %v1529 = vld [vmem:[%s179 + $0x19] sm:$0xff]
  %v1530 = vld [vmem:[%s179 + $0x21] sm:$0xff]
  %v1531 = vld [vmem:[%s179 + $0x31] sm:$0xff]
  %v1532 = vld [vmem:[%s179 + $0x39] sm:$0xff]
  %v1533 = vld [vmem:[%s179 + $0x49] sm:$0xff]
  %v1534 = vld [vmem:[%s179 + $0x51] sm:$0xff]
  %v1535 = vld [vmem:[%s179 + $0x61] sm:$0xff]
  %v1536 = vld [vmem:[%s179 + $0x69] sm:$0xff]
  %v1537 = vld [vmem:[%s179 + $0x79] sm:$0xff]
  %v1538 = vld [vmem:[%s179 + $0x81] sm:$0xff]
  %v1539 = vld [vmem:[%s179 + $0x91] sm:$0xff]
  %v1540 = vld [vmem:[%s179 + $0x99] sm:$0xff]
  %v1541 = vld [vmem:[%s179 + $0xa9] sm:$0xff]
  %v1542 = vld [vmem:[%s179 + $0xb1] sm:$0xff]
  %v1543 = vld [vmem:[%s179 + $0xc1] sm:$0xff]
  %v1544 = vld [vmem:[%s179 + $0xc9] sm:$0xff]
  %v1545 = vld [vmem:[%s179 + $0xd9] sm:$0xff]
  %v1546 = vld [vmem:[%s179 + $0xe1] sm:$0xff]
  %v1547 = vld [vmem:[%s179 + $0xf1] sm:$0xff]
  %v1548 = vld [vmem:[%s179 + $0xf9] sm:$0xff]
  %v1549 = vld [vmem:[%s179 + $0x109] sm:$0xff]
  %v1550 = vld [vmem:[%s179 + $0x111] sm:$0xff]
  %v1551 = vld [vmem:[%s179 + $0x121] sm:$0xff]
  %v1552 = vld [vmem:[%s179 + $0x129] sm:$0xff]
  %v1553 = vld [vmem:[%s179 + $0x139] sm:$0xff]
  %v1554 = vld [vmem:[%s179 + $0x141] sm:$0xff]
  %v1555 = vld [vmem:[%s179 + $0x151] sm:$0xff]
  %v1556 = vld [vmem:[%s179 + $0x159] sm:$0xff]
  %v1557 = vld [vmem:[%s179 + $0x169] sm:$0xff]
  %v1558 = vld [vmem:[%s179 + $0x171] sm:$0xff]
  %v1559 = vld [vmem:[%s179 + $0x1b1] sm:$0xff]
  %v1560 = vld [vmem:[%s179 + $0x1b9] sm:$0xff]
  %v1561 = vld [vmem:[%s179 + $0x1c9] sm:$0xff]
  %v1562 = vld [vmem:[%s179 + $0x1d1] sm:$0xff]
  %v1563 = vld [vmem:[%s179 + $0x1e1] sm:$0xff]
  %v1564 = vld [vmem:[%s179 + $0x1e9] sm:$0xff]
  %v1565 = vld [vmem:[%s179 + $0x1f9] sm:$0xff]
  %v1566 = vld [vmem:[%s179 + $0x201] sm:$0xff]
  %v1567 = vld [vmem:[%s179 + $0x211] sm:$0xff]
  %v1568 = vld [vmem:[%s179 + $0x219] sm:$0xff]
  %v1569 = vld [vmem:[%s179 + $0x229] sm:$0xff]
  %v1570 = vld [vmem:[%s179 + $0x231] sm:$0xff]
  %v1571 = vld [vmem:[%s179 + $0x241] sm:$0xff]
  %v1572 = vld [vmem:[%s179 + $0x249] sm:$0xff]
  %v1573 = vld [vmem:[%s179 + $0x259] sm:$0xff]
  %v1574 = vld [vmem:[%s179 + $0x261] sm:$0xff]
  %v1575 = vld [vmem:[%s179 + $0x271] sm:$0xff]
  %v1576 = vld [vmem:[%s179 + $0x279] sm:$0xff]
  %v1577 = vld [vmem:[%s179 + $0x289] sm:$0xff]
  %v1578 = vld [vmem:[%s179 + $0x291] sm:$0xff]
  %v1579 = vld [vmem:[%s179 + $0x2a1] sm:$0xff]
  %v1580 = vld [vmem:[%s179 + $0x2a9] sm:$0xff]
  %v1581 = vld [vmem:[%s179 + $0x2b9] sm:$0xff]
  %v1582 = vld [vmem:[%s179 + $0x2c1] sm:$0xff]
  %v1583 = vld [vmem:[%s179 + $0x2d1] sm:$0xff]
  %v1584 = vld [vmem:[%s179 + $0x2d9] sm:$0xff]
  %v1585 = vld [vmem:[%s179 + $0x2e9] sm:$0xff]
  %v1586 = vld [vmem:[%s179 + $0x2f1] sm:$0xff]
  %v1587 = vld [vmem:[%s179 + $0x301] sm:$0xff]
  %v1588 = vld [vmem:[%s179 + $0x309] sm:$0xff]
  %v1589 = vld [vmem:[%s179 + $0x319] sm:$0xff]
  %v1590 = vld [vmem:[%s179 + $0x321] sm:$0xff]
  %1655 = vrot.lane.b32.xlu0 %v1527, 16
  %v1656 = vpop.permute.xlu0 %1655
  %1657 = vrot.lane.b32.xlu0 %v1528, 16
  %v1658 = vpop.permute.xlu0 %1657
  %1659 = vrot.lane.b32.xlu0 %v1529, 16
  %v1660 = vpop.permute.xlu0 %1659
  %1661 = vrot.lane.b32.xlu0 %v1530, 16
  %v1662 = vpop.permute.xlu0 %1661
  %1663 = vrot.lane.b32.xlu0 %v1531, 16
  %v1664 = vpop.permute.xlu0 %1663
  %1665 = vrot.lane.b32.xlu0 %v1532, 16
  %v1666 = vpop.permute.xlu0 %1665
  %1667 = vrot.lane.b32.xlu0 %v1533, 16
  %v1668 = vpop.permute.xlu0 %1667
  %1669 = vrot.lane.b32.xlu0 %v1534, 16
  %v1670 = vpop.permute.xlu0 %1669
  %1671 = vrot.lane.b32.xlu0 %v1535, 16
  %v1672 = vpop.permute.xlu0 %1671
  %1673 = vrot.lane.b32.xlu0 %v1536, 16
  %v1674 = vpop.permute.xlu0 %1673
  %1675 = vrot.lane.b32.xlu0 %v1537, 16
  %v1676 = vpop.permute.xlu0 %1675
  %1677 = vrot.lane.b32.xlu0 %v1538, 16
  %v1678 = vpop.permute.xlu0 %1677
  %1679 = vrot.lane.b32.xlu0 %v1539, 16
  %v1680 = vpop.permute.xlu0 %1679
  %1681 = vrot.lane.b32.xlu0 %v1540, 16
  %v1682 = vpop.permute.xlu0 %1681
  %1683 = vrot.lane.b32.xlu0 %v1541, 16
  %v1684 = vpop.permute.xlu0 %1683
  %1685 = vrot.lane.b32.xlu0 %v1542, 16
  %v1686 = vpop.permute.xlu0 %1685
  %1687 = vrot.lane.b32.xlu0 %v1543, 16
  %v1688 = vpop.permute.xlu0 %1687
  %1689 = vrot.lane.b32.xlu0 %v1544, 16
  %v1690 = vpop.permute.xlu0 %1689
  %1691 = vrot.lane.b32.xlu0 %v1545, 16
  %v1692 = vpop.permute.xlu0 %1691
  %1693 = vrot.lane.b32.xlu0 %v1546, 16
  %v1694 = vpop.permute.xlu0 %1693
  %1695 = vrot.lane.b32.xlu0 %v1547, 16
  %v1696 = vpop.permute.xlu0 %1695
  %1697 = vrot.lane.b32.xlu0 %v1548, 16
  %v1698 = vpop.permute.xlu0 %1697
  %1699 = vrot.lane.b32.xlu0 %v1549, 16
  %v1700 = vpop.permute.xlu0 %1699
  %1701 = vrot.lane.b32.xlu0 %v1550, 16
  %v1702 = vpop.permute.xlu0 %1701
  %1703 = vrot.lane.b32.xlu0 %v1551, 16
  %v1704 = vpop.permute.xlu0 %1703
  %1705 = vrot.lane.b32.xlu0 %v1552, 16
  %v1706 = vpop.permute.xlu0 %1705
  %1707 = vrot.lane.b32.xlu0 %v1553, 16
  %v1708 = vpop.permute.xlu0 %1707
  %1709 = vrot.lane.b32.xlu0 %v1554, 16
  %v1710 = vpop.permute.xlu0 %1709
  %1711 = vrot.lane.b32.xlu0 %v1555, 16
  %v1712 = vpop.permute.xlu0 %1711
  %1713 = vrot.lane.b32.xlu0 %v1556, 16
  %v1714 = vpop.permute.xlu0 %1713
  %1715 = vrot.lane.b32.xlu0 %v1557, 16
  %v1716 = vpop.permute.xlu0 %1715
  %1717 = vrot.lane.b32.xlu0 %v1558, 16
  %v1718 = vpop.permute.xlu0 %1717
  %1719 = vrot.lane.b32.xlu0 %v1559, 16
  %v1720 = vpop.permute.xlu0 %1719
  %1721 = vrot.lane.b32.xlu0 %v1560, 16
  %v1722 = vpop.permute.xlu0 %1721
  %1723 = vrot.lane.b32.xlu0 %v1561, 16
  %v1724 = vpop.permute.xlu0 %1723
  %1725 = vrot.lane.b32.xlu0 %v1562, 16
  %v1726 = vpop.permute.xlu0 %1725
  %1727 = vrot.lane.b32.xlu0 %v1563, 16
  %v1728 = vpop.permute.xlu0 %1727
  %1729 = vrot.lane.b32.xlu0 %v1564, 16
  %v1730 = vpop.permute.xlu0 %1729
  %1731 = vrot.lane.b32.xlu0 %v1565, 16
  %v1732 = vpop.permute.xlu0 %1731
  %1733 = vrot.lane.b32.xlu0 %v1566, 16
  %v1734 = vpop.permute.xlu0 %1733
  %1735 = vrot.lane.b32.xlu0 %v1567, 16
  %v1736 = vpop.permute.xlu0 %1735
  %1737 = vrot.lane.b32.xlu0 %v1568, 16
  %v1738 = vpop.permute.xlu0 %1737
  %1739 = vrot.lane.b32.xlu0 %v1569, 16
  %v1740 = vpop.permute.xlu0 %1739
  %1741 = vrot.lane.b32.xlu0 %v1570, 16
  %v1742 = vpop.permute.xlu0 %1741
  %1743 = vrot.lane.b32.xlu0 %v1571, 16
  %v1744 = vpop.permute.xlu0 %1743
  %1745 = vrot.lane.b32.xlu0 %v1572, 16
  %v1746 = vpop.permute.xlu0 %1745
  %1747 = vrot.lane.b32.xlu0 %v1573, 16
  %v1748 = vpop.permute.xlu0 %1747
  %1749 = vrot.lane.b32.xlu0 %v1574, 16
  %v1750 = vpop.permute.xlu0 %1749
  %1751 = vrot.lane.b32.xlu0 %v1575, 16
  %v1752 = vpop.permute.xlu0 %1751
  %1753 = vrot.lane.b32.xlu0 %v1576, 16
  %v1754 = vpop.permute.xlu0 %1753
  %1755 = vrot.lane.b32.xlu0 %v1577, 16
  %v1756 = vpop.permute.xlu0 %1755
  %1757 = vrot.lane.b32.xlu0 %v1578, 16
  %v1758 = vpop.permute.xlu0 %1757
  %1759 = vrot.lane.b32.xlu0 %v1579, 16
  %v1760 = vpop.permute.xlu0 %1759
  %1761 = vrot.lane.b32.xlu0 %v1580, 16
  %v1762 = vpop.permute.xlu0 %1761
  %1763 = vrot.lane.b32.xlu0 %v1581, 16
  %v1764 = vpop.permute.xlu0 %1763
  %1765 = vrot.lane.b32.xlu0 %v1582, 16
  %v1766 = vpop.permute.xlu0 %1765
  %1767 = vrot.lane.b32.xlu0 %v1583, 16
  %v1768 = vpop.permute.xlu0 %1767
  %1769 = vrot.lane.b32.xlu0 %v1584, 16
  %v1770 = vpop.permute.xlu0 %1769
  %1771 = vrot.lane.b32.xlu0 %v1585, 16
  %v1772 = vpop.permute.xlu0 %1771
  %1773 = vrot.lane.b32.xlu0 %v1586, 16
  %v1774 = vpop.permute.xlu0 %1773
  %1775 = vrot.lane.b32.xlu0 %v1587, 16
  %v1776 = vpop.permute.xlu0 %1775
  %1777 = vrot.lane.b32.xlu0 %v1588, 16
  %v1778 = vpop.permute.xlu0 %1777
  %1779 = vrot.lane.b32.xlu0 %v1589, 16
  %v1780 = vpop.permute.xlu0 %1779
  %1781 = vrot.lane.b32.xlu0 %v1590, 16
  %v1782 = vpop.permute.xlu0 %1781
  %vm1847 = vcmask 162944
  %1848 = vst.msk [vmem:[#allocation3] sm:$0xff] %vm1847, %v1656
  %1849 = vst.msk [vmem:[#allocation3 + $0x8] sm:$0xff] %vm1847, %v1658
  %1850 = vst.msk [vmem:[#allocation3 + $0x10] sm:$0xff] %vm1847, %v1660
  %1851 = vst.msk [vmem:[#allocation3 + $0x18] sm:$0xff] %vm1847, %v1662
  %1852 = vst.msk [vmem:[#allocation3 + $0x20] sm:$0xff] %vm1847, %v1664
  %1853 = vst.msk [vmem:[#allocation3 + $0x28] sm:$0xff] %vm1847, %v1666
  %1854 = vst.msk [vmem:[#allocation3 + $0x30] sm:$0xff] %vm1847, %v1668
  %1855 = vst.msk [vmem:[#allocation3 + $0x38] sm:$0xff] %vm1847, %v1670
  %1856 = vst.msk [vmem:[#allocation3 + $0x40] sm:$0xff] %vm1847, %v1672
  %1857 = vst.msk [vmem:[#allocation3 + $0x48] sm:$0xff] %vm1847, %v1674
  %1858 = vst.msk [vmem:[#allocation3 + $0x50] sm:$0xff] %vm1847, %v1676
  %1859 = vst.msk [vmem:[#allocation3 + $0x58] sm:$0xff] %vm1847, %v1678
  %1860 = vst.msk [vmem:[#allocation3 + $0x60] sm:$0xff] %vm1847, %v1680
  %1861 = vst.msk [vmem:[#allocation3 + $0x68] sm:$0xff] %vm1847, %v1682
  %1862 = vst.msk [vmem:[#allocation3 + $0x70] sm:$0xff] %vm1847, %v1684
  %1863 = vst.msk [vmem:[#allocation3 + $0x78] sm:$0xff] %vm1847, %v1686
  %1864 = vst.msk [vmem:[#allocation3 + $0x80] sm:$0xff] %vm1847, %v1688
  %1865 = vst.msk [vmem:[#allocation3 + $0x88] sm:$0xff] %vm1847, %v1690
  %1866 = vst.msk [vmem:[#allocation3 + $0x90] sm:$0xff] %vm1847, %v1692
  %1867 = vst.msk [vmem:[#allocation3 + $0x98] sm:$0xff] %vm1847, %v1694
  %1868 = vst.msk [vmem:[#allocation3 + $0xa0] sm:$0xff] %vm1847, %v1696
  %1869 = vst.msk [vmem:[#allocation3 + $0xa8] sm:$0xff] %vm1847, %v1698
  %1870 = vst.msk [vmem:[#allocation3 + $0xb0] sm:$0xff] %vm1847, %v1700
  %1871 = vst.msk [vmem:[#allocation3 + $0xb8] sm:$0xff] %vm1847, %v1702
  %1872 = vst.msk [vmem:[#allocation3 + $0xc0] sm:$0xff] %vm1847, %v1704
  %1873 = vst.msk [vmem:[#allocation3 + $0xc8] sm:$0xff] %vm1847, %v1706
  %1874 = vst.msk [vmem:[#allocation3 + $0xd0] sm:$0xff] %vm1847, %v1708
  %1875 = vst.msk [vmem:[#allocation3 + $0xd8] sm:$0xff] %vm1847, %v1710
  %1876 = vst.msk [vmem:[#allocation3 + $0xe0] sm:$0xff] %vm1847, %v1712
  %1877 = vst.msk [vmem:[#allocation3 + $0xe8] sm:$0xff] %vm1847, %v1714
  %1878 = vst.msk [vmem:[#allocation3 + $0xf0] sm:$0xff] %vm1847, %v1716
  %1879 = vst.msk [vmem:[#allocation3 + $0xf8] sm:$0xff] %vm1847, %v1718
  %1880 = vst.msk [vmem:[#allocation3 + $0x100] sm:$0xff] %vm1847, %v1720
  %1881 = vst.msk [vmem:[#allocation3 + $0x108] sm:$0xff] %vm1847, %v1722
  %1882 = vst.msk [vmem:[#allocation3 + $0x110] sm:$0xff] %vm1847, %v1724
  %1883 = vst.msk [vmem:[#allocation3 + $0x118] sm:$0xff] %vm1847, %v1726
  %1884 = vst.msk [vmem:[#allocation3 + $0x120] sm:$0xff] %vm1847, %v1728
  %1885 = vst.msk [vmem:[#allocation3 + $0x128] sm:$0xff] %vm1847, %v1730
  %1886 = vst.msk [vmem:[#allocation3 + $0x130] sm:$0xff] %vm1847, %v1732
  %1887 = vst.msk [vmem:[#allocation3 + $0x138] sm:$0xff] %vm1847, %v1734
  %1888 = vst.msk [vmem:[#allocation3 + $0x140] sm:$0xff] %vm1847, %v1736
  %1889 = vst.msk [vmem:[#allocation3 + $0x148] sm:$0xff] %vm1847, %v1738
  %1890 = vst.msk [vmem:[#allocation3 + $0x150] sm:$0xff] %vm1847, %v1740
  %1891 = vst.msk [vmem:[#allocation3 + $0x158] sm:$0xff] %vm1847, %v1742
  %1892 = vst.msk [vmem:[#allocation3 + $0x160] sm:$0xff] %vm1847, %v1744
  %1893 = vst.msk [vmem:[#allocation3 + $0x168] sm:$0xff] %vm1847, %v1746
  %1894 = vst.msk [vmem:[#allocation3 + $0x170] sm:$0xff] %vm1847, %v1748
  %1895 = vst.msk [vmem:[#allocation3 + $0x178] sm:$0xff] %vm1847, %v1750
  %1896 = vst.msk [vmem:[#allocation3 + $0x180] sm:$0xff] %vm1847, %v1752
  %1897 = vst.msk [vmem:[#allocation3 + $0x188] sm:$0xff] %vm1847, %v1754
  %1898 = vst.msk [vmem:[#allocation3 + $0x190] sm:$0xff] %vm1847, %v1756
  %1899 = vst.msk [vmem:[#allocation3 + $0x198] sm:$0xff] %vm1847, %v1758
  %1900 = vst.msk [vmem:[#allocation3 + $0x1a0] sm:$0xff] %vm1847, %v1760
  %1901 = vst.msk [vmem:[#allocation3 + $0x1a8] sm:$0xff] %vm1847, %v1762
  %1902 = vst.msk [vmem:[#allocation3 + $0x1b0] sm:$0xff] %vm1847, %v1764
  %1903 = vst.msk [vmem:[#allocation3 + $0x1b8] sm:$0xff] %vm1847, %v1766
  %1904 = vst.msk [vmem:[#allocation3 + $0x1c0] sm:$0xff] %vm1847, %v1768
  %1905 = vst.msk [vmem:[#allocation3 + $0x1c8] sm:$0xff] %vm1847, %v1770
  %1906 = vst.msk [vmem:[#allocation3 + $0x1d0] sm:$0xff] %vm1847, %v1772
  %1907 = vst.msk [vmem:[#allocation3 + $0x1d8] sm:$0xff] %vm1847, %v1774
  %1908 = vst.msk [vmem:[#allocation3 + $0x1e0] sm:$0xff] %vm1847, %v1776
  %1909 = vst.msk [vmem:[#allocation3 + $0x1e8] sm:$0xff] %vm1847, %v1778
  %1910 = vst.msk [vmem:[#allocation3 + $0x1f0] sm:$0xff] %vm1847, %v1780
  %1911 = vst.msk [vmem:[#allocation3 + $0x1f8] sm:$0xff] %vm1847, %v1782
  %v1912 = vld [vmem:[%s179 + $0x2] sm:$0xff]
  %v1913 = vld [vmem:[%s179 + $0xa] sm:$0xff]
  %v1914 = vld [vmem:[%s179 + $0x1a] sm:$0xff]
  %v1915 = vld [vmem:[%s179 + $0x22] sm:$0xff]
  %v1916 = vld [vmem:[%s179 + $0x32] sm:$0xff]
  %v1917 = vld [vmem:[%s179 + $0x3a] sm:$0xff]
  %v1918 = vld [vmem:[%s179 + $0x4a] sm:$0xff]
  %v1919 = vld [vmem:[%s179 + $0x52] sm:$0xff]
  %v1920 = vld [vmem:[%s179 + $0x62] sm:$0xff]
  %v1921 = vld [vmem:[%s179 + $0x6a] sm:$0xff]
  %v1922 = vld [vmem:[%s179 + $0x7a] sm:$0xff]
  %v1923 = vld [vmem:[%s179 + $0x82] sm:$0xff]
  %v1924 = vld [vmem:[%s179 + $0x92] sm:$0xff]
  %v1925 = vld [vmem:[%s179 + $0x9a] sm:$0xff]
  %v1926 = vld [vmem:[%s179 + $0xaa] sm:$0xff]
  %v1927 = vld [vmem:[%s179 + $0xb2] sm:$0xff]
  %v1928 = vld [vmem:[%s179 + $0xc2] sm:$0xff]
  %v1929 = vld [vmem:[%s179 + $0xca] sm:$0xff]
  %v1930 = vld [vmem:[%s179 + $0xda] sm:$0xff]
  %v1931 = vld [vmem:[%s179 + $0xe2] sm:$0xff]
  %v1932 = vld [vmem:[%s179 + $0xf2] sm:$0xff]
  %v1933 = vld [vmem:[%s179 + $0xfa] sm:$0xff]
  %v1934 = vld [vmem:[%s179 + $0x10a] sm:$0xff]
  %v1935 = vld [vmem:[%s179 + $0x112] sm:$0xff]
  %v1936 = vld [vmem:[%s179 + $0x122] sm:$0xff]
  %v1937 = vld [vmem:[%s179 + $0x12a] sm:$0xff]
  %v1938 = vld [vmem:[%s179 + $0x13a] sm:$0xff]
  %v1939 = vld [vmem:[%s179 + $0x142] sm:$0xff]
  %v1940 = vld [vmem:[%s179 + $0x152] sm:$0xff]
  %v1941 = vld [vmem:[%s179 + $0x15a] sm:$0xff]
  %v1942 = vld [vmem:[%s179 + $0x16a] sm:$0xff]
  %v1943 = vld [vmem:[%s179 + $0x172] sm:$0xff]
  %v1944 = vld [vmem:[%s179 + $0x1b2] sm:$0xff]
  %v1945 = vld [vmem:[%s179 + $0x1ba] sm:$0xff]
  %v1946 = vld [vmem:[%s179 + $0x1ca] sm:$0xff]
  %v1947 = vld [vmem:[%s179 + $0x1d2] sm:$0xff]
  %v1948 = vld [vmem:[%s179 + $0x1e2] sm:$0xff]
  %v1949 = vld [vmem:[%s179 + $0x1ea] sm:$0xff]
  %v1950 = vld [vmem:[%s179 + $0x1fa] sm:$0xff]
  %v1951 = vld [vmem:[%s179 + $0x202] sm:$0xff]
  %v1952 = vld [vmem:[%s179 + $0x212] sm:$0xff]
  %v1953 = vld [vmem:[%s179 + $0x21a] sm:$0xff]
  %v1954 = vld [vmem:[%s179 + $0x22a] sm:$0xff]
  %v1955 = vld [vmem:[%s179 + $0x232] sm:$0xff]
  %v1956 = vld [vmem:[%s179 + $0x242] sm:$0xff]
  %v1957 = vld [vmem:[%s179 + $0x24a] sm:$0xff]
  %v1958 = vld [vmem:[%s179 + $0x25a] sm:$0xff]
  %v1959 = vld [vmem:[%s179 + $0x262] sm:$0xff]
  %v1960 = vld [vmem:[%s179 + $0x272] sm:$0xff]
  %v1961 = vld [vmem:[%s179 + $0x27a] sm:$0xff]
  %v1962 = vld [vmem:[%s179 + $0x28a] sm:$0xff]
  %v1963 = vld [vmem:[%s179 + $0x292] sm:$0xff]
  %v1964 = vld [vmem:[%s179 + $0x2a2] sm:$0xff]
  %v1965 = vld [vmem:[%s179 + $0x2aa] sm:$0xff]
  %v1966 = vld [vmem:[%s179 + $0x2ba] sm:$0xff]
  %v1967 = vld [vmem:[%s179 + $0x2c2] sm:$0xff]
  %v1968 = vld [vmem:[%s179 + $0x2d2] sm:$0xff]
  %v1969 = vld [vmem:[%s179 + $0x2da] sm:$0xff]
  %v1970 = vld [vmem:[%s179 + $0x2ea] sm:$0xff]
  %v1971 = vld [vmem:[%s179 + $0x2f2] sm:$0xff]
  %v1972 = vld [vmem:[%s179 + $0x302] sm:$0xff]
  %v1973 = vld [vmem:[%s179 + $0x30a] sm:$0xff]
  %v1974 = vld [vmem:[%s179 + $0x31a] sm:$0xff]
  %v1975 = vld [vmem:[%s179 + $0x322] sm:$0xff]
  %2040 = vrot.lane.b32.xlu0 %v1912, 20
  %v2041 = vpop.permute.xlu0 %2040
  %2042 = vrot.lane.b32.xlu0 %v1913, 20
  %v2043 = vpop.permute.xlu0 %2042
  %2044 = vrot.lane.b32.xlu0 %v1914, 20
  %v2045 = vpop.permute.xlu0 %2044
  %2046 = vrot.lane.b32.xlu0 %v1915, 20
  %v2047 = vpop.permute.xlu0 %2046
  %2048 = vrot.lane.b32.xlu0 %v1916, 20
  %v2049 = vpop.permute.xlu0 %2048
  %2050 = vrot.lane.b32.xlu0 %v1917, 20
  %v2051 = vpop.permute.xlu0 %2050
  %2052 = vrot.lane.b32.xlu0 %v1918, 20
  %v2053 = vpop.permute.xlu0 %2052
  %2054 = vrot.lane.b32.xlu0 %v1919, 20
  %v2055 = vpop.permute.xlu0 %2054
  %2056 = vrot.lane.b32.xlu0 %v1920, 20
  %v2057 = vpop.permute.xlu0 %2056
  %2058 = vrot.lane.b32.xlu0 %v1921, 20
  %v2059 = vpop.permute.xlu0 %2058
  %2060 = vrot.lane.b32.xlu0 %v1922, 20
  %v2061 = vpop.permute.xlu0 %2060
  %2062 = vrot.lane.b32.xlu0 %v1923, 20
  %v2063 = vpop.permute.xlu0 %2062
  %2064 = vrot.lane.b32.xlu0 %v1924, 20
  %v2065 = vpop.permute.xlu0 %2064
  %2066 = vrot.lane.b32.xlu0 %v1925, 20
  %v2067 = vpop.permute.xlu0 %2066
  %2068 = vrot.lane.b32.xlu0 %v1926, 20
  %v2069 = vpop.permute.xlu0 %2068
  %2070 = vrot.lane.b32.xlu0 %v1927, 20
  %v2071 = vpop.permute.xlu0 %2070
  %2072 = vrot.lane.b32.xlu0 %v1928, 20
  %v2073 = vpop.permute.xlu0 %2072
  %2074 = vrot.lane.b32.xlu0 %v1929, 20
  %v2075 = vpop.permute.xlu0 %2074
  %2076 = vrot.lane.b32.xlu0 %v1930, 20
  %v2077 = vpop.permute.xlu0 %2076
  %2078 = vrot.lane.b32.xlu0 %v1931, 20
  %v2079 = vpop.permute.xlu0 %2078
  %2080 = vrot.lane.b32.xlu0 %v1932, 20
  %v2081 = vpop.permute.xlu0 %2080
  %2082 = vrot.lane.b32.xlu0 %v1933, 20
  %v2083 = vpop.permute.xlu0 %2082
  %2084 = vrot.lane.b32.xlu0 %v1934, 20
  %v2085 = vpop.permute.xlu0 %2084
  %2086 = vrot.lane.b32.xlu0 %v1935, 20
  %v2087 = vpop.permute.xlu0 %2086
  %2088 = vrot.lane.b32.xlu0 %v1936, 20
  %v2089 = vpop.permute.xlu0 %2088
  %2090 = vrot.lane.b32.xlu0 %v1937, 20
  %v2091 = vpop.permute.xlu0 %2090
  %2092 = vrot.lane.b32.xlu0 %v1938, 20
  %v2093 = vpop.permute.xlu0 %2092
  %2094 = vrot.lane.b32.xlu0 %v1939, 20
  %v2095 = vpop.permute.xlu0 %2094
  %2096 = vrot.lane.b32.xlu0 %v1940, 20
  %v2097 = vpop.permute.xlu0 %2096
  %2098 = vrot.lane.b32.xlu0 %v1941, 20
  %v2099 = vpop.permute.xlu0 %2098
  %2100 = vrot.lane.b32.xlu0 %v1942, 20
  %v2101 = vpop.permute.xlu0 %2100
  %2102 = vrot.lane.b32.xlu0 %v1943, 20
  %v2103 = vpop.permute.xlu0 %2102
  %2104 = vrot.lane.b32.xlu0 %v1944, 20
  %v2105 = vpop.permute.xlu0 %2104
  %2106 = vrot.lane.b32.xlu0 %v1945, 20
  %v2107 = vpop.permute.xlu0 %2106
  %2108 = vrot.lane.b32.xlu0 %v1946, 20
  %v2109 = vpop.permute.xlu0 %2108
  %2110 = vrot.lane.b32.xlu0 %v1947, 20
  %v2111 = vpop.permute.xlu0 %2110
  %2112 = vrot.lane.b32.xlu0 %v1948, 20
  %v2113 = vpop.permute.xlu0 %2112
  %2114 = vrot.lane.b32.xlu0 %v1949, 20
  %v2115 = vpop.permute.xlu0 %2114
  %2116 = vrot.lane.b32.xlu0 %v1950, 20
  %v2117 = vpop.permute.xlu0 %2116
  %2118 = vrot.lane.b32.xlu0 %v1951, 20
  %v2119 = vpop.permute.xlu0 %2118
  %2120 = vrot.lane.b32.xlu0 %v1952, 20
  %v2121 = vpop.permute.xlu0 %2120
  %2122 = vrot.lane.b32.xlu0 %v1953, 20
  %v2123 = vpop.permute.xlu0 %2122
  %2124 = vrot.lane.b32.xlu0 %v1954, 20
  %v2125 = vpop.permute.xlu0 %2124
  %2126 = vrot.lane.b32.xlu0 %v1955, 20
  %v2127 = vpop.permute.xlu0 %2126
  %2128 = vrot.lane.b32.xlu0 %v1956, 20
  %v2129 = vpop.permute.xlu0 %2128
  %2130 = vrot.lane.b32.xlu0 %v1957, 20
  %v2131 = vpop.permute.xlu0 %2130
  %2132 = vrot.lane.b32.xlu0 %v1958, 20
  %v2133 = vpop.permute.xlu0 %2132
  %2134 = vrot.lane.b32.xlu0 %v1959, 20
  %v2135 = vpop.permute.xlu0 %2134
  %2136 = vrot.lane.b32.xlu0 %v1960, 20
  %v2137 = vpop.permute.xlu0 %2136
  %2138 = vrot.lane.b32.xlu0 %v1961, 20
  %v2139 = vpop.permute.xlu0 %2138
  %2140 = vrot.lane.b32.xlu0 %v1962, 20
  %v2141 = vpop.permute.xlu0 %2140
  %2142 = vrot.lane.b32.xlu0 %v1963, 20
  %v2143 = vpop.permute.xlu0 %2142
  %2144 = vrot.lane.b32.xlu0 %v1964, 20
  %v2145 = vpop.permute.xlu0 %2144
  %2146 = vrot.lane.b32.xlu0 %v1965, 20
  %v2147 = vpop.permute.xlu0 %2146
  %2148 = vrot.lane.b32.xlu0 %v1966, 20
  %v2149 = vpop.permute.xlu0 %2148
  %2150 = vrot.lane.b32.xlu0 %v1967, 20
  %v2151 = vpop.permute.xlu0 %2150
  %2152 = vrot.lane.b32.xlu0 %v1968, 20
  %v2153 = vpop.permute.xlu0 %2152
  %2154 = vrot.lane.b32.xlu0 %v1969, 20
  %v2155 = vpop.permute.xlu0 %2154
  %2156 = vrot.lane.b32.xlu0 %v1970, 20
  %v2157 = vpop.permute.xlu0 %2156
  %2158 = vrot.lane.b32.xlu0 %v1971, 20
  %v2159 = vpop.permute.xlu0 %2158
  %2160 = vrot.lane.b32.xlu0 %v1972, 20
  %v2161 = vpop.permute.xlu0 %2160
  %2162 = vrot.lane.b32.xlu0 %v1973, 20
  %v2163 = vpop.permute.xlu0 %2162
  %2164 = vrot.lane.b32.xlu0 %v1974, 20
  %v2165 = vpop.permute.xlu0 %2164
  %2166 = vrot.lane.b32.xlu0 %v1975, 20
  %v2167 = vpop.permute.xlu0 %2166
  %vm2232 = vcmask 195744
  %2233 = vst.msk [vmem:[#allocation3] sm:$0xff] %vm2232, %v2041
  %2234 = vst.msk [vmem:[#allocation3 + $0x8] sm:$0xff] %vm2232, %v2043
  %2235 = vst.msk [vmem:[#allocation3 + $0x10] sm:$0xff] %vm2232, %v2045
  %2236 = vst.msk [vmem:[#allocation3 + $0x18] sm:$0xff] %vm2232, %v2047
  %2237 = vst.msk [vmem:[#allocation3 + $0x20] sm:$0xff] %vm2232, %v2049
  %2238 = vst.msk [vmem:[#allocation3 + $0x28] sm:$0xff] %vm2232, %v2051
  %2239 = vst.msk [vmem:[#allocation3 + $0x30] sm:$0xff] %vm2232, %v2053
  %2240 = vst.msk [vmem:[#allocation3 + $0x38] sm:$0xff] %vm2232, %v2055
  %2241 = vst.msk [vmem:[#allocation3 + $0x40] sm:$0xff] %vm2232, %v2057
  %2242 = vst.msk [vmem:[#allocation3 + $0x48] sm:$0xff] %vm2232, %v2059
  %2243 = vst.msk [vmem:[#allocation3 + $0x50] sm:$0xff] %vm2232, %v2061
  %2244 = vst.msk [vmem:[#allocation3 + $0x58] sm:$0xff] %vm2232, %v2063
  %2245 = vst.msk [vmem:[#allocation3 + $0x60] sm:$0xff] %vm2232, %v2065
  %2246 = vst.msk [vmem:[#allocation3 + $0x68] sm:$0xff] %vm2232, %v2067
  %2247 = vst.msk [vmem:[#allocation3 + $0x70] sm:$0xff] %vm2232, %v2069
  %2248 = vst.msk [vmem:[#allocation3 + $0x78] sm:$0xff] %vm2232, %v2071
  %2249 = vst.msk [vmem:[#allocation3 + $0x80] sm:$0xff] %vm2232, %v2073
  %2250 = vst.msk [vmem:[#allocation3 + $0x88] sm:$0xff] %vm2232, %v2075
  %2251 = vst.msk [vmem:[#allocation3 + $0x90] sm:$0xff] %vm2232, %v2077
  %2252 = vst.msk [vmem:[#allocation3 + $0x98] sm:$0xff] %vm2232, %v2079
  %2253 = vst.msk [vmem:[#allocation3 + $0xa0] sm:$0xff] %vm2232, %v2081
  %2254 = vst.msk [vmem:[#allocation3 + $0xa8] sm:$0xff] %vm2232, %v2083
  %2255 = vst.msk [vmem:[#allocation3 + $0xb0] sm:$0xff] %vm2232, %v2085
  %2256 = vst.msk [vmem:[#allocation3 + $0xb8] sm:$0xff] %vm2232, %v2087
  %2257 = vst.msk [vmem:[#allocation3 + $0xc0] sm:$0xff] %vm2232, %v2089
  %2258 = vst.msk [vmem:[#allocation3 + $0xc8] sm:$0xff] %vm2232, %v2091
  %2259 = vst.msk [vmem:[#allocation3 + $0xd0] sm:$0xff] %vm2232, %v2093
  %2260 = vst.msk [vmem:[#allocation3 + $0xd8] sm:$0xff] %vm2232, %v2095
  %2261 = vst.msk [vmem:[#allocation3 + $0xe0] sm:$0xff] %vm2232, %v2097
  %2262 = vst.msk [vmem:[#allocation3 + $0xe8] sm:$0xff] %vm2232, %v2099
  %2263 = vst.msk [vmem:[#allocation3 + $0xf0] sm:$0xff] %vm2232, %v2101
  %2264 = vst.msk [vmem:[#allocation3 + $0xf8] sm:$0xff] %vm2232, %v2103
  %2265 = vst.msk [vmem:[#allocation3 + $0x100] sm:$0xff] %vm2232, %v2105
  %2266 = vst.msk [vmem:[#allocation3 + $0x108] sm:$0xff] %vm2232, %v2107
  %2267 = vst.msk [vmem:[#allocation3 + $0x110] sm:$0xff] %vm2232, %v2109
  %2268 = vst.msk [vmem:[#allocation3 + $0x118] sm:$0xff] %vm2232, %v2111
  %2269 = vst.msk [vmem:[#allocation3 + $0x120] sm:$0xff] %vm2232, %v2113
  %2270 = vst.msk [vmem:[#allocation3 + $0x128] sm:$0xff] %vm2232, %v2115
  %2271 = vst.msk [vmem:[#allocation3 + $0x130] sm:$0xff] %vm2232, %v2117
  %2272 = vst.msk [vmem:[#allocation3 + $0x138] sm:$0xff] %vm2232, %v2119
  %2273 = vst.msk [vmem:[#allocation3 + $0x140] sm:$0xff] %vm2232, %v2121
  %2274 = vst.msk [vmem:[#allocation3 + $0x148] sm:$0xff] %vm2232, %v2123
  %2275 = vst.msk [vmem:[#allocation3 + $0x150] sm:$0xff] %vm2232, %v2125
  %2276 = vst.msk [vmem:[#allocation3 + $0x158] sm:$0xff] %vm2232, %v2127
  %2277 = vst.msk [vmem:[#allocation3 + $0x160] sm:$0xff] %vm2232, %v2129
  %2278 = vst.msk [vmem:[#allocation3 + $0x168] sm:$0xff] %vm2232, %v2131
  %2279 = vst.msk [vmem:[#allocation3 + $0x170] sm:$0xff] %vm2232, %v2133
  %2280 = vst.msk [vmem:[#allocation3 + $0x178] sm:$0xff] %vm2232, %v2135
  %2281 = vst.msk [vmem:[#allocation3 + $0x180] sm:$0xff] %vm2232, %v2137
  %2282 = vst.msk [vmem:[#allocation3 + $0x188] sm:$0xff] %vm2232, %v2139
  %2283 = vst.msk [vmem:[#allocation3 + $0x190] sm:$0xff] %vm2232, %v2141
  %2284 = vst.msk [vmem:[#allocation3 + $0x198] sm:$0xff] %vm2232, %v2143
  %2285 = vst.msk [vmem:[#allocation3 + $0x1a0] sm:$0xff] %vm2232, %v2145
  %2286 = vst.msk [vmem:[#allocation3 + $0x1a8] sm:$0xff] %vm2232, %v2147
  %2287 = vst.msk [vmem:[#allocation3 + $0x1b0] sm:$0xff] %vm2232, %v2149
  %2288 = vst.msk [vmem:[#allocation3 + $0x1b8] sm:$0xff] %vm2232, %v2151
  %2289 = vst.msk [vmem:[#allocation3 + $0x1c0] sm:$0xff] %vm2232, %v2153
  %2290 = vst.msk [vmem:[#allocation3 + $0x1c8] sm:$0xff] %vm2232, %v2155
  %2291 = vst.msk [vmem:[#allocation3 + $0x1d0] sm:$0xff] %vm2232, %v2157
  %2292 = vst.msk [vmem:[#allocation3 + $0x1d8] sm:$0xff] %vm2232, %v2159
  %2293 = vst.msk [vmem:[#allocation3 + $0x1e0] sm:$0xff] %vm2232, %v2161
  %2294 = vst.msk [vmem:[#allocation3 + $0x1e8] sm:$0xff] %vm2232, %v2163
  %2295 = vst.msk [vmem:[#allocation3 + $0x1f0] sm:$0xff] %vm2232, %v2165
  %2296 = vst.msk [vmem:[#allocation3 + $0x1f8] sm:$0xff] %vm2232, %v2167
  %s2297 = scalar_lea.vmem [#allocation2], 48
  %v2298 = vld [vmem:[%s2297] sm:$0xff]
  %v2299 = vld [vmem:[%s2297 + $0x8] sm:$0xff]
  %v2300 = vld [vmem:[%s2297 + $0x18] sm:$0xff]
  %v2301 = vld [vmem:[%s2297 + $0x20] sm:$0xff]
  %v2302 = vld [vmem:[%s2297 + $0x30] sm:$0xff]
  %v2303 = vld [vmem:[%s2297 + $0x38] sm:$0xff]
  %v2304 = vld [vmem:[%s2297 + $0x48] sm:$0xff]
  %v2305 = vld [vmem:[%s2297 + $0x50] sm:$0xff]
  %v2306 = vld [vmem:[%s2297 + $0x60] sm:$0xff]
  %v2307 = vld [vmem:[%s2297 + $0x68] sm:$0xff]
  %v2308 = vld [vmem:[%s2297 + $0x78] sm:$0xff]
  %v2309 = vld [vmem:[%s2297 + $0x80] sm:$0xff]
  %v2310 = vld [vmem:[%s2297 + $0x90] sm:$0xff]
  %v2311 = vld [vmem:[%s2297 + $0x98] sm:$0xff]
  %v2312 = vld [vmem:[%s2297 + $0xa8] sm:$0xff]
  %v2313 = vld [vmem:[%s2297 + $0xb0] sm:$0xff]
  %v2314 = vld [vmem:[%s2297 + $0xc0] sm:$0xff]
  %v2315 = vld [vmem:[%s2297 + $0xc8] sm:$0xff]
  %v2316 = vld [vmem:[%s2297 + $0xd8] sm:$0xff]
  %v2317 = vld [vmem:[%s2297 + $0xe0] sm:$0xff]
  %v2318 = vld [vmem:[%s2297 + $0xf0] sm:$0xff]
  %v2319 = vld [vmem:[%s2297 + $0xf8] sm:$0xff]
  %v2320 = vld [vmem:[%s2297 + $0x108] sm:$0xff]
  %v2321 = vld [vmem:[%s2297 + $0x110] sm:$0xff]
  %v2322 = vld [vmem:[%s2297 + $0x120] sm:$0xff]
  %v2323 = vld [vmem:[%s2297 + $0x128] sm:$0xff]
  %v2324 = vld [vmem:[%s2297 + $0x138] sm:$0xff]
  %v2325 = vld [vmem:[%s2297 + $0x140] sm:$0xff]
  %v2326 = vld [vmem:[%s2297 + $0x150] sm:$0xff]
  %v2327 = vld [vmem:[%s2297 + $0x158] sm:$0xff]
  %v2328 = vld [vmem:[%s2297 + $0x168] sm:$0xff]
  %v2329 = vld [vmem:[%s2297 + $0x170] sm:$0xff]
  %v2330 = vld [vmem:[%s2297 + $0x1b0] sm:$0xff]
  %v2331 = vld [vmem:[%s2297 + $0x1b8] sm:$0xff]
  %v2332 = vld [vmem:[%s2297 + $0x1c8] sm:$0xff]
  %v2333 = vld [vmem:[%s2297 + $0x1d0] sm:$0xff]
  %v2334 = vld [vmem:[%s2297 + $0x1e0] sm:$0xff]
  %v2335 = vld [vmem:[%s2297 + $0x1e8] sm:$0xff]
  %v2336 = vld [vmem:[%s2297 + $0x1f8] sm:$0xff]
  %v2337 = vld [vmem:[%s2297 + $0x200] sm:$0xff]
  %v2338 = vld [vmem:[%s2297 + $0x210] sm:$0xff]
  %v2339 = vld [vmem:[%s2297 + $0x218] sm:$0xff]
  %v2340 = vld [vmem:[%s2297 + $0x228] sm:$0xff]
  %v2341 = vld [vmem:[%s2297 + $0x230] sm:$0xff]
  %v2342 = vld [vmem:[%s2297 + $0x240] sm:$0xff]
  %v2343 = vld [vmem:[%s2297 + $0x248] sm:$0xff]
  %v2344 = vld [vmem:[%s2297 + $0x258] sm:$0xff]
  %v2345 = vld [vmem:[%s2297 + $0x260] sm:$0xff]
  %v2346 = vld [vmem:[%s2297 + $0x270] sm:$0xff]
  %v2347 = vld [vmem:[%s2297 + $0x278] sm:$0xff]
  %v2348 = vld [vmem:[%s2297 + $0x288] sm:$0xff]
  %v2349 = vld [vmem:[%s2297 + $0x290] sm:$0xff]
  %v2350 = vld [vmem:[%s2297 + $0x2a0] sm:$0xff]
  %v2351 = vld [vmem:[%s2297 + $0x2a8] sm:$0xff]
  %v2352 = vld [vmem:[%s2297 + $0x2b8] sm:$0xff]
  %v2353 = vld [vmem:[%s2297 + $0x2c0] sm:$0xff]
  %v2354 = vld [vmem:[%s2297 + $0x2d0] sm:$0xff]
  %v2355 = vld [vmem:[%s2297 + $0x2d8] sm:$0xff]
  %v2356 = vld [vmem:[%s2297 + $0x2e8] sm:$0xff]
  %v2357 = vld [vmem:[%s2297 + $0x2f0] sm:$0xff]
  %v2358 = vld [vmem:[%s2297 + $0x300] sm:$0xff]
  %v2359 = vld [vmem:[%s2297 + $0x308] sm:$0xff]
  %v2360 = vld [vmem:[%s2297 + $0x318] sm:$0xff]
  %v2361 = vld [vmem:[%s2297 + $0x320] sm:$0xff]
  %2426 = vrot.lane.b32.xlu0 %v2298, 24
  %v2427 = vpop.permute.xlu0 %2426
  %2428 = vrot.lane.b32.xlu0 %v2299, 24
  %v2429 = vpop.permute.xlu0 %2428
  %2430 = vrot.lane.b32.xlu0 %v2300, 24
  %v2431 = vpop.permute.xlu0 %2430
  %2432 = vrot.lane.b32.xlu0 %v2301, 24
  %v2433 = vpop.permute.xlu0 %2432
  %2434 = vrot.lane.b32.xlu0 %v2302, 24
  %v2435 = vpop.permute.xlu0 %2434
  %2436 = vrot.lane.b32.xlu0 %v2303, 24
  %v2437 = vpop.permute.xlu0 %2436
  %2438 = vrot.lane.b32.xlu0 %v2304, 24
  %v2439 = vpop.permute.xlu0 %2438
  %2440 = vrot.lane.b32.xlu0 %v2305, 24
  %v2441 = vpop.permute.xlu0 %2440
  %2442 = vrot.lane.b32.xlu0 %v2306, 24
  %v2443 = vpop.permute.xlu0 %2442
  %2444 = vrot.lane.b32.xlu0 %v2307, 24
  %v2445 = vpop.permute.xlu0 %2444
  %2446 = vrot.lane.b32.xlu0 %v2308, 24
  %v2447 = vpop.permute.xlu0 %2446
  %2448 = vrot.lane.b32.xlu0 %v2309, 24
  %v2449 = vpop.permute.xlu0 %2448
  %2450 = vrot.lane.b32.xlu0 %v2310, 24
  %v2451 = vpop.permute.xlu0 %2450
  %2452 = vrot.lane.b32.xlu0 %v2311, 24
  %v2453 = vpop.permute.xlu0 %2452
  %2454 = vrot.lane.b32.xlu0 %v2312, 24
  %v2455 = vpop.permute.xlu0 %2454
  %2456 = vrot.lane.b32.xlu0 %v2313, 24
  %v2457 = vpop.permute.xlu0 %2456
  %2458 = vrot.lane.b32.xlu0 %v2314, 24
  %v2459 = vpop.permute.xlu0 %2458
  %2460 = vrot.lane.b32.xlu0 %v2315, 24
  %v2461 = vpop.permute.xlu0 %2460
  %2462 = vrot.lane.b32.xlu0 %v2316, 24
  %v2463 = vpop.permute.xlu0 %2462
  %2464 = vrot.lane.b32.xlu0 %v2317, 24
  %v2465 = vpop.permute.xlu0 %2464
  %2466 = vrot.lane.b32.xlu0 %v2318, 24
  %v2467 = vpop.permute.xlu0 %2466
  %2468 = vrot.lane.b32.xlu0 %v2319, 24
  %v2469 = vpop.permute.xlu0 %2468
  %2470 = vrot.lane.b32.xlu0 %v2320, 24
  %v2471 = vpop.permute.xlu0 %2470
  %2472 = vrot.lane.b32.xlu0 %v2321, 24
  %v2473 = vpop.permute.xlu0 %2472
  %2474 = vrot.lane.b32.xlu0 %v2322, 24
  %v2475 = vpop.permute.xlu0 %2474
  %2476 = vrot.lane.b32.xlu0 %v2323, 24
  %v2477 = vpop.permute.xlu0 %2476
  %2478 = vrot.lane.b32.xlu0 %v2324, 24
  %v2479 = vpop.permute.xlu0 %2478
  %2480 = vrot.lane.b32.xlu0 %v2325, 24
  %v2481 = vpop.permute.xlu0 %2480
  %2482 = vrot.lane.b32.xlu0 %v2326, 24
  %v2483 = vpop.permute.xlu0 %2482
  %2484 = vrot.lane.b32.xlu0 %v2327, 24
  %v2485 = vpop.permute.xlu0 %2484
  %2486 = vrot.lane.b32.xlu0 %v2328, 24
  %v2487 = vpop.permute.xlu0 %2486
  %2488 = vrot.lane.b32.xlu0 %v2329, 24
  %v2489 = vpop.permute.xlu0 %2488
  %2490 = vrot.lane.b32.xlu0 %v2330, 24
  %v2491 = vpop.permute.xlu0 %2490
  %2492 = vrot.lane.b32.xlu0 %v2331, 24
  %v2493 = vpop.permute.xlu0 %2492
  %2494 = vrot.lane.b32.xlu0 %v2332, 24
  %v2495 = vpop.permute.xlu0 %2494
  %2496 = vrot.lane.b32.xlu0 %v2333, 24
  %v2497 = vpop.permute.xlu0 %2496
  %2498 = vrot.lane.b32.xlu0 %v2334, 24
  %v2499 = vpop.permute.xlu0 %2498
  %2500 = vrot.lane.b32.xlu0 %v2335, 24
  %v2501 = vpop.permute.xlu0 %2500
  %2502 = vrot.lane.b32.xlu0 %v2336, 24
  %v2503 = vpop.permute.xlu0 %2502
  %2504 = vrot.lane.b32.xlu0 %v2337, 24
  %v2505 = vpop.permute.xlu0 %2504
  %2506 = vrot.lane.b32.xlu0 %v2338, 24
  %v2507 = vpop.permute.xlu0 %2506
  %2508 = vrot.lane.b32.xlu0 %v2339, 24
  %v2509 = vpop.permute.xlu0 %2508
  %2510 = vrot.lane.b32.xlu0 %v2340, 24
  %v2511 = vpop.permute.xlu0 %2510
  %2512 = vrot.lane.b32.xlu0 %v2341, 24
  %v2513 = vpop.permute.xlu0 %2512
  %2514 = vrot.lane.b32.xlu0 %v2342, 24
  %v2515 = vpop.permute.xlu0 %2514
  %2516 = vrot.lane.b32.xlu0 %v2343, 24
  %v2517 = vpop.permute.xlu0 %2516
  %2518 = vrot.lane.b32.xlu0 %v2344, 24
  %v2519 = vpop.permute.xlu0 %2518
  %2520 = vrot.lane.b32.xlu0 %v2345, 24
  %v2521 = vpop.permute.xlu0 %2520
  %2522 = vrot.lane.b32.xlu0 %v2346, 24
  %v2523 = vpop.permute.xlu0 %2522
  %2524 = vrot.lane.b32.xlu0 %v2347, 24
  %v2525 = vpop.permute.xlu0 %2524
  %2526 = vrot.lane.b32.xlu0 %v2348, 24
  %v2527 = vpop.permute.xlu0 %2526
  %2528 = vrot.lane.b32.xlu0 %v2349, 24
  %v2529 = vpop.permute.xlu0 %2528
  %2530 = vrot.lane.b32.xlu0 %v2350, 24
  %v2531 = vpop.permute.xlu0 %2530
  %2532 = vrot.lane.b32.xlu0 %v2351, 24
  %v2533 = vpop.permute.xlu0 %2532
  %2534 = vrot.lane.b32.xlu0 %v2352, 24
  %v2535 = vpop.permute.xlu0 %2534
  %2536 = vrot.lane.b32.xlu0 %v2353, 24
  %v2537 = vpop.permute.xlu0 %2536
  %2538 = vrot.lane.b32.xlu0 %v2354, 24
  %v2539 = vpop.permute.xlu0 %2538
  %2540 = vrot.lane.b32.xlu0 %v2355, 24
  %v2541 = vpop.permute.xlu0 %2540
  %2542 = vrot.lane.b32.xlu0 %v2356, 24
  %v2543 = vpop.permute.xlu0 %2542
  %2544 = vrot.lane.b32.xlu0 %v2357, 24
  %v2545 = vpop.permute.xlu0 %2544
  %2546 = vrot.lane.b32.xlu0 %v2358, 24
  %v2547 = vpop.permute.xlu0 %2546
  %2548 = vrot.lane.b32.xlu0 %v2359, 24
  %v2549 = vpop.permute.xlu0 %2548
  %2550 = vrot.lane.b32.xlu0 %v2360, 24
  %v2551 = vpop.permute.xlu0 %2550
  %2552 = vrot.lane.b32.xlu0 %v2361, 24
  %v2553 = vpop.permute.xlu0 %2552
  %vm2618 = vcmask 228544
  %2619 = vst.msk [vmem:[#allocation3] sm:$0xff] %vm2618, %v2427
  %2620 = vst.msk [vmem:[#allocation3 + $0x8] sm:$0xff] %vm2618, %v2429
  %2621 = vst.msk [vmem:[#allocation3 + $0x10] sm:$0xff] %vm2618, %v2431
  %2622 = vst.msk [vmem:[#allocation3 + $0x18] sm:$0xff] %vm2618, %v2433
  %2623 = vst.msk [vmem:[#allocation3 + $0x20] sm:$0xff] %vm2618, %v2435
  %2624 = vst.msk [vmem:[#allocation3 + $0x28] sm:$0xff] %vm2618, %v2437
  %2625 = vst.msk [vmem:[#allocation3 + $0x30] sm:$0xff] %vm2618, %v2439
  %2626 = vst.msk [vmem:[#allocation3 + $0x38] sm:$0xff] %vm2618, %v2441
  %2627 = vst.msk [vmem:[#allocation3 + $0x40] sm:$0xff] %vm2618, %v2443
  %2628 = vst.msk [vmem:[#allocation3 + $0x48] sm:$0xff] %vm2618, %v2445
  %2629 = vst.msk [vmem:[#allocation3 + $0x50] sm:$0xff] %vm2618, %v2447
  %2630 = vst.msk [vmem:[#allocation3 + $0x58] sm:$0xff] %vm2618, %v2449
  %2631 = vst.msk [vmem:[#allocation3 + $0x60] sm:$0xff] %vm2618, %v2451
  %2632 = vst.msk [vmem:[#allocation3 + $0x68] sm:$0xff] %vm2618, %v2453
  %2633 = vst.msk [vmem:[#allocation3 + $0x70] sm:$0xff] %vm2618, %v2455
  %2634 = vst.msk [vmem:[#allocation3 + $0x78] sm:$0xff] %vm2618, %v2457
  %2635 = vst.msk [vmem:[#allocation3 + $0x80] sm:$0xff] %vm2618, %v2459
  %2636 = vst.msk [vmem:[#allocation3 + $0x88] sm:$0xff] %vm2618, %v2461
  %2637 = vst.msk [vmem:[#allocation3 + $0x90] sm:$0xff] %vm2618, %v2463
  %2638 = vst.msk [vmem:[#allocation3 + $0x98] sm:$0xff] %vm2618, %v2465
  %2639 = vst.msk [vmem:[#allocation3 + $0xa0] sm:$0xff] %vm2618, %v2467
  %2640 = vst.msk [vmem:[#allocation3 + $0xa8] sm:$0xff] %vm2618, %v2469
  %2641 = vst.msk [vmem:[#allocation3 + $0xb0] sm:$0xff] %vm2618, %v2471
  %2642 = vst.msk [vmem:[#allocation3 + $0xb8] sm:$0xff] %vm2618, %v2473
  %2643 = vst.msk [vmem:[#allocation3 + $0xc0] sm:$0xff] %vm2618, %v2475
  %2644 = vst.msk [vmem:[#allocation3 + $0xc8] sm:$0xff] %vm2618, %v2477
  %2645 = vst.msk [vmem:[#allocation3 + $0xd0] sm:$0xff] %vm2618, %v2479
  %2646 = vst.msk [vmem:[#allocation3 + $0xd8] sm:$0xff] %vm2618, %v2481
  %2647 = vst.msk [vmem:[#allocation3 + $0xe0] sm:$0xff] %vm2618, %v2483
  %2648 = vst.msk [vmem:[#allocation3 + $0xe8] sm:$0xff] %vm2618, %v2485
  %2649 = vst.msk [vmem:[#allocation3 + $0xf0] sm:$0xff] %vm2618, %v2487
  %2650 = vst.msk [vmem:[#allocation3 + $0xf8] sm:$0xff] %vm2618, %v2489
  %2651 = vst.msk [vmem:[#allocation3 + $0x100] sm:$0xff] %vm2618, %v2491
  %2652 = vst.msk [vmem:[#allocation3 + $0x108] sm:$0xff] %vm2618, %v2493
  %2653 = vst.msk [vmem:[#allocation3 + $0x110] sm:$0xff] %vm2618, %v2495
  %2654 = vst.msk [vmem:[#allocation3 + $0x118] sm:$0xff] %vm2618, %v2497
  %2655 = vst.msk [vmem:[#allocation3 + $0x120] sm:$0xff] %vm2618, %v2499
  %2656 = vst.msk [vmem:[#allocation3 + $0x128] sm:$0xff] %vm2618, %v2501
  %2657 = vst.msk [vmem:[#allocation3 + $0x130] sm:$0xff] %vm2618, %v2503
  %2658 = vst.msk [vmem:[#allocation3 + $0x138] sm:$0xff] %vm2618, %v2505
  %2659 = vst.msk [vmem:[#allocation3 + $0x140] sm:$0xff] %vm2618, %v2507
  %2660 = vst.msk [vmem:[#allocation3 + $0x148] sm:$0xff] %vm2618, %v2509
  %2661 = vst.msk [vmem:[#allocation3 + $0x150] sm:$0xff] %vm2618, %v2511
  %2662 = vst.msk [vmem:[#allocation3 + $0x158] sm:$0xff] %vm2618, %v2513
  %2663 = vst.msk [vmem:[#allocation3 + $0x160] sm:$0xff] %vm2618, %v2515
  %2664 = vst.msk [vmem:[#allocation3 + $0x168] sm:$0xff] %vm2618, %v2517
  %2665 = vst.msk [vmem:[#allocation3 + $0x170] sm:$0xff] %vm2618, %v2519
  %2666 = vst.msk [vmem:[#allocation3 + $0x178] sm:$0xff] %vm2618, %v2521
  %2667 = vst.msk [vmem:[#allocation3 + $0x180] sm:$0xff] %vm2618, %v2523
  %2668 = vst.msk [vmem:[#allocation3 + $0x188] sm:$0xff] %vm2618, %v2525
  %2669 = vst.msk [vmem:[#allocation3 + $0x190] sm:$0xff] %vm2618, %v2527
  %2670 = vst.msk [vmem:[#allocation3 + $0x198] sm:$0xff] %vm2618, %v2529
  %2671 = vst.msk [vmem:[#allocation3 + $0x1a0] sm:$0xff] %vm2618, %v2531
  %2672 = vst.msk [vmem:[#allocation3 + $0x1a8] sm:$0xff] %vm2618, %v2533
  %2673 = vst.msk [vmem:[#allocation3 + $0x1b0] sm:$0xff] %vm2618, %v2535
  %2674 = vst.msk [vmem:[#allocation3 + $0x1b8] sm:$0xff] %vm2618, %v2537
  %2675 = vst.msk [vmem:[#allocation3 + $0x1c0] sm:$0xff] %vm2618, %v2539
  %2676 = vst.msk [vmem:[#allocation3 + $0x1c8] sm:$0xff] %vm2618, %v2541
  %2677 = vst.msk [vmem:[#allocation3 + $0x1d0] sm:$0xff] %vm2618, %v2543
  %2678 = vst.msk [vmem:[#allocation3 + $0x1d8] sm:$0xff] %vm2618, %v2545
  %2679 = vst.msk [vmem:[#allocation3 + $0x1e0] sm:$0xff] %vm2618, %v2547
  %2680 = vst.msk [vmem:[#allocation3 + $0x1e8] sm:$0xff] %vm2618, %v2549
  %2681 = vst.msk [vmem:[#allocation3 + $0x1f0] sm:$0xff] %vm2618, %v2551
  %2682 = vst.msk [vmem:[#allocation3 + $0x1f8] sm:$0xff] %vm2618, %v2553
  %v2683 = vld [vmem:[%s2297 + $0x1] sm:$0xff]
  %v2684 = vld [vmem:[%s2297 + $0x9] sm:$0xff]
  %v2685 = vld [vmem:[%s2297 + $0x19] sm:$0xff]
  %v2686 = vld [vmem:[%s2297 + $0x21] sm:$0xff]
  %v2687 = vld [vmem:[%s2297 + $0x31] sm:$0xff]
  %v2688 = vld [vmem:[%s2297 + $0x39] sm:$0xff]
  %v2689 = vld [vmem:[%s2297 + $0x49] sm:$0xff]
  %v2690 = vld [vmem:[%s2297 + $0x51] sm:$0xff]
  %v2691 = vld [vmem:[%s2297 + $0x61] sm:$0xff]
  %v2692 = vld [vmem:[%s2297 + $0x69] sm:$0xff]
  %v2693 = vld [vmem:[%s2297 + $0x79] sm:$0xff]
  %v2694 = vld [vmem:[%s2297 + $0x81] sm:$0xff]
  %v2695 = vld [vmem:[%s2297 + $0x91] sm:$0xff]
  %v2696 = vld [vmem:[%s2297 + $0x99] sm:$0xff]
  %v2697 = vld [vmem:[%s2297 + $0xa9] sm:$0xff]
  %v2698 = vld [vmem:[%s2297 + $0xb1] sm:$0xff]
  %v2699 = vld [vmem:[%s2297 + $0xc1] sm:$0xff]
  %v2700 = vld [vmem:[%s2297 + $0xc9] sm:$0xff]
  %v2701 = vld [vmem:[%s2297 + $0xd9] sm:$0xff]
  %v2702 = vld [vmem:[%s2297 + $0xe1] sm:$0xff]
  %v2703 = vld [vmem:[%s2297 + $0xf1] sm:$0xff]
  %v2704 = vld [vmem:[%s2297 + $0xf9] sm:$0xff]
  %v2705 = vld [vmem:[%s2297 + $0x109] sm:$0xff]
  %v2706 = vld [vmem:[%s2297 + $0x111] sm:$0xff]
  %v2707 = vld [vmem:[%s2297 + $0x121] sm:$0xff]
  %v2708 = vld [vmem:[%s2297 + $0x129] sm:$0xff]
  %v2709 = vld [vmem:[%s2297 + $0x139] sm:$0xff]
  %v2710 = vld [vmem:[%s2297 + $0x141] sm:$0xff]
  %v2711 = vld [vmem:[%s2297 + $0x151] sm:$0xff]
  %v2712 = vld [vmem:[%s2297 + $0x159] sm:$0xff]
  %v2713 = vld [vmem:[%s2297 + $0x169] sm:$0xff]
  %v2714 = vld [vmem:[%s2297 + $0x171] sm:$0xff]
  %v2715 = vld [vmem:[%s2297 + $0x1b1] sm:$0xff]
  %v2716 = vld [vmem:[%s2297 + $0x1b9] sm:$0xff]
  %v2717 = vld [vmem:[%s2297 + $0x1c9] sm:$0xff]
  %v2718 = vld [vmem:[%s2297 + $0x1d1] sm:$0xff]
  %v2719 = vld [vmem:[%s2297 + $0x1e1] sm:$0xff]
  %v2720 = vld [vmem:[%s2297 + $0x1e9] sm:$0xff]
  %v2721 = vld [vmem:[%s2297 + $0x1f9] sm:$0xff]
  %v2722 = vld [vmem:[%s2297 + $0x201] sm:$0xff]
  %v2723 = vld [vmem:[%s2297 + $0x211] sm:$0xff]
  %v2724 = vld [vmem:[%s2297 + $0x219] sm:$0xff]
  %v2725 = vld [vmem:[%s2297 + $0x229] sm:$0xff]
  %v2726 = vld [vmem:[%s2297 + $0x231] sm:$0xff]
  %v2727 = vld [vmem:[%s2297 + $0x241] sm:$0xff]
  %v2728 = vld [vmem:[%s2297 + $0x249] sm:$0xff]
  %v2729 = vld [vmem:[%s2297 + $0x259] sm:$0xff]
  %v2730 = vld [vmem:[%s2297 + $0x261] sm:$0xff]
  %v2731 = vld [vmem:[%s2297 + $0x271] sm:$0xff]
  %v2732 = vld [vmem:[%s2297 + $0x279] sm:$0xff]
  %v2733 = vld [vmem:[%s2297 + $0x289] sm:$0xff]
  %v2734 = vld [vmem:[%s2297 + $0x291] sm:$0xff]
  %v2735 = vld [vmem:[%s2297 + $0x2a1] sm:$0xff]
  %v2736 = vld [vmem:[%s2297 + $0x2a9] sm:$0xff]
  %v2737 = vld [vmem:[%s2297 + $0x2b9] sm:$0xff]
  %v2738 = vld [vmem:[%s2297 + $0x2c1] sm:$0xff]
  %v2739 = vld [vmem:[%s2297 + $0x2d1] sm:$0xff]
  %v2740 = vld [vmem:[%s2297 + $0x2d9] sm:$0xff]
  %v2741 = vld [vmem:[%s2297 + $0x2e9] sm:$0xff]
  %v2742 = vld [vmem:[%s2297 + $0x2f1] sm:$0xff]
  %v2743 = vld [vmem:[%s2297 + $0x301] sm:$0xff]
  %v2744 = vld [vmem:[%s2297 + $0x309] sm:$0xff]
  %v2745 = vld [vmem:[%s2297 + $0x319] sm:$0xff]
  %v2746 = vld [vmem:[%s2297 + $0x321] sm:$0xff]
  %2811 = vrot.lane.b32.xlu0 %v2683, 28
  %v2812 = vpop.permute.xlu0 %2811
  %2813 = vrot.lane.b32.xlu0 %v2684, 28
  %v2814 = vpop.permute.xlu0 %2813
  %2815 = vrot.lane.b32.xlu0 %v2685, 28
  %v2816 = vpop.permute.xlu0 %2815
  %2817 = vrot.lane.b32.xlu0 %v2686, 28
  %v2818 = vpop.permute.xlu0 %2817
  %2819 = vrot.lane.b32.xlu0 %v2687, 28
  %v2820 = vpop.permute.xlu0 %2819
  %2821 = vrot.lane.b32.xlu0 %v2688, 28
  %v2822 = vpop.permute.xlu0 %2821
  %2823 = vrot.lane.b32.xlu0 %v2689, 28
  %v2824 = vpop.permute.xlu0 %2823
  %2825 = vrot.lane.b32.xlu0 %v2690, 28
  %v2826 = vpop.permute.xlu0 %2825
  %2827 = vrot.lane.b32.xlu0 %v2691, 28
  %v2828 = vpop.permute.xlu0 %2827
  %2829 = vrot.lane.b32.xlu0 %v2692, 28
  %v2830 = vpop.permute.xlu0 %2829
  %2831 = vrot.lane.b32.xlu0 %v2693, 28
  %v2832 = vpop.permute.xlu0 %2831
  %2833 = vrot.lane.b32.xlu0 %v2694, 28
  %v2834 = vpop.permute.xlu0 %2833
  %2835 = vrot.lane.b32.xlu0 %v2695, 28
  %v2836 = vpop.permute.xlu0 %2835
  %2837 = vrot.lane.b32.xlu0 %v2696, 28
  %v2838 = vpop.permute.xlu0 %2837
  %2839 = vrot.lane.b32.xlu0 %v2697, 28
  %v2840 = vpop.permute.xlu0 %2839
  %2841 = vrot.lane.b32.xlu0 %v2698, 28
  %v2842 = vpop.permute.xlu0 %2841
  %2843 = vrot.lane.b32.xlu0 %v2699, 28
  %v2844 = vpop.permute.xlu0 %2843
  %2845 = vrot.lane.b32.xlu0 %v2700, 28
  %v2846 = vpop.permute.xlu0 %2845
  %2847 = vrot.lane.b32.xlu0 %v2701, 28
  %v2848 = vpop.permute.xlu0 %2847
  %2849 = vrot.lane.b32.xlu0 %v2702, 28
  %v2850 = vpop.permute.xlu0 %2849
  %2851 = vrot.lane.b32.xlu0 %v2703, 28
  %v2852 = vpop.permute.xlu0 %2851
  %2853 = vrot.lane.b32.xlu0 %v2704, 28
  %v2854 = vpop.permute.xlu0 %2853
  %2855 = vrot.lane.b32.xlu0 %v2705, 28
  %v2856 = vpop.permute.xlu0 %2855
  %2857 = vrot.lane.b32.xlu0 %v2706, 28
  %v2858 = vpop.permute.xlu0 %2857
  %2859 = vrot.lane.b32.xlu0 %v2707, 28
  %v2860 = vpop.permute.xlu0 %2859
  %2861 = vrot.lane.b32.xlu0 %v2708, 28
  %v2862 = vpop.permute.xlu0 %2861
  %2863 = vrot.lane.b32.xlu0 %v2709, 28
  %v2864 = vpop.permute.xlu0 %2863
  %2865 = vrot.lane.b32.xlu0 %v2710, 28
  %v2866 = vpop.permute.xlu0 %2865
  %2867 = vrot.lane.b32.xlu0 %v2711, 28
  %v2868 = vpop.permute.xlu0 %2867
  %2869 = vrot.lane.b32.xlu0 %v2712, 28
  %v2870 = vpop.permute.xlu0 %2869
  %2871 = vrot.lane.b32.xlu0 %v2713, 28
  %v2872 = vpop.permute.xlu0 %2871
  %2873 = vrot.lane.b32.xlu0 %v2714, 28
  %v2874 = vpop.permute.xlu0 %2873
  %2875 = vrot.lane.b32.xlu0 %v2715, 28
  %v2876 = vpop.permute.xlu0 %2875
  %2877 = vrot.lane.b32.xlu0 %v2716, 28
  %v2878 = vpop.permute.xlu0 %2877
  %2879 = vrot.lane.b32.xlu0 %v2717, 28
  %v2880 = vpop.permute.xlu0 %2879
  %2881 = vrot.lane.b32.xlu0 %v2718, 28
  %v2882 = vpop.permute.xlu0 %2881
  %2883 = vrot.lane.b32.xlu0 %v2719, 28
  %v2884 = vpop.permute.xlu0 %2883
  %2885 = vrot.lane.b32.xlu0 %v2720, 28
  %v2886 = vpop.permute.xlu0 %2885
  %2887 = vrot.lane.b32.xlu0 %v2721, 28
  %v2888 = vpop.permute.xlu0 %2887
  %2889 = vrot.lane.b32.xlu0 %v2722, 28
  %v2890 = vpop.permute.xlu0 %2889
  %2891 = vrot.lane.b32.xlu0 %v2723, 28
  %v2892 = vpop.permute.xlu0 %2891
  %2893 = vrot.lane.b32.xlu0 %v2724, 28
  %v2894 = vpop.permute.xlu0 %2893
  %2895 = vrot.lane.b32.xlu0 %v2725, 28
  %v2896 = vpop.permute.xlu0 %2895
  %2897 = vrot.lane.b32.xlu0 %v2726, 28
  %v2898 = vpop.permute.xlu0 %2897
  %2899 = vrot.lane.b32.xlu0 %v2727, 28
  %v2900 = vpop.permute.xlu0 %2899
  %2901 = vrot.lane.b32.xlu0 %v2728, 28
  %v2902 = vpop.permute.xlu0 %2901
  %2903 = vrot.lane.b32.xlu0 %v2729, 28
  %v2904 = vpop.permute.xlu0 %2903
  %2905 = vrot.lane.b32.xlu0 %v2730, 28
  %v2906 = vpop.permute.xlu0 %2905
  %2907 = vrot.lane.b32.xlu0 %v2731, 28
  %v2908 = vpop.permute.xlu0 %2907
  %2909 = vrot.lane.b32.xlu0 %v2732, 28
  %v2910 = vpop.permute.xlu0 %2909
  %2911 = vrot.lane.b32.xlu0 %v2733, 28
  %v2912 = vpop.permute.xlu0 %2911
  %2913 = vrot.lane.b32.xlu0 %v2734, 28
  %v2914 = vpop.permute.xlu0 %2913
  %2915 = vrot.lane.b32.xlu0 %v2735, 28
  %v2916 = vpop.permute.xlu0 %2915
  %2917 = vrot.lane.b32.xlu0 %v2736, 28
  %v2918 = vpop.permute.xlu0 %2917
  %2919 = vrot.lane.b32.xlu0 %v2737, 28
  %v2920 = vpop.permute.xlu0 %2919
  %2921 = vrot.lane.b32.xlu0 %v2738, 28
  %v2922 = vpop.permute.xlu0 %2921
  %2923 = vrot.lane.b32.xlu0 %v2739, 28
  %v2924 = vpop.permute.xlu0 %2923
  %2925 = vrot.lane.b32.xlu0 %v2740, 28
  %v2926 = vpop.permute.xlu0 %2925
  %2927 = vrot.lane.b32.xlu0 %v2741, 28
  %v2928 = vpop.permute.xlu0 %2927
  %2929 = vrot.lane.b32.xlu0 %v2742, 28
  %v2930 = vpop.permute.xlu0 %2929
  %2931 = vrot.lane.b32.xlu0 %v2743, 28
  %v2932 = vpop.permute.xlu0 %2931
  %2933 = vrot.lane.b32.xlu0 %v2744, 28
  %v2934 = vpop.permute.xlu0 %2933
  %2935 = vrot.lane.b32.xlu0 %v2745, 28
  %v2936 = vpop.permute.xlu0 %2935
  %2937 = vrot.lane.b32.xlu0 %v2746, 28
  %v2938 = vpop.permute.xlu0 %2937
  %vm3003 = vcmask 261344
  %3004 = vst.msk [vmem:[#allocation3] sm:$0xff] %vm3003, %v2812
  %3005 = vst.msk [vmem:[#allocation3 + $0x8] sm:$0xff] %vm3003, %v2814
  %3006 = vst.msk [vmem:[#allocation3 + $0x10] sm:$0xff] %vm3003, %v2816
  %3007 = vst.msk [vmem:[#allocation3 + $0x18] sm:$0xff] %vm3003, %v2818
  %3008 = vst.msk [vmem:[#allocation3 + $0x20] sm:$0xff] %vm3003, %v2820
  %3009 = vst.msk [vmem:[#allocation3 + $0x28] sm:$0xff] %vm3003, %v2822
  %3010 = vst.msk [vmem:[#allocation3 + $0x30] sm:$0xff] %vm3003, %v2824
  %3011 = vst.msk [vmem:[#allocation3 + $0x38] sm:$0xff] %vm3003, %v2826
  %3012 = vst.msk [vmem:[#allocation3 + $0x40] sm:$0xff] %vm3003, %v2828
  %3013 = vst.msk [vmem:[#allocation3 + $0x48] sm:$0xff] %vm3003, %v2830
  %3014 = vst.msk [vmem:[#allocation3 + $0x50] sm:$0xff] %vm3003, %v2832
  %3015 = vst.msk [vmem:[#allocation3 + $0x58] sm:$0xff] %vm3003, %v2834
  %3016 = vst.msk [vmem:[#allocation3 + $0x60] sm:$0xff] %vm3003, %v2836
  %3017 = vst.msk [vmem:[#allocation3 + $0x68] sm:$0xff] %vm3003, %v2838
  %3018 = vst.msk [vmem:[#allocation3 + $0x70] sm:$0xff] %vm3003, %v2840
  %3019 = vst.msk [vmem:[#allocation3 + $0x78] sm:$0xff] %vm3003, %v2842
  %3020 = vst.msk [vmem:[#allocation3 + $0x80] sm:$0xff] %vm3003, %v2844
  %3021 = vst.msk [vmem:[#allocation3 + $0x88] sm:$0xff] %vm3003, %v2846
  %3022 = vst.msk [vmem:[#allocation3 + $0x90] sm:$0xff] %vm3003, %v2848
  %3023 = vst.msk [vmem:[#allocation3 + $0x98] sm:$0xff] %vm3003, %v2850
  %3024 = vst.msk [vmem:[#allocation3 + $0xa0] sm:$0xff] %vm3003, %v2852
  %3025 = vst.msk [vmem:[#allocation3 + $0xa8] sm:$0xff] %vm3003, %v2854
  %3026 = vst.msk [vmem:[#allocation3 + $0xb0] sm:$0xff] %vm3003, %v2856
  %3027 = vst.msk [vmem:[#allocation3 + $0xb8] sm:$0xff] %vm3003, %v2858
  %3028 = vst.msk [vmem:[#allocation3 + $0xc0] sm:$0xff] %vm3003, %v2860
  %3029 = vst.msk [vmem:[#allocation3 + $0xc8] sm:$0xff] %vm3003, %v2862
  %3030 = vst.msk [vmem:[#allocation3 + $0xd0] sm:$0xff] %vm3003, %v2864
  %3031 = vst.msk [vmem:[#allocation3 + $0xd8] sm:$0xff] %vm3003, %v2866
  %3032 = vst.msk [vmem:[#allocation3 + $0xe0] sm:$0xff] %vm3003, %v2868
  %3033 = vst.msk [vmem:[#allocation3 + $0xe8] sm:$0xff] %vm3003, %v2870
  %3034 = vst.msk [vmem:[#allocation3 + $0xf0] sm:$0xff] %vm3003, %v2872
  %3035 = vst.msk [vmem:[#allocation3 + $0xf8] sm:$0xff] %vm3003, %v2874
  %3036 = vst.msk [vmem:[#allocation3 + $0x100] sm:$0xff] %vm3003, %v2876
  %3037 = vst.msk [vmem:[#allocation3 + $0x108] sm:$0xff] %vm3003, %v2878
  %3038 = vst.msk [vmem:[#allocation3 + $0x110] sm:$0xff] %vm3003, %v2880
  %3039 = vst.msk [vmem:[#allocation3 + $0x118] sm:$0xff] %vm3003, %v2882
  %3040 = vst.msk [vmem:[#allocation3 + $0x120] sm:$0xff] %vm3003, %v2884
  %3041 = vst.msk [vmem:[#allocation3 + $0x128] sm:$0xff] %vm3003, %v2886
  %3042 = vst.msk [vmem:[#allocation3 + $0x130] sm:$0xff] %vm3003, %v2888
  %3043 = vst.msk [vmem:[#allocation3 + $0x138] sm:$0xff] %vm3003, %v2890
  %3044 = vst.msk [vmem:[#allocation3 + $0x140] sm:$0xff] %vm3003, %v2892
  %3045 = vst.msk [vmem:[#allocation3 + $0x148] sm:$0xff] %vm3003, %v2894
  %3046 = vst.msk [vmem:[#allocation3 + $0x150] sm:$0xff] %vm3003, %v2896
  %3047 = vst.msk [vmem:[#allocation3 + $0x158] sm:$0xff] %vm3003, %v2898
  %3048 = vst.msk [vmem:[#allocation3 + $0x160] sm:$0xff] %vm3003, %v2900
  %3049 = vst.msk [vmem:[#allocation3 + $0x168] sm:$0xff] %vm3003, %v2902
  %3050 = vst.msk [vmem:[#allocation3 + $0x170] sm:$0xff] %vm3003, %v2904
  %3051 = vst.msk [vmem:[#allocation3 + $0x178] sm:$0xff] %vm3003, %v2906
  %3052 = vst.msk [vmem:[#allocation3 + $0x180] sm:$0xff] %vm3003, %v2908
  %3053 = vst.msk [vmem:[#allocation3 + $0x188] sm:$0xff] %vm3003, %v2910
  %3054 = vst.msk [vmem:[#allocation3 + $0x190] sm:$0xff] %vm3003, %v2912
  %3055 = vst.msk [vmem:[#allocation3 + $0x198] sm:$0xff] %vm3003, %v2914
  %3056 = vst.msk [vmem:[#allocation3 + $0x1a0] sm:$0xff] %vm3003, %v2916
  %3057 = vst.msk [vmem:[#allocation3 + $0x1a8] sm:$0xff] %vm3003, %v2918
  %3058 = vst.msk [vmem:[#allocation3 + $0x1b0] sm:$0xff] %vm3003, %v2920
  %3059 = vst.msk [vmem:[#allocation3 + $0x1b8] sm:$0xff] %vm3003, %v2922
  %3060 = vst.msk [vmem:[#allocation3 + $0x1c0] sm:$0xff] %vm3003, %v2924
  %3061 = vst.msk [vmem:[#allocation3 + $0x1c8] sm:$0xff] %vm3003, %v2926
  %3062 = vst.msk [vmem:[#allocation3 + $0x1d0] sm:$0xff] %vm3003, %v2928
  %3063 = vst.msk [vmem:[#allocation3 + $0x1d8] sm:$0xff] %vm3003, %v2930
  %3064 = vst.msk [vmem:[#allocation3 + $0x1e0] sm:$0xff] %vm3003, %v2932
  %3065 = vst.msk [vmem:[#allocation3 + $0x1e8] sm:$0xff] %vm3003, %v2934
  %3066 = vst.msk [vmem:[#allocation3 + $0x1f0] sm:$0xff] %vm3003, %v2936
  %3067 = vst.msk [vmem:[#allocation3 + $0x1f8] sm:$0xff] %vm3003, %v2938
  %v3068 = vld [vmem:[%s2297 + $0x2] sm:$0xff]
  %v3069 = vld [vmem:[%s2297 + $0xa] sm:$0xff]
  %v3070 = vld [vmem:[%s2297 + $0x1a] sm:$0xff]
  %v3071 = vld [vmem:[%s2297 + $0x22] sm:$0xff]
  %v3072 = vld [vmem:[%s2297 + $0x32] sm:$0xff]
  %v3073 = vld [vmem:[%s2297 + $0x3a] sm:$0xff]
  %v3074 = vld [vmem:[%s2297 + $0x4a] sm:$0xff]
  %v3075 = vld [vmem:[%s2297 + $0x52] sm:$0xff]
  %v3076 = vld [vmem:[%s2297 + $0x62] sm:$0xff]
  %v3077 = vld [vmem:[%s2297 + $0x6a] sm:$0xff]
  %v3078 = vld [vmem:[%s2297 + $0x7a] sm:$0xff]
  %v3079 = vld [vmem:[%s2297 + $0x82] sm:$0xff]
  %v3080 = vld [vmem:[%s2297 + $0x92] sm:$0xff]
  %v3081 = vld [vmem:[%s2297 + $0x9a] sm:$0xff]
  %v3082 = vld [vmem:[%s2297 + $0xaa] sm:$0xff]
  %v3083 = vld [vmem:[%s2297 + $0xb2] sm:$0xff]
  %v3084 = vld [vmem:[%s2297 + $0xc2] sm:$0xff]
  %v3085 = vld [vmem:[%s2297 + $0xca] sm:$0xff]
  %v3086 = vld [vmem:[%s2297 + $0xda] sm:$0xff]
  %v3087 = vld [vmem:[%s2297 + $0xe2] sm:$0xff]
  %v3088 = vld [vmem:[%s2297 + $0xf2] sm:$0xff]
  %v3089 = vld [vmem:[%s2297 + $0xfa] sm:$0xff]
  %v3090 = vld [vmem:[%s2297 + $0x10a] sm:$0xff]
  %v3091 = vld [vmem:[%s2297 + $0x112] sm:$0xff]
  %v3092 = vld [vmem:[%s2297 + $0x122] sm:$0xff]
  %v3093 = vld [vmem:[%s2297 + $0x12a] sm:$0xff]
  %v3094 = vld [vmem:[%s2297 + $0x13a] sm:$0xff]
  %v3095 = vld [vmem:[%s2297 + $0x142] sm:$0xff]
  %v3096 = vld [vmem:[%s2297 + $0x152] sm:$0xff]
  %v3097 = vld [vmem:[%s2297 + $0x15a] sm:$0xff]
  %v3098 = vld [vmem:[%s2297 + $0x16a] sm:$0xff]
  %v3099 = vld [vmem:[%s2297 + $0x172] sm:$0xff]
  %v3100 = vld [vmem:[%s2297 + $0x1b2] sm:$0xff]
  %v3101 = vld [vmem:[%s2297 + $0x1ba] sm:$0xff]
  %v3102 = vld [vmem:[%s2297 + $0x1ca] sm:$0xff]
  %v3103 = vld [vmem:[%s2297 + $0x1d2] sm:$0xff]
  %v3104 = vld [vmem:[%s2297 + $0x1e2] sm:$0xff]
  %v3105 = vld [vmem:[%s2297 + $0x1ea] sm:$0xff]
  %v3106 = vld [vmem:[%s2297 + $0x1fa] sm:$0xff]
  %v3107 = vld [vmem:[%s2297 + $0x202] sm:$0xff]
  %v3108 = vld [vmem:[%s2297 + $0x212] sm:$0xff]
  %v3109 = vld [vmem:[%s2297 + $0x21a] sm:$0xff]
  %v3110 = vld [vmem:[%s2297 + $0x22a] sm:$0xff]
  %v3111 = vld [vmem:[%s2297 + $0x232] sm:$0xff]
  %v3112 = vld [vmem:[%s2297 + $0x242] sm:$0xff]
  %v3113 = vld [vmem:[%s2297 + $0x24a] sm:$0xff]
  %v3114 = vld [vmem:[%s2297 + $0x25a] sm:$0xff]
  %v3115 = vld [vmem:[%s2297 + $0x262] sm:$0xff]
  %v3116 = vld [vmem:[%s2297 + $0x272] sm:$0xff]
  %v3117 = vld [vmem:[%s2297 + $0x27a] sm:$0xff]
  %v3118 = vld [vmem:[%s2297 + $0x28a] sm:$0xff]
  %v3119 = vld [vmem:[%s2297 + $0x292] sm:$0xff]
  %v3120 = vld [vmem:[%s2297 + $0x2a2] sm:$0xff]
  %v3121 = vld [vmem:[%s2297 + $0x2aa] sm:$0xff]
  %v3122 = vld [vmem:[%s2297 + $0x2ba] sm:$0xff]
  %v3123 = vld [vmem:[%s2297 + $0x2c2] sm:$0xff]
  %v3124 = vld [vmem:[%s2297 + $0x2d2] sm:$0xff]
  %v3125 = vld [vmem:[%s2297 + $0x2da] sm:$0xff]
  %v3126 = vld [vmem:[%s2297 + $0x2ea] sm:$0xff]
  %v3127 = vld [vmem:[%s2297 + $0x2f2] sm:$0xff]
  %v3128 = vld [vmem:[%s2297 + $0x302] sm:$0xff]
  %v3129 = vld [vmem:[%s2297 + $0x30a] sm:$0xff]
  %v3130 = vld [vmem:[%s2297 + $0x31a] sm:$0xff]
  %v3131 = vld [vmem:[%s2297 + $0x322] sm:$0xff]
  %3196 = vrot.lane.b32.xlu0 %v3068, 32
  %v3197 = vpop.permute.xlu0 %3196
  %3198 = vrot.lane.b32.xlu0 %v3069, 32
  %v3199 = vpop.permute.xlu0 %3198
  %3200 = vrot.lane.b32.xlu0 %v3070, 32
  %v3201 = vpop.permute.xlu0 %3200
  %3202 = vrot.lane.b32.xlu0 %v3071, 32
  %v3203 = vpop.permute.xlu0 %3202
  %3204 = vrot.lane.b32.xlu0 %v3072, 32
  %v3205 = vpop.permute.xlu0 %3204
  %3206 = vrot.lane.b32.xlu0 %v3073, 32
  %v3207 = vpop.permute.xlu0 %3206
  %3208 = vrot.lane.b32.xlu0 %v3074, 32
  %v3209 = vpop.permute.xlu0 %3208
  %3210 = vrot.lane.b32.xlu0 %v3075, 32
  %v3211 = vpop.permute.xlu0 %3210
  %3212 = vrot.lane.b32.xlu0 %v3076, 32
  %v3213 = vpop.permute.xlu0 %3212
  %3214 = vrot.lane.b32.xlu0 %v3077, 32
  %v3215 = vpop.permute.xlu0 %3214
  %3216 = vrot.lane.b32.xlu0 %v3078, 32
  %v3217 = vpop.permute.xlu0 %3216
  %3218 = vrot.lane.b32.xlu0 %v3079, 32
  %v3219 = vpop.permute.xlu0 %3218
  %3220 = vrot.lane.b32.xlu0 %v3080, 32
  %v3221 = vpop.permute.xlu0 %3220
  %3222 = vrot.lane.b32.xlu0 %v3081, 32
  %v3223 = vpop.permute.xlu0 %3222
  %3224 = vrot.lane.b32.xlu0 %v3082, 32
  %v3225 = vpop.permute.xlu0 %3224
  %3226 = vrot.lane.b32.xlu0 %v3083, 32
  %v3227 = vpop.permute.xlu0 %3226
  %3228 = vrot.lane.b32.xlu0 %v3084, 32
  %v3229 = vpop.permute.xlu0 %3228
  %3230 = vrot.lane.b32.xlu0 %v3085, 32
  %v3231 = vpop.permute.xlu0 %3230
  %3232 = vrot.lane.b32.xlu0 %v3086, 32
  %v3233 = vpop.permute.xlu0 %3232
  %3234 = vrot.lane.b32.xlu0 %v3087, 32
  %v3235 = vpop.permute.xlu0 %3234
  %3236 = vrot.lane.b32.xlu0 %v3088, 32
  %v3237 = vpop.permute.xlu0 %3236
  %3238 = vrot.lane.b32.xlu0 %v3089, 32
  %v3239 = vpop.permute.xlu0 %3238
  %3240 = vrot.lane.b32.xlu0 %v3090, 32
  %v3241 = vpop.permute.xlu0 %3240
  %3242 = vrot.lane.b32.xlu0 %v3091, 32
  %v3243 = vpop.permute.xlu0 %3242
  %3244 = vrot.lane.b32.xlu0 %v3092, 32
  %v3245 = vpop.permute.xlu0 %3244
  %3246 = vrot.lane.b32.xlu0 %v3093, 32
  %v3247 = vpop.permute.xlu0 %3246
  %3248 = vrot.lane.b32.xlu0 %v3094, 32
  %v3249 = vpop.permute.xlu0 %3248
  %3250 = vrot.lane.b32.xlu0 %v3095, 32
  %v3251 = vpop.permute.xlu0 %3250
  %3252 = vrot.lane.b32.xlu0 %v3096, 32
  %v3253 = vpop.permute.xlu0 %3252
  %3254 = vrot.lane.b32.xlu0 %v3097, 32
  %v3255 = vpop.permute.xlu0 %3254
  %3256 = vrot.lane.b32.xlu0 %v3098, 32
  %v3257 = vpop.permute.xlu0 %3256
  %3258 = vrot.lane.b32.xlu0 %v3099, 32
  %v3259 = vpop.permute.xlu0 %3258
  %3260 = vrot.lane.b32.xlu0 %v3100, 32
  %v3261 = vpop.permute.xlu0 %3260
  %3262 = vrot.lane.b32.xlu0 %v3101, 32
  %v3263 = vpop.permute.xlu0 %3262
  %3264 = vrot.lane.b32.xlu0 %v3102, 32
  %v3265 = vpop.permute.xlu0 %3264
  %3266 = vrot.lane.b32.xlu0 %v3103, 32
  %v3267 = vpop.permute.xlu0 %3266
  %3268 = vrot.lane.b32.xlu0 %v3104, 32
  %v3269 = vpop.permute.xlu0 %3268
  %3270 = vrot.lane.b32.xlu0 %v3105, 32
  %v3271 = vpop.permute.xlu0 %3270
  %3272 = vrot.lane.b32.xlu0 %v3106, 32
  %v3273 = vpop.permute.xlu0 %3272
  %3274 = vrot.lane.b32.xlu0 %v3107, 32
  %v3275 = vpop.permute.xlu0 %3274
  %3276 = vrot.lane.b32.xlu0 %v3108, 32
  %v3277 = vpop.permute.xlu0 %3276
  %3278 = vrot.lane.b32.xlu0 %v3109, 32
  %v3279 = vpop.permute.xlu0 %3278
  %3280 = vrot.lane.b32.xlu0 %v3110, 32
  %v3281 = vpop.permute.xlu0 %3280
  %3282 = vrot.lane.b32.xlu0 %v3111, 32
  %v3283 = vpop.permute.xlu0 %3282
  %3284 = vrot.lane.b32.xlu0 %v3112, 32
  %v3285 = vpop.permute.xlu0 %3284
  %3286 = vrot.lane.b32.xlu0 %v3113, 32
  %v3287 = vpop.permute.xlu0 %3286
  %3288 = vrot.lane.b32.xlu0 %v3114, 32
  %v3289 = vpop.permute.xlu0 %3288
  %3290 = vrot.lane.b32.xlu0 %v3115, 32
  %v3291 = vpop.permute.xlu0 %3290
  %3292 = vrot.lane.b32.xlu0 %v3116, 32
  %v3293 = vpop.permute.xlu0 %3292
  %3294 = vrot.lane.b32.xlu0 %v3117, 32
  %v3295 = vpop.permute.xlu0 %3294
  %3296 = vrot.lane.b32.xlu0 %v3118, 32
  %v3297 = vpop.permute.xlu0 %3296
  %3298 = vrot.lane.b32.xlu0 %v3119, 32
  %v3299 = vpop.permute.xlu0 %3298
  %3300 = vrot.lane.b32.xlu0 %v3120, 32
  %v3301 = vpop.permute.xlu0 %3300
  %3302 = vrot.lane.b32.xlu0 %v3121, 32
  %v3303 = vpop.permute.xlu0 %3302
  %3304 = vrot.lane.b32.xlu0 %v3122, 32
  %v3305 = vpop.permute.xlu0 %3304
  %3306 = vrot.lane.b32.xlu0 %v3123, 32
  %v3307 = vpop.permute.xlu0 %3306
  %3308 = vrot.lane.b32.xlu0 %v3124, 32
  %v3309 = vpop.permute.xlu0 %3308
  %3310 = vrot.lane.b32.xlu0 %v3125, 32
  %v3311 = vpop.permute.xlu0 %3310
  %3312 = vrot.lane.b32.xlu0 %v3126, 32
  %v3313 = vpop.permute.xlu0 %3312
  %3314 = vrot.lane.b32.xlu0 %v3127, 32
  %v3315 = vpop.permute.xlu0 %3314
  %3316 = vrot.lane.b32.xlu0 %v3128, 32
  %v3317 = vpop.permute.xlu0 %3316
  %3318 = vrot.lane.b32.xlu0 %v3129, 32
  %v3319 = vpop.permute.xlu0 %3318
  %3320 = vrot.lane.b32.xlu0 %v3130, 32
  %v3321 = vpop.permute.xlu0 %3320
  %3322 = vrot.lane.b32.xlu0 %v3131, 32
  %v3323 = vpop.permute.xlu0 %3322
  %vm3388 = vcmask 294144
  %3389 = vst.msk [vmem:[#allocation3] sm:$0xff] %vm3388, %v3197
  %3390 = vst.msk [vmem:[#allocation3 + $0x8] sm:$0xff] %vm3388, %v3199
  %3391 = vst.msk [vmem:[#allocation3 + $0x10] sm:$0xff] %vm3388, %v3201
  %3392 = vst.msk [vmem:[#allocation3 + $0x18] sm:$0xff] %vm3388, %v3203
  %3393 = vst.msk [vmem:[#allocation3 + $0x20] sm:$0xff] %vm3388, %v3205
  %3394 = vst.msk [vmem:[#allocation3 + $0x28] sm:$0xff] %vm3388, %v3207
  %3395 = vst.msk [vmem:[#allocation3 + $0x30] sm:$0xff] %vm3388, %v3209
  %3396 = vst.msk [vmem:[#allocation3 + $0x38] sm:$0xff] %vm3388, %v3211
  %3397 = vst.msk [vmem:[#allocation3 + $0x40] sm:$0xff] %vm3388, %v3213
  %3398 = vst.msk [vmem:[#allocation3 + $0x48] sm:$0xff] %vm3388, %v3215
  %3399 = vst.msk [vmem:[#allocation3 + $0x50] sm:$0xff] %vm3388, %v3217
  %3400 = vst.msk [vmem:[#allocation3 + $0x58] sm:$0xff] %vm3388, %v3219
  %3401 = vst.msk [vmem:[#allocation3 + $0x60] sm:$0xff] %vm3388, %v3221
  %3402 = vst.msk [vmem:[#allocation3 + $0x68] sm:$0xff] %vm3388, %v3223
  %3403 = vst.msk [vmem:[#allocation3 + $0x70] sm:$0xff] %vm3388, %v3225
  %3404 = vst.msk [vmem:[#allocation3 + $0x78] sm:$0xff] %vm3388, %v3227
  %3405 = vst.msk [vmem:[#allocation3 + $0x80] sm:$0xff] %vm3388, %v3229
  %3406 = vst.msk [vmem:[#allocation3 + $0x88] sm:$0xff] %vm3388, %v3231
  %3407 = vst.msk [vmem:[#allocation3 + $0x90] sm:$0xff] %vm3388, %v3233
  %3408 = vst.msk [vmem:[#allocation3 + $0x98] sm:$0xff] %vm3388, %v3235
  %3409 = vst.msk [vmem:[#allocation3 + $0xa0] sm:$0xff] %vm3388, %v3237
  %3410 = vst.msk [vmem:[#allocation3 + $0xa8] sm:$0xff] %vm3388, %v3239
  %3411 = vst.msk [vmem:[#allocation3 + $0xb0] sm:$0xff] %vm3388, %v3241
  %3412 = vst.msk [vmem:[#allocation3 + $0xb8] sm:$0xff] %vm3388, %v3243
  %3413 = vst.msk [vmem:[#allocation3 + $0xc0] sm:$0xff] %vm3388, %v3245
  %3414 = vst.msk [vmem:[#allocation3 + $0xc8] sm:$0xff] %vm3388, %v3247
  %3415 = vst.msk [vmem:[#allocation3 + $0xd0] sm:$0xff] %vm3388, %v3249
  %3416 = vst.msk [vmem:[#allocation3 + $0xd8] sm:$0xff] %vm3388, %v3251
  %3417 = vst.msk [vmem:[#allocation3 + $0xe0] sm:$0xff] %vm3388, %v3253
  %3418 = vst.msk [vmem:[#allocation3 + $0xe8] sm:$0xff] %vm3388, %v3255
  %3419 = vst.msk [vmem:[#allocation3 + $0xf0] sm:$0xff] %vm3388, %v3257
  %3420 = vst.msk [vmem:[#allocation3 + $0xf8] sm:$0xff] %vm3388, %v3259
  %3421 = vst.msk [vmem:[#allocation3 + $0x100] sm:$0xff] %vm3388, %v3261
  %3422 = vst.msk [vmem:[#allocation3 + $0x108] sm:$0xff] %vm3388, %v3263
  %3423 = vst.msk [vmem:[#allocation3 + $0x110] sm:$0xff] %vm3388, %v3265
  %3424 = vst.msk [vmem:[#allocation3 + $0x118] sm:$0xff] %vm3388, %v3267
  %3425 = vst.msk [vmem:[#allocation3 + $0x120] sm:$0xff] %vm3388, %v3269
  %3426 = vst.msk [vmem:[#allocation3 + $0x128] sm:$0xff] %vm3388, %v3271
  %3427 = vst.msk [vmem:[#allocation3 + $0x130] sm:$0xff] %vm3388, %v3273
  %3428 = vst.msk [vmem:[#allocation3 + $0x138] sm:$0xff] %vm3388, %v3275
  %3429 = vst.msk [vmem:[#allocation3 + $0x140] sm:$0xff] %vm3388, %v3277
  %3430 = vst.msk [vmem:[#allocation3 + $0x148] sm:$0xff] %vm3388, %v3279
  %3431 = vst.msk [vmem:[#allocation3 + $0x150] sm:$0xff] %vm3388, %v3281
  %3432 = vst.msk [vmem:[#allocation3 + $0x158] sm:$0xff] %vm3388, %v3283
  %3433 = vst.msk [vmem:[#allocation3 + $0x160] sm:$0xff] %vm3388, %v3285
  %3434 = vst.msk [vmem:[#allocation3 + $0x168] sm:$0xff] %vm3388, %v3287
  %3435 = vst.msk [vmem:[#allocation3 + $0x170] sm:$0xff] %vm3388, %v3289
  %3436 = vst.msk [vmem:[#allocation3 + $0x178] sm:$0xff] %vm3388, %v3291
  %3437 = vst.msk [vmem:[#allocation3 + $0x180] sm:$0xff] %vm3388, %v3293
  %3438 = vst.msk [vmem:[#allocation3 + $0x188] sm:$0xff] %vm3388, %v3295
  %3439 = vst.msk [vmem:[#allocation3 + $0x190] sm:$0xff] %vm3388, %v3297
  %3440 = vst.msk [vmem:[#allocation3 + $0x198] sm:$0xff] %vm3388, %v3299
  %3441 = vst.msk [vmem:[#allocation3 + $0x1a0] sm:$0xff] %vm3388, %v3301
  %3442 = vst.msk [vmem:[#allocation3 + $0x1a8] sm:$0xff] %vm3388, %v3303
  %3443 = vst.msk [vmem:[#allocation3 + $0x1b0] sm:$0xff] %vm3388, %v3305
  %3444 = vst.msk [vmem:[#allocation3 + $0x1b8] sm:$0xff] %vm3388, %v3307
  %3445 = vst.msk [vmem:[#allocation3 + $0x1c0] sm:$0xff] %vm3388, %v3309
  %3446 = vst.msk [vmem:[#allocation3 + $0x1c8] sm:$0xff] %vm3388, %v3311
  %3447 = vst.msk [vmem:[#allocation3 + $0x1d0] sm:$0xff] %vm3388, %v3313
  %3448 = vst.msk [vmem:[#allocation3 + $0x1d8] sm:$0xff] %vm3388, %v3315
  %3449 = vst.msk [vmem:[#allocation3 + $0x1e0] sm:$0xff] %vm3388, %v3317
  %3450 = vst.msk [vmem:[#allocation3 + $0x1e8] sm:$0xff] %vm3388, %v3319
  %3451 = vst.msk [vmem:[#allocation3 + $0x1f0] sm:$0xff] %vm3388, %v3321
  %3452 = vst.msk [vmem:[#allocation3 + $0x1f8] sm:$0xff] %vm3388, %v3323
  %v3453 = vld [vmem:[#allocation3] sm:$0xff]
  %v3454 = vld [vmem:[#allocation3 + $0x8] sm:$0xff]
  %v3455 = vld [vmem:[#allocation3 + $0x10] sm:$0xff]
  %v3456 = vld [vmem:[#allocation3 + $0x18] sm:$0xff]
  %v3457 = vld [vmem:[#allocation3 + $0x20] sm:$0xff]
  %v3458 = vld [vmem:[#allocation3 + $0x28] sm:$0xff]
  %v3459 = vld [vmem:[#allocation3 + $0x30] sm:$0xff]
  %v3460 = vld [vmem:[#allocation3 + $0x38] sm:$0xff]
  %v3461 = vld [vmem:[#allocation3 + $0x40] sm:$0xff]
  %v3462 = vld [vmem:[#allocation3 + $0x48] sm:$0xff]
  %v3463 = vld [vmem:[#allocation3 + $0x50] sm:$0xff]
  %v3464 = vld [vmem:[#allocation3 + $0x58] sm:$0xff]
  %v3465 = vld [vmem:[#allocation3 + $0x60] sm:$0xff]
  %v3466 = vld [vmem:[#allocation3 + $0x68] sm:$0xff]
  %v3467 = vld [vmem:[#allocation3 + $0x70] sm:$0xff]
  %v3468 = vld [vmem:[#allocation3 + $0x78] sm:$0xff]
  %v3469 = vld [vmem:[#allocation3 + $0x80] sm:$0xff]
  %v3470 = vld [vmem:[#allocation3 + $0x88] sm:$0xff]
  %v3471 = vld [vmem:[#allocation3 + $0x90] sm:$0xff]
  %v3472 = vld [vmem:[#allocation3 + $0x98] sm:$0xff]
  %v3473 = vld [vmem:[#allocation3 + $0xa0] sm:$0xff]
  %v3474 = vld [vmem:[#allocation3 + $0xa8] sm:$0xff]
  %v3475 = vld [vmem:[#allocation3 + $0xb0] sm:$0xff]
  %v3476 = vld [vmem:[#allocation3 + $0xb8] sm:$0xff]
  %v3477 = vld [vmem:[#allocation3 + $0xc0] sm:$0xff]
  %v3478 = vld [vmem:[#allocation3 + $0xc8] sm:$0xff]
  %v3479 = vld [vmem:[#allocation3 + $0xd0] sm:$0xff]
  %v3480 = vld [vmem:[#allocation3 + $0xd8] sm:$0xff]
  %v3481 = vld [vmem:[#allocation3 + $0xe0] sm:$0xff]
  %v3482 = vld [vmem:[#allocation3 + $0xe8] sm:$0xff]
  %v3483 = vld [vmem:[#allocation3 + $0xf0] sm:$0xff]
  %v3484 = vld [vmem:[#allocation3 + $0xf8] sm:$0xff]
  %v3485 = vld [vmem:[#allocation3 + $0x100] sm:$0xff]
  %v3486 = vld [vmem:[#allocation3 + $0x108] sm:$0xff]
  %v3487 = vld [vmem:[#allocation3 + $0x110] sm:$0xff]
  %v3488 = vld [vmem:[#allocation3 + $0x118] sm:$0xff]
  %v3489 = vld [vmem:[#allocation3 + $0x120] sm:$0xff]
  %v3490 = vld [vmem:[#allocation3 + $0x128] sm:$0xff]
  %v3491 = vld [vmem:[#allocation3 + $0x130] sm:$0xff]
  %v3492 = vld [vmem:[#allocation3 + $0x138] sm:$0xff]
  %v3493 = vld [vmem:[#allocation3 + $0x140] sm:$0xff]
  %v3494 = vld [vmem:[#allocation3 + $0x148] sm:$0xff]
  %v3495 = vld [vmem:[#allocation3 + $0x150] sm:$0xff]
  %v3496 = vld [vmem:[#allocation3 + $0x158] sm:$0xff]
  %v3497 = vld [vmem:[#allocation3 + $0x160] sm:$0xff]
  %v3498 = vld [vmem:[#allocation3 + $0x168] sm:$0xff]
  %v3499 = vld [vmem:[#allocation3 + $0x170] sm:$0xff]
  %v3500 = vld [vmem:[#allocation3 + $0x178] sm:$0xff]
  %v3501 = vld [vmem:[#allocation3 + $0x180] sm:$0xff]
  %v3502 = vld [vmem:[#allocation3 + $0x188] sm:$0xff]
  %v3503 = vld [vmem:[#allocation3 + $0x190] sm:$0xff]
  %v3504 = vld [vmem:[#allocation3 + $0x198] sm:$0xff]
  %v3505 = vld [vmem:[#allocation3 + $0x1a0] sm:$0xff]
  %v3506 = vld [vmem:[#allocation3 + $0x1a8] sm:$0xff]
  %v3507 = vld [vmem:[#allocation3 + $0x1b0] sm:$0xff]
  %v3508 = vld [vmem:[#allocation3 + $0x1b8] sm:$0xff]
  %v3509 = vld [vmem:[#allocation3 + $0x1c0] sm:$0xff]
  %v3510 = vld [vmem:[#allocation3 + $0x1c8] sm:$0xff]
  %v3511 = vld [vmem:[#allocation3 + $0x1d0] sm:$0xff]
  %v3512 = vld [vmem:[#allocation3 + $0x1d8] sm:$0xff]
  %v3513 = vld [vmem:[#allocation3 + $0x1e0] sm:$0xff]
  %v3514 = vld [vmem:[#allocation3 + $0x1e8] sm:$0xff]
  %v3515 = vld [vmem:[#allocation3 + $0x1f0] sm:$0xff]
  %v3516 = vld [vmem:[#allocation3 + $0x1f8] sm:$0xff]
  %v3517 = vpack.c.bf16 %v3454, %v3453
  %v3518 = vpack.c.bf16 %v3456, %v3455
  %v3519 = vpack.c.bf16 %v3458, %v3457
  %v3520 = vpack.c.bf16 %v3460, %v3459
  %v3521 = vpack.c.bf16 %v3462, %v3461
  %v3522 = vpack.c.bf16 %v3464, %v3463
  %v3523 = vpack.c.bf16 %v3466, %v3465
  %v3524 = vpack.c.bf16 %v3468, %v3467
  %v3525 = vpack.c.bf16 %v3470, %v3469
  %v3526 = vpack.c.bf16 %v3472, %v3471
  %v3527 = vpack.c.bf16 %v3474, %v3473
  %v3528 = vpack.c.bf16 %v3476, %v3475
  %v3529 = vpack.c.bf16 %v3478, %v3477
  %v3530 = vpack.c.bf16 %v3480, %v3479
  %v3531 = vpack.c.bf16 %v3482, %v3481
  %v3532 = vpack.c.bf16 %v3484, %v3483
  %v3533 = vpack.c.bf16 %v3486, %v3485
  %v3534 = vpack.c.bf16 %v3488, %v3487
  %v3535 = vpack.c.bf16 %v3490, %v3489
  %v3536 = vpack.c.bf16 %v3492, %v3491
  %v3537 = vpack.c.bf16 %v3494, %v3493
  %v3538 = vpack.c.bf16 %v3496, %v3495
  %v3539 = vpack.c.bf16 %v3498, %v3497
  %v3540 = vpack.c.bf16 %v3500, %v3499
  %v3541 = vpack.c.bf16 %v3502, %v3501
  %v3542 = vpack.c.bf16 %v3504, %v3503
  %v3543 = vpack.c.bf16 %v3506, %v3505
  %v3544 = vpack.c.bf16 %v3508, %v3507
  %v3545 = vpack.c.bf16 %v3510, %v3509
  %v3546 = vpack.c.bf16 %v3512, %v3511
  %v3547 = vpack.c.bf16 %v3514, %v3513
  %v3548 = vpack.c.bf16 %v3516, %v3515
  %v3549 = vld [vmem:[%s1] sm:$0xf]
  %v3550 = vld [vmem:[%s1 + $0x4] sm:$0xf]
  %v3551 = vld [vmem:[%s1 + $0x8] sm:$0xf]
  %v3552 = vld [vmem:[%s1 + $0xc] sm:$0xf]
  %v3553 = vld [vmem:[%s1 + $0x10] sm:$0x3]
  %v3559 = vunpack.c.l.b16 %v3549
  %v3560 = vunpack.c.l.b16 %v3550
  %v3561 = vunpack.c.l.b16 %v3551
  %v3562 = vunpack.c.l.b16 %v3552
  %v3563 = vunpack.c.l.b16 %v3553
  %v3564 = vpack.c.b16 %v3560, %v3559
  %v3565 = vpack.c.b16 %v3562, %v3561
  %v3566 = vpack.c.b16 %v3563, %v3563
  %vm3569 = vcmask 293888
  %v3571 = vsel %vm3569, %v3517, 0
  %v3574 = vsel %vm3569, %v3518, 0
  %v3577 = vsel %vm3569, %v3519, 0
  %v3580 = vsel %vm3569, %v3520, 0
  %v3583 = vsel %vm3569, %v3521, 0
  %v3586 = vsel %vm3569, %v3522, 0
  %v3589 = vsel %vm3569, %v3523, 0
  %v3592 = vsel %vm3569, %v3524, 0
  %v3595 = vsel %vm3569, %v3525, 0
  %v3598 = vsel %vm3569, %v3526, 0
  %v3601 = vsel %vm3569, %v3527, 0
  %v3604 = vsel %vm3569, %v3528, 0
  %v3607 = vsel %vm3569, %v3529, 0
  %v3610 = vsel %vm3569, %v3530, 0
  %v3613 = vsel %vm3569, %v3531, 0
  %v3616 = vsel %vm3569, %v3532, 0
  %v3619 = vsel %vm3569, %v3533, 0
  %v3622 = vsel %vm3569, %v3534, 0
  %v3625 = vsel %vm3569, %v3535, 0
  %v3628 = vsel %vm3569, %v3536, 0
  %v3631 = vsel %vm3569, %v3537, 0
  %v3634 = vsel %vm3569, %v3538, 0
  %v3637 = vsel %vm3569, %v3539, 0
  %v3640 = vsel %vm3569, %v3540, 0
  %v3643 = vsel %vm3569, %v3541, 0
  %v3646 = vsel %vm3569, %v3542, 0
  %v3649 = vsel %vm3569, %v3543, 0
  %v3652 = vsel %vm3569, %v3544, 0
  %v3655 = vsel %vm3569, %v3545, 0
  %v3658 = vsel %vm3569, %v3546, 0
  %v3661 = vsel %vm3569, %v3547, 0
  %v3664 = vsel %vm3569, %v3548, 0
  %vm3666 = vcmask 1041408
  %v3668 = vsel %vm3666, %v3566, 0
  %3670 = vmatpush.bf16.msra.mxu0 0
  %3671 = vmatpush.bf16.msra.mxu0 0
  %3672 = vmatpush.bf16.msra.mxu0 0
  %3673 = vmatpush.bf16.msra.mxu0 0
  %3674 = vmatpush.bf16.msra.mxu0 0
  %3675 = vmatpush.bf16.msra.mxu0 %v3668
  %3676 = vmatpush.bf16.msra.mxu0 %v3565
  %3677 = vmatpush.bf16.msra.mxu0 %v3564
  %3678 = vmatmul.bf16.gmra.mxu0 %v3571
  %v3679 = vpop.f32.mrf.mxu0
  %v3680 = vadd.f32 0.0, %v3679
  %v3681 = vpop.f32.mrf.mxu0
  %v3682 = vadd.f32 0.0, %v3681
  %3683 = vmatmul.bf16.gmra.mxu0 %v3574
  %v3684 = vpop.f32.mrf.mxu0
  %v3685 = vadd.f32 0.0, %v3684
  %v3686 = vpop.f32.mrf.mxu0
  %v3687 = vadd.f32 0.0, %v3686
  %3688 = vmatmul.bf16.gmra.mxu0 %v3577
  %v3689 = vpop.f32.mrf.mxu0
  %v3690 = vadd.f32 0.0, %v3689
  %v3691 = vpop.f32.mrf.mxu0
  %v3692 = vadd.f32 0.0, %v3691
  %3693 = vmatmul.bf16.gmra.mxu0 %v3580
  %v3694 = vpop.f32.mrf.mxu0
  %v3695 = vadd.f32 0.0, %v3694
  %v3696 = vpop.f32.mrf.mxu0
  %v3697 = vadd.f32 0.0, %v3696
  %3698 = vmatmul.bf16.gmra.mxu0 %v3583
  %v3699 = vpop.f32.mrf.mxu0
  %v3700 = vadd.f32 0.0, %v3699
  %v3701 = vpop.f32.mrf.mxu0
  %v3702 = vadd.f32 0.0, %v3701
  %3703 = vmatmul.bf16.gmra.mxu0 %v3586
  %v3704 = vpop.f32.mrf.mxu0
  %v3705 = vadd.f32 0.0, %v3704
  %v3706 = vpop.f32.mrf.mxu0
  %v3707 = vadd.f32 0.0, %v3706
  %3708 = vmatmul.bf16.gmra.mxu0 %v3589
  %v3709 = vpop.f32.mrf.mxu0
  %v3710 = vadd.f32 0.0, %v3709
  %v3711 = vpop.f32.mrf.mxu0
  %v3712 = vadd.f32 0.0, %v3711
  %3713 = vmatmul.bf16.gmra.mxu0 %v3592
  %v3714 = vpop.f32.mrf.mxu0
  %v3715 = vadd.f32 0.0, %v3714
  %v3716 = vpop.f32.mrf.mxu0
  %v3717 = vadd.f32 0.0, %v3716
  %3718 = vmatmul.bf16.gmra.mxu0 %v3595
  %v3719 = vpop.f32.mrf.mxu0
  %v3720 = vadd.f32 0.0, %v3719
  %v3721 = vpop.f32.mrf.mxu0
  %v3722 = vadd.f32 0.0, %v3721
  %3723 = vmatmul.bf16.gmra.mxu0 %v3598
  %v3724 = vpop.f32.mrf.mxu0
  %v3725 = vadd.f32 0.0, %v3724
  %v3726 = vpop.f32.mrf.mxu0
  %v3727 = vadd.f32 0.0, %v3726
  %3728 = vmatmul.bf16.gmra.mxu0 %v3601
  %v3729 = vpop.f32.mrf.mxu0
  %v3730 = vadd.f32 0.0, %v3729
  %v3731 = vpop.f32.mrf.mxu0
  %v3732 = vadd.f32 0.0, %v3731
  %3733 = vmatmul.bf16.gmra.mxu0 %v3604
  %v3734 = vpop.f32.mrf.mxu0
  %v3735 = vadd.f32 0.0, %v3734
  %v3736 = vpop.f32.mrf.mxu0
  %v3737 = vadd.f32 0.0, %v3736
  %3738 = vmatmul.bf16.gmra.mxu0 %v3607
  %v3739 = vpop.f32.mrf.mxu0
  %v3740 = vadd.f32 0.0, %v3739
  %v3741 = vpop.f32.mrf.mxu0
  %v3742 = vadd.f32 0.0, %v3741
  %3743 = vmatmul.bf16.gmra.mxu0 %v3610
  %v3744 = vpop.f32.mrf.mxu0
  %v3745 = vadd.f32 0.0, %v3744
  %v3746 = vpop.f32.mrf.mxu0
  %v3747 = vadd.f32 0.0, %v3746
  %3748 = vmatmul.bf16.gmra.mxu0 %v3613
  %v3749 = vpop.f32.mrf.mxu0
  %v3750 = vadd.f32 0.0, %v3749
  %v3751 = vpop.f32.mrf.mxu0
  %v3752 = vadd.f32 0.0, %v3751
  %3753 = vmatmul.bf16.gmra.mxu0 %v3616
  %v3754 = vpop.f32.mrf.mxu0
  %v3755 = vadd.f32 0.0, %v3754
  %v3756 = vpop.f32.mrf.mxu0
  %v3757 = vadd.f32 0.0, %v3756
  %3758 = vmatmul.bf16.gmra.mxu0 %v3619
  %v3759 = vpop.f32.mrf.mxu0
  %v3760 = vadd.f32 0.0, %v3759
  %v3761 = vpop.f32.mrf.mxu0
  %v3762 = vadd.f32 0.0, %v3761
  %3763 = vmatmul.bf16.gmra.mxu0 %v3622
  %v3764 = vpop.f32.mrf.mxu0
  %v3765 = vadd.f32 0.0, %v3764
  %v3766 = vpop.f32.mrf.mxu0
  %v3767 = vadd.f32 0.0, %v3766
  %3768 = vmatmul.bf16.gmra.mxu0 %v3625
  %v3769 = vpop.f32.mrf.mxu0
  %v3770 = vadd.f32 0.0, %v3769
  %v3771 = vpop.f32.mrf.mxu0
  %v3772 = vadd.f32 0.0, %v3771
  %3773 = vmatmul.bf16.gmra.mxu0 %v3628
  %v3774 = vpop.f32.mrf.mxu0
  %v3775 = vadd.f32 0.0, %v3774
  %v3776 = vpop.f32.mrf.mxu0
  %v3777 = vadd.f32 0.0, %v3776
  %3778 = vmatmul.bf16.gmra.mxu0 %v3631
  %v3779 = vpop.f32.mrf.mxu0
  %v3780 = vadd.f32 0.0, %v3779
  %v3781 = vpop.f32.mrf.mxu0
  %v3782 = vadd.f32 0.0, %v3781
  %3783 = vmatmul.bf16.gmra.mxu0 %v3634
  %v3784 = vpop.f32.mrf.mxu0
  %v3785 = vadd.f32 0.0, %v3784
  %v3786 = vpop.f32.mrf.mxu0
  %v3787 = vadd.f32 0.0, %v3786
  %3788 = vmatmul.bf16.gmra.mxu0 %v3637
  %v3789 = vpop.f32.mrf.mxu0
  %v3790 = vadd.f32 0.0, %v3789
  %v3791 = vpop.f32.mrf.mxu0
  %v3792 = vadd.f32 0.0, %v3791
  %3793 = vmatmul.bf16.gmra.mxu0 %v3640
  %v3794 = vpop.f32.mrf.mxu0
  %v3795 = vadd.f32 0.0, %v3794
  %v3796 = vpop.f32.mrf.mxu0
  %v3797 = vadd.f32 0.0, %v3796
  %3798 = vmatmul.bf16.gmra.mxu0 %v3643
  %v3799 = vpop.f32.mrf.mxu0
  %v3800 = vadd.f32 0.0, %v3799
  %v3801 = vpop.f32.mrf.mxu0
  %v3802 = vadd.f32 0.0, %v3801
  %3803 = vmatmul.bf16.gmra.mxu0 %v3646
  %v3804 = vpop.f32.mrf.mxu0
  %v3805 = vadd.f32 0.0, %v3804
  %v3806 = vpop.f32.mrf.mxu0
  %v3807 = vadd.f32 0.0, %v3806
  %3808 = vmatmul.bf16.gmra.mxu0 %v3649
  %v3809 = vpop.f32.mrf.mxu0
  %v3810 = vadd.f32 0.0, %v3809
  %v3811 = vpop.f32.mrf.mxu0
  %v3812 = vadd.f32 0.0, %v3811
  %3813 = vmatmul.bf16.gmra.mxu0 %v3652
  %v3814 = vpop.f32.mrf.mxu0
  %v3815 = vadd.f32 0.0, %v3814
  %v3816 = vpop.f32.mrf.mxu0
  %v3817 = vadd.f32 0.0, %v3816
  %3818 = vmatmul.bf16.gmra.mxu0 %v3655
  %v3819 = vpop.f32.mrf.mxu0
  %v3820 = vadd.f32 0.0, %v3819
  %v3821 = vpop.f32.mrf.mxu0
  %v3822 = vadd.f32 0.0, %v3821
  %3823 = vmatmul.bf16.gmra.mxu0 %v3658
  %v3824 = vpop.f32.mrf.mxu0
  %v3825 = vadd.f32 0.0, %v3824
  %v3826 = vpop.f32.mrf.mxu0
  %v3827 = vadd.f32 0.0, %v3826
  %3828 = vmatmul.bf16.gmra.mxu0 %v3661
  %v3829 = vpop.f32.mrf.mxu0
  %v3830 = vadd.f32 0.0, %v3829
  %v3831 = vpop.f32.mrf.mxu0
  %v3832 = vadd.f32 0.0, %v3831
  %3833 = vmatmul.bf16.gmra.mxu0 %v3664
  %v3834 = vpop.f32.mrf.mxu0
  %v3835 = vadd.f32 0.0, %v3834
  %v3836 = vpop.f32.mrf.mxu0
  %v3837 = vadd.f32 0.0, %v3836
  %3838 = vdwg.mxu0
  %v3839 = vld [vmem:[%s2] sm:$0x1]
  %v3840 = vld [vmem:[%s3] sm:$0x1]
  %vm3841 = vcmask 64512
  %v3842 = vsel %vm3841, %v3680, 0.0
  %v3843 = vsel %vm3841, %v3682, 0.0
  %v3844 = vadd.f32 %v3842, %v3843
  %v3845 = vsel %vm3841, %v3685, 0.0
  %v3846 = vadd.f32 %v3844, %v3845
  %v3847 = vsel %vm3841, %v3687, 0.0
  %v3848 = vadd.f32 %v3846, %v3847
  %v3849 = vsel %vm3841, %v3690, 0.0
  %v3850 = vadd.f32 %v3848, %v3849
  %v3851 = vsel %vm3841, %v3692, 0.0
  %v3852 = vadd.f32 %v3850, %v3851
  %v3853 = vsel %vm3841, %v3695, 0.0
  %v3854 = vadd.f32 %v3852, %v3853
  %v3855 = vsel %vm3841, %v3697, 0.0
  %v3856 = vadd.f32 %v3854, %v3855
  %v3857 = vsel %vm3841, %v3700, 0.0
  %v3858 = vadd.f32 %v3856, %v3857
  %v3859 = vsel %vm3841, %v3702, 0.0
  %v3860 = vadd.f32 %v3858, %v3859
  %v3861 = vsel %vm3841, %v3705, 0.0
  %v3862 = vadd.f32 %v3860, %v3861
  %v3863 = vsel %vm3841, %v3707, 0.0
  %v3864 = vadd.f32 %v3862, %v3863
  %v3865 = vsel %vm3841, %v3710, 0.0
  %v3866 = vadd.f32 %v3864, %v3865
  %v3867 = vsel %vm3841, %v3712, 0.0
  %v3868 = vadd.f32 %v3866, %v3867
  %v3869 = vsel %vm3841, %v3715, 0.0
  %v3870 = vadd.f32 %v3868, %v3869
  %v3871 = vsel %vm3841, %v3717, 0.0
  %v3872 = vadd.f32 %v3870, %v3871
  %v3873 = vsel %vm3841, %v3720, 0.0
  %v3874 = vadd.f32 %v3872, %v3873
  %v3875 = vsel %vm3841, %v3722, 0.0
  %v3876 = vadd.f32 %v3874, %v3875
  %v3877 = vsel %vm3841, %v3725, 0.0
  %v3878 = vadd.f32 %v3876, %v3877
  %v3879 = vsel %vm3841, %v3727, 0.0
  %v3880 = vadd.f32 %v3878, %v3879
  %v3881 = vsel %vm3841, %v3730, 0.0
  %v3882 = vadd.f32 %v3880, %v3881
  %v3883 = vsel %vm3841, %v3732, 0.0
  %v3884 = vadd.f32 %v3882, %v3883
  %v3885 = vsel %vm3841, %v3735, 0.0
  %v3886 = vadd.f32 %v3884, %v3885
  %v3887 = vsel %vm3841, %v3737, 0.0
  %v3888 = vadd.f32 %v3886, %v3887
  %v3889 = vsel %vm3841, %v3740, 0.0
  %v3890 = vadd.f32 %v3888, %v3889
  %v3891 = vsel %vm3841, %v3742, 0.0
  %v3892 = vadd.f32 %v3890, %v3891
  %v3893 = vsel %vm3841, %v3745, 0.0
  %v3894 = vadd.f32 %v3892, %v3893
  %v3895 = vsel %vm3841, %v3747, 0.0
  %v3896 = vadd.f32 %v3894, %v3895
  %v3897 = vsel %vm3841, %v3750, 0.0
  %v3898 = vadd.f32 %v3896, %v3897
  %v3899 = vsel %vm3841, %v3752, 0.0
  %v3900 = vadd.f32 %v3898, %v3899
  %v3901 = vsel %vm3841, %v3755, 0.0
  %v3902 = vadd.f32 %v3900, %v3901
  %v3903 = vsel %vm3841, %v3757, 0.0
  %v3904 = vadd.f32 %v3902, %v3903
  %v3905 = vsel %vm3841, %v3760, 0.0
  %v3906 = vadd.f32 %v3904, %v3905
  %v3907 = vsel %vm3841, %v3762, 0.0
  %v3908 = vadd.f32 %v3906, %v3907
  %v3909 = vsel %vm3841, %v3765, 0.0
  %v3910 = vadd.f32 %v3908, %v3909
  %v3911 = vsel %vm3841, %v3767, 0.0
  %v3912 = vadd.f32 %v3910, %v3911
  %v3913 = vsel %vm3841, %v3770, 0.0
  %v3914 = vadd.f32 %v3912, %v3913
  %v3915 = vsel %vm3841, %v3772, 0.0
  %v3916 = vadd.f32 %v3914, %v3915
  %v3917 = vsel %vm3841, %v3775, 0.0
  %v3918 = vadd.f32 %v3916, %v3917
  %v3919 = vsel %vm3841, %v3777, 0.0
  %v3920 = vadd.f32 %v3918, %v3919
  %v3921 = vsel %vm3841, %v3780, 0.0
  %v3922 = vadd.f32 %v3920, %v3921
  %v3923 = vsel %vm3841, %v3782, 0.0
  %v3924 = vadd.f32 %v3922, %v3923
  %v3925 = vsel %vm3841, %v3785, 0.0
  %v3926 = vadd.f32 %v3924, %v3925
  %v3927 = vsel %vm3841, %v3787, 0.0
  %v3928 = vadd.f32 %v3926, %v3927
  %v3929 = vsel %vm3841, %v3790, 0.0
  %v3930 = vadd.f32 %v3928, %v3929
  %v3931 = vsel %vm3841, %v3792, 0.0
  %v3932 = vadd.f32 %v3930, %v3931
  %v3933 = vsel %vm3841, %v3795, 0.0
  %v3934 = vadd.f32 %v3932, %v3933
  %v3935 = vsel %vm3841, %v3797, 0.0
  %v3936 = vadd.f32 %v3934, %v3935
  %v3937 = vsel %vm3841, %v3800, 0.0
  %v3938 = vadd.f32 %v3936, %v3937
  %v3939 = vsel %vm3841, %v3802, 0.0
  %v3940 = vadd.f32 %v3938, %v3939
  %v3941 = vsel %vm3841, %v3805, 0.0
  %v3942 = vadd.f32 %v3940, %v3941
  %v3943 = vsel %vm3841, %v3807, 0.0
  %v3944 = vadd.f32 %v3942, %v3943
  %v3945 = vsel %vm3841, %v3810, 0.0
  %v3946 = vadd.f32 %v3944, %v3945
  %v3947 = vsel %vm3841, %v3812, 0.0
  %v3948 = vadd.f32 %v3946, %v3947
  %v3949 = vsel %vm3841, %v3815, 0.0
  %v3950 = vadd.f32 %v3948, %v3949
  %v3951 = vsel %vm3841, %v3817, 0.0
  %v3952 = vadd.f32 %v3950, %v3951
  %v3953 = vsel %vm3841, %v3820, 0.0
  %v3954 = vadd.f32 %v3952, %v3953
  %v3955 = vsel %vm3841, %v3822, 0.0
  %v3956 = vadd.f32 %v3954, %v3955
  %v3957 = vsel %vm3841, %v3825, 0.0
  %v3958 = vadd.f32 %v3956, %v3957
  %v3959 = vsel %vm3841, %v3827, 0.0
  %v3960 = vadd.f32 %v3958, %v3959
  %v3961 = vsel %vm3841, %v3830, 0.0
  %v3962 = vadd.f32 %v3960, %v3961
  %v3963 = vsel %vm3841, %v3832, 0.0
  %v3964 = vadd.f32 %v3962, %v3963
  %v3965 = vsel %vm3841, %v3835, 0.0
  %v3966 = vadd.f32 %v3964, %v3965
  %v3967 = vsel %vm3841, %v3837, 0.0
  %v3968 = vadd.f32 %v3966, %v3967
  %v3969 = vrot.slane %v3968, 4
  %v3970 = vadd.f32 %v3968, %v3969
  %v3971 = vrot.slane %v3970, 2
  %v3972 = vadd.f32 %v3970, %v3971
  %v3973 = vrot.slane %v3972, 1
  %v3974 = vadd.f32 %v3972, %v3973
  %v3975 = vmul.f32 %v3974, 0.001953125
  %v3976 = vmul.f32 %v3680, %v3680
  %v3977 = vmul.f32 %v3682, %v3682
  %v3978 = vmul.f32 %v3685, %v3685
  %v3979 = vmul.f32 %v3687, %v3687
  %v3980 = vmul.f32 %v3690, %v3690
  %v3981 = vmul.f32 %v3692, %v3692
  %v3982 = vmul.f32 %v3695, %v3695
  %v3983 = vmul.f32 %v3697, %v3697
  %v3984 = vmul.f32 %v3700, %v3700
  %v3985 = vmul.f32 %v3702, %v3702
  %v3986 = vmul.f32 %v3705, %v3705
  %v3987 = vmul.f32 %v3707, %v3707
  %v3988 = vmul.f32 %v3710, %v3710
  %v3989 = vmul.f32 %v3712, %v3712
  %v3990 = vmul.f32 %v3715, %v3715
  %v3991 = vmul.f32 %v3717, %v3717
  %v3992 = vmul.f32 %v3720, %v3720
  %v3993 = vmul.f32 %v3722, %v3722
  %v3994 = vmul.f32 %v3725, %v3725
  %v3995 = vmul.f32 %v3727, %v3727
  %v3996 = vmul.f32 %v3730, %v3730
  %v3997 = vmul.f32 %v3732, %v3732
  %v3998 = vmul.f32 %v3735, %v3735
  %v3999 = vmul.f32 %v3737, %v3737
  %v4000 = vmul.f32 %v3740, %v3740
  %v4001 = vmul.f32 %v3742, %v3742
  %v4002 = vmul.f32 %v3745, %v3745
  %v4003 = vmul.f32 %v3747, %v3747
  %v4004 = vmul.f32 %v3750, %v3750
  %v4005 = vmul.f32 %v3752, %v3752
  %v4006 = vmul.f32 %v3755, %v3755
  %v4007 = vmul.f32 %v3757, %v3757
  %v4008 = vmul.f32 %v3760, %v3760
  %v4009 = vmul.f32 %v3762, %v3762
  %v4010 = vmul.f32 %v3765, %v3765
  %v4011 = vmul.f32 %v3767, %v3767
  %v4012 = vmul.f32 %v3770, %v3770
  %v4013 = vmul.f32 %v3772, %v3772
  %v4014 = vmul.f32 %v3775, %v3775
  %v4015 = vmul.f32 %v3777, %v3777
  %v4016 = vmul.f32 %v3780, %v3780
  %v4017 = vmul.f32 %v3782, %v3782
  %v4018 = vmul.f32 %v3785, %v3785
  %v4019 = vmul.f32 %v3787, %v3787
  %v4020 = vmul.f32 %v3790, %v3790
  %v4021 = vmul.f32 %v3792, %v3792
  %v4022 = vmul.f32 %v3795, %v3795
  %v4023 = vmul.f32 %v3797, %v3797
  %v4024 = vmul.f32 %v3800, %v3800
  %v4025 = vmul.f32 %v3802, %v3802
  %v4026 = vmul.f32 %v3805, %v3805
  %v4027 = vmul.f32 %v3807, %v3807
  %v4028 = vmul.f32 %v3810, %v3810
  %v4029 = vmul.f32 %v3812, %v3812
  %v4030 = vmul.f32 %v3815, %v3815
  %v4031 = vmul.f32 %v3817, %v3817
  %v4032 = vmul.f32 %v3820, %v3820
  %v4033 = vmul.f32 %v3822, %v3822
  %v4034 = vmul.f32 %v3825, %v3825
  %v4035 = vmul.f32 %v3827, %v3827
  %v4036 = vmul.f32 %v3830, %v3830
  %v4037 = vmul.f32 %v3832, %v3832
  %v4038 = vmul.f32 %v3835, %v3835
  %v4039 = vmul.f32 %v3837, %v3837
  %v4040 = vsel %vm3841, %v3976, 0.0
  %v4041 = vsel %vm3841, %v3977, 0.0
  %v4042 = vadd.f32 %v4040, %v4041
  %v4043 = vsel %vm3841, %v3978, 0.0
  %v4044 = vadd.f32 %v4042, %v4043
  %v4045 = vsel %vm3841, %v3979, 0.0
  %v4046 = vadd.f32 %v4044, %v4045
  %v4047 = vsel %vm3841, %v3980, 0.0
  %v4048 = vadd.f32 %v4046, %v4047
  %v4049 = vsel %vm3841, %v3981, 0.0
  %v4050 = vadd.f32 %v4048, %v4049
  %v4051 = vsel %vm3841, %v3982, 0.0
  %v4052 = vadd.f32 %v4050, %v4051
  %v4053 = vsel %vm3841, %v3983, 0.0
  %v4054 = vadd.f32 %v4052, %v4053
  %v4055 = vsel %vm3841, %v3984, 0.0
  %v4056 = vadd.f32 %v4054, %v4055
  %v4057 = vsel %vm3841, %v3985, 0.0
  %v4058 = vadd.f32 %v4056, %v4057
  %v4059 = vsel %vm3841, %v3986, 0.0
  %v4060 = vadd.f32 %v4058, %v4059
  %v4061 = vsel %vm3841, %v3987, 0.0
  %v4062 = vadd.f32 %v4060, %v4061
  %v4063 = vsel %vm3841, %v3988, 0.0
  %v4064 = vadd.f32 %v4062, %v4063
  %v4065 = vsel %vm3841, %v3989, 0.0
  %v4066 = vadd.f32 %v4064, %v4065
  %v4067 = vsel %vm3841, %v3990, 0.0
  %v4068 = vadd.f32 %v4066, %v4067
  %v4069 = vsel %vm3841, %v3991, 0.0
  %v4070 = vadd.f32 %v4068, %v4069
  %v4071 = vsel %vm3841, %v3992, 0.0
  %v4072 = vadd.f32 %v4070, %v4071
  %v4073 = vsel %vm3841, %v3993, 0.0
  %v4074 = vadd.f32 %v4072, %v4073
  %v4075 = vsel %vm3841, %v3994, 0.0
  %v4076 = vadd.f32 %v4074, %v4075
  %v4077 = vsel %vm3841, %v3995, 0.0
  %v4078 = vadd.f32 %v4076, %v4077
  %v4079 = vsel %vm3841, %v3996, 0.0
  %v4080 = vadd.f32 %v4078, %v4079
  %v4081 = vsel %vm3841, %v3997, 0.0
  %v4082 = vadd.f32 %v4080, %v4081
  %v4083 = vsel %vm3841, %v3998, 0.0
  %v4084 = vadd.f32 %v4082, %v4083
  %v4085 = vsel %vm3841, %v3999, 0.0
  %v4086 = vadd.f32 %v4084, %v4085
  %v4087 = vsel %vm3841, %v4000, 0.0
  %v4088 = vadd.f32 %v4086, %v4087
  %v4089 = vsel %vm3841, %v4001, 0.0
  %v4090 = vadd.f32 %v4088, %v4089
  %v4091 = vsel %vm3841, %v4002, 0.0
  %v4092 = vadd.f32 %v4090, %v4091
  %v4093 = vsel %vm3841, %v4003, 0.0
  %v4094 = vadd.f32 %v4092, %v4093
  %v4095 = vsel %vm3841, %v4004, 0.0
  %v4096 = vadd.f32 %v4094, %v4095
  %v4097 = vsel %vm3841, %v4005, 0.0
  %v4098 = vadd.f32 %v4096, %v4097
  %v4099 = vsel %vm3841, %v4006, 0.0
  %v4100 = vadd.f32 %v4098, %v4099
  %v4101 = vsel %vm3841, %v4007, 0.0
  %v4102 = vadd.f32 %v4100, %v4101
  %v4103 = vsel %vm3841, %v4008, 0.0
  %v4104 = vadd.f32 %v4102, %v4103
  %v4105 = vsel %vm3841, %v4009, 0.0
  %v4106 = vadd.f32 %v4104, %v4105
  %v4107 = vsel %vm3841, %v4010, 0.0
  %v4108 = vadd.f32 %v4106, %v4107
  %v4109 = vsel %vm3841, %v4011, 0.0
  %v4110 = vadd.f32 %v4108, %v4109
  %v4111 = vsel %vm3841, %v4012, 0.0
  %v4112 = vadd.f32 %v4110, %v4111
  %v4113 = vsel %vm3841, %v4013, 0.0
  %v4114 = vadd.f32 %v4112, %v4113
  %v4115 = vsel %vm3841, %v4014, 0.0
  %v4116 = vadd.f32 %v4114, %v4115
  %v4117 = vsel %vm3841, %v4015, 0.0
  %v4118 = vadd.f32 %v4116, %v4117
  %v4119 = vsel %vm3841, %v4016, 0.0
  %v4120 = vadd.f32 %v4118, %v4119
  %v4121 = vsel %vm3841, %v4017, 0.0
  %v4122 = vadd.f32 %v4120, %v4121
  %v4123 = vsel %vm3841, %v4018, 0.0
  %v4124 = vadd.f32 %v4122, %v4123
  %v4125 = vsel %vm3841, %v4019, 0.0
  %v4126 = vadd.f32 %v4124, %v4125
  %v4127 = vsel %vm3841, %v4020, 0.0
  %v4128 = vadd.f32 %v4126, %v4127
  %v4129 = vsel %vm3841, %v4021, 0.0
  %v4130 = vadd.f32 %v4128, %v4129
  %v4131 = vsel %vm3841, %v4022, 0.0
  %v4132 = vadd.f32 %v4130, %v4131
  %v4133 = vsel %vm3841, %v4023, 0.0
  %v4134 = vadd.f32 %v4132, %v4133
  %v4135 = vsel %vm3841, %v4024, 0.0
  %v4136 = vadd.f32 %v4134, %v4135
  %v4137 = vsel %vm3841, %v4025, 0.0
  %v4138 = vadd.f32 %v4136, %v4137
  %v4139 = vsel %vm3841, %v4026, 0.0
  %v4140 = vadd.f32 %v4138, %v4139
  %v4141 = vsel %vm3841, %v4027, 0.0
  %v4142 = vadd.f32 %v4140, %v4141
  %v4143 = vsel %vm3841, %v4028, 0.0
  %v4144 = vadd.f32 %v4142, %v4143
  %v4145 = vsel %vm3841, %v4029, 0.0
  %v4146 = vadd.f32 %v4144, %v4145
  %v4147 = vsel %vm3841, %v4030, 0.0
  %v4148 = vadd.f32 %v4146, %v4147
  %v4149 = vsel %vm3841, %v4031, 0.0
  %v4150 = vadd.f32 %v4148, %v4149
  %v4151 = vsel %vm3841, %v4032, 0.0
  %v4152 = vadd.f32 %v4150, %v4151
  %v4153 = vsel %vm3841, %v4033, 0.0
  %v4154 = vadd.f32 %v4152, %v4153
  %v4155 = vsel %vm3841, %v4034, 0.0
  %v4156 = vadd.f32 %v4154, %v4155
  %v4157 = vsel %vm3841, %v4035, 0.0
  %v4158 = vadd.f32 %v4156, %v4157
  %v4159 = vsel %vm3841, %v4036, 0.0
  %v4160 = vadd.f32 %v4158, %v4159
  %v4161 = vsel %vm3841, %v4037, 0.0
  %v4162 = vadd.f32 %v4160, %v4161
  %v4163 = vsel %vm3841, %v4038, 0.0
  %v4164 = vadd.f32 %v4162, %v4163
  %v4165 = vsel %vm3841, %v4039, 0.0
  %v4166 = vadd.f32 %v4164, %v4165
  %v4167 = vrot.slane %v4166, 4
  %v4168 = vadd.f32 %v4166, %v4167
  %v4169 = vrot.slane %v4168, 2
  %v4170 = vadd.f32 %v4168, %v4169
  %v4171 = vrot.slane %v4170, 1
  %v4172 = vadd.f32 %v4170, %v4171
  %v4173 = vmul.f32 %v4172, 0.001953125
  %v4174 = vmul.f32 %v3975, %v3975
  %v4175 = vsub.f32 %v4173, %v4174
  %v4176 = vadd.f32 %v4175, 1e-05
  %v4177 = vrsqrt.pop %v4176
  %v4178 = vmul.f32 %v4177, %v4176
  %v4179 = vmul.f32 %v4178, %v4177
  %v4180 = vmul.f32 0.5, %v4179
  %v4181 = vsub.f32 1.5, %v4180
  %v4182 = vmul.f32 %v4177, %v4181
  %vm4183 = vweird.f32 %v4176
  %vm4184 = vweird.f32 %v4177
  %vm4185 = vmor %vm4183, %vm4184
  %v4186 = vsel %vm4185, %v4177, %v4182
  %v4187 = vmul.f32 %v3839, %v4186
  %v4188 = vmul.f32 %v4187, %v3975
  %v4189 = vsub.f32 %v3840, %v4188
  %v4191 = vperm.slane %v4187, 0
  %v4193 = vmul.f32 %v3680, %v4191
  %v4194 = vmul.f32 %v3682, %v4191
  %v4195 = vmul.f32 %v3685, %v4191
  %v4196 = vmul.f32 %v3687, %v4191
  %v4197 = vmul.f32 %v3690, %v4191
  %v4198 = vmul.f32 %v3692, %v4191
  %v4199 = vmul.f32 %v3695, %v4191
  %v4200 = vmul.f32 %v3697, %v4191
  %v4201 = vmul.f32 %v3700, %v4191
  %v4202 = vmul.f32 %v3702, %v4191
  %v4203 = vmul.f32 %v3705, %v4191
  %v4204 = vmul.f32 %v3707, %v4191
  %v4205 = vmul.f32 %v3710, %v4191
  %v4206 = vmul.f32 %v3712, %v4191
  %v4207 = vmul.f32 %v3715, %v4191
  %v4208 = vmul.f32 %v3717, %v4191
  %v4209 = vmul.f32 %v3720, %v4191
  %v4210 = vmul.f32 %v3722, %v4191
  %v4211 = vmul.f32 %v3725, %v4191
  %v4212 = vmul.f32 %v3727, %v4191
  %v4213 = vmul.f32 %v3730, %v4191
  %v4214 = vmul.f32 %v3732, %v4191
  %v4215 = vmul.f32 %v3735, %v4191
  %v4216 = vmul.f32 %v3737, %v4191
  %v4217 = vmul.f32 %v3740, %v4191
  %v4218 = vmul.f32 %v3742, %v4191
  %v4219 = vmul.f32 %v3745, %v4191
  %v4220 = vmul.f32 %v3747, %v4191
  %v4221 = vmul.f32 %v3750, %v4191
  %v4222 = vmul.f32 %v3752, %v4191
  %v4223 = vmul.f32 %v3755, %v4191
  %v4224 = vmul.f32 %v3757, %v4191
  %v4225 = vmul.f32 %v3760, %v4191
  %v4226 = vmul.f32 %v3762, %v4191
  %v4227 = vmul.f32 %v3765, %v4191
  %v4228 = vmul.f32 %v3767, %v4191
  %v4229 = vmul.f32 %v3770, %v4191
  %v4230 = vmul.f32 %v3772, %v4191
  %v4231 = vmul.f32 %v3775, %v4191
  %v4232 = vmul.f32 %v3777, %v4191
  %v4233 = vmul.f32 %v3780, %v4191
  %v4234 = vmul.f32 %v3782, %v4191
  %v4235 = vmul.f32 %v3785, %v4191
  %v4236 = vmul.f32 %v3787, %v4191
  %v4237 = vmul.f32 %v3790, %v4191
  %v4238 = vmul.f32 %v3792, %v4191
  %v4239 = vmul.f32 %v3795, %v4191
  %v4240 = vmul.f32 %v3797, %v4191
  %v4241 = vmul.f32 %v3800, %v4191
  %v4242 = vmul.f32 %v3802, %v4191
  %v4243 = vmul.f32 %v3805, %v4191
  %v4244 = vmul.f32 %v3807, %v4191
  %v4245 = vmul.f32 %v3810, %v4191
  %v4246 = vmul.f32 %v3812, %v4191
  %v4247 = vmul.f32 %v3815, %v4191
  %v4248 = vmul.f32 %v3817, %v4191
  %v4249 = vmul.f32 %v3820, %v4191
  %v4250 = vmul.f32 %v3822, %v4191
  %v4251 = vmul.f32 %v3825, %v4191
  %v4252 = vmul.f32 %v3827, %v4191
  %v4253 = vmul.f32 %v3830, %v4191
  %v4254 = vmul.f32 %v3832, %v4191
  %v4255 = vmul.f32 %v3835, %v4191
  %v4256 = vmul.f32 %v3837, %v4191
  %v4258 = vperm.slane %v4189, 0
  %v4260 = vadd.f32 %v4193, %v4258
  %v4261 = vadd.f32 %v4194, %v4258
  %v4262 = vadd.f32 %v4195, %v4258
  %v4263 = vadd.f32 %v4196, %v4258
  %v4264 = vadd.f32 %v4197, %v4258
  %v4265 = vadd.f32 %v4198, %v4258
  %v4266 = vadd.f32 %v4199, %v4258
  %v4267 = vadd.f32 %v4200, %v4258
  %v4268 = vadd.f32 %v4201, %v4258
  %v4269 = vadd.f32 %v4202, %v4258
  %v4270 = vadd.f32 %v4203, %v4258
  %v4271 = vadd.f32 %v4204, %v4258
  %v4272 = vadd.f32 %v4205, %v4258
  %v4273 = vadd.f32 %v4206, %v4258
  %v4274 = vadd.f32 %v4207, %v4258
  %v4275 = vadd.f32 %v4208, %v4258
  %v4276 = vadd.f32 %v4209, %v4258
  %v4277 = vadd.f32 %v4210, %v4258
  %v4278 = vadd.f32 %v4211, %v4258
  %v4279 = vadd.f32 %v4212, %v4258
  %v4280 = vadd.f32 %v4213, %v4258
  %v4281 = vadd.f32 %v4214, %v4258
  %v4282 = vadd.f32 %v4215, %v4258
  %v4283 = vadd.f32 %v4216, %v4258
  %v4284 = vadd.f32 %v4217, %v4258
  %v4285 = vadd.f32 %v4218, %v4258
  %v4286 = vadd.f32 %v4219, %v4258
  %v4287 = vadd.f32 %v4220, %v4258
  %v4288 = vadd.f32 %v4221, %v4258
  %v4289 = vadd.f32 %v4222, %v4258
  %v4290 = vadd.f32 %v4223, %v4258
  %v4291 = vadd.f32 %v4224, %v4258
  %v4292 = vadd.f32 %v4225, %v4258
  %v4293 = vadd.f32 %v4226, %v4258
  %v4294 = vadd.f32 %v4227, %v4258
  %v4295 = vadd.f32 %v4228, %v4258
  %v4296 = vadd.f32 %v4229, %v4258
  %v4297 = vadd.f32 %v4230, %v4258
  %v4298 = vadd.f32 %v4231, %v4258
  %v4299 = vadd.f32 %v4232, %v4258
  %v4300 = vadd.f32 %v4233, %v4258
  %v4301 = vadd.f32 %v4234, %v4258
  %v4302 = vadd.f32 %v4235, %v4258
  %v4303 = vadd.f32 %v4236, %v4258
  %v4304 = vadd.f32 %v4237, %v4258
  %v4305 = vadd.f32 %v4238, %v4258
  %v4306 = vadd.f32 %v4239, %v4258
  %v4307 = vadd.f32 %v4240, %v4258
  %v4308 = vadd.f32 %v4241, %v4258
  %v4309 = vadd.f32 %v4242, %v4258
  %v4310 = vadd.f32 %v4243, %v4258
  %v4311 = vadd.f32 %v4244, %v4258
  %v4312 = vadd.f32 %v4245, %v4258
  %v4313 = vadd.f32 %v4246, %v4258
  %v4314 = vadd.f32 %v4247, %v4258
  %v4315 = vadd.f32 %v4248, %v4258
  %v4316 = vadd.f32 %v4249, %v4258
  %v4317 = vadd.f32 %v4250, %v4258
  %v4318 = vadd.f32 %v4251, %v4258
  %v4319 = vadd.f32 %v4252, %v4258
  %v4320 = vadd.f32 %v4253, %v4258
  %v4321 = vadd.f32 %v4254, %v4258
  %v4322 = vadd.f32 %v4255, %v4258
  %v4323 = vadd.f32 %v4256, %v4258
  %v4324 = vmax.f32 %v4260, 0.0
  %v4325 = vmax.f32 %v4261, 0.0
  %v4326 = vmax.f32 %v4262, 0.0
  %v4327 = vmax.f32 %v4263, 0.0
  %v4328 = vmax.f32 %v4264, 0.0
  %v4329 = vmax.f32 %v4265, 0.0
  %v4330 = vmax.f32 %v4266, 0.0
  %v4331 = vmax.f32 %v4267, 0.0
  %v4332 = vmax.f32 %v4268, 0.0
  %v4333 = vmax.f32 %v4269, 0.0
  %v4334 = vmax.f32 %v4270, 0.0
  %v4335 = vmax.f32 %v4271, 0.0
  %v4336 = vmax.f32 %v4272, 0.0
  %v4337 = vmax.f32 %v4273, 0.0
  %v4338 = vmax.f32 %v4274, 0.0
  %v4339 = vmax.f32 %v4275, 0.0
  %v4340 = vmax.f32 %v4276, 0.0
  %v4341 = vmax.f32 %v4277, 0.0
  %v4342 = vmax.f32 %v4278, 0.0
  %v4343 = vmax.f32 %v4279, 0.0
  %v4344 = vmax.f32 %v4280, 0.0
  %v4345 = vmax.f32 %v4281, 0.0
  %v4346 = vmax.f32 %v4282, 0.0
  %v4347 = vmax.f32 %v4283, 0.0
  %v4348 = vmax.f32 %v4284, 0.0
  %v4349 = vmax.f32 %v4285, 0.0
  %v4350 = vmax.f32 %v4286, 0.0
  %v4351 = vmax.f32 %v4287, 0.0
  %v4352 = vmax.f32 %v4288, 0.0
  %v4353 = vmax.f32 %v4289, 0.0
  %v4354 = vmax.f32 %v4290, 0.0
  %v4355 = vmax.f32 %v4291, 0.0
  %v4356 = vmax.f32 %v4292, 0.0
  %v4357 = vmax.f32 %v4293, 0.0
  %v4358 = vmax.f32 %v4294, 0.0
  %v4359 = vmax.f32 %v4295, 0.0
  %v4360 = vmax.f32 %v4296, 0.0
  %v4361 = vmax.f32 %v4297, 0.0
  %v4362 = vmax.f32 %v4298, 0.0
  %v4363 = vmax.f32 %v4299, 0.0
  %v4364 = vmax.f32 %v4300, 0.0
  %v4365 = vmax.f32 %v4301, 0.0
  %v4366 = vmax.f32 %v4302, 0.0
  %v4367 = vmax.f32 %v4303, 0.0
  %v4368 = vmax.f32 %v4304, 0.0
  %v4369 = vmax.f32 %v4305, 0.0
  %v4370 = vmax.f32 %v4306, 0.0
  %v4371 = vmax.f32 %v4307, 0.0
  %v4372 = vmax.f32 %v4308, 0.0
  %v4373 = vmax.f32 %v4309, 0.0
  %v4374 = vmax.f32 %v4310, 0.0
  %v4375 = vmax.f32 %v4311, 0.0
  %v4376 = vmax.f32 %v4312, 0.0
  %v4377 = vmax.f32 %v4313, 0.0
  %v4378 = vmax.f32 %v4314, 0.0
  %v4379 = vmax.f32 %v4315, 0.0
  %v4380 = vmax.f32 %v4316, 0.0
  %v4381 = vmax.f32 %v4317, 0.0
  %v4382 = vmax.f32 %v4318, 0.0
  %v4383 = vmax.f32 %v4319, 0.0
  %v4384 = vmax.f32 %v4320, 0.0
  %v4385 = vmax.f32 %v4321, 0.0
  %v4386 = vmax.f32 %v4322, 0.0
  %v4387 = vmax.f32 %v4323, 0.0
  %4388 = vst.msk [vmem:[#allocation4] sm:$0xff] %vm3841, 0.0
  %4389 = vst.msk [vmem:[#allocation4 + $0x8] sm:$0xff] %vm3841, 0.0
  %vm4390 = vcmask 58368
  %4391 = vst.msk [vmem:[#allocation4 + $0x10] sm:$0x3] %vm4390, 0.0
  %4392 = vst.msk [vmem:[#allocation4 + $0x1b0] sm:$0xff] %vm3841, 0.0
  %4393 = vst.msk [vmem:[#allocation4 + $0x1b8] sm:$0xff] %vm3841, 0.0
  %4394 = vst.msk [vmem:[#allocation4 + $0x1c0] sm:$0x3] %vm4390, 0.0
  %s4395 = scalar_lea.vmem [#allocation4], 408
  %4396 = vst.msk [vmem:[%s4395] sm:$0xff] %vm3841, 0.0
  %4397 = vst.msk [vmem:[%s4395 + $0x8] sm:$0xff] %vm3841, 0.0
  %4398 = vst.msk [vmem:[%s4395 + $0x10] sm:$0x3] %vm4390, 0.0
  %4399 = vst.msk [vmem:[%s4395 + $0x1b0] sm:$0xff] %vm3841, 0.0
  %4400 = vst.msk [vmem:[%s4395 + $0x1b8] sm:$0xff] %vm3841, 0.0
  %4401 = vst.msk [vmem:[%s4395 + $0x1c0] sm:$0x3] %vm4390, 0.0
  %vm4402 = vcmask 57344
  %4403 = vst.msk [vmem:[#allocation4] sm:$0x1] %vm4402, 0.0
  %4404 = vst.msk [vmem:[#allocation4 + $0x18] sm:$0x1] %vm4402, 0.0
  %4405 = vst.msk [vmem:[#allocation4 + $0x30] sm:$0x1] %vm4402, 0.0
  %4406 = vst.msk [vmem:[#allocation4 + $0x48] sm:$0x1] %vm4402, 0.0
  %4407 = vst.msk [vmem:[#allocation4 + $0x60] sm:$0x1] %vm4402, 0.0
  %4408 = vst.msk [vmem:[#allocation4 + $0x78] sm:$0x1] %vm4402, 0.0
  %4409 = vst.msk [vmem:[#allocation4 + $0x90] sm:$0x1] %vm4402, 0.0
  %4410 = vst.msk [vmem:[#allocation4 + $0xa8] sm:$0x1] %vm4402, 0.0
  %4411 = vst.msk [vmem:[#allocation4 + $0xc0] sm:$0x1] %vm4402, 0.0
  %4412 = vst.msk [vmem:[#allocation4 + $0xd8] sm:$0x1] %vm4402, 0.0
  %4413 = vst.msk [vmem:[#allocation4 + $0xf0] sm:$0x1] %vm4402, 0.0
  %4414 = vst.msk [vmem:[#allocation4 + $0x108] sm:$0x1] %vm4402, 0.0
  %4415 = vst.msk [vmem:[#allocation4 + $0x120] sm:$0x1] %vm4402, 0.0
  %4416 = vst.msk [vmem:[#allocation4 + $0x138] sm:$0x1] %vm4402, 0.0
  %4417 = vst.msk [vmem:[#allocation4 + $0x150] sm:$0x1] %vm4402, 0.0
  %4418 = vst.msk [vmem:[#allocation4 + $0x168] sm:$0x1] %vm4402, 0.0
  %4419 = vst.msk [vmem:[#allocation4 + $0x180] sm:$0x1] %vm4402, 0.0
  %4420 = vst.msk [vmem:[#allocation4 + $0x198] sm:$0x1] %vm4402, 0.0
  %4421 = vst.msk [vmem:[#allocation4 + $0x1b0] sm:$0x1] %vm4402, 0.0
  %4422 = vst.msk [vmem:[#allocation4 + $0x1c8] sm:$0x1] %vm4402, 0.0
  %4423 = vst.msk [vmem:[#allocation4 + $0x1e0] sm:$0x1] %vm4402, 0.0
  %4424 = vst.msk [vmem:[#allocation4 + $0x1f8] sm:$0x1] %vm4402, 0.0
  %4425 = vst.msk [vmem:[#allocation4 + $0x210] sm:$0x1] %vm4402, 0.0
  %4426 = vst.msk [vmem:[#allocation4 + $0x228] sm:$0x1] %vm4402, 0.0
  %4427 = vst.msk [vmem:[#allocation4 + $0x240] sm:$0x1] %vm4402, 0.0
  %4428 = vst.msk [vmem:[#allocation4 + $0x258] sm:$0x1] %vm4402, 0.0
  %4429 = vst.msk [vmem:[#allocation4 + $0x270] sm:$0x1] %vm4402, 0.0
  %4430 = vst.msk [vmem:[#allocation4 + $0x288] sm:$0x1] %vm4402, 0.0
  %4431 = vst.msk [vmem:[#allocation4 + $0x2a0] sm:$0x1] %vm4402, 0.0
  %4432 = vst.msk [vmem:[#allocation4 + $0x2b8] sm:$0x1] %vm4402, 0.0
  %4433 = vst.msk [vmem:[#allocation4 + $0x2d0] sm:$0x1] %vm4402, 0.0
  %4434 = vst.msk [vmem:[#allocation4 + $0x2e8] sm:$0x1] %vm4402, 0.0
  %4435 = vst.msk [vmem:[#allocation4 + $0x300] sm:$0x1] %vm4402, 0.0
  %4436 = vst.msk [vmem:[#allocation4 + $0x318] sm:$0x1] %vm4402, 0.0
  %4437 = vst.msk [vmem:[#allocation4 + $0x330] sm:$0x1] %vm4402, 0.0
  %4438 = vst.msk [vmem:[#allocation4 + $0x348] sm:$0x1] %vm4402, 0.0
  %4439 = vst.msk [vmem:[#allocation4 + $0x11] sm:$0x1] %vm4402, 0.0
  %4440 = vst.msk [vmem:[#allocation4 + $0x29] sm:$0x1] %vm4402, 0.0
  %4441 = vst.msk [vmem:[#allocation4 + $0x41] sm:$0x1] %vm4402, 0.0
  %4442 = vst.msk [vmem:[#allocation4 + $0x59] sm:$0x1] %vm4402, 0.0
  %4443 = vst.msk [vmem:[#allocation4 + $0x71] sm:$0x1] %vm4402, 0.0
  %4444 = vst.msk [vmem:[#allocation4 + $0x89] sm:$0x1] %vm4402, 0.0
  %4445 = vst.msk [vmem:[#allocation4 + $0xa1] sm:$0x1] %vm4402, 0.0
  %4446 = vst.msk [vmem:[#allocation4 + $0xb9] sm:$0x1] %vm4402, 0.0
  %4447 = vst.msk [vmem:[#allocation4 + $0xd1] sm:$0x1] %vm4402, 0.0
  %4448 = vst.msk [vmem:[#allocation4 + $0xe9] sm:$0x1] %vm4402, 0.0
  %4449 = vst.msk [vmem:[#allocation4 + $0x101] sm:$0x1] %vm4402, 0.0
  %4450 = vst.msk [vmem:[#allocation4 + $0x119] sm:$0x1] %vm4402, 0.0
  %4451 = vst.msk [vmem:[#allocation4 + $0x131] sm:$0x1] %vm4402, 0.0
  %4452 = vst.msk [vmem:[#allocation4 + $0x149] sm:$0x1] %vm4402, 0.0
  %4453 = vst.msk [vmem:[#allocation4 + $0x161] sm:$0x1] %vm4402, 0.0
  %4454 = vst.msk [vmem:[#allocation4 + $0x179] sm:$0x1] %vm4402, 0.0
  %4455 = vst.msk [vmem:[#allocation4 + $0x191] sm:$0x1] %vm4402, 0.0
  %4456 = vst.msk [vmem:[#allocation4 + $0x1a9] sm:$0x1] %vm4402, 0.0
  %4457 = vst.msk [vmem:[#allocation4 + $0x1c1] sm:$0x1] %vm4402, 0.0
  %4458 = vst.msk [vmem:[#allocation4 + $0x1d9] sm:$0x1] %vm4402, 0.0
  %4459 = vst.msk [vmem:[#allocation4 + $0x1f1] sm:$0x1] %vm4402, 0.0
  %4460 = vst.msk [vmem:[#allocation4 + $0x209] sm:$0x1] %vm4402, 0.0
  %4461 = vst.msk [vmem:[#allocation4 + $0x221] sm:$0x1] %vm4402, 0.0
  %4462 = vst.msk [vmem:[#allocation4 + $0x239] sm:$0x1] %vm4402, 0.0
  %4463 = vst.msk [vmem:[#allocation4 + $0x251] sm:$0x1] %vm4402, 0.0
  %4464 = vst.msk [vmem:[#allocation4 + $0x269] sm:$0x1] %vm4402, 0.0
  %4465 = vst.msk [vmem:[#allocation4 + $0x281] sm:$0x1] %vm4402, 0.0
  %4466 = vst.msk [vmem:[#allocation4 + $0x299] sm:$0x1] %vm4402, 0.0
  %4467 = vst.msk [vmem:[#allocation4 + $0x2b1] sm:$0x1] %vm4402, 0.0
  %4468 = vst.msk [vmem:[#allocation4 + $0x2c9] sm:$0x1] %vm4402, 0.0
  %4469 = vst.msk [vmem:[#allocation4 + $0x2e1] sm:$0x1] %vm4402, 0.0
  %4470 = vst.msk [vmem:[#allocation4 + $0x2f9] sm:$0x1] %vm4402, 0.0
  %4471 = vst.msk [vmem:[#allocation4 + $0x311] sm:$0x1] %vm4402, 0.0
  %4472 = vst.msk [vmem:[#allocation4 + $0x329] sm:$0x1] %vm4402, 0.0
  %4473 = vst.msk [vmem:[#allocation4 + $0x341] sm:$0x1] %vm4402, 0.0
  %4474 = vst.msk [vmem:[#allocation4 + $0x359] sm:$0x1] %vm4402, 0.0
  %s4475 = scalar_lea.vmem [#allocation4], 24
  %4476 = vst.msk [vmem:[%s4475 + $0x1] sm:$0xff] %vm3841, %v4324
  %4477 = vst.msk [vmem:[%s4475 + $0x9] sm:$0xff] %vm3841, %v4325
  %4478 = vst.msk [vmem:[%s4475 + $0x19] sm:$0xff] %vm3841, %v4326
  %4479 = vst.msk [vmem:[%s4475 + $0x21] sm:$0xff] %vm3841, %v4327
  %4480 = vst.msk [vmem:[%s4475 + $0x31] sm:$0xff] %vm3841, %v4328
  %4481 = vst.msk [vmem:[%s4475 + $0x39] sm:$0xff] %vm3841, %v4329
  %4482 = vst.msk [vmem:[%s4475 + $0x49] sm:$0xff] %vm3841, %v4330
  %4483 = vst.msk [vmem:[%s4475 + $0x51] sm:$0xff] %vm3841, %v4331
  %4484 = vst.msk [vmem:[%s4475 + $0x61] sm:$0xff] %vm3841, %v4332
  %4485 = vst.msk [vmem:[%s4475 + $0x69] sm:$0xff] %vm3841, %v4333
  %4486 = vst.msk [vmem:[%s4475 + $0x79] sm:$0xff] %vm3841, %v4334
  %4487 = vst.msk [vmem:[%s4475 + $0x81] sm:$0xff] %vm3841, %v4335
  %4488 = vst.msk [vmem:[%s4475 + $0x91] sm:$0xff] %vm3841, %v4336
  %4489 = vst.msk [vmem:[%s4475 + $0x99] sm:$0xff] %vm3841, %v4337
  %4490 = vst.msk [vmem:[%s4475 + $0xa9] sm:$0xff] %vm3841, %v4338
  %4491 = vst.msk [vmem:[%s4475 + $0xb1] sm:$0xff] %vm3841, %v4339
  %4492 = vst.msk [vmem:[%s4475 + $0xc1] sm:$0xff] %vm3841, %v4340
  %4493 = vst.msk [vmem:[%s4475 + $0xc9] sm:$0xff] %vm3841, %v4341
  %4494 = vst.msk [vmem:[%s4475 + $0xd9] sm:$0xff] %vm3841, %v4342
  %4495 = vst.msk [vmem:[%s4475 + $0xe1] sm:$0xff] %vm3841, %v4343
  %4496 = vst.msk [vmem:[%s4475 + $0xf1] sm:$0xff] %vm3841, %v4344
  %4497 = vst.msk [vmem:[%s4475 + $0xf9] sm:$0xff] %vm3841, %v4345
  %4498 = vst.msk [vmem:[%s4475 + $0x109] sm:$0xff] %vm3841, %v4346
  %4499 = vst.msk [vmem:[%s4475 + $0x111] sm:$0xff] %vm3841, %v4347
  %4500 = vst.msk [vmem:[%s4475 + $0x121] sm:$0xff] %vm3841, %v4348
  %4501 = vst.msk [vmem:[%s4475 + $0x129] sm:$0xff] %vm3841, %v4349
  %4502 = vst.msk [vmem:[%s4475 + $0x139] sm:$0xff] %vm3841, %v4350
  %4503 = vst.msk [vmem:[%s4475 + $0x141] sm:$0xff] %vm3841, %v4351
  %4504 = vst.msk [vmem:[%s4475 + $0x151] sm:$0xff] %vm3841, %v4352
  %4505 = vst.msk [vmem:[%s4475 + $0x159] sm:$0xff] %vm3841, %v4353
  %4506 = vst.msk [vmem:[%s4475 + $0x169] sm:$0xff] %vm3841, %v4354
  %4507 = vst.msk [vmem:[%s4475 + $0x171] sm:$0xff] %vm3841, %v4355
  %4508 = vst.msk [vmem:[%s4475 + $0x1b1] sm:$0xff] %vm3841, %v4356
  %4509 = vst.msk [vmem:[%s4475 + $0x1b9] sm:$0xff] %vm3841, %v4357
  %4510 = vst.msk [vmem:[%s4475 + $0x1c9] sm:$0xff] %vm3841, %v4358
  %4511 = vst.msk [vmem:[%s4475 + $0x1d1] sm:$0xff] %vm3841, %v4359
  %4512 = vst.msk [vmem:[%s4475 + $0x1e1] sm:$0xff] %vm3841, %v4360
  %4513 = vst.msk [vmem:[%s4475 + $0x1e9] sm:$0xff] %vm3841, %v4361
  %4514 = vst.msk [vmem:[%s4475 + $0x1f9] sm:$0xff] %vm3841, %v4362
  %4515 = vst.msk [vmem:[%s4475 + $0x201] sm:$0xff] %vm3841, %v4363
  %4516 = vst.msk [vmem:[%s4475 + $0x211] sm:$0xff] %vm3841, %v4364
  %4517 = vst.msk [vmem:[%s4475 + $0x219] sm:$0xff] %vm3841, %v4365
  %4518 = vst.msk [vmem:[%s4475 + $0x229] sm:$0xff] %vm3841, %v4366
  %4519 = vst.msk [vmem:[%s4475 + $0x231] sm:$0xff] %vm3841, %v4367
  %4520 = vst.msk [vmem:[%s4475 + $0x241] sm:$0xff] %vm3841, %v4368
  %4521 = vst.msk [vmem:[%s4475 + $0x249] sm:$0xff] %vm3841, %v4369
  %4522 = vst.msk [vmem:[%s4475 + $0x259] sm:$0xff] %vm3841, %v4370
  %4523 = vst.msk [vmem:[%s4475 + $0x261] sm:$0xff] %vm3841, %v4371
  %4524 = vst.msk [vmem:[%s4475 + $0x271] sm:$0xff] %vm3841, %v4372
  %4525 = vst.msk [vmem:[%s4475 + $0x279] sm:$0xff] %vm3841, %v4373
  %4526 = vst.msk [vmem:[%s4475 + $0x289] sm:$0xff] %vm3841, %v4374
  %4527 = vst.msk [vmem:[%s4475 + $0x291] sm:$0xff] %vm3841, %v4375
  %4528 = vst.msk [vmem:[%s4475 + $0x2a1] sm:$0xff] %vm3841, %v4376
  %4529 = vst.msk [vmem:[%s4475 + $0x2a9] sm:$0xff] %vm3841, %v4377
  %4530 = vst.msk [vmem:[%s4475 + $0x2b9] sm:$0xff] %vm3841, %v4378
  %4531 = vst.msk [vmem:[%s4475 + $0x2c1] sm:$0xff] %vm3841, %v4379
  %4532 = vst.msk [vmem:[%s4475 + $0x2d1] sm:$0xff] %vm3841, %v4380
  %4533 = vst.msk [vmem:[%s4475 + $0x2d9] sm:$0xff] %vm3841, %v4381
  %4534 = vst.msk [vmem:[%s4475 + $0x2e9] sm:$0xff] %vm3841, %v4382
  %4535 = vst.msk [vmem:[%s4475 + $0x2f1] sm:$0xff] %vm3841, %v4383
  %4536 = vst.msk [vmem:[%s4475 + $0x301] sm:$0xff] %vm3841, %v4384
  %4537 = vst.msk [vmem:[%s4475 + $0x309] sm:$0xff] %vm3841, %v4385
  %4538 = vst.msk [vmem:[%s4475 + $0x319] sm:$0xff] %vm3841, %v4386
  %4539 = vst.msk [vmem:[%s4475 + $0x321] sm:$0xff] %vm3841, %v4387
  %v4540 = vld [vmem:[#allocation4] sm:$0xff]
  %v4541 = vld [vmem:[#allocation4 + $0x8] sm:$0xff]
  %v4542 = vld [vmem:[#allocation4 + $0x18] sm:$0xff]
  %v4543 = vld [vmem:[#allocation4 + $0x20] sm:$0xff]
  %v4544 = vld [vmem:[#allocation4 + $0x30] sm:$0xff]
  %v4545 = vld [vmem:[#allocation4 + $0x38] sm:$0xff]
  %v4546 = vld [vmem:[#allocation4 + $0x48] sm:$0xff]
  %v4547 = vld [vmem:[#allocation4 + $0x50] sm:$0xff]
  %v4548 = vld [vmem:[#allocation4 + $0x60] sm:$0xff]
  %v4549 = vld [vmem:[#allocation4 + $0x68] sm:$0xff]
  %v4550 = vld [vmem:[#allocation4 + $0x78] sm:$0xff]
  %v4551 = vld [vmem:[#allocation4 + $0x80] sm:$0xff]
  %v4552 = vld [vmem:[#allocation4 + $0x90] sm:$0xff]
  %v4553 = vld [vmem:[#allocation4 + $0x98] sm:$0xff]
  %v4554 = vld [vmem:[#allocation4 + $0xa8] sm:$0xff]
  %v4555 = vld [vmem:[#allocation4 + $0xb0] sm:$0xff]
  %v4556 = vld [vmem:[#allocation4 + $0xc0] sm:$0xff]
  %v4557 = vld [vmem:[#allocation4 + $0xc8] sm:$0xff]
  %v4558 = vld [vmem:[#allocation4 + $0xd8] sm:$0xff]
  %v4559 = vld [vmem:[#allocation4 + $0xe0] sm:$0xff]
  %v4560 = vld [vmem:[#allocation4 + $0xf0] sm:$0xff]
  %v4561 = vld [vmem:[#allocation4 + $0xf8] sm:$0xff]
  %v4562 = vld [vmem:[#allocation4 + $0x108] sm:$0xff]
  %v4563 = vld [vmem:[#allocation4 + $0x110] sm:$0xff]
  %v4564 = vld [vmem:[#allocation4 + $0x120] sm:$0xff]
  %v4565 = vld [vmem:[#allocation4 + $0x128] sm:$0xff]
  %v4566 = vld [vmem:[#allocation4 + $0x138] sm:$0xff]
  %v4567 = vld [vmem:[#allocation4 + $0x140] sm:$0xff]
  %v4568 = vld [vmem:[#allocation4 + $0x150] sm:$0xff]
  %v4569 = vld [vmem:[#allocation4 + $0x158] sm:$0xff]
  %v4570 = vld [vmem:[#allocation4 + $0x168] sm:$0xff]
  %v4571 = vld [vmem:[#allocation4 + $0x170] sm:$0xff]
  %v4572 = vld [vmem:[#allocation4 + $0x1b0] sm:$0xff]
  %v4573 = vld [vmem:[#allocation4 + $0x1b8] sm:$0xff]
  %v4574 = vld [vmem:[#allocation4 + $0x1c8] sm:$0xff]
  %v4575 = vld [vmem:[#allocation4 + $0x1d0] sm:$0xff]
  %v4576 = vld [vmem:[#allocation4 + $0x1e0] sm:$0xff]
  %v4577 = vld [vmem:[#allocation4 + $0x1e8] sm:$0xff]
  %v4578 = vld [vmem:[#allocation4 + $0x1f8] sm:$0xff]
  %v4579 = vld [vmem:[#allocation4 + $0x200] sm:$0xff]
  %v4580 = vld [vmem:[#allocation4 + $0x210] sm:$0xff]
  %v4581 = vld [vmem:[#allocation4 + $0x218] sm:$0xff]
  %v4582 = vld [vmem:[#allocation4 + $0x228] sm:$0xff]
  %v4583 = vld [vmem:[#allocation4 + $0x230] sm:$0xff]
  %v4584 = vld [vmem:[#allocation4 + $0x240] sm:$0xff]
  %v4585 = vld [vmem:[#allocation4 + $0x248] sm:$0xff]
  %v4586 = vld [vmem:[#allocation4 + $0x258] sm:$0xff]
  %v4587 = vld [vmem:[#allocation4 + $0x260] sm:$0xff]
  %v4588 = vld [vmem:[#allocation4 + $0x270] sm:$0xff]
  %v4589 = vld [vmem:[#allocation4 + $0x278] sm:$0xff]
  %v4590 = vld [vmem:[#allocation4 + $0x288] sm:$0xff]
  %v4591 = vld [vmem:[#allocation4 + $0x290] sm:$0xff]
  %v4592 = vld [vmem:[#allocation4 + $0x2a0] sm:$0xff]
  %v4593 = vld [vmem:[#allocation4 + $0x2a8] sm:$0xff]
  %v4594 = vld [vmem:[#allocation4 + $0x2b8] sm:$0xff]
  %v4595 = vld [vmem:[#allocation4 + $0x2c0] sm:$0xff]
  %v4596 = vld [vmem:[#allocation4 + $0x2d0] sm:$0xff]
  %v4597 = vld [vmem:[#allocation4 + $0x2d8] sm:$0xff]
  %v4598 = vld [vmem:[#allocation4 + $0x2e8] sm:$0xff]
  %v4599 = vld [vmem:[#allocation4 + $0x2f0] sm:$0xff]
  %v4600 = vld [vmem:[#allocation4 + $0x300] sm:$0xff]
  %v4601 = vld [vmem:[#allocation4 + $0x308] sm:$0xff]
  %v4602 = vld [vmem:[#allocation4 + $0x318] sm:$0xff]
  %v4603 = vld [vmem:[#allocation4 + $0x320] sm:$0xff]
  %4604 = vst.msk [vmem:[#allocation5] sm:$0xff] %vm3841, %v4540
  %4605 = vst.msk [vmem:[#allocation5 + $0x8] sm:$0xff] %vm3841, %v4541
  %4606 = vst.msk [vmem:[#allocation5 + $0x10] sm:$0xff] %vm3841, %v4542
  %4607 = vst.msk [vmem:[#allocation5 + $0x18] sm:$0xff] %vm3841, %v4543
  %4608 = vst.msk [vmem:[#allocation5 + $0x20] sm:$0xff] %vm3841, %v4544
  %4609 = vst.msk [vmem:[#allocation5 + $0x28] sm:$0xff] %vm3841, %v4545
  %4610 = vst.msk [vmem:[#allocation5 + $0x30] sm:$0xff] %vm3841, %v4546
  %4611 = vst.msk [vmem:[#allocation5 + $0x38] sm:$0xff] %vm3841, %v4547
  %4612 = vst.msk [vmem:[#allocation5 + $0x40] sm:$0xff] %vm3841, %v4548
  %4613 = vst.msk [vmem:[#allocation5 + $0x48] sm:$0xff] %vm3841, %v4549
  %4614 = vst.msk [vmem:[#allocation5 + $0x50] sm:$0xff] %vm3841, %v4550
  %4615 = vst.msk [vmem:[#allocation5 + $0x58] sm:$0xff] %vm3841, %v4551
  %4616 = vst.msk [vmem:[#allocation5 + $0x60] sm:$0xff] %vm3841, %v4552
  %4617 = vst.msk [vmem:[#allocation5 + $0x68] sm:$0xff] %vm3841, %v4553
  %4618 = vst.msk [vmem:[#allocation5 + $0x70] sm:$0xff] %vm3841, %v4554
  %4619 = vst.msk [vmem:[#allocation5 + $0x78] sm:$0xff] %vm3841, %v4555
  %4620 = vst.msk [vmem:[#allocation5 + $0x80] sm:$0xff] %vm3841, %v4556
  %4621 = vst.msk [vmem:[#allocation5 + $0x88] sm:$0xff] %vm3841, %v4557
  %4622 = vst.msk [vmem:[#allocation5 + $0x90] sm:$0xff] %vm3841, %v4558
  %4623 = vst.msk [vmem:[#allocation5 + $0x98] sm:$0xff] %vm3841, %v4559
  %4624 = vst.msk [vmem:[#allocation5 + $0xa0] sm:$0xff] %vm3841, %v4560
  %4625 = vst.msk [vmem:[#allocation5 + $0xa8] sm:$0xff] %vm3841, %v4561
  %4626 = vst.msk [vmem:[#allocation5 + $0xb0] sm:$0xff] %vm3841, %v4562
  %4627 = vst.msk [vmem:[#allocation5 + $0xb8] sm:$0xff] %vm3841, %v4563
  %4628 = vst.msk [vmem:[#allocation5 + $0xc0] sm:$0xff] %vm3841, %v4564
  %4629 = vst.msk [vmem:[#allocation5 + $0xc8] sm:$0xff] %vm3841, %v4565
  %4630 = vst.msk [vmem:[#allocation5 + $0xd0] sm:$0xff] %vm3841, %v4566
  %4631 = vst.msk [vmem:[#allocation5 + $0xd8] sm:$0xff] %vm3841, %v4567
  %4632 = vst.msk [vmem:[#allocation5 + $0xe0] sm:$0xff] %vm3841, %v4568
  %4633 = vst.msk [vmem:[#allocation5 + $0xe8] sm:$0xff] %vm3841, %v4569
  %4634 = vst.msk [vmem:[#allocation5 + $0xf0] sm:$0xff] %vm3841, %v4570
  %4635 = vst.msk [vmem:[#allocation5 + $0xf8] sm:$0xff] %vm3841, %v4571
  %4636 = vst.msk [vmem:[#allocation5 + $0x100] sm:$0xff] %vm3841, %v4572
  %4637 = vst.msk [vmem:[#allocation5 + $0x108] sm:$0xff] %vm3841, %v4573
  %4638 = vst.msk [vmem:[#allocation5 + $0x110] sm:$0xff] %vm3841, %v4574
  %4639 = vst.msk [vmem:[#allocation5 + $0x118] sm:$0xff] %vm3841, %v4575
  %4640 = vst.msk [vmem:[#allocation5 + $0x120] sm:$0xff] %vm3841, %v4576
  %4641 = vst.msk [vmem:[#allocation5 + $0x128] sm:$0xff] %vm3841, %v4577
  %4642 = vst.msk [vmem:[#allocation5 + $0x130] sm:$0xff] %vm3841, %v4578
  %4643 = vst.msk [vmem:[#allocation5 + $0x138] sm:$0xff] %vm3841, %v4579
  %4644 = vst.msk [vmem:[#allocation5 + $0x140] sm:$0xff] %vm3841, %v4580
  %4645 = vst.msk [vmem:[#allocation5 + $0x148] sm:$0xff] %vm3841, %v4581
  %4646 = vst.msk [vmem:[#allocation5 + $0x150] sm:$0xff] %vm3841, %v4582
  %4647 = vst.msk [vmem:[#allocation5 + $0x158] sm:$0xff] %vm3841, %v4583
  %4648 = vst.msk [vmem:[#allocation5 + $0x160] sm:$0xff] %vm3841, %v4584
  %4649 = vst.msk [vmem:[#allocation5 + $0x168] sm:$0xff] %vm3841, %v4585
  %4650 = vst.msk [vmem:[#allocation5 + $0x170] sm:$0xff] %vm3841, %v4586
  %4651 = vst.msk [vmem:[#allocation5 + $0x178] sm:$0xff] %vm3841, %v4587
  %4652 = vst.msk [vmem:[#allocation5 + $0x180] sm:$0xff] %vm3841, %v4588
  %4653 = vst.msk [vmem:[#allocation5 + $0x188] sm:$0xff] %vm3841, %v4589
  %4654 = vst.msk [vmem:[#allocation5 + $0x190] sm:$0xff] %vm3841, %v4590
  %4655 = vst.msk [vmem:[#allocation5 + $0x198] sm:$0xff] %vm3841, %v4591
  %4656 = vst.msk [vmem:[#allocation5 + $0x1a0] sm:$0xff] %vm3841, %v4592
  %4657 = vst.msk [vmem:[#allocation5 + $0x1a8] sm:$0xff] %vm3841, %v4593
  %4658 = vst.msk [vmem:[#allocation5 + $0x1b0] sm:$0xff] %vm3841, %v4594
  %4659 = vst.msk [vmem:[#allocation5 + $0x1b8] sm:$0xff] %vm3841, %v4595
  %4660 = vst.msk [vmem:[#allocation5 + $0x1c0] sm:$0xff] %vm3841, %v4596
  %4661 = vst.msk [vmem:[#allocation5 + $0x1c8] sm:$0xff] %vm3841, %v4597
  %4662 = vst.msk [vmem:[#allocation5 + $0x1d0] sm:$0xff] %vm3841, %v4598
  %4663 = vst.msk [vmem:[#allocation5 + $0x1d8] sm:$0xff] %vm3841, %v4599
  %4664 = vst.msk [vmem:[#allocation5 + $0x1e0] sm:$0xff] %vm3841, %v4600
  %4665 = vst.msk [vmem:[#allocation5 + $0x1e8] sm:$0xff] %vm3841, %v4601
  %4666 = vst.msk [vmem:[#allocation5 + $0x1f0] sm:$0xff] %vm3841, %v4602
  %4667 = vst.msk [vmem:[#allocation5 + $0x1f8] sm:$0xff] %vm3841, %v4603
  %v4668 = vld [vmem:[#allocation4 + $0x1] sm:$0xff]
  %v4669 = vld [vmem:[#allocation4 + $0x9] sm:$0xff]
  %v4670 = vld [vmem:[#allocation4 + $0x19] sm:$0xff]
  %v4671 = vld [vmem:[#allocation4 + $0x21] sm:$0xff]
  %v4672 = vld [vmem:[#allocation4 + $0x31] sm:$0xff]
  %v4673 = vld [vmem:[#allocation4 + $0x39] sm:$0xff]
  %v4674 = vld [vmem:[#allocation4 + $0x49] sm:$0xff]
  %v4675 = vld [vmem:[#allocation4 + $0x51] sm:$0xff]
  %v4676 = vld [vmem:[#allocation4 + $0x61] sm:$0xff]
  %v4677 = vld [vmem:[#allocation4 + $0x69] sm:$0xff]
  %v4678 = vld [vmem:[#allocation4 + $0x79] sm:$0xff]
  %v4679 = vld [vmem:[#allocation4 + $0x81] sm:$0xff]
  %v4680 = vld [vmem:[#allocation4 + $0x91] sm:$0xff]
  %v4681 = vld [vmem:[#allocation4 + $0x99] sm:$0xff]
  %v4682 = vld [vmem:[#allocation4 + $0xa9] sm:$0xff]
  %v4683 = vld [vmem:[#allocation4 + $0xb1] sm:$0xff]
  %v4684 = vld [vmem:[#allocation4 + $0xc1] sm:$0xff]
  %v4685 = vld [vmem:[#allocation4 + $0xc9] sm:$0xff]
  %v4686 = vld [vmem:[#allocation4 + $0xd9] sm:$0xff]
  %v4687 = vld [vmem:[#allocation4 + $0xe1] sm:$0xff]
  %v4688 = vld [vmem:[#allocation4 + $0xf1] sm:$0xff]
  %v4689 = vld [vmem:[#allocation4 + $0xf9] sm:$0xff]
  %v4690 = vld [vmem:[#allocation4 + $0x109] sm:$0xff]
  %v4691 = vld [vmem:[#allocation4 + $0x111] sm:$0xff]
  %v4692 = vld [vmem:[#allocation4 + $0x121] sm:$0xff]
  %v4693 = vld [vmem:[#allocation4 + $0x129] sm:$0xff]
  %v4694 = vld [vmem:[#allocation4 + $0x139] sm:$0xff]
  %v4695 = vld [vmem:[#allocation4 + $0x141] sm:$0xff]
  %v4696 = vld [vmem:[#allocation4 + $0x151] sm:$0xff]
  %v4697 = vld [vmem:[#allocation4 + $0x159] sm:$0xff]
  %v4698 = vld [vmem:[#allocation4 + $0x169] sm:$0xff]
  %v4699 = vld [vmem:[#allocation4 + $0x171] sm:$0xff]
  %v4700 = vld [vmem:[#allocation4 + $0x1b1] sm:$0xff]
  %v4701 = vld [vmem:[#allocation4 + $0x1b9] sm:$0xff]
  %v4702 = vld [vmem:[#allocation4 + $0x1c9] sm:$0xff]
  %v4703 = vld [vmem:[#allocation4 + $0x1d1] sm:$0xff]
  %v4704 = vld [vmem:[#allocation4 + $0x1e1] sm:$0xff]
  %v4705 = vld [vmem:[#allocation4 + $0x1e9] sm:$0xff]
  %v4706 = vld [vmem:[#allocation4 + $0x1f9] sm:$0xff]
  %v4707 = vld [vmem:[#allocation4 + $0x201] sm:$0xff]
  %v4708 = vld [vmem:[#allocation4 + $0x211] sm:$0xff]
  %v4709 = vld [vmem:[#allocation4 + $0x219] sm:$0xff]
  %v4710 = vld [vmem:[#allocation4 + $0x229] sm:$0xff]
  %v4711 = vld [vmem:[#allocation4 + $0x231] sm:$0xff]
  %v4712 = vld [vmem:[#allocation4 + $0x241] sm:$0xff]
  %v4713 = vld [vmem:[#allocation4 + $0x249] sm:$0xff]
  %v4714 = vld [vmem:[#allocation4 + $0x259] sm:$0xff]
  %v4715 = vld [vmem:[#allocation4 + $0x261] sm:$0xff]
  %v4716 = vld [vmem:[#allocation4 + $0x271] sm:$0xff]
  %v4717 = vld [vmem:[#allocation4 + $0x279] sm:$0xff]
  %v4718 = vld [vmem:[#allocation4 + $0x289] sm:$0xff]
  %v4719 = vld [vmem:[#allocation4 + $0x291] sm:$0xff]
  %v4720 = vld [vmem:[#allocation4 + $0x2a1] sm:$0xff]
  %v4721 = vld [vmem:[#allocation4 + $0x2a9] sm:$0xff]
  %v4722 = vld [vmem:[#allocation4 + $0x2b9] sm:$0xff]
  %v4723 = vld [vmem:[#allocation4 + $0x2c1] sm:$0xff]
  %v4724 = vld [vmem:[#allocation4 + $0x2d1] sm:$0xff]
  %v4725 = vld [vmem:[#allocation4 + $0x2d9] sm:$0xff]
  %v4726 = vld [vmem:[#allocation4 + $0x2e9] sm:$0xff]
  %v4727 = vld [vmem:[#allocation4 + $0x2f1] sm:$0xff]
  %v4728 = vld [vmem:[#allocation4 + $0x301] sm:$0xff]
  %v4729 = vld [vmem:[#allocation4 + $0x309] sm:$0xff]
  %v4730 = vld [vmem:[#allocation4 + $0x319] sm:$0xff]
  %v4731 = vld [vmem:[#allocation4 + $0x321] sm:$0xff]
  %4796 = vrot.lane.b32.xlu0 %v4668, 8
  %v4797 = vpop.permute.xlu0 %4796
  %4798 = vrot.lane.b32.xlu0 %v4669, 8
  %v4799 = vpop.permute.xlu0 %4798
  %4800 = vrot.lane.b32.xlu0 %v4670, 8
  %v4801 = vpop.permute.xlu0 %4800
  %4802 = vrot.lane.b32.xlu0 %v4671, 8
  %v4803 = vpop.permute.xlu0 %4802
  %4804 = vrot.lane.b32.xlu0 %v4672, 8
  %v4805 = vpop.permute.xlu0 %4804
  %4806 = vrot.lane.b32.xlu0 %v4673, 8
  %v4807 = vpop.permute.xlu0 %4806
  %4808 = vrot.lane.b32.xlu0 %v4674, 8
  %v4809 = vpop.permute.xlu0 %4808
  %4810 = vrot.lane.b32.xlu0 %v4675, 8
  %v4811 = vpop.permute.xlu0 %4810
  %4812 = vrot.lane.b32.xlu0 %v4676, 8
  %v4813 = vpop.permute.xlu0 %4812
  %4814 = vrot.lane.b32.xlu0 %v4677, 8
  %v4815 = vpop.permute.xlu0 %4814
  %4816 = vrot.lane.b32.xlu0 %v4678, 8
  %v4817 = vpop.permute.xlu0 %4816
  %4818 = vrot.lane.b32.xlu0 %v4679, 8
  %v4819 = vpop.permute.xlu0 %4818
  %4820 = vrot.lane.b32.xlu0 %v4680, 8
  %v4821 = vpop.permute.xlu0 %4820
  %4822 = vrot.lane.b32.xlu0 %v4681, 8
  %v4823 = vpop.permute.xlu0 %4822
  %4824 = vrot.lane.b32.xlu0 %v4682, 8
  %v4825 = vpop.permute.xlu0 %4824
  %4826 = vrot.lane.b32.xlu0 %v4683, 8
  %v4827 = vpop.permute.xlu0 %4826
  %4828 = vrot.lane.b32.xlu0 %v4684, 8
  %v4829 = vpop.permute.xlu0 %4828
  %4830 = vrot.lane.b32.xlu0 %v4685, 8
  %v4831 = vpop.permute.xlu0 %4830
  %4832 = vrot.lane.b32.xlu0 %v4686, 8
  %v4833 = vpop.permute.xlu0 %4832
  %4834 = vrot.lane.b32.xlu0 %v4687, 8
  %v4835 = vpop.permute.xlu0 %4834
  %4836 = vrot.lane.b32.xlu0 %v4688, 8
  %v4837 = vpop.permute.xlu0 %4836
  %4838 = vrot.lane.b32.xlu0 %v4689, 8
  %v4839 = vpop.permute.xlu0 %4838
  %4840 = vrot.lane.b32.xlu0 %v4690, 8
  %v4841 = vpop.permute.xlu0 %4840
  %4842 = vrot.lane.b32.xlu0 %v4691, 8
  %v4843 = vpop.permute.xlu0 %4842
  %4844 = vrot.lane.b32.xlu0 %v4692, 8
  %v4845 = vpop.permute.xlu0 %4844
  %4846 = vrot.lane.b32.xlu0 %v4693, 8
  %v4847 = vpop.permute.xlu0 %4846
  %4848 = vrot.lane.b32.xlu0 %v4694, 8
  %v4849 = vpop.permute.xlu0 %4848
  %4850 = vrot.lane.b32.xlu0 %v4695, 8
  %v4851 = vpop.permute.xlu0 %4850
  %4852 = vrot.lane.b32.xlu0 %v4696, 8
  %v4853 = vpop.permute.xlu0 %4852
  %4854 = vrot.lane.b32.xlu0 %v4697, 8
  %v4855 = vpop.permute.xlu0 %4854
  %4856 = vrot.lane.b32.xlu0 %v4698, 8
  %v4857 = vpop.permute.xlu0 %4856
  %4858 = vrot.lane.b32.xlu0 %v4699, 8
  %v4859 = vpop.permute.xlu0 %4858
  %4860 = vrot.lane.b32.xlu0 %v4700, 8
  %v4861 = vpop.permute.xlu0 %4860
  %4862 = vrot.lane.b32.xlu0 %v4701, 8
  %v4863 = vpop.permute.xlu0 %4862
  %4864 = vrot.lane.b32.xlu0 %v4702, 8
  %v4865 = vpop.permute.xlu0 %4864
  %4866 = vrot.lane.b32.xlu0 %v4703, 8
  %v4867 = vpop.permute.xlu0 %4866
  %4868 = vrot.lane.b32.xlu0 %v4704, 8
  %v4869 = vpop.permute.xlu0 %4868
  %4870 = vrot.lane.b32.xlu0 %v4705, 8
  %v4871 = vpop.permute.xlu0 %4870
  %4872 = vrot.lane.b32.xlu0 %v4706, 8
  %v4873 = vpop.permute.xlu0 %4872
  %4874 = vrot.lane.b32.xlu0 %v4707, 8
  %v4875 = vpop.permute.xlu0 %4874
  %4876 = vrot.lane.b32.xlu0 %v4708, 8
  %v4877 = vpop.permute.xlu0 %4876
  %4878 = vrot.lane.b32.xlu0 %v4709, 8
  %v4879 = vpop.permute.xlu0 %4878
  %4880 = vrot.lane.b32.xlu0 %v4710, 8
  %v4881 = vpop.permute.xlu0 %4880
  %4882 = vrot.lane.b32.xlu0 %v4711, 8
  %v4883 = vpop.permute.xlu0 %4882
  %4884 = vrot.lane.b32.xlu0 %v4712, 8
  %v4885 = vpop.permute.xlu0 %4884
  %4886 = vrot.lane.b32.xlu0 %v4713, 8
  %v4887 = vpop.permute.xlu0 %4886
  %4888 = vrot.lane.b32.xlu0 %v4714, 8
  %v4889 = vpop.permute.xlu0 %4888
  %4890 = vrot.lane.b32.xlu0 %v4715, 8
  %v4891 = vpop.permute.xlu0 %4890
  %4892 = vrot.lane.b32.xlu0 %v4716, 8
  %v4893 = vpop.permute.xlu0 %4892
  %4894 = vrot.lane.b32.xlu0 %v4717, 8
  %v4895 = vpop.permute.xlu0 %4894
  %4896 = vrot.lane.b32.xlu0 %v4718, 8
  %v4897 = vpop.permute.xlu0 %4896
  %4898 = vrot.lane.b32.xlu0 %v4719, 8
  %v4899 = vpop.permute.xlu0 %4898
  %4900 = vrot.lane.b32.xlu0 %v4720, 8
  %v4901 = vpop.permute.xlu0 %4900
  %4902 = vrot.lane.b32.xlu0 %v4721, 8
  %v4903 = vpop.permute.xlu0 %4902
  %4904 = vrot.lane.b32.xlu0 %v4722, 8
  %v4905 = vpop.permute.xlu0 %4904
  %4906 = vrot.lane.b32.xlu0 %v4723, 8
  %v4907 = vpop.permute.xlu0 %4906
  %4908 = vrot.lane.b32.xlu0 %v4724, 8
  %v4909 = vpop.permute.xlu0 %4908
  %4910 = vrot.lane.b32.xlu0 %v4725, 8
  %v4911 = vpop.permute.xlu0 %4910
  %4912 = vrot.lane.b32.xlu0 %v4726, 8
  %v4913 = vpop.permute.xlu0 %4912
  %4914 = vrot.lane.b32.xlu0 %v4727, 8
  %v4915 = vpop.permute.xlu0 %4914
  %4916 = vrot.lane.b32.xlu0 %v4728, 8
  %v4917 = vpop.permute.xlu0 %4916
  %4918 = vrot.lane.b32.xlu0 %v4729, 8
  %v4919 = vpop.permute.xlu0 %4918
  %4920 = vrot.lane.b32.xlu0 %v4730, 8
  %v4921 = vpop.permute.xlu0 %4920
  %4922 = vrot.lane.b32.xlu0 %v4731, 8
  %v4923 = vpop.permute.xlu0 %4922
  %vm4988 = vcmask 130112
  %4989 = vst.msk [vmem:[#allocation5] sm:$0xff] %vm4988, %v4797
  %4990 = vst.msk [vmem:[#allocation5 + $0x8] sm:$0xff] %vm4988, %v4799
  %4991 = vst.msk [vmem:[#allocation5 + $0x10] sm:$0xff] %vm4988, %v4801
  %4992 = vst.msk [vmem:[#allocation5 + $0x18] sm:$0xff] %vm4988, %v4803
  %4993 = vst.msk [vmem:[#allocation5 + $0x20] sm:$0xff] %vm4988, %v4805
  %4994 = vst.msk [vmem:[#allocation5 + $0x28] sm:$0xff] %vm4988, %v4807
  %4995 = vst.msk [vmem:[#allocation5 + $0x30] sm:$0xff] %vm4988, %v4809
  %4996 = vst.msk [vmem:[#allocation5 + $0x38] sm:$0xff] %vm4988, %v4811
  %4997 = vst.msk [vmem:[#allocation5 + $0x40] sm:$0xff] %vm4988, %v4813
  %4998 = vst.msk [vmem:[#allocation5 + $0x48] sm:$0xff] %vm4988, %v4815
  %4999 = vst.msk [vmem:[#allocation5 + $0x50] sm:$0xff] %vm4988, %v4817
  %5000 = vst.msk [vmem:[#allocation5 + $0x58] sm:$0xff] %vm4988, %v4819
  %5001 = vst.msk [vmem:[#allocation5 + $0x60] sm:$0xff] %vm4988, %v4821
  %5002 = vst.msk [vmem:[#allocation5 + $0x68] sm:$0xff] %vm4988, %v4823
  %5003 = vst.msk [vmem:[#allocation5 + $0x70] sm:$0xff] %vm4988, %v4825
  %5004 = vst.msk [vmem:[#allocation5 + $0x78] sm:$0xff] %vm4988, %v4827
  %5005 = vst.msk [vmem:[#allocation5 + $0x80] sm:$0xff] %vm4988, %v4829
  %5006 = vst.msk [vmem:[#allocation5 + $0x88] sm:$0xff] %vm4988, %v4831
  %5007 = vst.msk [vmem:[#allocation5 + $0x90] sm:$0xff] %vm4988, %v4833
  %5008 = vst.msk [vmem:[#allocation5 + $0x98] sm:$0xff] %vm4988, %v4835
  %5009 = vst.msk [vmem:[#allocation5 + $0xa0] sm:$0xff] %vm4988, %v4837
  %5010 = vst.msk [vmem:[#allocation5 + $0xa8] sm:$0xff] %vm4988, %v4839
  %5011 = vst.msk [vmem:[#allocation5 + $0xb0] sm:$0xff] %vm4988, %v4841
  %5012 = vst.msk [vmem:[#allocation5 + $0xb8] sm:$0xff] %vm4988, %v4843
  %5013 = vst.msk [vmem:[#allocation5 + $0xc0] sm:$0xff] %vm4988, %v4845
  %5014 = vst.msk [vmem:[#allocation5 + $0xc8] sm:$0xff] %vm4988, %v4847
  %5015 = vst.msk [vmem:[#allocation5 + $0xd0] sm:$0xff] %vm4988, %v4849
  %5016 = vst.msk [vmem:[#allocation5 + $0xd8] sm:$0xff] %vm4988, %v4851
  %5017 = vst.msk [vmem:[#allocation5 + $0xe0] sm:$0xff] %vm4988, %v4853
  %5018 = vst.msk [vmem:[#allocation5 + $0xe8] sm:$0xff] %vm4988, %v4855
  %5019 = vst.msk [vmem:[#allocation5 + $0xf0] sm:$0xff] %vm4988, %v4857
  %5020 = vst.msk [vmem:[#allocation5 + $0xf8] sm:$0xff] %vm4988, %v4859
  %5021 = vst.msk [vmem:[#allocation5 + $0x100] sm:$0xff] %vm4988, %v4861
  %5022 = vst.msk [vmem:[#allocation5 + $0x108] sm:$0xff] %vm4988, %v4863
  %5023 = vst.msk [vmem:[#allocation5 + $0x110] sm:$0xff] %vm4988, %v4865
  %5024 = vst.msk [vmem:[#allocation5 + $0x118] sm:$0xff] %vm4988, %v4867
  %5025 = vst.msk [vmem:[#allocation5 + $0x120] sm:$0xff] %vm4988, %v4869
  %5026 = vst.msk [vmem:[#allocation5 + $0x128] sm:$0xff] %vm4988, %v4871
  %5027 = vst.msk [vmem:[#allocation5 + $0x130] sm:$0xff] %vm4988, %v4873
  %5028 = vst.msk [vmem:[#allocation5 + $0x138] sm:$0xff] %vm4988, %v4875
  %5029 = vst.msk [vmem:[#allocation5 + $0x140] sm:$0xff] %vm4988, %v4877
  %5030 = vst.msk [vmem:[#allocation5 + $0x148] sm:$0xff] %vm4988, %v4879
  %5031 = vst.msk [vmem:[#allocation5 + $0x150] sm:$0xff] %vm4988, %v4881
  %5032 = vst.msk [vmem:[#allocation5 + $0x158] sm:$0xff] %vm4988, %v4883
  %5033 = vst.msk [vmem:[#allocation5 + $0x160] sm:$0xff] %vm4988, %v4885
  %5034 = vst.msk [vmem:[#allocation5 + $0x168] sm:$0xff] %vm4988, %v4887
  %5035 = vst.msk [vmem:[#allocation5 + $0x170] sm:$0xff] %vm4988, %v4889
  %5036 = vst.msk [vmem:[#allocation5 + $0x178] sm:$0xff] %vm4988, %v4891
  %5037 = vst.msk [vmem:[#allocation5 + $0x180] sm:$0xff] %vm4988, %v4893
  %5038 = vst.msk [vmem:[#allocation5 + $0x188] sm:$0xff] %vm4988, %v4895
  %5039 = vst.msk [vmem:[#allocation5 + $0x190] sm:$0xff] %vm4988, %v4897
  %5040 = vst.msk [vmem:[#allocation5 + $0x198] sm:$0xff] %vm4988, %v4899
  %5041 = vst.msk [vmem:[#allocation5 + $0x1a0] sm:$0xff] %vm4988, %v4901
  %5042 = vst.msk [vmem:[#allocation5 + $0x1a8] sm:$0xff] %vm4988, %v4903
  %5043 = vst.msk [vmem:[#allocation5 + $0x1b0] sm:$0xff] %vm4988, %v4905
  %5044 = vst.msk [vmem:[#allocation5 + $0x1b8] sm:$0xff] %vm4988, %v4907
  %5045 = vst.msk [vmem:[#allocation5 + $0x1c0] sm:$0xff] %vm4988, %v4909
  %5046 = vst.msk [vmem:[#allocation5 + $0x1c8] sm:$0xff] %vm4988, %v4911
  %5047 = vst.msk [vmem:[#allocation5 + $0x1d0] sm:$0xff] %vm4988, %v4913
  %5048 = vst.msk [vmem:[#allocation5 + $0x1d8] sm:$0xff] %vm4988, %v4915
  %5049 = vst.msk [vmem:[#allocation5 + $0x1e0] sm:$0xff] %vm4988, %v4917
  %5050 = vst.msk [vmem:[#allocation5 + $0x1e8] sm:$0xff] %vm4988, %v4919
  %5051 = vst.msk [vmem:[#allocation5 + $0x1f0] sm:$0xff] %vm4988, %v4921
  %5052 = vst.msk [vmem:[#allocation5 + $0x1f8] sm:$0xff] %vm4988, %v4923
  %v5053 = vld [vmem:[#allocation4 + $0x2] sm:$0xff]
  %v5054 = vld [vmem:[#allocation4 + $0xa] sm:$0xff]
  %v5055 = vld [vmem:[#allocation4 + $0x1a] sm:$0xff]
  %v5056 = vld [vmem:[#allocation4 + $0x22] sm:$0xff]
  %v5057 = vld [vmem:[#allocation4 + $0x32] sm:$0xff]
  %v5058 = vld [vmem:[#allocation4 + $0x3a] sm:$0xff]
  %v5059 = vld [vmem:[#allocation4 + $0x4a] sm:$0xff]
  %v5060 = vld [vmem:[#allocation4 + $0x52] sm:$0xff]
  %v5061 = vld [vmem:[#allocation4 + $0x62] sm:$0xff]
  %v5062 = vld [vmem:[#allocation4 + $0x6a] sm:$0xff]
  %v5063 = vld [vmem:[#allocation4 + $0x7a] sm:$0xff]
  %v5064 = vld [vmem:[#allocation4 + $0x82] sm:$0xff]
  %v5065 = vld [vmem:[#allocation4 + $0x92] sm:$0xff]
  %v5066 = vld [vmem:[#allocation4 + $0x9a] sm:$0xff]
  %v5067 = vld [vmem:[#allocation4 + $0xaa] sm:$0xff]
  %v5068 = vld [vmem:[#allocation4 + $0xb2] sm:$0xff]
  %v5069 = vld [vmem:[#allocation4 + $0xc2] sm:$0xff]
  %v5070 = vld [vmem:[#allocation4 + $0xca] sm:$0xff]
  %v5071 = vld [vmem:[#allocation4 + $0xda] sm:$0xff]
  %v5072 = vld [vmem:[#allocation4 + $0xe2] sm:$0xff]
  %v5073 = vld [vmem:[#allocation4 + $0xf2] sm:$0xff]
  %v5074 = vld [vmem:[#allocation4 + $0xfa] sm:$0xff]
  %v5075 = vld [vmem:[#allocation4 + $0x10a] sm:$0xff]
  %v5076 = vld [vmem:[#allocation4 + $0x112] sm:$0xff]
  %v5077 = vld [vmem:[#allocation4 + $0x122] sm:$0xff]
  %v5078 = vld [vmem:[#allocation4 + $0x12a] sm:$0xff]
  %v5079 = vld [vmem:[#allocation4 + $0x13a] sm:$0xff]
  %v5080 = vld [vmem:[#allocation4 + $0x142] sm:$0xff]
  %v5081 = vld [vmem:[#allocation4 + $0x152] sm:$0xff]
  %v5082 = vld [vmem:[#allocation4 + $0x15a] sm:$0xff]
  %v5083 = vld [vmem:[#allocation4 + $0x16a] sm:$0xff]
  %v5084 = vld [vmem:[#allocation4 + $0x172] sm:$0xff]
  %v5085 = vld [vmem:[#allocation4 + $0x1b2] sm:$0xff]
  %v5086 = vld [vmem:[#allocation4 + $0x1ba] sm:$0xff]
  %v5087 = vld [vmem:[#allocation4 + $0x1ca] sm:$0xff]
  %v5088 = vld [vmem:[#allocation4 + $0x1d2] sm:$0xff]
  %v5089 = vld [vmem:[#allocation4 + $0x1e2] sm:$0xff]
  %v5090 = vld [vmem:[#allocation4 + $0x1ea] sm:$0xff]
  %v5091 = vld [vmem:[#allocation4 + $0x1fa] sm:$0xff]
  %v5092 = vld [vmem:[#allocation4 + $0x202] sm:$0xff]
  %v5093 = vld [vmem:[#allocation4 + $0x212] sm:$0xff]
  %v5094 = vld [vmem:[#allocation4 + $0x21a] sm:$0xff]
  %v5095 = vld [vmem:[#allocation4 + $0x22a] sm:$0xff]
  %v5096 = vld [vmem:[#allocation4 + $0x232] sm:$0xff]
  %v5097 = vld [vmem:[#allocation4 + $0x242] sm:$0xff]
  %v5098 = vld [vmem:[#allocation4 + $0x24a] sm:$0xff]
  %v5099 = vld [vmem:[#allocation4 + $0x25a] sm:$0xff]
  %v5100 = vld [vmem:[#allocation4 + $0x262] sm:$0xff]
  %v5101 = vld [vmem:[#allocation4 + $0x272] sm:$0xff]
  %v5102 = vld [vmem:[#allocation4 + $0x27a] sm:$0xff]
  %v5103 = vld [vmem:[#allocation4 + $0x28a] sm:$0xff]
  %v5104 = vld [vmem:[#allocation4 + $0x292] sm:$0xff]
  %v5105 = vld [vmem:[#allocation4 + $0x2a2] sm:$0xff]
  %v5106 = vld [vmem:[#allocation4 + $0x2aa] sm:$0xff]
  %v5107 = vld [vmem:[#allocation4 + $0x2ba] sm:$0xff]
  %v5108 = vld [vmem:[#allocation4 + $0x2c2] sm:$0xff]
  %v5109 = vld [vmem:[#allocation4 + $0x2d2] sm:$0xff]
  %v5110 = vld [vmem:[#allocation4 + $0x2da] sm:$0xff]
  %v5111 = vld [vmem:[#allocation4 + $0x2ea] sm:$0xff]
  %v5112 = vld [vmem:[#allocation4 + $0x2f2] sm:$0xff]
  %v5113 = vld [vmem:[#allocation4 + $0x302] sm:$0xff]
  %v5114 = vld [vmem:[#allocation4 + $0x30a] sm:$0xff]
  %v5115 = vld [vmem:[#allocation4 + $0x31a] sm:$0xff]
  %v5116 = vld [vmem:[#allocation4 + $0x322] sm:$0xff]
  %5181 = vrot.lane.b32.xlu0 %v5053, 16
  %v5182 = vpop.permute.xlu0 %5181
  %5183 = vrot.lane.b32.xlu0 %v5054, 16
  %v5184 = vpop.permute.xlu0 %5183
  %5185 = vrot.lane.b32.xlu0 %v5055, 16
  %v5186 = vpop.permute.xlu0 %5185
  %5187 = vrot.lane.b32.xlu0 %v5056, 16
  %v5188 = vpop.permute.xlu0 %5187
  %5189 = vrot.lane.b32.xlu0 %v5057, 16
  %v5190 = vpop.permute.xlu0 %5189
  %5191 = vrot.lane.b32.xlu0 %v5058, 16
  %v5192 = vpop.permute.xlu0 %5191
  %5193 = vrot.lane.b32.xlu0 %v5059, 16
  %v5194 = vpop.permute.xlu0 %5193
  %5195 = vrot.lane.b32.xlu0 %v5060, 16
  %v5196 = vpop.permute.xlu0 %5195
  %5197 = vrot.lane.b32.xlu0 %v5061, 16
  %v5198 = vpop.permute.xlu0 %5197
  %5199 = vrot.lane.b32.xlu0 %v5062, 16
  %v5200 = vpop.permute.xlu0 %5199
  %5201 = vrot.lane.b32.xlu0 %v5063, 16
  %v5202 = vpop.permute.xlu0 %5201
  %5203 = vrot.lane.b32.xlu0 %v5064, 16
  %v5204 = vpop.permute.xlu0 %5203
  %5205 = vrot.lane.b32.xlu0 %v5065, 16
  %v5206 = vpop.permute.xlu0 %5205
  %5207 = vrot.lane.b32.xlu0 %v5066, 16
  %v5208 = vpop.permute.xlu0 %5207
  %5209 = vrot.lane.b32.xlu0 %v5067, 16
  %v5210 = vpop.permute.xlu0 %5209
  %5211 = vrot.lane.b32.xlu0 %v5068, 16
  %v5212 = vpop.permute.xlu0 %5211
  %5213 = vrot.lane.b32.xlu0 %v5069, 16
  %v5214 = vpop.permute.xlu0 %5213
  %5215 = vrot.lane.b32.xlu0 %v5070, 16
  %v5216 = vpop.permute.xlu0 %5215
  %5217 = vrot.lane.b32.xlu0 %v5071, 16
  %v5218 = vpop.permute.xlu0 %5217
  %5219 = vrot.lane.b32.xlu0 %v5072, 16
  %v5220 = vpop.permute.xlu0 %5219
  %5221 = vrot.lane.b32.xlu0 %v5073, 16
  %v5222 = vpop.permute.xlu0 %5221
  %5223 = vrot.lane.b32.xlu0 %v5074, 16
  %v5224 = vpop.permute.xlu0 %5223
  %5225 = vrot.lane.b32.xlu0 %v5075, 16
  %v5226 = vpop.permute.xlu0 %5225
  %5227 = vrot.lane.b32.xlu0 %v5076, 16
  %v5228 = vpop.permute.xlu0 %5227
  %5229 = vrot.lane.b32.xlu0 %v5077, 16
  %v5230 = vpop.permute.xlu0 %5229
  %5231 = vrot.lane.b32.xlu0 %v5078, 16
  %v5232 = vpop.permute.xlu0 %5231
  %5233 = vrot.lane.b32.xlu0 %v5079, 16
  %v5234 = vpop.permute.xlu0 %5233
  %5235 = vrot.lane.b32.xlu0 %v5080, 16
  %v5236 = vpop.permute.xlu0 %5235
  %5237 = vrot.lane.b32.xlu0 %v5081, 16
  %v5238 = vpop.permute.xlu0 %5237
  %5239 = vrot.lane.b32.xlu0 %v5082, 16
  %v5240 = vpop.permute.xlu0 %5239
  %5241 = vrot.lane.b32.xlu0 %v5083, 16
  %v5242 = vpop.permute.xlu0 %5241
  %5243 = vrot.lane.b32.xlu0 %v5084, 16
  %v5244 = vpop.permute.xlu0 %5243
  %5245 = vrot.lane.b32.xlu0 %v5085, 16
  %v5246 = vpop.permute.xlu0 %5245
  %5247 = vrot.lane.b32.xlu0 %v5086, 16
  %v5248 = vpop.permute.xlu0 %5247
  %5249 = vrot.lane.b32.xlu0 %v5087, 16
  %v5250 = vpop.permute.xlu0 %5249
  %5251 = vrot.lane.b32.xlu0 %v5088, 16
  %v5252 = vpop.permute.xlu0 %5251
  %5253 = vrot.lane.b32.xlu0 %v5089, 16
  %v5254 = vpop.permute.xlu0 %5253
  %5255 = vrot.lane.b32.xlu0 %v5090, 16
  %v5256 = vpop.permute.xlu0 %5255
  %5257 = vrot.lane.b32.xlu0 %v5091, 16
  %v5258 = vpop.permute.xlu0 %5257
  %5259 = vrot.lane.b32.xlu0 %v5092, 16
  %v5260 = vpop.permute.xlu0 %5259
  %5261 = vrot.lane.b32.xlu0 %v5093, 16
  %v5262 = vpop.permute.xlu0 %5261
  %5263 = vrot.lane.b32.xlu0 %v5094, 16
  %v5264 = vpop.permute.xlu0 %5263
  %5265 = vrot.lane.b32.xlu0 %v5095, 16
  %v5266 = vpop.permute.xlu0 %5265
  %5267 = vrot.lane.b32.xlu0 %v5096, 16
  %v5268 = vpop.permute.xlu0 %5267
  %5269 = vrot.lane.b32.xlu0 %v5097, 16
  %v5270 = vpop.permute.xlu0 %5269
  %5271 = vrot.lane.b32.xlu0 %v5098, 16
  %v5272 = vpop.permute.xlu0 %5271
  %5273 = vrot.lane.b32.xlu0 %v5099, 16
  %v5274 = vpop.permute.xlu0 %5273
  %5275 = vrot.lane.b32.xlu0 %v5100, 16
  %v5276 = vpop.permute.xlu0 %5275
  %5277 = vrot.lane.b32.xlu0 %v5101, 16
  %v5278 = vpop.permute.xlu0 %5277
  %5279 = vrot.lane.b32.xlu0 %v5102, 16
  %v5280 = vpop.permute.xlu0 %5279
  %5281 = vrot.lane.b32.xlu0 %v5103, 16
  %v5282 = vpop.permute.xlu0 %5281
  %5283 = vrot.lane.b32.xlu0 %v5104, 16
  %v5284 = vpop.permute.xlu0 %5283
  %5285 = vrot.lane.b32.xlu0 %v5105, 16
  %v5286 = vpop.permute.xlu0 %5285
  %5287 = vrot.lane.b32.xlu0 %v5106, 16
  %v5288 = vpop.permute.xlu0 %5287
  %5289 = vrot.lane.b32.xlu0 %v5107, 16
  %v5290 = vpop.permute.xlu0 %5289
  %5291 = vrot.lane.b32.xlu0 %v5108, 16
  %v5292 = vpop.permute.xlu0 %5291
  %5293 = vrot.lane.b32.xlu0 %v5109, 16
  %v5294 = vpop.permute.xlu0 %5293
  %5295 = vrot.lane.b32.xlu0 %v5110, 16
  %v5296 = vpop.permute.xlu0 %5295
  %5297 = vrot.lane.b32.xlu0 %v5111, 16
  %v5298 = vpop.permute.xlu0 %5297
  %5299 = vrot.lane.b32.xlu0 %v5112, 16
  %v5300 = vpop.permute.xlu0 %5299
  %5301 = vrot.lane.b32.xlu0 %v5113, 16
  %v5302 = vpop.permute.xlu0 %5301
  %5303 = vrot.lane.b32.xlu0 %v5114, 16
  %v5304 = vpop.permute.xlu0 %5303
  %5305 = vrot.lane.b32.xlu0 %v5115, 16
  %v5306 = vpop.permute.xlu0 %5305
  %5307 = vrot.lane.b32.xlu0 %v5116, 16
  %v5308 = vpop.permute.xlu0 %5307
  %vm5373 = vcmask 195712
  %5374 = vst.msk [vmem:[#allocation5] sm:$0xff] %vm5373, %v5182
  %5375 = vst.msk [vmem:[#allocation5 + $0x8] sm:$0xff] %vm5373, %v5184
  %5376 = vst.msk [vmem:[#allocation5 + $0x10] sm:$0xff] %vm5373, %v5186
  %5377 = vst.msk [vmem:[#allocation5 + $0x18] sm:$0xff] %vm5373, %v5188
  %5378 = vst.msk [vmem:[#allocation5 + $0x20] sm:$0xff] %vm5373, %v5190
  %5379 = vst.msk [vmem:[#allocation5 + $0x28] sm:$0xff] %vm5373, %v5192
  %5380 = vst.msk [vmem:[#allocation5 + $0x30] sm:$0xff] %vm5373, %v5194
  %5381 = vst.msk [vmem:[#allocation5 + $0x38] sm:$0xff] %vm5373, %v5196
  %5382 = vst.msk [vmem:[#allocation5 + $0x40] sm:$0xff] %vm5373, %v5198
  %5383 = vst.msk [vmem:[#allocation5 + $0x48] sm:$0xff] %vm5373, %v5200
  %5384 = vst.msk [vmem:[#allocation5 + $0x50] sm:$0xff] %vm5373, %v5202
  %5385 = vst.msk [vmem:[#allocation5 + $0x58] sm:$0xff] %vm5373, %v5204
  %5386 = vst.msk [vmem:[#allocation5 + $0x60] sm:$0xff] %vm5373, %v5206
  %5387 = vst.msk [vmem:[#allocation5 + $0x68] sm:$0xff] %vm5373, %v5208
  %5388 = vst.msk [vmem:[#allocation5 + $0x70] sm:$0xff] %vm5373, %v5210
  %5389 = vst.msk [vmem:[#allocation5 + $0x78] sm:$0xff] %vm5373, %v5212
  %5390 = vst.msk [vmem:[#allocation5 + $0x80] sm:$0xff] %vm5373, %v5214
  %5391 = vst.msk [vmem:[#allocation5 + $0x88] sm:$0xff] %vm5373, %v5216
  %5392 = vst.msk [vmem:[#allocation5 + $0x90] sm:$0xff] %vm5373, %v5218
  %5393 = vst.msk [vmem:[#allocation5 + $0x98] sm:$0xff] %vm5373, %v5220
  %5394 = vst.msk [vmem:[#allocation5 + $0xa0] sm:$0xff] %vm5373, %v5222
  %5395 = vst.msk [vmem:[#allocation5 + $0xa8] sm:$0xff] %vm5373, %v5224
  %5396 = vst.msk [vmem:[#allocation5 + $0xb0] sm:$0xff] %vm5373, %v5226
  %5397 = vst.msk [vmem:[#allocation5 + $0xb8] sm:$0xff] %vm5373, %v5228
  %5398 = vst.msk [vmem:[#allocation5 + $0xc0] sm:$0xff] %vm5373, %v5230
  %5399 = vst.msk [vmem:[#allocation5 + $0xc8] sm:$0xff] %vm5373, %v5232
  %5400 = vst.msk [vmem:[#allocation5 + $0xd0] sm:$0xff] %vm5373, %v5234
  %5401 = vst.msk [vmem:[#allocation5 + $0xd8] sm:$0xff] %vm5373, %v5236
  %5402 = vst.msk [vmem:[#allocation5 + $0xe0] sm:$0xff] %vm5373, %v5238
  %5403 = vst.msk [vmem:[#allocation5 + $0xe8] sm:$0xff] %vm5373, %v5240
  %5404 = vst.msk [vmem:[#allocation5 + $0xf0] sm:$0xff] %vm5373, %v5242
  %5405 = vst.msk [vmem:[#allocation5 + $0xf8] sm:$0xff] %vm5373, %v5244
  %5406 = vst.msk [vmem:[#allocation5 + $0x100] sm:$0xff] %vm5373, %v5246
  %5407 = vst.msk [vmem:[#allocation5 + $0x108] sm:$0xff] %vm5373, %v5248
  %5408 = vst.msk [vmem:[#allocation5 + $0x110] sm:$0xff] %vm5373, %v5250
  %5409 = vst.msk [vmem:[#allocation5 + $0x118] sm:$0xff] %vm5373, %v5252
  %5410 = vst.msk [vmem:[#allocation5 + $0x120] sm:$0xff] %vm5373, %v5254
  %5411 = vst.msk [vmem:[#allocation5 + $0x128] sm:$0xff] %vm5373, %v5256
  %5412 = vst.msk [vmem:[#allocation5 + $0x130] sm:$0xff] %vm5373, %v5258
  %5413 = vst.msk [vmem:[#allocation5 + $0x138] sm:$0xff] %vm5373, %v5260
  %5414 = vst.msk [vmem:[#allocation5 + $0x140] sm:$0xff] %vm5373, %v5262
  %5415 = vst.msk [vmem:[#allocation5 + $0x148] sm:$0xff] %vm5373, %v5264
  %5416 = vst.msk [vmem:[#allocation5 + $0x150] sm:$0xff] %vm5373, %v5266
  %5417 = vst.msk [vmem:[#allocation5 + $0x158] sm:$0xff] %vm5373, %v5268
  %5418 = vst.msk [vmem:[#allocation5 + $0x160] sm:$0xff] %vm5373, %v5270
  %5419 = vst.msk [vmem:[#allocation5 + $0x168] sm:$0xff] %vm5373, %v5272
  %5420 = vst.msk [vmem:[#allocation5 + $0x170] sm:$0xff] %vm5373, %v5274
  %5421 = vst.msk [vmem:[#allocation5 + $0x178] sm:$0xff] %vm5373, %v5276
  %5422 = vst.msk [vmem:[#allocation5 + $0x180] sm:$0xff] %vm5373, %v5278
  %5423 = vst.msk [vmem:[#allocation5 + $0x188] sm:$0xff] %vm5373, %v5280
  %5424 = vst.msk [vmem:[#allocation5 + $0x190] sm:$0xff] %vm5373, %v5282
  %5425 = vst.msk [vmem:[#allocation5 + $0x198] sm:$0xff] %vm5373, %v5284
  %5426 = vst.msk [vmem:[#allocation5 + $0x1a0] sm:$0xff] %vm5373, %v5286
  %5427 = vst.msk [vmem:[#allocation5 + $0x1a8] sm:$0xff] %vm5373, %v5288
  %5428 = vst.msk [vmem:[#allocation5 + $0x1b0] sm:$0xff] %vm5373, %v5290
  %5429 = vst.msk [vmem:[#allocation5 + $0x1b8] sm:$0xff] %vm5373, %v5292
  %5430 = vst.msk [vmem:[#allocation5 + $0x1c0] sm:$0xff] %vm5373, %v5294
  %5431 = vst.msk [vmem:[#allocation5 + $0x1c8] sm:$0xff] %vm5373, %v5296
  %5432 = vst.msk [vmem:[#allocation5 + $0x1d0] sm:$0xff] %vm5373, %v5298
  %5433 = vst.msk [vmem:[#allocation5 + $0x1d8] sm:$0xff] %vm5373, %v5300
  %5434 = vst.msk [vmem:[#allocation5 + $0x1e0] sm:$0xff] %vm5373, %v5302
  %5435 = vst.msk [vmem:[#allocation5 + $0x1e8] sm:$0xff] %vm5373, %v5304
  %5436 = vst.msk [vmem:[#allocation5 + $0x1f0] sm:$0xff] %vm5373, %v5306
  %5437 = vst.msk [vmem:[#allocation5 + $0x1f8] sm:$0xff] %vm5373, %v5308
  %v5438 = vld [vmem:[%s4475] sm:$0xff]
  %v5439 = vld [vmem:[%s4475 + $0x8] sm:$0xff]
  %v5440 = vld [vmem:[%s4475 + $0x18] sm:$0xff]
  %v5441 = vld [vmem:[%s4475 + $0x20] sm:$0xff]
  %v5442 = vld [vmem:[%s4475 + $0x30] sm:$0xff]
  %v5443 = vld [vmem:[%s4475 + $0x38] sm:$0xff]
  %v5444 = vld [vmem:[%s4475 + $0x48] sm:$0xff]
  %v5445 = vld [vmem:[%s4475 + $0x50] sm:$0xff]
  %v5446 = vld [vmem:[%s4475 + $0x60] sm:$0xff]
  %v5447 = vld [vmem:[%s4475 + $0x68] sm:$0xff]
  %v5448 = vld [vmem:[%s4475 + $0x78] sm:$0xff]
  %v5449 = vld [vmem:[%s4475 + $0x80] sm:$0xff]
  %v5450 = vld [vmem:[%s4475 + $0x90] sm:$0xff]
  %v5451 = vld [vmem:[%s4475 + $0x98] sm:$0xff]
  %v5452 = vld [vmem:[%s4475 + $0xa8] sm:$0xff]
  %v5453 = vld [vmem:[%s4475 + $0xb0] sm:$0xff]
  %v5454 = vld [vmem:[%s4475 + $0xc0] sm:$0xff]
  %v5455 = vld [vmem:[%s4475 + $0xc8] sm:$0xff]
  %v5456 = vld [vmem:[%s4475 + $0xd8] sm:$0xff]
  %v5457 = vld [vmem:[%s4475 + $0xe0] sm:$0xff]
  %v5458 = vld [vmem:[%s4475 + $0xf0] sm:$0xff]
  %v5459 = vld [vmem:[%s4475 + $0xf8] sm:$0xff]
  %v5460 = vld [vmem:[%s4475 + $0x108] sm:$0xff]
  %v5461 = vld [vmem:[%s4475 + $0x110] sm:$0xff]
  %v5462 = vld [vmem:[%s4475 + $0x120] sm:$0xff]
  %v5463 = vld [vmem:[%s4475 + $0x128] sm:$0xff]
  %v5464 = vld [vmem:[%s4475 + $0x138] sm:$0xff]
  %v5465 = vld [vmem:[%s4475 + $0x140] sm:$0xff]
  %v5466 = vld [vmem:[%s4475 + $0x150] sm:$0xff]
  %v5467 = vld [vmem:[%s4475 + $0x158] sm:$0xff]
  %v5468 = vld [vmem:[%s4475 + $0x168] sm:$0xff]
  %v5469 = vld [vmem:[%s4475 + $0x170] sm:$0xff]
  %v5470 = vld [vmem:[%s4475 + $0x1b0] sm:$0xff]
  %v5471 = vld [vmem:[%s4475 + $0x1b8] sm:$0xff]
  %v5472 = vld [vmem:[%s4475 + $0x1c8] sm:$0xff]
  %v5473 = vld [vmem:[%s4475 + $0x1d0] sm:$0xff]
  %v5474 = vld [vmem:[%s4475 + $0x1e0] sm:$0xff]
  %v5475 = vld [vmem:[%s4475 + $0x1e8] sm:$0xff]
  %v5476 = vld [vmem:[%s4475 + $0x1f8] sm:$0xff]
  %v5477 = vld [vmem:[%s4475 + $0x200] sm:$0xff]
  %v5478 = vld [vmem:[%s4475 + $0x210] sm:$0xff]
  %v5479 = vld [vmem:[%s4475 + $0x218] sm:$0xff]
  %v5480 = vld [vmem:[%s4475 + $0x228] sm:$0xff]
  %v5481 = vld [vmem:[%s4475 + $0x230] sm:$0xff]
  %v5482 = vld [vmem:[%s4475 + $0x240] sm:$0xff]
  %v5483 = vld [vmem:[%s4475 + $0x248] sm:$0xff]
  %v5484 = vld [vmem:[%s4475 + $0x258] sm:$0xff]
  %v5485 = vld [vmem:[%s4475 + $0x260] sm:$0xff]
  %v5486 = vld [vmem:[%s4475 + $0x270] sm:$0xff]
  %v5487 = vld [vmem:[%s4475 + $0x278] sm:$0xff]
  %v5488 = vld [vmem:[%s4475 + $0x288] sm:$0xff]
  %v5489 = vld [vmem:[%s4475 + $0x290] sm:$0xff]
  %v5490 = vld [vmem:[%s4475 + $0x2a0] sm:$0xff]
  %v5491 = vld [vmem:[%s4475 + $0x2a8] sm:$0xff]
  %v5492 = vld [vmem:[%s4475 + $0x2b8] sm:$0xff]
  %v5493 = vld [vmem:[%s4475 + $0x2c0] sm:$0xff]
  %v5494 = vld [vmem:[%s4475 + $0x2d0] sm:$0xff]
  %v5495 = vld [vmem:[%s4475 + $0x2d8] sm:$0xff]
  %v5496 = vld [vmem:[%s4475 + $0x2e8] sm:$0xff]
  %v5497 = vld [vmem:[%s4475 + $0x2f0] sm:$0xff]
  %v5498 = vld [vmem:[%s4475 + $0x300] sm:$0xff]
  %v5499 = vld [vmem:[%s4475 + $0x308] sm:$0xff]
  %v5500 = vld [vmem:[%s4475 + $0x318] sm:$0xff]
  %v5501 = vld [vmem:[%s4475 + $0x320] sm:$0xff]
  %5566 = vrot.lane.b32.xlu0 %v5438, 24
  %v5567 = vpop.permute.xlu0 %5566
  %5568 = vrot.lane.b32.xlu0 %v5439, 24
  %v5569 = vpop.permute.xlu0 %5568
  %5570 = vrot.lane.b32.xlu0 %v5440, 24
  %v5571 = vpop.permute.xlu0 %5570
  %5572 = vrot.lane.b32.xlu0 %v5441, 24
  %v5573 = vpop.permute.xlu0 %5572
  %5574 = vrot.lane.b32.xlu0 %v5442, 24
  %v5575 = vpop.permute.xlu0 %5574
  %5576 = vrot.lane.b32.xlu0 %v5443, 24
  %v5577 = vpop.permute.xlu0 %5576
  %5578 = vrot.lane.b32.xlu0 %v5444, 24
  %v5579 = vpop.permute.xlu0 %5578
  %5580 = vrot.lane.b32.xlu0 %v5445, 24
  %v5581 = vpop.permute.xlu0 %5580
  %5582 = vrot.lane.b32.xlu0 %v5446, 24
  %v5583 = vpop.permute.xlu0 %5582
  %5584 = vrot.lane.b32.xlu0 %v5447, 24
  %v5585 = vpop.permute.xlu0 %5584
  %5586 = vrot.lane.b32.xlu0 %v5448, 24
  %v5587 = vpop.permute.xlu0 %5586
  %5588 = vrot.lane.b32.xlu0 %v5449, 24
  %v5589 = vpop.permute.xlu0 %5588
  %5590 = vrot.lane.b32.xlu0 %v5450, 24
  %v5591 = vpop.permute.xlu0 %5590
  %5592 = vrot.lane.b32.xlu0 %v5451, 24
  %v5593 = vpop.permute.xlu0 %5592
  %5594 = vrot.lane.b32.xlu0 %v5452, 24
  %v5595 = vpop.permute.xlu0 %5594
  %5596 = vrot.lane.b32.xlu0 %v5453, 24
  %v5597 = vpop.permute.xlu0 %5596
  %5598 = vrot.lane.b32.xlu0 %v5454, 24
  %v5599 = vpop.permute.xlu0 %5598
  %5600 = vrot.lane.b32.xlu0 %v5455, 24
  %v5601 = vpop.permute.xlu0 %5600
  %5602 = vrot.lane.b32.xlu0 %v5456, 24
  %v5603 = vpop.permute.xlu0 %5602
  %5604 = vrot.lane.b32.xlu0 %v5457, 24
  %v5605 = vpop.permute.xlu0 %5604
  %5606 = vrot.lane.b32.xlu0 %v5458, 24
  %v5607 = vpop.permute.xlu0 %5606
  %5608 = vrot.lane.b32.xlu0 %v5459, 24
  %v5609 = vpop.permute.xlu0 %5608
  %5610 = vrot.lane.b32.xlu0 %v5460, 24
  %v5611 = vpop.permute.xlu0 %5610
  %5612 = vrot.lane.b32.xlu0 %v5461, 24
  %v5613 = vpop.permute.xlu0 %5612
  %5614 = vrot.lane.b32.xlu0 %v5462, 24
  %v5615 = vpop.permute.xlu0 %5614
  %5616 = vrot.lane.b32.xlu0 %v5463, 24
  %v5617 = vpop.permute.xlu0 %5616
  %5618 = vrot.lane.b32.xlu0 %v5464, 24
  %v5619 = vpop.permute.xlu0 %5618
  %5620 = vrot.lane.b32.xlu0 %v5465, 24
  %v5621 = vpop.permute.xlu0 %5620
  %5622 = vrot.lane.b32.xlu0 %v5466, 24
  %v5623 = vpop.permute.xlu0 %5622
  %5624 = vrot.lane.b32.xlu0 %v5467, 24
  %v5625 = vpop.permute.xlu0 %5624
  %5626 = vrot.lane.b32.xlu0 %v5468, 24
  %v5627 = vpop.permute.xlu0 %5626
  %5628 = vrot.lane.b32.xlu0 %v5469, 24
  %v5629 = vpop.permute.xlu0 %5628
  %5630 = vrot.lane.b32.xlu0 %v5470, 24
  %v5631 = vpop.permute.xlu0 %5630
  %5632 = vrot.lane.b32.xlu0 %v5471, 24
  %v5633 = vpop.permute.xlu0 %5632
  %5634 = vrot.lane.b32.xlu0 %v5472, 24
  %v5635 = vpop.permute.xlu0 %5634
  %5636 = vrot.lane.b32.xlu0 %v5473, 24
  %v5637 = vpop.permute.xlu0 %5636
  %5638 = vrot.lane.b32.xlu0 %v5474, 24
  %v5639 = vpop.permute.xlu0 %5638
  %5640 = vrot.lane.b32.xlu0 %v5475, 24
  %v5641 = vpop.permute.xlu0 %5640
  %5642 = vrot.lane.b32.xlu0 %v5476, 24
  %v5643 = vpop.permute.xlu0 %5642
  %5644 = vrot.lane.b32.xlu0 %v5477, 24
  %v5645 = vpop.permute.xlu0 %5644
  %5646 = vrot.lane.b32.xlu0 %v5478, 24
  %v5647 = vpop.permute.xlu0 %5646
  %5648 = vrot.lane.b32.xlu0 %v5479, 24
  %v5649 = vpop.permute.xlu0 %5648
  %5650 = vrot.lane.b32.xlu0 %v5480, 24
  %v5651 = vpop.permute.xlu0 %5650
  %5652 = vrot.lane.b32.xlu0 %v5481, 24
  %v5653 = vpop.permute.xlu0 %5652
  %5654 = vrot.lane.b32.xlu0 %v5482, 24
  %v5655 = vpop.permute.xlu0 %5654
  %5656 = vrot.lane.b32.xlu0 %v5483, 24
  %v5657 = vpop.permute.xlu0 %5656
  %5658 = vrot.lane.b32.xlu0 %v5484, 24
  %v5659 = vpop.permute.xlu0 %5658
  %5660 = vrot.lane.b32.xlu0 %v5485, 24
  %v5661 = vpop.permute.xlu0 %5660
  %5662 = vrot.lane.b32.xlu0 %v5486, 24
  %v5663 = vpop.permute.xlu0 %5662
  %5664 = vrot.lane.b32.xlu0 %v5487, 24
  %v5665 = vpop.permute.xlu0 %5664
  %5666 = vrot.lane.b32.xlu0 %v5488, 24
  %v5667 = vpop.permute.xlu0 %5666
  %5668 = vrot.lane.b32.xlu0 %v5489, 24
  %v5669 = vpop.permute.xlu0 %5668
  %5670 = vrot.lane.b32.xlu0 %v5490, 24
  %v5671 = vpop.permute.xlu0 %5670
  %5672 = vrot.lane.b32.xlu0 %v5491, 24
  %v5673 = vpop.permute.xlu0 %5672
  %5674 = vrot.lane.b32.xlu0 %v5492, 24
  %v5675 = vpop.permute.xlu0 %5674
  %5676 = vrot.lane.b32.xlu0 %v5493, 24
  %v5677 = vpop.permute.xlu0 %5676
  %5678 = vrot.lane.b32.xlu0 %v5494, 24
  %v5679 = vpop.permute.xlu0 %5678
  %5680 = vrot.lane.b32.xlu0 %v5495, 24
  %v5681 = vpop.permute.xlu0 %5680
  %5682 = vrot.lane.b32.xlu0 %v5496, 24
  %v5683 = vpop.permute.xlu0 %5682
  %5684 = vrot.lane.b32.xlu0 %v5497, 24
  %v5685 = vpop.permute.xlu0 %5684
  %5686 = vrot.lane.b32.xlu0 %v5498, 24
  %v5687 = vpop.permute.xlu0 %5686
  %5688 = vrot.lane.b32.xlu0 %v5499, 24
  %v5689 = vpop.permute.xlu0 %5688
  %5690 = vrot.lane.b32.xlu0 %v5500, 24
  %v5691 = vpop.permute.xlu0 %5690
  %5692 = vrot.lane.b32.xlu0 %v5501, 24
  %v5693 = vpop.permute.xlu0 %5692
  %vm5758 = vcmask 261312
  %5759 = vst.msk [vmem:[#allocation5] sm:$0xff] %vm5758, %v5567
  %5760 = vst.msk [vmem:[#allocation5 + $0x8] sm:$0xff] %vm5758, %v5569
  %5761 = vst.msk [vmem:[#allocation5 + $0x10] sm:$0xff] %vm5758, %v5571
  %5762 = vst.msk [vmem:[#allocation5 + $0x18] sm:$0xff] %vm5758, %v5573
  %5763 = vst.msk [vmem:[#allocation5 + $0x20] sm:$0xff] %vm5758, %v5575
  %5764 = vst.msk [vmem:[#allocation5 + $0x28] sm:$0xff] %vm5758, %v5577
  %5765 = vst.msk [vmem:[#allocation5 + $0x30] sm:$0xff] %vm5758, %v5579
  %5766 = vst.msk [vmem:[#allocation5 + $0x38] sm:$0xff] %vm5758, %v5581
  %5767 = vst.msk [vmem:[#allocation5 + $0x40] sm:$0xff] %vm5758, %v5583
  %5768 = vst.msk [vmem:[#allocation5 + $0x48] sm:$0xff] %vm5758, %v5585
  %5769 = vst.msk [vmem:[#allocation5 + $0x50] sm:$0xff] %vm5758, %v5587
  %5770 = vst.msk [vmem:[#allocation5 + $0x58] sm:$0xff] %vm5758, %v5589
  %5771 = vst.msk [vmem:[#allocation5 + $0x60] sm:$0xff] %vm5758, %v5591
  %5772 = vst.msk [vmem:[#allocation5 + $0x68] sm:$0xff] %vm5758, %v5593
  %5773 = vst.msk [vmem:[#allocation5 + $0x70] sm:$0xff] %vm5758, %v5595
  %5774 = vst.msk [vmem:[#allocation5 + $0x78] sm:$0xff] %vm5758, %v5597
  %5775 = vst.msk [vmem:[#allocation5 + $0x80] sm:$0xff] %vm5758, %v5599
  %5776 = vst.msk [vmem:[#allocation5 + $0x88] sm:$0xff] %vm5758, %v5601
  %5777 = vst.msk [vmem:[#allocation5 + $0x90] sm:$0xff] %vm5758, %v5603
  %5778 = vst.msk [vmem:[#allocation5 + $0x98] sm:$0xff] %vm5758, %v5605
  %5779 = vst.msk [vmem:[#allocation5 + $0xa0] sm:$0xff] %vm5758, %v5607
  %5780 = vst.msk [vmem:[#allocation5 + $0xa8] sm:$0xff] %vm5758, %v5609
  %5781 = vst.msk [vmem:[#allocation5 + $0xb0] sm:$0xff] %vm5758, %v5611
  %5782 = vst.msk [vmem:[#allocation5 + $0xb8] sm:$0xff] %vm5758, %v5613
  %5783 = vst.msk [vmem:[#allocation5 + $0xc0] sm:$0xff] %vm5758, %v5615
  %5784 = vst.msk [vmem:[#allocation5 + $0xc8] sm:$0xff] %vm5758, %v5617
  %5785 = vst.msk [vmem:[#allocation5 + $0xd0] sm:$0xff] %vm5758, %v5619
  %5786 = vst.msk [vmem:[#allocation5 + $0xd8] sm:$0xff] %vm5758, %v5621
  %5787 = vst.msk [vmem:[#allocation5 + $0xe0] sm:$0xff] %vm5758, %v5623
  %5788 = vst.msk [vmem:[#allocation5 + $0xe8] sm:$0xff] %vm5758, %v5625
  %5789 = vst.msk [vmem:[#allocation5 + $0xf0] sm:$0xff] %vm5758, %v5627
  %5790 = vst.msk [vmem:[#allocation5 + $0xf8] sm:$0xff] %vm5758, %v5629
  %5791 = vst.msk [vmem:[#allocation5 + $0x100] sm:$0xff] %vm5758, %v5631
  %5792 = vst.msk [vmem:[#allocation5 + $0x108] sm:$0xff] %vm5758, %v5633
  %5793 = vst.msk [vmem:[#allocation5 + $0x110] sm:$0xff] %vm5758, %v5635
  %5794 = vst.msk [vmem:[#allocation5 + $0x118] sm:$0xff] %vm5758, %v5637
  %5795 = vst.msk [vmem:[#allocation5 + $0x120] sm:$0xff] %vm5758, %v5639
  %5796 = vst.msk [vmem:[#allocation5 + $0x128] sm:$0xff] %vm5758, %v5641
  %5797 = vst.msk [vmem:[#allocation5 + $0x130] sm:$0xff] %vm5758, %v5643
  %5798 = vst.msk [vmem:[#allocation5 + $0x138] sm:$0xff] %vm5758, %v5645
  %5799 = vst.msk [vmem:[#allocation5 + $0x140] sm:$0xff] %vm5758, %v5647
  %5800 = vst.msk [vmem:[#allocation5 + $0x148] sm:$0xff] %vm5758, %v5649
  %5801 = vst.msk [vmem:[#allocation5 + $0x150] sm:$0xff] %vm5758, %v5651
  %5802 = vst.msk [vmem:[#allocation5 + $0x158] sm:$0xff] %vm5758, %v5653
  %5803 = vst.msk [vmem:[#allocation5 + $0x160] sm:$0xff] %vm5758, %v5655
  %5804 = vst.msk [vmem:[#allocation5 + $0x168] sm:$0xff] %vm5758, %v5657
  %5805 = vst.msk [vmem:[#allocation5 + $0x170] sm:$0xff] %vm5758, %v5659
  %5806 = vst.msk [vmem:[#allocation5 + $0x178] sm:$0xff] %vm5758, %v5661
  %5807 = vst.msk [vmem:[#allocation5 + $0x180] sm:$0xff] %vm5758, %v5663
  %5808 = vst.msk [vmem:[#allocation5 + $0x188] sm:$0xff] %vm5758, %v5665
  %5809 = vst.msk [vmem:[#allocation5 + $0x190] sm:$0xff] %vm5758, %v5667
  %5810 = vst.msk [vmem:[#allocation5 + $0x198] sm:$0xff] %vm5758, %v5669
  %5811 = vst.msk [vmem:[#allocation5 + $0x1a0] sm:$0xff] %vm5758, %v5671
  %5812 = vst.msk [vmem:[#allocation5 + $0x1a8] sm:$0xff] %vm5758, %v5673
  %5813 = vst.msk [vmem:[#allocation5 + $0x1b0] sm:$0xff] %vm5758, %v5675
  %5814 = vst.msk [vmem:[#allocation5 + $0x1b8] sm:$0xff] %vm5758, %v5677
  %5815 = vst.msk [vmem:[#allocation5 + $0x1c0] sm:$0xff] %vm5758, %v5679
  %5816 = vst.msk [vmem:[#allocation5 + $0x1c8] sm:$0xff] %vm5758, %v5681
  %5817 = vst.msk [vmem:[#allocation5 + $0x1d0] sm:$0xff] %vm5758, %v5683
  %5818 = vst.msk [vmem:[#allocation5 + $0x1d8] sm:$0xff] %vm5758, %v5685
  %5819 = vst.msk [vmem:[#allocation5 + $0x1e0] sm:$0xff] %vm5758, %v5687
  %5820 = vst.msk [vmem:[#allocation5 + $0x1e8] sm:$0xff] %vm5758, %v5689
  %5821 = vst.msk [vmem:[#allocation5 + $0x1f0] sm:$0xff] %vm5758, %v5691
  %5822 = vst.msk [vmem:[#allocation5 + $0x1f8] sm:$0xff] %vm5758, %v5693
  %v5823 = vld [vmem:[%s4475 + $0x1] sm:$0xff]
  %v5824 = vld [vmem:[%s4475 + $0x9] sm:$0xff]
  %v5825 = vld [vmem:[%s4475 + $0x19] sm:$0xff]
  %v5826 = vld [vmem:[%s4475 + $0x21] sm:$0xff]
  %v5827 = vld [vmem:[%s4475 + $0x31] sm:$0xff]
  %v5828 = vld [vmem:[%s4475 + $0x39] sm:$0xff]
  %v5829 = vld [vmem:[%s4475 + $0x49] sm:$0xff]
  %v5830 = vld [vmem:[%s4475 + $0x51] sm:$0xff]
  %v5831 = vld [vmem:[%s4475 + $0x61] sm:$0xff]
  %v5832 = vld [vmem:[%s4475 + $0x69] sm:$0xff]
  %v5833 = vld [vmem:[%s4475 + $0x79] sm:$0xff]
  %v5834 = vld [vmem:[%s4475 + $0x81] sm:$0xff]
  %v5835 = vld [vmem:[%s4475 + $0x91] sm:$0xff]
  %v5836 = vld [vmem:[%s4475 + $0x99] sm:$0xff]
  %v5837 = vld [vmem:[%s4475 + $0xa9] sm:$0xff]
  %v5838 = vld [vmem:[%s4475 + $0xb1] sm:$0xff]
  %v5839 = vld [vmem:[%s4475 + $0xc1] sm:$0xff]
  %v5840 = vld [vmem:[%s4475 + $0xc9] sm:$0xff]
  %v5841 = vld [vmem:[%s4475 + $0xd9] sm:$0xff]
  %v5842 = vld [vmem:[%s4475 + $0xe1] sm:$0xff]
  %v5843 = vld [vmem:[%s4475 + $0xf1] sm:$0xff]
  %v5844 = vld [vmem:[%s4475 + $0xf9] sm:$0xff]
  %v5845 = vld [vmem:[%s4475 + $0x109] sm:$0xff]
  %v5846 = vld [vmem:[%s4475 + $0x111] sm:$0xff]
  %v5847 = vld [vmem:[%s4475 + $0x121] sm:$0xff]
  %v5848 = vld [vmem:[%s4475 + $0x129] sm:$0xff]
  %v5849 = vld [vmem:[%s4475 + $0x139] sm:$0xff]
  %v5850 = vld [vmem:[%s4475 + $0x141] sm:$0xff]
  %v5851 = vld [vmem:[%s4475 + $0x151] sm:$0xff]
  %v5852 = vld [vmem:[%s4475 + $0x159] sm:$0xff]
  %v5853 = vld [vmem:[%s4475 + $0x169] sm:$0xff]
  %v5854 = vld [vmem:[%s4475 + $0x171] sm:$0xff]
  %v5855 = vld [vmem:[%s4475 + $0x1b1] sm:$0xff]
  %v5856 = vld [vmem:[%s4475 + $0x1b9] sm:$0xff]
  %v5857 = vld [vmem:[%s4475 + $0x1c9] sm:$0xff]
  %v5858 = vld [vmem:[%s4475 + $0x1d1] sm:$0xff]
  %v5859 = vld [vmem:[%s4475 + $0x1e1] sm:$0xff]
  %v5860 = vld [vmem:[%s4475 + $0x1e9] sm:$0xff]
  %v5861 = vld [vmem:[%s4475 + $0x1f9] sm:$0xff]
  %v5862 = vld [vmem:[%s4475 + $0x201] sm:$0xff]
  %v5863 = vld [vmem:[%s4475 + $0x211] sm:$0xff]
  %v5864 = vld [vmem:[%s4475 + $0x219] sm:$0xff]
  %v5865 = vld [vmem:[%s4475 + $0x229] sm:$0xff]
  %v5866 = vld [vmem:[%s4475 + $0x231] sm:$0xff]
  %v5867 = vld [vmem:[%s4475 + $0x241] sm:$0xff]
  %v5868 = vld [vmem:[%s4475 + $0x249] sm:$0xff]
  %v5869 = vld [vmem:[%s4475 + $0x259] sm:$0xff]
  %v5870 = vld [vmem:[%s4475 + $0x261] sm:$0xff]
  %v5871 = vld [vmem:[%s4475 + $0x271] sm:$0xff]
  %v5872 = vld [vmem:[%s4475 + $0x279] sm:$0xff]
  %v5873 = vld [vmem:[%s4475 + $0x289] sm:$0xff]
  %v5874 = vld [vmem:[%s4475 + $0x291] sm:$0xff]
  %v5875 = vld [vmem:[%s4475 + $0x2a1] sm:$0xff]
  %v5876 = vld [vmem:[%s4475 + $0x2a9] sm:$0xff]
  %v5877 = vld [vmem:[%s4475 + $0x2b9] sm:$0xff]
  %v5878 = vld [vmem:[%s4475 + $0x2c1] sm:$0xff]
  %v5879 = vld [vmem:[%s4475 + $0x2d1] sm:$0xff]
  %v5880 = vld [vmem:[%s4475 + $0x2d9] sm:$0xff]
  %v5881 = vld [vmem:[%s4475 + $0x2e9] sm:$0xff]
  %v5882 = vld [vmem:[%s4475 + $0x2f1] sm:$0xff]
  %v5883 = vld [vmem:[%s4475 + $0x301] sm:$0xff]
  %v5884 = vld [vmem:[%s4475 + $0x309] sm:$0xff]
  %v5885 = vld [vmem:[%s4475 + $0x319] sm:$0xff]
  %v5886 = vld [vmem:[%s4475 + $0x321] sm:$0xff]
  %5951 = vrot.lane.b32.xlu0 %v5823, 32
  %v5952 = vpop.permute.xlu0 %5951
  %5953 = vrot.lane.b32.xlu0 %v5824, 32
  %v5954 = vpop.permute.xlu0 %5953
  %5955 = vrot.lane.b32.xlu0 %v5825, 32
  %v5956 = vpop.permute.xlu0 %5955
  %5957 = vrot.lane.b32.xlu0 %v5826, 32
  %v5958 = vpop.permute.xlu0 %5957
  %5959 = vrot.lane.b32.xlu0 %v5827, 32
  %v5960 = vpop.permute.xlu0 %5959
  %5961 = vrot.lane.b32.xlu0 %v5828, 32
  %v5962 = vpop.permute.xlu0 %5961
  %5963 = vrot.lane.b32.xlu0 %v5829, 32
  %v5964 = vpop.permute.xlu0 %5963
  %5965 = vrot.lane.b32.xlu0 %v5830, 32
  %v5966 = vpop.permute.xlu0 %5965
  %5967 = vrot.lane.b32.xlu0 %v5831, 32
  %v5968 = vpop.permute.xlu0 %5967
  %5969 = vrot.lane.b32.xlu0 %v5832, 32
  %v5970 = vpop.permute.xlu0 %5969
  %5971 = vrot.lane.b32.xlu0 %v5833, 32
  %v5972 = vpop.permute.xlu0 %5971
  %5973 = vrot.lane.b32.xlu0 %v5834, 32
  %v5974 = vpop.permute.xlu0 %5973
  %5975 = vrot.lane.b32.xlu0 %v5835, 32
  %v5976 = vpop.permute.xlu0 %5975
  %5977 = vrot.lane.b32.xlu0 %v5836, 32
  %v5978 = vpop.permute.xlu0 %5977
  %5979 = vrot.lane.b32.xlu0 %v5837, 32
  %v5980 = vpop.permute.xlu0 %5979
  %5981 = vrot.lane.b32.xlu0 %v5838, 32
  %v5982 = vpop.permute.xlu0 %5981
  %5983 = vrot.lane.b32.xlu0 %v5839, 32
  %v5984 = vpop.permute.xlu0 %5983
  %5985 = vrot.lane.b32.xlu0 %v5840, 32
  %v5986 = vpop.permute.xlu0 %5985
  %5987 = vrot.lane.b32.xlu0 %v5841, 32
  %v5988 = vpop.permute.xlu0 %5987
  %5989 = vrot.lane.b32.xlu0 %v5842, 32
  %v5990 = vpop.permute.xlu0 %5989
  %5991 = vrot.lane.b32.xlu0 %v5843, 32
  %v5992 = vpop.permute.xlu0 %5991
  %5993 = vrot.lane.b32.xlu0 %v5844, 32
  %v5994 = vpop.permute.xlu0 %5993
  %5995 = vrot.lane.b32.xlu0 %v5845, 32
  %v5996 = vpop.permute.xlu0 %5995
  %5997 = vrot.lane.b32.xlu0 %v5846, 32
  %v5998 = vpop.permute.xlu0 %5997
  %5999 = vrot.lane.b32.xlu0 %v5847, 32
  %v6000 = vpop.permute.xlu0 %5999
  %6001 = vrot.lane.b32.xlu0 %v5848, 32
  %v6002 = vpop.permute.xlu0 %6001
  %6003 = vrot.lane.b32.xlu0 %v5849, 32
  %v6004 = vpop.permute.xlu0 %6003
  %6005 = vrot.lane.b32.xlu0 %v5850, 32
  %v6006 = vpop.permute.xlu0 %6005
  %6007 = vrot.lane.b32.xlu0 %v5851, 32
  %v6008 = vpop.permute.xlu0 %6007
  %6009 = vrot.lane.b32.xlu0 %v5852, 32
  %v6010 = vpop.permute.xlu0 %6009
  %6011 = vrot.lane.b32.xlu0 %v5853, 32
  %v6012 = vpop.permute.xlu0 %6011
  %6013 = vrot.lane.b32.xlu0 %v5854, 32
  %v6014 = vpop.permute.xlu0 %6013
  %6015 = vrot.lane.b32.xlu0 %v5855, 32
  %v6016 = vpop.permute.xlu0 %6015
  %6017 = vrot.lane.b32.xlu0 %v5856, 32
  %v6018 = vpop.permute.xlu0 %6017
  %6019 = vrot.lane.b32.xlu0 %v5857, 32
  %v6020 = vpop.permute.xlu0 %6019
  %6021 = vrot.lane.b32.xlu0 %v5858, 32
  %v6022 = vpop.permute.xlu0 %6021
  %6023 = vrot.lane.b32.xlu0 %v5859, 32
  %v6024 = vpop.permute.xlu0 %6023
  %6025 = vrot.lane.b32.xlu0 %v5860, 32
  %v6026 = vpop.permute.xlu0 %6025
  %6027 = vrot.lane.b32.xlu0 %v5861, 32
  %v6028 = vpop.permute.xlu0 %6027
  %6029 = vrot.lane.b32.xlu0 %v5862, 32
  %v6030 = vpop.permute.xlu0 %6029
  %6031 = vrot.lane.b32.xlu0 %v5863, 32
  %v6032 = vpop.permute.xlu0 %6031
  %6033 = vrot.lane.b32.xlu0 %v5864, 32
  %v6034 = vpop.permute.xlu0 %6033
  %6035 = vrot.lane.b32.xlu0 %v5865, 32
  %v6036 = vpop.permute.xlu0 %6035
  %6037 = vrot.lane.b32.xlu0 %v5866, 32
  %v6038 = vpop.permute.xlu0 %6037
  %6039 = vrot.lane.b32.xlu0 %v5867, 32
  %v6040 = vpop.permute.xlu0 %6039
  %6041 = vrot.lane.b32.xlu0 %v5868, 32
  %v6042 = vpop.permute.xlu0 %6041
  %6043 = vrot.lane.b32.xlu0 %v5869, 32
  %v6044 = vpop.permute.xlu0 %6043
  %6045 = vrot.lane.b32.xlu0 %v5870, 32
  %v6046 = vpop.permute.xlu0 %6045
  %6047 = vrot.lane.b32.xlu0 %v5871, 32
  %v6048 = vpop.permute.xlu0 %6047
  %6049 = vrot.lane.b32.xlu0 %v5872, 32
  %v6050 = vpop.permute.xlu0 %6049
  %6051 = vrot.lane.b32.xlu0 %v5873, 32
  %v6052 = vpop.permute.xlu0 %6051
  %6053 = vrot.lane.b32.xlu0 %v5874, 32
  %v6054 = vpop.permute.xlu0 %6053
  %6055 = vrot.lane.b32.xlu0 %v5875, 32
  %v6056 = vpop.permute.xlu0 %6055
  %6057 = vrot.lane.b32.xlu0 %v5876, 32
  %v6058 = vpop.permute.xlu0 %6057
  %6059 = vrot.lane.b32.xlu0 %v5877, 32
  %v6060 = vpop.permute.xlu0 %6059
  %6061 = vrot.lane.b32.xlu0 %v5878, 32
  %v6062 = vpop.permute.xlu0 %6061
  %6063 = vrot.lane.b32.xlu0 %v5879, 32
  %v6064 = vpop.permute.xlu0 %6063
  %6065 = vrot.lane.b32.xlu0 %v5880, 32
  %v6066 = vpop.permute.xlu0 %6065
  %6067 = vrot.lane.b32.xlu0 %v5881, 32
  %v6068 = vpop.permute.xlu0 %6067
  %6069 = vrot.lane.b32.xlu0 %v5882, 32
  %v6070 = vpop.permute.xlu0 %6069
  %6071 = vrot.lane.b32.xlu0 %v5883, 32
  %v6072 = vpop.permute.xlu0 %6071
  %6073 = vrot.lane.b32.xlu0 %v5884, 32
  %v6074 = vpop.permute.xlu0 %6073
  %6075 = vrot.lane.b32.xlu0 %v5885, 32
  %v6076 = vpop.permute.xlu0 %6075
  %6077 = vrot.lane.b32.xlu0 %v5886, 32
  %v6078 = vpop.permute.xlu0 %6077
  %vm6143 = vcmask 326912
  %6144 = vst.msk [vmem:[#allocation5] sm:$0xff] %vm6143, %v5952
  %6145 = vst.msk [vmem:[#allocation5 + $0x8] sm:$0xff] %vm6143, %v5954
  %6146 = vst.msk [vmem:[#allocation5 + $0x10] sm:$0xff] %vm6143, %v5956
  %6147 = vst.msk [vmem:[#allocation5 + $0x18] sm:$0xff] %vm6143, %v5958
  %6148 = vst.msk [vmem:[#allocation5 + $0x20] sm:$0xff] %vm6143, %v5960
  %6149 = vst.msk [vmem:[#allocation5 + $0x28] sm:$0xff] %vm6143, %v5962
  %6150 = vst.msk [vmem:[#allocation5 + $0x30] sm:$0xff] %vm6143, %v5964
  %6151 = vst.msk [vmem:[#allocation5 + $0x38] sm:$0xff] %vm6143, %v5966
  %6152 = vst.msk [vmem:[#allocation5 + $0x40] sm:$0xff] %vm6143, %v5968
  %6153 = vst.msk [vmem:[#allocation5 + $0x48] sm:$0xff] %vm6143, %v5970
  %6154 = vst.msk [vmem:[#allocation5 + $0x50] sm:$0xff] %vm6143, %v5972
  %6155 = vst.msk [vmem:[#allocation5 + $0x58] sm:$0xff] %vm6143, %v5974
  %6156 = vst.msk [vmem:[#allocation5 + $0x60] sm:$0xff] %vm6143, %v5976
  %6157 = vst.msk [vmem:[#allocation5 + $0x68] sm:$0xff] %vm6143, %v5978
  %6158 = vst.msk [vmem:[#allocation5 + $0x70] sm:$0xff] %vm6143, %v5980
  %6159 = vst.msk [vmem:[#allocation5 + $0x78] sm:$0xff] %vm6143, %v5982
  %6160 = vst.msk [vmem:[#allocation5 + $0x80] sm:$0xff] %vm6143, %v5984
  %6161 = vst.msk [vmem:[#allocation5 + $0x88] sm:$0xff] %vm6143, %v5986
  %6162 = vst.msk [vmem:[#allocation5 + $0x90] sm:$0xff] %vm6143, %v5988
  %6163 = vst.msk [vmem:[#allocation5 + $0x98] sm:$0xff] %vm6143, %v5990
  %6164 = vst.msk [vmem:[#allocation5 + $0xa0] sm:$0xff] %vm6143, %v5992
  %6165 = vst.msk [vmem:[#allocation5 + $0xa8] sm:$0xff] %vm6143, %v5994
  %6166 = vst.msk [vmem:[#allocation5 + $0xb0] sm:$0xff] %vm6143, %v5996
  %6167 = vst.msk [vmem:[#allocation5 + $0xb8] sm:$0xff] %vm6143, %v5998
  %6168 = vst.msk [vmem:[#allocation5 + $0xc0] sm:$0xff] %vm6143, %v6000
  %6169 = vst.msk [vmem:[#allocation5 + $0xc8] sm:$0xff] %vm6143, %v6002
  %6170 = vst.msk [vmem:[#allocation5 + $0xd0] sm:$0xff] %vm6143, %v6004
  %6171 = vst.msk [vmem:[#allocation5 + $0xd8] sm:$0xff] %vm6143, %v6006
  %6172 = vst.msk [vmem:[#allocation5 + $0xe0] sm:$0xff] %vm6143, %v6008
  %6173 = vst.msk [vmem:[#allocation5 + $0xe8] sm:$0xff] %vm6143, %v6010
  %6174 = vst.msk [vmem:[#allocation5 + $0xf0] sm:$0xff] %vm6143, %v6012
  %6175 = vst.msk [vmem:[#allocation5 + $0xf8] sm:$0xff] %vm6143, %v6014
  %6176 = vst.msk [vmem:[#allocation5 + $0x100] sm:$0xff] %vm6143, %v6016
  %6177 = vst.msk [vmem:[#allocation5 + $0x108] sm:$0xff] %vm6143, %v6018
  %6178 = vst.msk [vmem:[#allocation5 + $0x110] sm:$0xff] %vm6143, %v6020
  %6179 = vst.msk [vmem:[#allocation5 + $0x118] sm:$0xff] %vm6143, %v6022
  %6180 = vst.msk [vmem:[#allocation5 + $0x120] sm:$0xff] %vm6143, %v6024
  %6181 = vst.msk [vmem:[#allocation5 + $0x128] sm:$0xff] %vm6143, %v6026
  %6182 = vst.msk [vmem:[#allocation5 + $0x130] sm:$0xff] %vm6143, %v6028
  %6183 = vst.msk [vmem:[#allocation5 + $0x138] sm:$0xff] %vm6143, %v6030
  %6184 = vst.msk [vmem:[#allocation5 + $0x140] sm:$0xff] %vm6143, %v6032
  %6185 = vst.msk [vmem:[#allocation5 + $0x148] sm:$0xff] %vm6143, %v6034
  %6186 = vst.msk [vmem:[#allocation5 + $0x150] sm:$0xff] %vm6143, %v6036
  %6187 = vst.msk [vmem:[#allocation5 + $0x158] sm:$0xff] %vm6143, %v6038
  %6188 = vst.msk [vmem:[#allocation5 + $0x160] sm:$0xff] %vm6143, %v6040
  %6189 = vst.msk [vmem:[#allocation5 + $0x168] sm:$0xff] %vm6143, %v6042
  %6190 = vst.msk [vmem:[#allocation5 + $0x170] sm:$0xff] %vm6143, %v6044
  %6191 = vst.msk [vmem:[#allocation5 + $0x178] sm:$0xff] %vm6143, %v6046
  %6192 = vst.msk [vmem:[#allocation5 + $0x180] sm:$0xff] %vm6143, %v6048
  %6193 = vst.msk [vmem:[#allocation5 + $0x188] sm:$0xff] %vm6143, %v6050
  %6194 = vst.msk [vmem:[#allocation5 + $0x190] sm:$0xff] %vm6143, %v6052
  %6195 = vst.msk [vmem:[#allocation5 + $0x198] sm:$0xff] %vm6143, %v6054
  %6196 = vst.msk [vmem:[#allocation5 + $0x1a0] sm:$0xff] %vm6143, %v6056
  %6197 = vst.msk [vmem:[#allocation5 + $0x1a8] sm:$0xff] %vm6143, %v6058
  %6198 = vst.msk [vmem:[#allocation5 + $0x1b0] sm:$0xff] %vm6143, %v6060
  %6199 = vst.msk [vmem:[#allocation5 + $0x1b8] sm:$0xff] %vm6143, %v6062
  %6200 = vst.msk [vmem:[#allocation5 + $0x1c0] sm:$0xff] %vm6143, %v6064
  %6201 = vst.msk [vmem:[#allocation5 + $0x1c8] sm:$0xff] %vm6143, %v6066
  %6202 = vst.msk [vmem:[#allocation5 + $0x1d0] sm:$0xff] %vm6143, %v6068
  %6203 = vst.msk [vmem:[#allocation5 + $0x1d8] sm:$0xff] %vm6143, %v6070
  %6204 = vst.msk [vmem:[#allocation5 + $0x1e0] sm:$0xff] %vm6143, %v6072
  %6205 = vst.msk [vmem:[#allocation5 + $0x1e8] sm:$0xff] %vm6143, %v6074
  %6206 = vst.msk [vmem:[#allocation5 + $0x1f0] sm:$0xff] %vm6143, %v6076
  %6207 = vst.msk [vmem:[#allocation5 + $0x1f8] sm:$0xff] %vm6143, %v6078
  %v6208 = vld [vmem:[%s4475 + $0x2] sm:$0xff]
  %v6209 = vld [vmem:[%s4475 + $0xa] sm:$0xff]
  %v6210 = vld [vmem:[%s4475 + $0x1a] sm:$0xff]
  %v6211 = vld [vmem:[%s4475 + $0x22] sm:$0xff]
  %v6212 = vld [vmem:[%s4475 + $0x32] sm:$0xff]
  %v6213 = vld [vmem:[%s4475 + $0x3a] sm:$0xff]
  %v6214 = vld [vmem:[%s4475 + $0x4a] sm:$0xff]
  %v6215 = vld [vmem:[%s4475 + $0x52] sm:$0xff]
  %v6216 = vld [vmem:[%s4475 + $0x62] sm:$0xff]
  %v6217 = vld [vmem:[%s4475 + $0x6a] sm:$0xff]
  %v6218 = vld [vmem:[%s4475 + $0x7a] sm:$0xff]
  %v6219 = vld [vmem:[%s4475 + $0x82] sm:$0xff]
  %v6220 = vld [vmem:[%s4475 + $0x92] sm:$0xff]
  %v6221 = vld [vmem:[%s4475 + $0x9a] sm:$0xff]
  %v6222 = vld [vmem:[%s4475 + $0xaa] sm:$0xff]
  %v6223 = vld [vmem:[%s4475 + $0xb2] sm:$0xff]
  %v6224 = vld [vmem:[%s4475 + $0xc2] sm:$0xff]
  %v6225 = vld [vmem:[%s4475 + $0xca] sm:$0xff]
  %v6226 = vld [vmem:[%s4475 + $0xda] sm:$0xff]
  %v6227 = vld [vmem:[%s4475 + $0xe2] sm:$0xff]
  %v6228 = vld [vmem:[%s4475 + $0xf2] sm:$0xff]
  %v6229 = vld [vmem:[%s4475 + $0xfa] sm:$0xff]
  %v6230 = vld [vmem:[%s4475 + $0x10a] sm:$0xff]
  %v6231 = vld [vmem:[%s4475 + $0x112] sm:$0xff]
  %v6232 = vld [vmem:[%s4475 + $0x122] sm:$0xff]
  %v6233 = vld [vmem:[%s4475 + $0x12a] sm:$0xff]
  %v6234 = vld [vmem:[%s4475 + $0x13a] sm:$0xff]
  %v6235 = vld [vmem:[%s4475 + $0x142] sm:$0xff]
  %v6236 = vld [vmem:[%s4475 + $0x152] sm:$0xff]
  %v6237 = vld [vmem:[%s4475 + $0x15a] sm:$0xff]
  %v6238 = vld [vmem:[%s4475 + $0x16a] sm:$0xff]
  %v6239 = vld [vmem:[%s4475 + $0x172] sm:$0xff]
  %v6240 = vld [vmem:[%s4475 + $0x1b2] sm:$0xff]
  %v6241 = vld [vmem:[%s4475 + $0x1ba] sm:$0xff]
  %v6242 = vld [vmem:[%s4475 + $0x1ca] sm:$0xff]
  %v6243 = vld [vmem:[%s4475 + $0x1d2] sm:$0xff]
  %v6244 = vld [vmem:[%s4475 + $0x1e2] sm:$0xff]
  %v6245 = vld [vmem:[%s4475 + $0x1ea] sm:$0xff]
  %v6246 = vld [vmem:[%s4475 + $0x1fa] sm:$0xff]
  %v6247 = vld [vmem:[%s4475 + $0x202] sm:$0xff]
  %v6248 = vld [vmem:[%s4475 + $0x212] sm:$0xff]
  %v6249 = vld [vmem:[%s4475 + $0x21a] sm:$0xff]
  %v6250 = vld [vmem:[%s4475 + $0x22a] sm:$0xff]
  %v6251 = vld [vmem:[%s4475 + $0x232] sm:$0xff]
  %v6252 = vld [vmem:[%s4475 + $0x242] sm:$0xff]
  %v6253 = vld [vmem:[%s4475 + $0x24a] sm:$0xff]
  %v6254 = vld [vmem:[%s4475 + $0x25a] sm:$0xff]
  %v6255 = vld [vmem:[%s4475 + $0x262] sm:$0xff]
  %v6256 = vld [vmem:[%s4475 + $0x272] sm:$0xff]
  %v6257 = vld [vmem:[%s4475 + $0x27a] sm:$0xff]
  %v6258 = vld [vmem:[%s4475 + $0x28a] sm:$0xff]
  %v6259 = vld [vmem:[%s4475 + $0x292] sm:$0xff]
  %v6260 = vld [vmem:[%s4475 + $0x2a2] sm:$0xff]
  %v6261 = vld [vmem:[%s4475 + $0x2aa] sm:$0xff]
  %v6262 = vld [vmem:[%s4475 + $0x2ba] sm:$0xff]
  %v6263 = vld [vmem:[%s4475 + $0x2c2] sm:$0xff]
  %v6264 = vld [vmem:[%s4475 + $0x2d2] sm:$0xff]
  %v6265 = vld [vmem:[%s4475 + $0x2da] sm:$0xff]
  %v6266 = vld [vmem:[%s4475 + $0x2ea] sm:$0xff]
  %v6267 = vld [vmem:[%s4475 + $0x2f2] sm:$0xff]
  %v6268 = vld [vmem:[%s4475 + $0x302] sm:$0xff]
  %v6269 = vld [vmem:[%s4475 + $0x30a] sm:$0xff]
  %v6270 = vld [vmem:[%s4475 + $0x31a] sm:$0xff]
  %v6271 = vld [vmem:[%s4475 + $0x322] sm:$0xff]
  %6336 = vrot.lane.b32.xlu0 %v6208, 40
  %v6337 = vpop.permute.xlu0 %6336
  %6338 = vrot.lane.b32.xlu0 %v6209, 40
  %v6339 = vpop.permute.xlu0 %6338
  %6340 = vrot.lane.b32.xlu0 %v6210, 40
  %v6341 = vpop.permute.xlu0 %6340
  %6342 = vrot.lane.b32.xlu0 %v6211, 40
  %v6343 = vpop.permute.xlu0 %6342
  %6344 = vrot.lane.b32.xlu0 %v6212, 40
  %v6345 = vpop.permute.xlu0 %6344
  %6346 = vrot.lane.b32.xlu0 %v6213, 40
  %v6347 = vpop.permute.xlu0 %6346
  %6348 = vrot.lane.b32.xlu0 %v6214, 40
  %v6349 = vpop.permute.xlu0 %6348
  %6350 = vrot.lane.b32.xlu0 %v6215, 40
  %v6351 = vpop.permute.xlu0 %6350
  %6352 = vrot.lane.b32.xlu0 %v6216, 40
  %v6353 = vpop.permute.xlu0 %6352
  %6354 = vrot.lane.b32.xlu0 %v6217, 40
  %v6355 = vpop.permute.xlu0 %6354
  %6356 = vrot.lane.b32.xlu0 %v6218, 40
  %v6357 = vpop.permute.xlu0 %6356
  %6358 = vrot.lane.b32.xlu0 %v6219, 40
  %v6359 = vpop.permute.xlu0 %6358
  %6360 = vrot.lane.b32.xlu0 %v6220, 40
  %v6361 = vpop.permute.xlu0 %6360
  %6362 = vrot.lane.b32.xlu0 %v6221, 40
  %v6363 = vpop.permute.xlu0 %6362
  %6364 = vrot.lane.b32.xlu0 %v6222, 40
  %v6365 = vpop.permute.xlu0 %6364
  %6366 = vrot.lane.b32.xlu0 %v6223, 40
  %v6367 = vpop.permute.xlu0 %6366
  %6368 = vrot.lane.b32.xlu0 %v6224, 40
  %v6369 = vpop.permute.xlu0 %6368
  %6370 = vrot.lane.b32.xlu0 %v6225, 40
  %v6371 = vpop.permute.xlu0 %6370
  %6372 = vrot.lane.b32.xlu0 %v6226, 40
  %v6373 = vpop.permute.xlu0 %6372
  %6374 = vrot.lane.b32.xlu0 %v6227, 40
  %v6375 = vpop.permute.xlu0 %6374
  %6376 = vrot.lane.b32.xlu0 %v6228, 40
  %v6377 = vpop.permute.xlu0 %6376
  %6378 = vrot.lane.b32.xlu0 %v6229, 40
  %v6379 = vpop.permute.xlu0 %6378
  %6380 = vrot.lane.b32.xlu0 %v6230, 40
  %v6381 = vpop.permute.xlu0 %6380
  %6382 = vrot.lane.b32.xlu0 %v6231, 40
  %v6383 = vpop.permute.xlu0 %6382
  %6384 = vrot.lane.b32.xlu0 %v6232, 40
  %v6385 = vpop.permute.xlu0 %6384
  %6386 = vrot.lane.b32.xlu0 %v6233, 40
  %v6387 = vpop.permute.xlu0 %6386
  %6388 = vrot.lane.b32.xlu0 %v6234, 40
  %v6389 = vpop.permute.xlu0 %6388
  %6390 = vrot.lane.b32.xlu0 %v6235, 40
  %v6391 = vpop.permute.xlu0 %6390
  %6392 = vrot.lane.b32.xlu0 %v6236, 40
  %v6393 = vpop.permute.xlu0 %6392
  %6394 = vrot.lane.b32.xlu0 %v6237, 40
  %v6395 = vpop.permute.xlu0 %6394
  %6396 = vrot.lane.b32.xlu0 %v6238, 40
  %v6397 = vpop.permute.xlu0 %6396
  %6398 = vrot.lane.b32.xlu0 %v6239, 40
  %v6399 = vpop.permute.xlu0 %6398
  %6400 = vrot.lane.b32.xlu0 %v6240, 40
  %v6401 = vpop.permute.xlu0 %6400
  %6402 = vrot.lane.b32.xlu0 %v6241, 40
  %v6403 = vpop.permute.xlu0 %6402
  %6404 = vrot.lane.b32.xlu0 %v6242, 40
  %v6405 = vpop.permute.xlu0 %6404
  %6406 = vrot.lane.b32.xlu0 %v6243, 40
  %v6407 = vpop.permute.xlu0 %6406
  %6408 = vrot.lane.b32.xlu0 %v6244, 40
  %v6409 = vpop.permute.xlu0 %6408
  %6410 = vrot.lane.b32.xlu0 %v6245, 40
  %v6411 = vpop.permute.xlu0 %6410
  %6412 = vrot.lane.b32.xlu0 %v6246, 40
  %v6413 = vpop.permute.xlu0 %6412
  %6414 = vrot.lane.b32.xlu0 %v6247, 40
  %v6415 = vpop.permute.xlu0 %6414
  %6416 = vrot.lane.b32.xlu0 %v6248, 40
  %v6417 = vpop.permute.xlu0 %6416
  %6418 = vrot.lane.b32.xlu0 %v6249, 40
  %v6419 = vpop.permute.xlu0 %6418
  %6420 = vrot.lane.b32.xlu0 %v6250, 40
  %v6421 = vpop.permute.xlu0 %6420
  %6422 = vrot.lane.b32.xlu0 %v6251, 40
  %v6423 = vpop.permute.xlu0 %6422
  %6424 = vrot.lane.b32.xlu0 %v6252, 40
  %v6425 = vpop.permute.xlu0 %6424
  %6426 = vrot.lane.b32.xlu0 %v6253, 40
  %v6427 = vpop.permute.xlu0 %6426
  %6428 = vrot.lane.b32.xlu0 %v6254, 40
  %v6429 = vpop.permute.xlu0 %6428
  %6430 = vrot.lane.b32.xlu0 %v6255, 40
  %v6431 = vpop.permute.xlu0 %6430
  %6432 = vrot.lane.b32.xlu0 %v6256, 40
  %v6433 = vpop.permute.xlu0 %6432
  %6434 = vrot.lane.b32.xlu0 %v6257, 40
  %v6435 = vpop.permute.xlu0 %6434
  %6436 = vrot.lane.b32.xlu0 %v6258, 40
  %v6437 = vpop.permute.xlu0 %6436
  %6438 = vrot.lane.b32.xlu0 %v6259, 40
  %v6439 = vpop.permute.xlu0 %6438
  %6440 = vrot.lane.b32.xlu0 %v6260, 40
  %v6441 = vpop.permute.xlu0 %6440
  %6442 = vrot.lane.b32.xlu0 %v6261, 40
  %v6443 = vpop.permute.xlu0 %6442
  %6444 = vrot.lane.b32.xlu0 %v6262, 40
  %v6445 = vpop.permute.xlu0 %6444
  %6446 = vrot.lane.b32.xlu0 %v6263, 40
  %v6447 = vpop.permute.xlu0 %6446
  %6448 = vrot.lane.b32.xlu0 %v6264, 40
  %v6449 = vpop.permute.xlu0 %6448
  %6450 = vrot.lane.b32.xlu0 %v6265, 40
  %v6451 = vpop.permute.xlu0 %6450
  %6452 = vrot.lane.b32.xlu0 %v6266, 40
  %v6453 = vpop.permute.xlu0 %6452
  %6454 = vrot.lane.b32.xlu0 %v6267, 40
  %v6455 = vpop.permute.xlu0 %6454
  %6456 = vrot.lane.b32.xlu0 %v6268, 40
  %v6457 = vpop.permute.xlu0 %6456
  %6458 = vrot.lane.b32.xlu0 %v6269, 40
  %v6459 = vpop.permute.xlu0 %6458
  %6460 = vrot.lane.b32.xlu0 %v6270, 40
  %v6461 = vpop.permute.xlu0 %6460
  %6462 = vrot.lane.b32.xlu0 %v6271, 40
  %v6463 = vpop.permute.xlu0 %6462
  %vm6528 = vcmask 392512
  %6529 = vst.msk [vmem:[#allocation5] sm:$0xff] %vm6528, %v6337
  %6530 = vst.msk [vmem:[#allocation5 + $0x8] sm:$0xff] %vm6528, %v6339
  %6531 = vst.msk [vmem:[#allocation5 + $0x10] sm:$0xff] %vm6528, %v6341
  %6532 = vst.msk [vmem:[#allocation5 + $0x18] sm:$0xff] %vm6528, %v6343
  %6533 = vst.msk [vmem:[#allocation5 + $0x20] sm:$0xff] %vm6528, %v6345
  %6534 = vst.msk [vmem:[#allocation5 + $0x28] sm:$0xff] %vm6528, %v6347
  %6535 = vst.msk [vmem:[#allocation5 + $0x30] sm:$0xff] %vm6528, %v6349
  %6536 = vst.msk [vmem:[#allocation5 + $0x38] sm:$0xff] %vm6528, %v6351
  %6537 = vst.msk [vmem:[#allocation5 + $0x40] sm:$0xff] %vm6528, %v6353
  %6538 = vst.msk [vmem:[#allocation5 + $0x48] sm:$0xff] %vm6528, %v6355
  %6539 = vst.msk [vmem:[#allocation5 + $0x50] sm:$0xff] %vm6528, %v6357
  %6540 = vst.msk [vmem:[#allocation5 + $0x58] sm:$0xff] %vm6528, %v6359
  %6541 = vst.msk [vmem:[#allocation5 + $0x60] sm:$0xff] %vm6528, %v6361
  %6542 = vst.msk [vmem:[#allocation5 + $0x68] sm:$0xff] %vm6528, %v6363
  %6543 = vst.msk [vmem:[#allocation5 + $0x70] sm:$0xff] %vm6528, %v6365
  %6544 = vst.msk [vmem:[#allocation5 + $0x78] sm:$0xff] %vm6528, %v6367
  %6545 = vst.msk [vmem:[#allocation5 + $0x80] sm:$0xff] %vm6528, %v6369
  %6546 = vst.msk [vmem:[#allocation5 + $0x88] sm:$0xff] %vm6528, %v6371
  %6547 = vst.msk [vmem:[#allocation5 + $0x90] sm:$0xff] %vm6528, %v6373
  %6548 = vst.msk [vmem:[#allocation5 + $0x98] sm:$0xff] %vm6528, %v6375
  %6549 = vst.msk [vmem:[#allocation5 + $0xa0] sm:$0xff] %vm6528, %v6377
  %6550 = vst.msk [vmem:[#allocation5 + $0xa8] sm:$0xff] %vm6528, %v6379
  %6551 = vst.msk [vmem:[#allocation5 + $0xb0] sm:$0xff] %vm6528, %v6381
  %6552 = vst.msk [vmem:[#allocation5 + $0xb8] sm:$0xff] %vm6528, %v6383
  %6553 = vst.msk [vmem:[#allocation5 + $0xc0] sm:$0xff] %vm6528, %v6385
  %6554 = vst.msk [vmem:[#allocation5 + $0xc8] sm:$0xff] %vm6528, %v6387
  %6555 = vst.msk [vmem:[#allocation5 + $0xd0] sm:$0xff] %vm6528, %v6389
  %6556 = vst.msk [vmem:[#allocation5 + $0xd8] sm:$0xff] %vm6528, %v6391
  %6557 = vst.msk [vmem:[#allocation5 + $0xe0] sm:$0xff] %vm6528, %v6393
  %6558 = vst.msk [vmem:[#allocation5 + $0xe8] sm:$0xff] %vm6528, %v6395
  %6559 = vst.msk [vmem:[#allocation5 + $0xf0] sm:$0xff] %vm6528, %v6397
  %6560 = vst.msk [vmem:[#allocation5 + $0xf8] sm:$0xff] %vm6528, %v6399
  %6561 = vst.msk [vmem:[#allocation5 + $0x100] sm:$0xff] %vm6528, %v6401
  %6562 = vst.msk [vmem:[#allocation5 + $0x108] sm:$0xff] %vm6528, %v6403
  %6563 = vst.msk [vmem:[#allocation5 + $0x110] sm:$0xff] %vm6528, %v6405
  %6564 = vst.msk [vmem:[#allocation5 + $0x118] sm:$0xff] %vm6528, %v6407
  %6565 = vst.msk [vmem:[#allocation5 + $0x120] sm:$0xff] %vm6528, %v6409
  %6566 = vst.msk [vmem:[#allocation5 + $0x128] sm:$0xff] %vm6528, %v6411
  %6567 = vst.msk [vmem:[#allocation5 + $0x130] sm:$0xff] %vm6528, %v6413
  %6568 = vst.msk [vmem:[#allocation5 + $0x138] sm:$0xff] %vm6528, %v6415
  %6569 = vst.msk [vmem:[#allocation5 + $0x140] sm:$0xff] %vm6528, %v6417
  %6570 = vst.msk [vmem:[#allocation5 + $0x148] sm:$0xff] %vm6528, %v6419
  %6571 = vst.msk [vmem:[#allocation5 + $0x150] sm:$0xff] %vm6528, %v6421
  %6572 = vst.msk [vmem:[#allocation5 + $0x158] sm:$0xff] %vm6528, %v6423
  %6573 = vst.msk [vmem:[#allocation5 + $0x160] sm:$0xff] %vm6528, %v6425
  %6574 = vst.msk [vmem:[#allocation5 + $0x168] sm:$0xff] %vm6528, %v6427
  %6575 = vst.msk [vmem:[#allocation5 + $0x170] sm:$0xff] %vm6528, %v6429
  %6576 = vst.msk [vmem:[#allocation5 + $0x178] sm:$0xff] %vm6528, %v6431
  %6577 = vst.msk [vmem:[#allocation5 + $0x180] sm:$0xff] %vm6528, %v6433
  %6578 = vst.msk [vmem:[#allocation5 + $0x188] sm:$0xff] %vm6528, %v6435
  %6579 = vst.msk [vmem:[#allocation5 + $0x190] sm:$0xff] %vm6528, %v6437
  %6580 = vst.msk [vmem:[#allocation5 + $0x198] sm:$0xff] %vm6528, %v6439
  %6581 = vst.msk [vmem:[#allocation5 + $0x1a0] sm:$0xff] %vm6528, %v6441
  %6582 = vst.msk [vmem:[#allocation5 + $0x1a8] sm:$0xff] %vm6528, %v6443
  %6583 = vst.msk [vmem:[#allocation5 + $0x1b0] sm:$0xff] %vm6528, %v6445
  %6584 = vst.msk [vmem:[#allocation5 + $0x1b8] sm:$0xff] %vm6528, %v6447
  %6585 = vst.msk [vmem:[#allocation5 + $0x1c0] sm:$0xff] %vm6528, %v6449
  %6586 = vst.msk [vmem:[#allocation5 + $0x1c8] sm:$0xff] %vm6528, %v6451
  %6587 = vst.msk [vmem:[#allocation5 + $0x1d0] sm:$0xff] %vm6528, %v6453
  %6588 = vst.msk [vmem:[#allocation5 + $0x1d8] sm:$0xff] %vm6528, %v6455
  %6589 = vst.msk [vmem:[#allocation5 + $0x1e0] sm:$0xff] %vm6528, %v6457
  %6590 = vst.msk [vmem:[#allocation5 + $0x1e8] sm:$0xff] %vm6528, %v6459
  %6591 = vst.msk [vmem:[#allocation5 + $0x1f0] sm:$0xff] %vm6528, %v6461
  %6592 = vst.msk [vmem:[#allocation5 + $0x1f8] sm:$0xff] %vm6528, %v6463
  %s6593 = scalar_lea.vmem [#allocation4], 48
  %v6594 = vld [vmem:[%s6593] sm:$0xff]
  %v6595 = vld [vmem:[%s6593 + $0x8] sm:$0xff]
  %v6596 = vld [vmem:[%s6593 + $0x18] sm:$0xff]
  %v6597 = vld [vmem:[%s6593 + $0x20] sm:$0xff]
  %v6598 = vld [vmem:[%s6593 + $0x30] sm:$0xff]
  %v6599 = vld [vmem:[%s6593 + $0x38] sm:$0xff]
  %v6600 = vld [vmem:[%s6593 + $0x48] sm:$0xff]
  %v6601 = vld [vmem:[%s6593 + $0x50] sm:$0xff]
  %v6602 = vld [vmem:[%s6593 + $0x60] sm:$0xff]
  %v6603 = vld [vmem:[%s6593 + $0x68] sm:$0xff]
  %v6604 = vld [vmem:[%s6593 + $0x78] sm:$0xff]
  %v6605 = vld [vmem:[%s6593 + $0x80] sm:$0xff]
  %v6606 = vld [vmem:[%s6593 + $0x90] sm:$0xff]
  %v6607 = vld [vmem:[%s6593 + $0x98] sm:$0xff]
  %v6608 = vld [vmem:[%s6593 + $0xa8] sm:$0xff]
  %v6609 = vld [vmem:[%s6593 + $0xb0] sm:$0xff]
  %v6610 = vld [vmem:[%s6593 + $0xc0] sm:$0xff]
  %v6611 = vld [vmem:[%s6593 + $0xc8] sm:$0xff]
  %v6612 = vld [vmem:[%s6593 + $0xd8] sm:$0xff]
  %v6613 = vld [vmem:[%s6593 + $0xe0] sm:$0xff]
  %v6614 = vld [vmem:[%s6593 + $0xf0] sm:$0xff]
  %v6615 = vld [vmem:[%s6593 + $0xf8] sm:$0xff]
  %v6616 = vld [vmem:[%s6593 + $0x108] sm:$0xff]
  %v6617 = vld [vmem:[%s6593 + $0x110] sm:$0xff]
  %v6618 = vld [vmem:[%s6593 + $0x120] sm:$0xff]
  %v6619 = vld [vmem:[%s6593 + $0x128] sm:$0xff]
  %v6620 = vld [vmem:[%s6593 + $0x138] sm:$0xff]
  %v6621 = vld [vmem:[%s6593 + $0x140] sm:$0xff]
  %v6622 = vld [vmem:[%s6593 + $0x150] sm:$0xff]
  %v6623 = vld [vmem:[%s6593 + $0x158] sm:$0xff]
  %v6624 = vld [vmem:[%s6593 + $0x168] sm:$0xff]
  %v6625 = vld [vmem:[%s6593 + $0x170] sm:$0xff]
  %v6626 = vld [vmem:[%s6593 + $0x1b0] sm:$0xff]
  %v6627 = vld [vmem:[%s6593 + $0x1b8] sm:$0xff]
  %v6628 = vld [vmem:[%s6593 + $0x1c8] sm:$0xff]
  %v6629 = vld [vmem:[%s6593 + $0x1d0] sm:$0xff]
  %v6630 = vld [vmem:[%s6593 + $0x1e0] sm:$0xff]
  %v6631 = vld [vmem:[%s6593 + $0x1e8] sm:$0xff]
  %v6632 = vld [vmem:[%s6593 + $0x1f8] sm:$0xff]
  %v6633 = vld [vmem:[%s6593 + $0x200] sm:$0xff]
  %v6634 = vld [vmem:[%s6593 + $0x210] sm:$0xff]
  %v6635 = vld [vmem:[%s6593 + $0x218] sm:$0xff]
  %v6636 = vld [vmem:[%s6593 + $0x228] sm:$0xff]
  %v6637 = vld [vmem:[%s6593 + $0x230] sm:$0xff]
  %v6638 = vld [vmem:[%s6593 + $0x240] sm:$0xff]
  %v6639 = vld [vmem:[%s6593 + $0x248] sm:$0xff]
  %v6640 = vld [vmem:[%s6593 + $0x258] sm:$0xff]
  %v6641 = vld [vmem:[%s6593 + $0x260] sm:$0xff]
  %v6642 = vld [vmem:[%s6593 + $0x270] sm:$0xff]
  %v6643 = vld [vmem:[%s6593 + $0x278] sm:$0xff]
  %v6644 = vld [vmem:[%s6593 + $0x288] sm:$0xff]
  %v6645 = vld [vmem:[%s6593 + $0x290] sm:$0xff]
  %v6646 = vld [vmem:[%s6593 + $0x2a0] sm:$0xff]
  %v6647 = vld [vmem:[%s6593 + $0x2a8] sm:$0xff]
  %v6648 = vld [vmem:[%s6593 + $0x2b8] sm:$0xff]
  %v6649 = vld [vmem:[%s6593 + $0x2c0] sm:$0xff]
  %v6650 = vld [vmem:[%s6593 + $0x2d0] sm:$0xff]
  %v6651 = vld [vmem:[%s6593 + $0x2d8] sm:$0xff]
  %v6652 = vld [vmem:[%s6593 + $0x2e8] sm:$0xff]
  %v6653 = vld [vmem:[%s6593 + $0x2f0] sm:$0xff]
  %v6654 = vld [vmem:[%s6593 + $0x300] sm:$0xff]
  %v6655 = vld [vmem:[%s6593 + $0x308] sm:$0xff]
  %v6656 = vld [vmem:[%s6593 + $0x318] sm:$0xff]
  %v6657 = vld [vmem:[%s6593 + $0x320] sm:$0xff]
  %6722 = vrot.lane.b32.xlu0 %v6594, 48
  %v6723 = vpop.permute.xlu0 %6722
  %6724 = vrot.lane.b32.xlu0 %v6595, 48
  %v6725 = vpop.permute.xlu0 %6724
  %6726 = vrot.lane.b32.xlu0 %v6596, 48
  %v6727 = vpop.permute.xlu0 %6726
  %6728 = vrot.lane.b32.xlu0 %v6597, 48
  %v6729 = vpop.permute.xlu0 %6728
  %6730 = vrot.lane.b32.xlu0 %v6598, 48
  %v6731 = vpop.permute.xlu0 %6730
  %6732 = vrot.lane.b32.xlu0 %v6599, 48
  %v6733 = vpop.permute.xlu0 %6732
  %6734 = vrot.lane.b32.xlu0 %v6600, 48
  %v6735 = vpop.permute.xlu0 %6734
  %6736 = vrot.lane.b32.xlu0 %v6601, 48
  %v6737 = vpop.permute.xlu0 %6736
  %6738 = vrot.lane.b32.xlu0 %v6602, 48
  %v6739 = vpop.permute.xlu0 %6738
  %6740 = vrot.lane.b32.xlu0 %v6603, 48
  %v6741 = vpop.permute.xlu0 %6740
  %6742 = vrot.lane.b32.xlu0 %v6604, 48
  %v6743 = vpop.permute.xlu0 %6742
  %6744 = vrot.lane.b32.xlu0 %v6605, 48
  %v6745 = vpop.permute.xlu0 %6744
  %6746 = vrot.lane.b32.xlu0 %v6606, 48
  %v6747 = vpop.permute.xlu0 %6746
  %6748 = vrot.lane.b32.xlu0 %v6607, 48
  %v6749 = vpop.permute.xlu0 %6748
  %6750 = vrot.lane.b32.xlu0 %v6608, 48
  %v6751 = vpop.permute.xlu0 %6750
  %6752 = vrot.lane.b32.xlu0 %v6609, 48
  %v6753 = vpop.permute.xlu0 %6752
  %6754 = vrot.lane.b32.xlu0 %v6610, 48
  %v6755 = vpop.permute.xlu0 %6754
  %6756 = vrot.lane.b32.xlu0 %v6611, 48
  %v6757 = vpop.permute.xlu0 %6756
  %6758 = vrot.lane.b32.xlu0 %v6612, 48
  %v6759 = vpop.permute.xlu0 %6758
  %6760 = vrot.lane.b32.xlu0 %v6613, 48
  %v6761 = vpop.permute.xlu0 %6760
  %6762 = vrot.lane.b32.xlu0 %v6614, 48
  %v6763 = vpop.permute.xlu0 %6762
  %6764 = vrot.lane.b32.xlu0 %v6615, 48
  %v6765 = vpop.permute.xlu0 %6764
  %6766 = vrot.lane.b32.xlu0 %v6616, 48
  %v6767 = vpop.permute.xlu0 %6766
  %6768 = vrot.lane.b32.xlu0 %v6617, 48
  %v6769 = vpop.permute.xlu0 %6768
  %6770 = vrot.lane.b32.xlu0 %v6618, 48
  %v6771 = vpop.permute.xlu0 %6770
  %6772 = vrot.lane.b32.xlu0 %v6619, 48
  %v6773 = vpop.permute.xlu0 %6772
  %6774 = vrot.lane.b32.xlu0 %v6620, 48
  %v6775 = vpop.permute.xlu0 %6774
  %6776 = vrot.lane.b32.xlu0 %v6621, 48
  %v6777 = vpop.permute.xlu0 %6776
  %6778 = vrot.lane.b32.xlu0 %v6622, 48
  %v6779 = vpop.permute.xlu0 %6778
  %6780 = vrot.lane.b32.xlu0 %v6623, 48
  %v6781 = vpop.permute.xlu0 %6780
  %6782 = vrot.lane.b32.xlu0 %v6624, 48
  %v6783 = vpop.permute.xlu0 %6782
  %6784 = vrot.lane.b32.xlu0 %v6625, 48
  %v6785 = vpop.permute.xlu0 %6784
  %6786 = vrot.lane.b32.xlu0 %v6626, 48
  %v6787 = vpop.permute.xlu0 %6786
  %6788 = vrot.lane.b32.xlu0 %v6627, 48
  %v6789 = vpop.permute.xlu0 %6788
  %6790 = vrot.lane.b32.xlu0 %v6628, 48
  %v6791 = vpop.permute.xlu0 %6790
  %6792 = vrot.lane.b32.xlu0 %v6629, 48
  %v6793 = vpop.permute.xlu0 %6792
  %6794 = vrot.lane.b32.xlu0 %v6630, 48
  %v6795 = vpop.permute.xlu0 %6794
  %6796 = vrot.lane.b32.xlu0 %v6631, 48
  %v6797 = vpop.permute.xlu0 %6796
  %6798 = vrot.lane.b32.xlu0 %v6632, 48
  %v6799 = vpop.permute.xlu0 %6798
  %6800 = vrot.lane.b32.xlu0 %v6633, 48
  %v6801 = vpop.permute.xlu0 %6800
  %6802 = vrot.lane.b32.xlu0 %v6634, 48
  %v6803 = vpop.permute.xlu0 %6802
  %6804 = vrot.lane.b32.xlu0 %v6635, 48
  %v6805 = vpop.permute.xlu0 %6804
  %6806 = vrot.lane.b32.xlu0 %v6636, 48
  %v6807 = vpop.permute.xlu0 %6806
  %6808 = vrot.lane.b32.xlu0 %v6637, 48
  %v6809 = vpop.permute.xlu0 %6808
  %6810 = vrot.lane.b32.xlu0 %v6638, 48
  %v6811 = vpop.permute.xlu0 %6810
  %6812 = vrot.lane.b32.xlu0 %v6639, 48
  %v6813 = vpop.permute.xlu0 %6812
  %6814 = vrot.lane.b32.xlu0 %v6640, 48
  %v6815 = vpop.permute.xlu0 %6814
  %6816 = vrot.lane.b32.xlu0 %v6641, 48
  %v6817 = vpop.permute.xlu0 %6816
  %6818 = vrot.lane.b32.xlu0 %v6642, 48
  %v6819 = vpop.permute.xlu0 %6818
  %6820 = vrot.lane.b32.xlu0 %v6643, 48
  %v6821 = vpop.permute.xlu0 %6820
  %6822 = vrot.lane.b32.xlu0 %v6644, 48
  %v6823 = vpop.permute.xlu0 %6822
  %6824 = vrot.lane.b32.xlu0 %v6645, 48
  %v6825 = vpop.permute.xlu0 %6824
  %6826 = vrot.lane.b32.xlu0 %v6646, 48
  %v6827 = vpop.permute.xlu0 %6826
  %6828 = vrot.lane.b32.xlu0 %v6647, 48
  %v6829 = vpop.permute.xlu0 %6828
  %6830 = vrot.lane.b32.xlu0 %v6648, 48
  %v6831 = vpop.permute.xlu0 %6830
  %6832 = vrot.lane.b32.xlu0 %v6649, 48
  %v6833 = vpop.permute.xlu0 %6832
  %6834 = vrot.lane.b32.xlu0 %v6650, 48
  %v6835 = vpop.permute.xlu0 %6834
  %6836 = vrot.lane.b32.xlu0 %v6651, 48
  %v6837 = vpop.permute.xlu0 %6836
  %6838 = vrot.lane.b32.xlu0 %v6652, 48
  %v6839 = vpop.permute.xlu0 %6838
  %6840 = vrot.lane.b32.xlu0 %v6653, 48
  %v6841 = vpop.permute.xlu0 %6840
  %6842 = vrot.lane.b32.xlu0 %v6654, 48
  %v6843 = vpop.permute.xlu0 %6842
  %6844 = vrot.lane.b32.xlu0 %v6655, 48
  %v6845 = vpop.permute.xlu0 %6844
  %6846 = vrot.lane.b32.xlu0 %v6656, 48
  %v6847 = vpop.permute.xlu0 %6846
  %6848 = vrot.lane.b32.xlu0 %v6657, 48
  %v6849 = vpop.permute.xlu0 %6848
  %vm6914 = vcmask 458112
  %6915 = vst.msk [vmem:[#allocation5] sm:$0xff] %vm6914, %v6723
  %6916 = vst.msk [vmem:[#allocation5 + $0x8] sm:$0xff] %vm6914, %v6725
  %6917 = vst.msk [vmem:[#allocation5 + $0x10] sm:$0xff] %vm6914, %v6727
  %6918 = vst.msk [vmem:[#allocation5 + $0x18] sm:$0xff] %vm6914, %v6729
  %6919 = vst.msk [vmem:[#allocation5 + $0x20] sm:$0xff] %vm6914, %v6731
  %6920 = vst.msk [vmem:[#allocation5 + $0x28] sm:$0xff] %vm6914, %v6733
  %6921 = vst.msk [vmem:[#allocation5 + $0x30] sm:$0xff] %vm6914, %v6735
  %6922 = vst.msk [vmem:[#allocation5 + $0x38] sm:$0xff] %vm6914, %v6737
  %6923 = vst.msk [vmem:[#allocation5 + $0x40] sm:$0xff] %vm6914, %v6739
  %6924 = vst.msk [vmem:[#allocation5 + $0x48] sm:$0xff] %vm6914, %v6741
  %6925 = vst.msk [vmem:[#allocation5 + $0x50] sm:$0xff] %vm6914, %v6743
  %6926 = vst.msk [vmem:[#allocation5 + $0x58] sm:$0xff] %vm6914, %v6745
  %6927 = vst.msk [vmem:[#allocation5 + $0x60] sm:$0xff] %vm6914, %v6747
  %6928 = vst.msk [vmem:[#allocation5 + $0x68] sm:$0xff] %vm6914, %v6749
  %6929 = vst.msk [vmem:[#allocation5 + $0x70] sm:$0xff] %vm6914, %v6751
  %6930 = vst.msk [vmem:[#allocation5 + $0x78] sm:$0xff] %vm6914, %v6753
  %6931 = vst.msk [vmem:[#allocation5 + $0x80] sm:$0xff] %vm6914, %v6755
  %6932 = vst.msk [vmem:[#allocation5 + $0x88] sm:$0xff] %vm6914, %v6757
  %6933 = vst.msk [vmem:[#allocation5 + $0x90] sm:$0xff] %vm6914, %v6759
  %6934 = vst.msk [vmem:[#allocation5 + $0x98] sm:$0xff] %vm6914, %v6761
  %6935 = vst.msk [vmem:[#allocation5 + $0xa0] sm:$0xff] %vm6914, %v6763
  %6936 = vst.msk [vmem:[#allocation5 + $0xa8] sm:$0xff] %vm6914, %v6765
  %6937 = vst.msk [vmem:[#allocation5 + $0xb0] sm:$0xff] %vm6914, %v6767
  %6938 = vst.msk [vmem:[#allocation5 + $0xb8] sm:$0xff] %vm6914, %v6769
  %6939 = vst.msk [vmem:[#allocation5 + $0xc0] sm:$0xff] %vm6914, %v6771
  %6940 = vst.msk [vmem:[#allocation5 + $0xc8] sm:$0xff] %vm6914, %v6773
  %6941 = vst.msk [vmem:[#allocation5 + $0xd0] sm:$0xff] %vm6914, %v6775
  %6942 = vst.msk [vmem:[#allocation5 + $0xd8] sm:$0xff] %vm6914, %v6777
  %6943 = vst.msk [vmem:[#allocation5 + $0xe0] sm:$0xff] %vm6914, %v6779
  %6944 = vst.msk [vmem:[#allocation5 + $0xe8] sm:$0xff] %vm6914, %v6781
  %6945 = vst.msk [vmem:[#allocation5 + $0xf0] sm:$0xff] %vm6914, %v6783
  %6946 = vst.msk [vmem:[#allocation5 + $0xf8] sm:$0xff] %vm6914, %v6785
  %6947 = vst.msk [vmem:[#allocation5 + $0x100] sm:$0xff] %vm6914, %v6787
  %6948 = vst.msk [vmem:[#allocation5 + $0x108] sm:$0xff] %vm6914, %v6789
  %6949 = vst.msk [vmem:[#allocation5 + $0x110] sm:$0xff] %vm6914, %v6791
  %6950 = vst.msk [vmem:[#allocation5 + $0x118] sm:$0xff] %vm6914, %v6793
  %6951 = vst.msk [vmem:[#allocation5 + $0x120] sm:$0xff] %vm6914, %v6795
  %6952 = vst.msk [vmem:[#allocation5 + $0x128] sm:$0xff] %vm6914, %v6797
  %6953 = vst.msk [vmem:[#allocation5 + $0x130] sm:$0xff] %vm6914, %v6799
  %6954 = vst.msk [vmem:[#allocation5 + $0x138] sm:$0xff] %vm6914, %v6801
  %6955 = vst.msk [vmem:[#allocation5 + $0x140] sm:$0xff] %vm6914, %v6803
  %6956 = vst.msk [vmem:[#allocation5 + $0x148] sm:$0xff] %vm6914, %v6805
  %6957 = vst.msk [vmem:[#allocation5 + $0x150] sm:$0xff] %vm6914, %v6807
  %6958 = vst.msk [vmem:[#allocation5 + $0x158] sm:$0xff] %vm6914, %v6809
  %6959 = vst.msk [vmem:[#allocation5 + $0x160] sm:$0xff] %vm6914, %v6811
  %6960 = vst.msk [vmem:[#allocation5 + $0x168] sm:$0xff] %vm6914, %v6813
  %6961 = vst.msk [vmem:[#allocation5 + $0x170] sm:$0xff] %vm6914, %v6815
  %6962 = vst.msk [vmem:[#allocation5 + $0x178] sm:$0xff] %vm6914, %v6817
  %6963 = vst.msk [vmem:[#allocation5 + $0x180] sm:$0xff] %vm6914, %v6819
  %6964 = vst.msk [vmem:[#allocation5 + $0x188] sm:$0xff] %vm6914, %v6821
  %6965 = vst.msk [vmem:[#allocation5 + $0x190] sm:$0xff] %vm6914, %v6823
  %6966 = vst.msk [vmem:[#allocation5 + $0x198] sm:$0xff] %vm6914, %v6825
  %6967 = vst.msk [vmem:[#allocation5 + $0x1a0] sm:$0xff] %vm6914, %v6827
  %6968 = vst.msk [vmem:[#allocation5 + $0x1a8] sm:$0xff] %vm6914, %v6829
  %6969 = vst.msk [vmem:[#allocation5 + $0x1b0] sm:$0xff] %vm6914, %v6831
  %6970 = vst.msk [vmem:[#allocation5 + $0x1b8] sm:$0xff] %vm6914, %v6833
  %6971 = vst.msk [vmem:[#allocation5 + $0x1c0] sm:$0xff] %vm6914, %v6835
  %6972 = vst.msk [vmem:[#allocation5 + $0x1c8] sm:$0xff] %vm6914, %v6837
  %6973 = vst.msk [vmem:[#allocation5 + $0x1d0] sm:$0xff] %vm6914, %v6839
  %6974 = vst.msk [vmem:[#allocation5 + $0x1d8] sm:$0xff] %vm6914, %v6841
  %6975 = vst.msk [vmem:[#allocation5 + $0x1e0] sm:$0xff] %vm6914, %v6843
  %6976 = vst.msk [vmem:[#allocation5 + $0x1e8] sm:$0xff] %vm6914, %v6845
  %6977 = vst.msk [vmem:[#allocation5 + $0x1f0] sm:$0xff] %vm6914, %v6847
  %6978 = vst.msk [vmem:[#allocation5 + $0x1f8] sm:$0xff] %vm6914, %v6849
  %v6979 = vld [vmem:[%s6593 + $0x1] sm:$0xff]
  %v6980 = vld [vmem:[%s6593 + $0x9] sm:$0xff]
  %v6981 = vld [vmem:[%s6593 + $0x19] sm:$0xff]
  %v6982 = vld [vmem:[%s6593 + $0x21] sm:$0xff]
  %v6983 = vld [vmem:[%s6593 + $0x31] sm:$0xff]
  %v6984 = vld [vmem:[%s6593 + $0x39] sm:$0xff]
  %v6985 = vld [vmem:[%s6593 + $0x49] sm:$0xff]
  %v6986 = vld [vmem:[%s6593 + $0x51] sm:$0xff]
  %v6987 = vld [vmem:[%s6593 + $0x61] sm:$0xff]
  %v6988 = vld [vmem:[%s6593 + $0x69] sm:$0xff]
  %v6989 = vld [vmem:[%s6593 + $0x79] sm:$0xff]
  %v6990 = vld [vmem:[%s6593 + $0x81] sm:$0xff]
  %v6991 = vld [vmem:[%s6593 + $0x91] sm:$0xff]
  %v6992 = vld [vmem:[%s6593 + $0x99] sm:$0xff]
  %v6993 = vld [vmem:[%s6593 + $0xa9] sm:$0xff]
  %v6994 = vld [vmem:[%s6593 + $0xb1] sm:$0xff]
  %v6995 = vld [vmem:[%s6593 + $0xc1] sm:$0xff]
  %v6996 = vld [vmem:[%s6593 + $0xc9] sm:$0xff]
  %v6997 = vld [vmem:[%s6593 + $0xd9] sm:$0xff]
  %v6998 = vld [vmem:[%s6593 + $0xe1] sm:$0xff]
  %v6999 = vld [vmem:[%s6593 + $0xf1] sm:$0xff]
  %v7000 = vld [vmem:[%s6593 + $0xf9] sm:$0xff]
  %v7001 = vld [vmem:[%s6593 + $0x109] sm:$0xff]
  %v7002 = vld [vmem:[%s6593 + $0x111] sm:$0xff]
  %v7003 = vld [vmem:[%s6593 + $0x121] sm:$0xff]
  %v7004 = vld [vmem:[%s6593 + $0x129] sm:$0xff]
  %v7005 = vld [vmem:[%s6593 + $0x139] sm:$0xff]
  %v7006 = vld [vmem:[%s6593 + $0x141] sm:$0xff]
  %v7007 = vld [vmem:[%s6593 + $0x151] sm:$0xff]
  %v7008 = vld [vmem:[%s6593 + $0x159] sm:$0xff]
  %v7009 = vld [vmem:[%s6593 + $0x169] sm:$0xff]
  %v7010 = vld [vmem:[%s6593 + $0x171] sm:$0xff]
  %v7011 = vld [vmem:[%s6593 + $0x1b1] sm:$0xff]
  %v7012 = vld [vmem:[%s6593 + $0x1b9] sm:$0xff]
  %v7013 = vld [vmem:[%s6593 + $0x1c9] sm:$0xff]
  %v7014 = vld [vmem:[%s6593 + $0x1d1] sm:$0xff]
  %v7015 = vld [vmem:[%s6593 + $0x1e1] sm:$0xff]
  %v7016 = vld [vmem:[%s6593 + $0x1e9] sm:$0xff]
  %v7017 = vld [vmem:[%s6593 + $0x1f9] sm:$0xff]
  %v7018 = vld [vmem:[%s6593 + $0x201] sm:$0xff]
  %v7019 = vld [vmem:[%s6593 + $0x211] sm:$0xff]
  %v7020 = vld [vmem:[%s6593 + $0x219] sm:$0xff]
  %v7021 = vld [vmem:[%s6593 + $0x229] sm:$0xff]
  %v7022 = vld [vmem:[%s6593 + $0x231] sm:$0xff]
  %v7023 = vld [vmem:[%s6593 + $0x241] sm:$0xff]
  %v7024 = vld [vmem:[%s6593 + $0x249] sm:$0xff]
  %v7025 = vld [vmem:[%s6593 + $0x259] sm:$0xff]
  %v7026 = vld [vmem:[%s6593 + $0x261] sm:$0xff]
  %v7027 = vld [vmem:[%s6593 + $0x271] sm:$0xff]
  %v7028 = vld [vmem:[%s6593 + $0x279] sm:$0xff]
  %v7029 = vld [vmem:[%s6593 + $0x289] sm:$0xff]
  %v7030 = vld [vmem:[%s6593 + $0x291] sm:$0xff]
  %v7031 = vld [vmem:[%s6593 + $0x2a1] sm:$0xff]
  %v7032 = vld [vmem:[%s6593 + $0x2a9] sm:$0xff]
  %v7033 = vld [vmem:[%s6593 + $0x2b9] sm:$0xff]
  %v7034 = vld [vmem:[%s6593 + $0x2c1] sm:$0xff]
  %v7035 = vld [vmem:[%s6593 + $0x2d1] sm:$0xff]
  %v7036 = vld [vmem:[%s6593 + $0x2d9] sm:$0xff]
  %v7037 = vld [vmem:[%s6593 + $0x2e9] sm:$0xff]
  %v7038 = vld [vmem:[%s6593 + $0x2f1] sm:$0xff]
  %v7039 = vld [vmem:[%s6593 + $0x301] sm:$0xff]
  %v7040 = vld [vmem:[%s6593 + $0x309] sm:$0xff]
  %v7041 = vld [vmem:[%s6593 + $0x319] sm:$0xff]
  %v7042 = vld [vmem:[%s6593 + $0x321] sm:$0xff]
  %7107 = vrot.lane.b32.xlu0 %v6979, 56
  %v7108 = vpop.permute.xlu0 %7107
  %7109 = vrot.lane.b32.xlu0 %v6980, 56
  %v7110 = vpop.permute.xlu0 %7109
  %7111 = vrot.lane.b32.xlu0 %v6981, 56
  %v7112 = vpop.permute.xlu0 %7111
  %7113 = vrot.lane.b32.xlu0 %v6982, 56
  %v7114 = vpop.permute.xlu0 %7113
  %7115 = vrot.lane.b32.xlu0 %v6983, 56
  %v7116 = vpop.permute.xlu0 %7115
  %7117 = vrot.lane.b32.xlu0 %v6984, 56
  %v7118 = vpop.permute.xlu0 %7117
  %7119 = vrot.lane.b32.xlu0 %v6985, 56
  %v7120 = vpop.permute.xlu0 %7119
  %7121 = vrot.lane.b32.xlu0 %v6986, 56
  %v7122 = vpop.permute.xlu0 %7121
  %7123 = vrot.lane.b32.xlu0 %v6987, 56
  %v7124 = vpop.permute.xlu0 %7123
  %7125 = vrot.lane.b32.xlu0 %v6988, 56
  %v7126 = vpop.permute.xlu0 %7125
  %7127 = vrot.lane.b32.xlu0 %v6989, 56
  %v7128 = vpop.permute.xlu0 %7127
  %7129 = vrot.lane.b32.xlu0 %v6990, 56
  %v7130 = vpop.permute.xlu0 %7129
  %7131 = vrot.lane.b32.xlu0 %v6991, 56
  %v7132 = vpop.permute.xlu0 %7131
  %7133 = vrot.lane.b32.xlu0 %v6992, 56
  %v7134 = vpop.permute.xlu0 %7133
  %7135 = vrot.lane.b32.xlu0 %v6993, 56
  %v7136 = vpop.permute.xlu0 %7135
  %7137 = vrot.lane.b32.xlu0 %v6994, 56
  %v7138 = vpop.permute.xlu0 %7137
  %7139 = vrot.lane.b32.xlu0 %v6995, 56
  %v7140 = vpop.permute.xlu0 %7139
  %7141 = vrot.lane.b32.xlu0 %v6996, 56
  %v7142 = vpop.permute.xlu0 %7141
  %7143 = vrot.lane.b32.xlu0 %v6997, 56
  %v7144 = vpop.permute.xlu0 %7143
  %7145 = vrot.lane.b32.xlu0 %v6998, 56
  %v7146 = vpop.permute.xlu0 %7145
  %7147 = vrot.lane.b32.xlu0 %v6999, 56
  %v7148 = vpop.permute.xlu0 %7147
  %7149 = vrot.lane.b32.xlu0 %v7000, 56
  %v7150 = vpop.permute.xlu0 %7149
  %7151 = vrot.lane.b32.xlu0 %v7001, 56
  %v7152 = vpop.permute.xlu0 %7151
  %7153 = vrot.lane.b32.xlu0 %v7002, 56
  %v7154 = vpop.permute.xlu0 %7153
  %7155 = vrot.lane.b32.xlu0 %v7003, 56
  %v7156 = vpop.permute.xlu0 %7155
  %7157 = vrot.lane.b32.xlu0 %v7004, 56
  %v7158 = vpop.permute.xlu0 %7157
  %7159 = vrot.lane.b32.xlu0 %v7005, 56
  %v7160 = vpop.permute.xlu0 %7159
  %7161 = vrot.lane.b32.xlu0 %v7006, 56
  %v7162 = vpop.permute.xlu0 %7161
  %7163 = vrot.lane.b32.xlu0 %v7007, 56
  %v7164 = vpop.permute.xlu0 %7163
  %7165 = vrot.lane.b32.xlu0 %v7008, 56
  %v7166 = vpop.permute.xlu0 %7165
  %7167 = vrot.lane.b32.xlu0 %v7009, 56
  %v7168 = vpop.permute.xlu0 %7167
  %7169 = vrot.lane.b32.xlu0 %v7010, 56
  %v7170 = vpop.permute.xlu0 %7169
  %7171 = vrot.lane.b32.xlu0 %v7011, 56
  %v7172 = vpop.permute.xlu0 %7171
  %7173 = vrot.lane.b32.xlu0 %v7012, 56
  %v7174 = vpop.permute.xlu0 %7173
  %7175 = vrot.lane.b32.xlu0 %v7013, 56
  %v7176 = vpop.permute.xlu0 %7175
  %7177 = vrot.lane.b32.xlu0 %v7014, 56
  %v7178 = vpop.permute.xlu0 %7177
  %7179 = vrot.lane.b32.xlu0 %v7015, 56
  %v7180 = vpop.permute.xlu0 %7179
  %7181 = vrot.lane.b32.xlu0 %v7016, 56
  %v7182 = vpop.permute.xlu0 %7181
  %7183 = vrot.lane.b32.xlu0 %v7017, 56
  %v7184 = vpop.permute.xlu0 %7183
  %7185 = vrot.lane.b32.xlu0 %v7018, 56
  %v7186 = vpop.permute.xlu0 %7185
  %7187 = vrot.lane.b32.xlu0 %v7019, 56
  %v7188 = vpop.permute.xlu0 %7187
  %7189 = vrot.lane.b32.xlu0 %v7020, 56
  %v7190 = vpop.permute.xlu0 %7189
  %7191 = vrot.lane.b32.xlu0 %v7021, 56
  %v7192 = vpop.permute.xlu0 %7191
  %7193 = vrot.lane.b32.xlu0 %v7022, 56
  %v7194 = vpop.permute.xlu0 %7193
  %7195 = vrot.lane.b32.xlu0 %v7023, 56
  %v7196 = vpop.permute.xlu0 %7195
  %7197 = vrot.lane.b32.xlu0 %v7024, 56
  %v7198 = vpop.permute.xlu0 %7197
  %7199 = vrot.lane.b32.xlu0 %v7025, 56
  %v7200 = vpop.permute.xlu0 %7199
  %7201 = vrot.lane.b32.xlu0 %v7026, 56
  %v7202 = vpop.permute.xlu0 %7201
  %7203 = vrot.lane.b32.xlu0 %v7027, 56
  %v7204 = vpop.permute.xlu0 %7203
  %7205 = vrot.lane.b32.xlu0 %v7028, 56
  %v7206 = vpop.permute.xlu0 %7205
  %7207 = vrot.lane.b32.xlu0 %v7029, 56
  %v7208 = vpop.permute.xlu0 %7207
  %7209 = vrot.lane.b32.xlu0 %v7030, 56
  %v7210 = vpop.permute.xlu0 %7209
  %7211 = vrot.lane.b32.xlu0 %v7031, 56
  %v7212 = vpop.permute.xlu0 %7211
  %7213 = vrot.lane.b32.xlu0 %v7032, 56
  %v7214 = vpop.permute.xlu0 %7213
  %7215 = vrot.lane.b32.xlu0 %v7033, 56
  %v7216 = vpop.permute.xlu0 %7215
  %7217 = vrot.lane.b32.xlu0 %v7034, 56
  %v7218 = vpop.permute.xlu0 %7217
  %7219 = vrot.lane.b32.xlu0 %v7035, 56
  %v7220 = vpop.permute.xlu0 %7219
  %7221 = vrot.lane.b32.xlu0 %v7036, 56
  %v7222 = vpop.permute.xlu0 %7221
  %7223 = vrot.lane.b32.xlu0 %v7037, 56
  %v7224 = vpop.permute.xlu0 %7223
  %7225 = vrot.lane.b32.xlu0 %v7038, 56
  %v7226 = vpop.permute.xlu0 %7225
  %7227 = vrot.lane.b32.xlu0 %v7039, 56
  %v7228 = vpop.permute.xlu0 %7227
  %7229 = vrot.lane.b32.xlu0 %v7040, 56
  %v7230 = vpop.permute.xlu0 %7229
  %7231 = vrot.lane.b32.xlu0 %v7041, 56
  %v7232 = vpop.permute.xlu0 %7231
  %7233 = vrot.lane.b32.xlu0 %v7042, 56
  %v7234 = vpop.permute.xlu0 %7233
  %vm7299 = vcmask 523712
  %7300 = vst.msk [vmem:[#allocation5] sm:$0xff] %vm7299, %v7108
  %7301 = vst.msk [vmem:[#allocation5 + $0x8] sm:$0xff] %vm7299, %v7110
  %7302 = vst.msk [vmem:[#allocation5 + $0x10] sm:$0xff] %vm7299, %v7112
  %7303 = vst.msk [vmem:[#allocation5 + $0x18] sm:$0xff] %vm7299, %v7114
  %7304 = vst.msk [vmem:[#allocation5 + $0x20] sm:$0xff] %vm7299, %v7116
  %7305 = vst.msk [vmem:[#allocation5 + $0x28] sm:$0xff] %vm7299, %v7118
  %7306 = vst.msk [vmem:[#allocation5 + $0x30] sm:$0xff] %vm7299, %v7120
  %7307 = vst.msk [vmem:[#allocation5 + $0x38] sm:$0xff] %vm7299, %v7122
  %7308 = vst.msk [vmem:[#allocation5 + $0x40] sm:$0xff] %vm7299, %v7124
  %7309 = vst.msk [vmem:[#allocation5 + $0x48] sm:$0xff] %vm7299, %v7126
  %7310 = vst.msk [vmem:[#allocation5 + $0x50] sm:$0xff] %vm7299, %v7128
  %7311 = vst.msk [vmem:[#allocation5 + $0x58] sm:$0xff] %vm7299, %v7130
  %7312 = vst.msk [vmem:[#allocation5 + $0x60] sm:$0xff] %vm7299, %v7132
  %7313 = vst.msk [vmem:[#allocation5 + $0x68] sm:$0xff] %vm7299, %v7134
  %7314 = vst.msk [vmem:[#allocation5 + $0x70] sm:$0xff] %vm7299, %v7136
  %7315 = vst.msk [vmem:[#allocation5 + $0x78] sm:$0xff] %vm7299, %v7138
  %7316 = vst.msk [vmem:[#allocation5 + $0x80] sm:$0xff] %vm7299, %v7140
  %7317 = vst.msk [vmem:[#allocation5 + $0x88] sm:$0xff] %vm7299, %v7142
  %7318 = vst.msk [vmem:[#allocation5 + $0x90] sm:$0xff] %vm7299, %v7144
  %7319 = vst.msk [vmem:[#allocation5 + $0x98] sm:$0xff] %vm7299, %v7146
  %7320 = vst.msk [vmem:[#allocation5 + $0xa0] sm:$0xff] %vm7299, %v7148
  %7321 = vst.msk [vmem:[#allocation5 + $0xa8] sm:$0xff] %vm7299, %v7150
  %7322 = vst.msk [vmem:[#allocation5 + $0xb0] sm:$0xff] %vm7299, %v7152
  %7323 = vst.msk [vmem:[#allocation5 + $0xb8] sm:$0xff] %vm7299, %v7154
  %7324 = vst.msk [vmem:[#allocation5 + $0xc0] sm:$0xff] %vm7299, %v7156
  %7325 = vst.msk [vmem:[#allocation5 + $0xc8] sm:$0xff] %vm7299, %v7158
  %7326 = vst.msk [vmem:[#allocation5 + $0xd0] sm:$0xff] %vm7299, %v7160
  %7327 = vst.msk [vmem:[#allocation5 + $0xd8] sm:$0xff] %vm7299, %v7162
  %7328 = vst.msk [vmem:[#allocation5 + $0xe0] sm:$0xff] %vm7299, %v7164
  %7329 = vst.msk [vmem:[#allocation5 + $0xe8] sm:$0xff] %vm7299, %v7166
  %7330 = vst.msk [vmem:[#allocation5 + $0xf0] sm:$0xff] %vm7299, %v7168
  %7331 = vst.msk [vmem:[#allocation5 + $0xf8] sm:$0xff] %vm7299, %v7170
  %7332 = vst.msk [vmem:[#allocation5 + $0x100] sm:$0xff] %vm7299, %v7172
  %7333 = vst.msk [vmem:[#allocation5 + $0x108] sm:$0xff] %vm7299, %v7174
  %7334 = vst.msk [vmem:[#allocation5 + $0x110] sm:$0xff] %vm7299, %v7176
  %7335 = vst.msk [vmem:[#allocation5 + $0x118] sm:$0xff] %vm7299, %v7178
  %7336 = vst.msk [vmem:[#allocation5 + $0x120] sm:$0xff] %vm7299, %v7180
  %7337 = vst.msk [vmem:[#allocation5 + $0x128] sm:$0xff] %vm7299, %v7182
  %7338 = vst.msk [vmem:[#allocation5 + $0x130] sm:$0xff] %vm7299, %v7184
  %7339 = vst.msk [vmem:[#allocation5 + $0x138] sm:$0xff] %vm7299, %v7186
  %7340 = vst.msk [vmem:[#allocation5 + $0x140] sm:$0xff] %vm7299, %v7188
  %7341 = vst.msk [vmem:[#allocation5 + $0x148] sm:$0xff] %vm7299, %v7190
  %7342 = vst.msk [vmem:[#allocation5 + $0x150] sm:$0xff] %vm7299, %v7192
  %7343 = vst.msk [vmem:[#allocation5 + $0x158] sm:$0xff] %vm7299, %v7194
  %7344 = vst.msk [vmem:[#allocation5 + $0x160] sm:$0xff] %vm7299, %v7196
  %7345 = vst.msk [vmem:[#allocation5 + $0x168] sm:$0xff] %vm7299, %v7198
  %7346 = vst.msk [vmem:[#allocation5 + $0x170] sm:$0xff] %vm7299, %v7200
  %7347 = vst.msk [vmem:[#allocation5 + $0x178] sm:$0xff] %vm7299, %v7202
  %7348 = vst.msk [vmem:[#allocation5 + $0x180] sm:$0xff] %vm7299, %v7204
  %7349 = vst.msk [vmem:[#allocation5 + $0x188] sm:$0xff] %vm7299, %v7206
  %7350 = vst.msk [vmem:[#allocation5 + $0x190] sm:$0xff] %vm7299, %v7208
  %7351 = vst.msk [vmem:[#allocation5 + $0x198] sm:$0xff] %vm7299, %v7210
  %7352 = vst.msk [vmem:[#allocation5 + $0x1a0] sm:$0xff] %vm7299, %v7212
  %7353 = vst.msk [vmem:[#allocation5 + $0x1a8] sm:$0xff] %vm7299, %v7214
  %7354 = vst.msk [vmem:[#allocation5 + $0x1b0] sm:$0xff] %vm7299, %v7216
  %7355 = vst.msk [vmem:[#allocation5 + $0x1b8] sm:$0xff] %vm7299, %v7218
  %7356 = vst.msk [vmem:[#allocation5 + $0x1c0] sm:$0xff] %vm7299, %v7220
  %7357 = vst.msk [vmem:[#allocation5 + $0x1c8] sm:$0xff] %vm7299, %v7222
  %7358 = vst.msk [vmem:[#allocation5 + $0x1d0] sm:$0xff] %vm7299, %v7224
  %7359 = vst.msk [vmem:[#allocation5 + $0x1d8] sm:$0xff] %vm7299, %v7226
  %7360 = vst.msk [vmem:[#allocation5 + $0x1e0] sm:$0xff] %vm7299, %v7228
  %7361 = vst.msk [vmem:[#allocation5 + $0x1e8] sm:$0xff] %vm7299, %v7230
  %7362 = vst.msk [vmem:[#allocation5 + $0x1f0] sm:$0xff] %vm7299, %v7232
  %7363 = vst.msk [vmem:[#allocation5 + $0x1f8] sm:$0xff] %vm7299, %v7234
  %v7364 = vld [vmem:[%s6593 + $0x2] sm:$0xff]
  %v7365 = vld [vmem:[%s6593 + $0xa] sm:$0xff]
  %v7366 = vld [vmem:[%s6593 + $0x1a] sm:$0xff]
  %v7367 = vld [vmem:[%s6593 + $0x22] sm:$0xff]
  %v7368 = vld [vmem:[%s6593 + $0x32] sm:$0xff]
  %v7369 = vld [vmem:[%s6593 + $0x3a] sm:$0xff]
  %v7370 = vld [vmem:[%s6593 + $0x4a] sm:$0xff]
  %v7371 = vld [vmem:[%s6593 + $0x52] sm:$0xff]
  %v7372 = vld [vmem:[%s6593 + $0x62] sm:$0xff]
  %v7373 = vld [vmem:[%s6593 + $0x6a] sm:$0xff]
  %v7374 = vld [vmem:[%s6593 + $0x7a] sm:$0xff]
  %v7375 = vld [vmem:[%s6593 + $0x82] sm:$0xff]
  %v7376 = vld [vmem:[%s6593 + $0x92] sm:$0xff]
  %v7377 = vld [vmem:[%s6593 + $0x9a] sm:$0xff]
  %v7378 = vld [vmem:[%s6593 + $0xaa] sm:$0xff]
  %v7379 = vld [vmem:[%s6593 + $0xb2] sm:$0xff]
  %v7380 = vld [vmem:[%s6593 + $0xc2] sm:$0xff]
  %v7381 = vld [vmem:[%s6593 + $0xca] sm:$0xff]
  %v7382 = vld [vmem:[%s6593 + $0xda] sm:$0xff]
  %v7383 = vld [vmem:[%s6593 + $0xe2] sm:$0xff]
  %v7384 = vld [vmem:[%s6593 + $0xf2] sm:$0xff]
  %v7385 = vld [vmem:[%s6593 + $0xfa] sm:$0xff]
  %v7386 = vld [vmem:[%s6593 + $0x10a] sm:$0xff]
  %v7387 = vld [vmem:[%s6593 + $0x112] sm:$0xff]
  %v7388 = vld [vmem:[%s6593 + $0x122] sm:$0xff]
  %v7389 = vld [vmem:[%s6593 + $0x12a] sm:$0xff]
  %v7390 = vld [vmem:[%s6593 + $0x13a] sm:$0xff]
  %v7391 = vld [vmem:[%s6593 + $0x142] sm:$0xff]
  %v7392 = vld [vmem:[%s6593 + $0x152] sm:$0xff]
  %v7393 = vld [vmem:[%s6593 + $0x15a] sm:$0xff]
  %v7394 = vld [vmem:[%s6593 + $0x16a] sm:$0xff]
  %v7395 = vld [vmem:[%s6593 + $0x172] sm:$0xff]
  %v7396 = vld [vmem:[%s6593 + $0x1b2] sm:$0xff]
  %v7397 = vld [vmem:[%s6593 + $0x1ba] sm:$0xff]
  %v7398 = vld [vmem:[%s6593 + $0x1ca] sm:$0xff]
  %v7399 = vld [vmem:[%s6593 + $0x1d2] sm:$0xff]
  %v7400 = vld [vmem:[%s6593 + $0x1e2] sm:$0xff]
  %v7401 = vld [vmem:[%s6593 + $0x1ea] sm:$0xff]
  %v7402 = vld [vmem:[%s6593 + $0x1fa] sm:$0xff]
  %v7403 = vld [vmem:[%s6593 + $0x202] sm:$0xff]
  %v7404 = vld [vmem:[%s6593 + $0x212] sm:$0xff]
  %v7405 = vld [vmem:[%s6593 + $0x21a] sm:$0xff]
  %v7406 = vld [vmem:[%s6593 + $0x22a] sm:$0xff]
  %v7407 = vld [vmem:[%s6593 + $0x232] sm:$0xff]
  %v7408 = vld [vmem:[%s6593 + $0x242] sm:$0xff]
  %v7409 = vld [vmem:[%s6593 + $0x24a] sm:$0xff]
  %v7410 = vld [vmem:[%s6593 + $0x25a] sm:$0xff]
  %v7411 = vld [vmem:[%s6593 + $0x262] sm:$0xff]
  %v7412 = vld [vmem:[%s6593 + $0x272] sm:$0xff]
  %v7413 = vld [vmem:[%s6593 + $0x27a] sm:$0xff]
  %v7414 = vld [vmem:[%s6593 + $0x28a] sm:$0xff]
  %v7415 = vld [vmem:[%s6593 + $0x292] sm:$0xff]
  %v7416 = vld [vmem:[%s6593 + $0x2a2] sm:$0xff]
  %v7417 = vld [vmem:[%s6593 + $0x2aa] sm:$0xff]
  %v7418 = vld [vmem:[%s6593 + $0x2ba] sm:$0xff]
  %v7419 = vld [vmem:[%s6593 + $0x2c2] sm:$0xff]
  %v7420 = vld [vmem:[%s6593 + $0x2d2] sm:$0xff]
  %v7421 = vld [vmem:[%s6593 + $0x2da] sm:$0xff]
  %v7422 = vld [vmem:[%s6593 + $0x2ea] sm:$0xff]
  %v7423 = vld [vmem:[%s6593 + $0x2f2] sm:$0xff]
  %v7424 = vld [vmem:[%s6593 + $0x302] sm:$0xff]
  %v7425 = vld [vmem:[%s6593 + $0x30a] sm:$0xff]
  %v7426 = vld [vmem:[%s6593 + $0x31a] sm:$0xff]
  %v7427 = vld [vmem:[%s6593 + $0x322] sm:$0xff]
  %7492 = vrot.lane.b32.xlu0 %v7364, 64
  %v7493 = vpop.permute.xlu0 %7492
  %7494 = vrot.lane.b32.xlu0 %v7365, 64
  %v7495 = vpop.permute.xlu0 %7494
  %7496 = vrot.lane.b32.xlu0 %v7366, 64
  %v7497 = vpop.permute.xlu0 %7496
  %7498 = vrot.lane.b32.xlu0 %v7367, 64
  %v7499 = vpop.permute.xlu0 %7498
  %7500 = vrot.lane.b32.xlu0 %v7368, 64
  %v7501 = vpop.permute.xlu0 %7500
  %7502 = vrot.lane.b32.xlu0 %v7369, 64
  %v7503 = vpop.permute.xlu0 %7502
  %7504 = vrot.lane.b32.xlu0 %v7370, 64
  %v7505 = vpop.permute.xlu0 %7504
  %7506 = vrot.lane.b32.xlu0 %v7371, 64
  %v7507 = vpop.permute.xlu0 %7506
  %7508 = vrot.lane.b32.xlu0 %v7372, 64
  %v7509 = vpop.permute.xlu0 %7508
  %7510 = vrot.lane.b32.xlu0 %v7373, 64
  %v7511 = vpop.permute.xlu0 %7510
  %7512 = vrot.lane.b32.xlu0 %v7374, 64
  %v7513 = vpop.permute.xlu0 %7512
  %7514 = vrot.lane.b32.xlu0 %v7375, 64
  %v7515 = vpop.permute.xlu0 %7514
  %7516 = vrot.lane.b32.xlu0 %v7376, 64
  %v7517 = vpop.permute.xlu0 %7516
  %7518 = vrot.lane.b32.xlu0 %v7377, 64
  %v7519 = vpop.permute.xlu0 %7518
  %7520 = vrot.lane.b32.xlu0 %v7378, 64
  %v7521 = vpop.permute.xlu0 %7520
  %7522 = vrot.lane.b32.xlu0 %v7379, 64
  %v7523 = vpop.permute.xlu0 %7522
  %7524 = vrot.lane.b32.xlu0 %v7380, 64
  %v7525 = vpop.permute.xlu0 %7524
  %7526 = vrot.lane.b32.xlu0 %v7381, 64
  %v7527 = vpop.permute.xlu0 %7526
  %7528 = vrot.lane.b32.xlu0 %v7382, 64
  %v7529 = vpop.permute.xlu0 %7528
  %7530 = vrot.lane.b32.xlu0 %v7383, 64
  %v7531 = vpop.permute.xlu0 %7530
  %7532 = vrot.lane.b32.xlu0 %v7384, 64
  %v7533 = vpop.permute.xlu0 %7532
  %7534 = vrot.lane.b32.xlu0 %v7385, 64
  %v7535 = vpop.permute.xlu0 %7534
  %7536 = vrot.lane.b32.xlu0 %v7386, 64
  %v7537 = vpop.permute.xlu0 %7536
  %7538 = vrot.lane.b32.xlu0 %v7387, 64
  %v7539 = vpop.permute.xlu0 %7538
  %7540 = vrot.lane.b32.xlu0 %v7388, 64
  %v7541 = vpop.permute.xlu0 %7540
  %7542 = vrot.lane.b32.xlu0 %v7389, 64
  %v7543 = vpop.permute.xlu0 %7542
  %7544 = vrot.lane.b32.xlu0 %v7390, 64
  %v7545 = vpop.permute.xlu0 %7544
  %7546 = vrot.lane.b32.xlu0 %v7391, 64
  %v7547 = vpop.permute.xlu0 %7546
  %7548 = vrot.lane.b32.xlu0 %v7392, 64
  %v7549 = vpop.permute.xlu0 %7548
  %7550 = vrot.lane.b32.xlu0 %v7393, 64
  %v7551 = vpop.permute.xlu0 %7550
  %7552 = vrot.lane.b32.xlu0 %v7394, 64
  %v7553 = vpop.permute.xlu0 %7552
  %7554 = vrot.lane.b32.xlu0 %v7395, 64
  %v7555 = vpop.permute.xlu0 %7554
  %7556 = vrot.lane.b32.xlu0 %v7396, 64
  %v7557 = vpop.permute.xlu0 %7556
  %7558 = vrot.lane.b32.xlu0 %v7397, 64
  %v7559 = vpop.permute.xlu0 %7558
  %7560 = vrot.lane.b32.xlu0 %v7398, 64
  %v7561 = vpop.permute.xlu0 %7560
  %7562 = vrot.lane.b32.xlu0 %v7399, 64
  %v7563 = vpop.permute.xlu0 %7562
  %7564 = vrot.lane.b32.xlu0 %v7400, 64
  %v7565 = vpop.permute.xlu0 %7564
  %7566 = vrot.lane.b32.xlu0 %v7401, 64
  %v7567 = vpop.permute.xlu0 %7566
  %7568 = vrot.lane.b32.xlu0 %v7402, 64
  %v7569 = vpop.permute.xlu0 %7568
  %7570 = vrot.lane.b32.xlu0 %v7403, 64
  %v7571 = vpop.permute.xlu0 %7570
  %7572 = vrot.lane.b32.xlu0 %v7404, 64
  %v7573 = vpop.permute.xlu0 %7572
  %7574 = vrot.lane.b32.xlu0 %v7405, 64
  %v7575 = vpop.permute.xlu0 %7574
  %7576 = vrot.lane.b32.xlu0 %v7406, 64
  %v7577 = vpop.permute.xlu0 %7576
  %7578 = vrot.lane.b32.xlu0 %v7407, 64
  %v7579 = vpop.permute.xlu0 %7578
  %7580 = vrot.lane.b32.xlu0 %v7408, 64
  %v7581 = vpop.permute.xlu0 %7580
  %7582 = vrot.lane.b32.xlu0 %v7409, 64
  %v7583 = vpop.permute.xlu0 %7582
  %7584 = vrot.lane.b32.xlu0 %v7410, 64
  %v7585 = vpop.permute.xlu0 %7584
  %7586 = vrot.lane.b32.xlu0 %v7411, 64
  %v7587 = vpop.permute.xlu0 %7586
  %7588 = vrot.lane.b32.xlu0 %v7412, 64
  %v7589 = vpop.permute.xlu0 %7588
  %7590 = vrot.lane.b32.xlu0 %v7413, 64
  %v7591 = vpop.permute.xlu0 %7590
  %7592 = vrot.lane.b32.xlu0 %v7414, 64
  %v7593 = vpop.permute.xlu0 %7592
  %7594 = vrot.lane.b32.xlu0 %v7415, 64
  %v7595 = vpop.permute.xlu0 %7594
  %7596 = vrot.lane.b32.xlu0 %v7416, 64
  %v7597 = vpop.permute.xlu0 %7596
  %7598 = vrot.lane.b32.xlu0 %v7417, 64
  %v7599 = vpop.permute.xlu0 %7598
  %7600 = vrot.lane.b32.xlu0 %v7418, 64
  %v7601 = vpop.permute.xlu0 %7600
  %7602 = vrot.lane.b32.xlu0 %v7419, 64
  %v7603 = vpop.permute.xlu0 %7602
  %7604 = vrot.lane.b32.xlu0 %v7420, 64
  %v7605 = vpop.permute.xlu0 %7604
  %7606 = vrot.lane.b32.xlu0 %v7421, 64
  %v7607 = vpop.permute.xlu0 %7606
  %7608 = vrot.lane.b32.xlu0 %v7422, 64
  %v7609 = vpop.permute.xlu0 %7608
  %7610 = vrot.lane.b32.xlu0 %v7423, 64
  %v7611 = vpop.permute.xlu0 %7610
  %7612 = vrot.lane.b32.xlu0 %v7424, 64
  %v7613 = vpop.permute.xlu0 %7612
  %7614 = vrot.lane.b32.xlu0 %v7425, 64
  %v7615 = vpop.permute.xlu0 %7614
  %7616 = vrot.lane.b32.xlu0 %v7426, 64
  %v7617 = vpop.permute.xlu0 %7616
  %7618 = vrot.lane.b32.xlu0 %v7427, 64
  %v7619 = vpop.permute.xlu0 %7618
  %vm7684 = vcmask 589312
  %7685 = vst.msk [vmem:[#allocation5] sm:$0xff] %vm7684, %v7493
  %7686 = vst.msk [vmem:[#allocation5 + $0x8] sm:$0xff] %vm7684, %v7495
  %7687 = vst.msk [vmem:[#allocation5 + $0x10] sm:$0xff] %vm7684, %v7497
  %7688 = vst.msk [vmem:[#allocation5 + $0x18] sm:$0xff] %vm7684, %v7499
  %7689 = vst.msk [vmem:[#allocation5 + $0x20] sm:$0xff] %vm7684, %v7501
  %7690 = vst.msk [vmem:[#allocation5 + $0x28] sm:$0xff] %vm7684, %v7503
  %7691 = vst.msk [vmem:[#allocation5 + $0x30] sm:$0xff] %vm7684, %v7505
  %7692 = vst.msk [vmem:[#allocation5 + $0x38] sm:$0xff] %vm7684, %v7507
  %7693 = vst.msk [vmem:[#allocation5 + $0x40] sm:$0xff] %vm7684, %v7509
  %7694 = vst.msk [vmem:[#allocation5 + $0x48] sm:$0xff] %vm7684, %v7511
  %7695 = vst.msk [vmem:[#allocation5 + $0x50] sm:$0xff] %vm7684, %v7513
  %7696 = vst.msk [vmem:[#allocation5 + $0x58] sm:$0xff] %vm7684, %v7515
  %7697 = vst.msk [vmem:[#allocation5 + $0x60] sm:$0xff] %vm7684, %v7517
  %7698 = vst.msk [vmem:[#allocation5 + $0x68] sm:$0xff] %vm7684, %v7519
  %7699 = vst.msk [vmem:[#allocation5 + $0x70] sm:$0xff] %vm7684, %v7521
  %7700 = vst.msk [vmem:[#allocation5 + $0x78] sm:$0xff] %vm7684, %v7523
  %7701 = vst.msk [vmem:[#allocation5 + $0x80] sm:$0xff] %vm7684, %v7525
  %7702 = vst.msk [vmem:[#allocation5 + $0x88] sm:$0xff] %vm7684, %v7527
  %7703 = vst.msk [vmem:[#allocation5 + $0x90] sm:$0xff] %vm7684, %v7529
  %7704 = vst.msk [vmem:[#allocation5 + $0x98] sm:$0xff] %vm7684, %v7531
  %7705 = vst.msk [vmem:[#allocation5 + $0xa0] sm:$0xff] %vm7684, %v7533
  %7706 = vst.msk [vmem:[#allocation5 + $0xa8] sm:$0xff] %vm7684, %v7535
  %7707 = vst.msk [vmem:[#allocation5 + $0xb0] sm:$0xff] %vm7684, %v7537
  %7708 = vst.msk [vmem:[#allocation5 + $0xb8] sm:$0xff] %vm7684, %v7539
  %7709 = vst.msk [vmem:[#allocation5 + $0xc0] sm:$0xff] %vm7684, %v7541
  %7710 = vst.msk [vmem:[#allocation5 + $0xc8] sm:$0xff] %vm7684, %v7543
  %7711 = vst.msk [vmem:[#allocation5 + $0xd0] sm:$0xff] %vm7684, %v7545
  %7712 = vst.msk [vmem:[#allocation5 + $0xd8] sm:$0xff] %vm7684, %v7547
  %7713 = vst.msk [vmem:[#allocation5 + $0xe0] sm:$0xff] %vm7684, %v7549
  %7714 = vst.msk [vmem:[#allocation5 + $0xe8] sm:$0xff] %vm7684, %v7551
  %7715 = vst.msk [vmem:[#allocation5 + $0xf0] sm:$0xff] %vm7684, %v7553
  %7716 = vst.msk [vmem:[#allocation5 + $0xf8] sm:$0xff] %vm7684, %v7555
  %7717 = vst.msk [vmem:[#allocation5 + $0x100] sm:$0xff] %vm7684, %v7557
  %7718 = vst.msk [vmem:[#allocation5 + $0x108] sm:$0xff] %vm7684, %v7559
  %7719 = vst.msk [vmem:[#allocation5 + $0x110] sm:$0xff] %vm7684, %v7561
  %7720 = vst.msk [vmem:[#allocation5 + $0x118] sm:$0xff] %vm7684, %v7563
  %7721 = vst.msk [vmem:[#allocation5 + $0x120] sm:$0xff] %vm7684, %v7565
  %7722 = vst.msk [vmem:[#allocation5 + $0x128] sm:$0xff] %vm7684, %v7567
  %7723 = vst.msk [vmem:[#allocation5 + $0x130] sm:$0xff] %vm7684, %v7569
  %7724 = vst.msk [vmem:[#allocation5 + $0x138] sm:$0xff] %vm7684, %v7571
  %7725 = vst.msk [vmem:[#allocation5 + $0x140] sm:$0xff] %vm7684, %v7573
  %7726 = vst.msk [vmem:[#allocation5 + $0x148] sm:$0xff] %vm7684, %v7575
  %7727 = vst.msk [vmem:[#allocation5 + $0x150] sm:$0xff] %vm7684, %v7577
  %7728 = vst.msk [vmem:[#allocation5 + $0x158] sm:$0xff] %vm7684, %v7579
  %7729 = vst.msk [vmem:[#allocation5 + $0x160] sm:$0xff] %vm7684, %v7581
  %7730 = vst.msk [vmem:[#allocation5 + $0x168] sm:$0xff] %vm7684, %v7583
  %7731 = vst.msk [vmem:[#allocation5 + $0x170] sm:$0xff] %vm7684, %v7585
  %7732 = vst.msk [vmem:[#allocation5 + $0x178] sm:$0xff] %vm7684, %v7587
  %7733 = vst.msk [vmem:[#allocation5 + $0x180] sm:$0xff] %vm7684, %v7589
  %7734 = vst.msk [vmem:[#allocation5 + $0x188] sm:$0xff] %vm7684, %v7591
  %7735 = vst.msk [vmem:[#allocation5 + $0x190] sm:$0xff] %vm7684, %v7593
  %7736 = vst.msk [vmem:[#allocation5 + $0x198] sm:$0xff] %vm7684, %v7595
  %7737 = vst.msk [vmem:[#allocation5 + $0x1a0] sm:$0xff] %vm7684, %v7597
  %7738 = vst.msk [vmem:[#allocation5 + $0x1a8] sm:$0xff] %vm7684, %v7599
  %7739 = vst.msk [vmem:[#allocation5 + $0x1b0] sm:$0xff] %vm7684, %v7601
  %7740 = vst.msk [vmem:[#allocation5 + $0x1b8] sm:$0xff] %vm7684, %v7603
  %7741 = vst.msk [vmem:[#allocation5 + $0x1c0] sm:$0xff] %vm7684, %v7605
  %7742 = vst.msk [vmem:[#allocation5 + $0x1c8] sm:$0xff] %vm7684, %v7607
  %7743 = vst.msk [vmem:[#allocation5 + $0x1d0] sm:$0xff] %vm7684, %v7609
  %7744 = vst.msk [vmem:[#allocation5 + $0x1d8] sm:$0xff] %vm7684, %v7611
  %7745 = vst.msk [vmem:[#allocation5 + $0x1e0] sm:$0xff] %vm7684, %v7613
  %7746 = vst.msk [vmem:[#allocation5 + $0x1e8] sm:$0xff] %vm7684, %v7615
  %7747 = vst.msk [vmem:[#allocation5 + $0x1f0] sm:$0xff] %vm7684, %v7617
  %7748 = vst.msk [vmem:[#allocation5 + $0x1f8] sm:$0xff] %vm7684, %v7619
  %v7749 = vld [vmem:[#allocation5] sm:$0xff]
  %v7750 = vld [vmem:[#allocation5 + $0x8] sm:$0xff]
  %v7751 = vld [vmem:[#allocation5 + $0x10] sm:$0xff]
  %v7752 = vld [vmem:[#allocation5 + $0x18] sm:$0xff]
  %v7753 = vld [vmem:[#allocation5 + $0x20] sm:$0xff]
  %v7754 = vld [vmem:[#allocation5 + $0x28] sm:$0xff]
  %v7755 = vld [vmem:[#allocation5 + $0x30] sm:$0xff]
  %v7756 = vld [vmem:[#allocation5 + $0x38] sm:$0xff]
  %v7757 = vld [vmem:[#allocation5 + $0x40] sm:$0xff]
  %v7758 = vld [vmem:[#allocation5 + $0x48] sm:$0xff]
  %v7759 = vld [vmem:[#allocation5 + $0x50] sm:$0xff]
  %v7760 = vld [vmem:[#allocation5 + $0x58] sm:$0xff]
  %v7761 = vld [vmem:[#allocation5 + $0x60] sm:$0xff]
  %v7762 = vld [vmem:[#allocation5 + $0x68] sm:$0xff]
  %v7763 = vld [vmem:[#allocation5 + $0x70] sm:$0xff]
  %v7764 = vld [vmem:[#allocation5 + $0x78] sm:$0xff]
  %v7765 = vld [vmem:[#allocation5 + $0x80] sm:$0xff]
  %v7766 = vld [vmem:[#allocation5 + $0x88] sm:$0xff]
  %v7767 = vld [vmem:[#allocation5 + $0x90] sm:$0xff]
  %v7768 = vld [vmem:[#allocation5 + $0x98] sm:$0xff]
  %v7769 = vld [vmem:[#allocation5 + $0xa0] sm:$0xff]
  %v7770 = vld [vmem:[#allocation5 + $0xa8] sm:$0xff]
  %v7771 = vld [vmem:[#allocation5 + $0xb0] sm:$0xff]
  %v7772 = vld [vmem:[#allocation5 + $0xb8] sm:$0xff]
  %v7773 = vld [vmem:[#allocation5 + $0xc0] sm:$0xff]
  %v7774 = vld [vmem:[#allocation5 + $0xc8] sm:$0xff]
  %v7775 = vld [vmem:[#allocation5 + $0xd0] sm:$0xff]
  %v7776 = vld [vmem:[#allocation5 + $0xd8] sm:$0xff]
  %v7777 = vld [vmem:[#allocation5 + $0xe0] sm:$0xff]
  %v7778 = vld [vmem:[#allocation5 + $0xe8] sm:$0xff]
  %v7779 = vld [vmem:[#allocation5 + $0xf0] sm:$0xff]
  %v7780 = vld [vmem:[#allocation5 + $0xf8] sm:$0xff]
  %v7781 = vld [vmem:[#allocation5 + $0x100] sm:$0xff]
  %v7782 = vld [vmem:[#allocation5 + $0x108] sm:$0xff]
  %v7783 = vld [vmem:[#allocation5 + $0x110] sm:$0xff]
  %v7784 = vld [vmem:[#allocation5 + $0x118] sm:$0xff]
  %v7785 = vld [vmem:[#allocation5 + $0x120] sm:$0xff]
  %v7786 = vld [vmem:[#allocation5 + $0x128] sm:$0xff]
  %v7787 = vld [vmem:[#allocation5 + $0x130] sm:$0xff]
  %v7788 = vld [vmem:[#allocation5 + $0x138] sm:$0xff]
  %v7789 = vld [vmem:[#allocation5 + $0x140] sm:$0xff]
  %v7790 = vld [vmem:[#allocation5 + $0x148] sm:$0xff]
  %v7791 = vld [vmem:[#allocation5 + $0x150] sm:$0xff]
  %v7792 = vld [vmem:[#allocation5 + $0x158] sm:$0xff]
  %v7793 = vld [vmem:[#allocation5 + $0x160] sm:$0xff]
  %v7794 = vld [vmem:[#allocation5 + $0x168] sm:$0xff]
  %v7795 = vld [vmem:[#allocation5 + $0x170] sm:$0xff]
  %v7796 = vld [vmem:[#allocation5 + $0x178] sm:$0xff]
  %v7797 = vld [vmem:[#allocation5 + $0x180] sm:$0xff]
  %v7798 = vld [vmem:[#allocation5 + $0x188] sm:$0xff]
  %v7799 = vld [vmem:[#allocation5 + $0x190] sm:$0xff]
  %v7800 = vld [vmem:[#allocation5 + $0x198] sm:$0xff]
  %v7801 = vld [vmem:[#allocation5 + $0x1a0] sm:$0xff]
  %v7802 = vld [vmem:[#allocation5 + $0x1a8] sm:$0xff]
  %v7803 = vld [vmem:[#allocation5 + $0x1b0] sm:$0xff]
  %v7804 = vld [vmem:[#allocation5 + $0x1b8] sm:$0xff]
  %v7805 = vld [vmem:[#allocation5 + $0x1c0] sm:$0xff]
  %v7806 = vld [vmem:[#allocation5 + $0x1c8] sm:$0xff]
  %v7807 = vld [vmem:[#allocation5 + $0x1d0] sm:$0xff]
  %v7808 = vld [vmem:[#allocation5 + $0x1d8] sm:$0xff]
  %v7809 = vld [vmem:[#allocation5 + $0x1e0] sm:$0xff]
  %v7810 = vld [vmem:[#allocation5 + $0x1e8] sm:$0xff]
  %v7811 = vld [vmem:[#allocation5 + $0x1f0] sm:$0xff]
  %v7812 = vld [vmem:[#allocation5 + $0x1f8] sm:$0xff]
  %v7813 = vpack.c.bf16 %v7750, %v7749
  %v7814 = vpack.c.bf16 %v7752, %v7751
  %v7815 = vpack.c.bf16 %v7754, %v7753
  %v7816 = vpack.c.bf16 %v7756, %v7755
  %v7817 = vpack.c.bf16 %v7758, %v7757
  %v7818 = vpack.c.bf16 %v7760, %v7759
  %v7819 = vpack.c.bf16 %v7762, %v7761
  %v7820 = vpack.c.bf16 %v7764, %v7763
  %v7821 = vpack.c.bf16 %v7766, %v7765
  %v7822 = vpack.c.bf16 %v7768, %v7767
  %v7823 = vpack.c.bf16 %v7770, %v7769
  %v7824 = vpack.c.bf16 %v7772, %v7771
  %v7825 = vpack.c.bf16 %v7774, %v7773
  %v7826 = vpack.c.bf16 %v7776, %v7775
  %v7827 = vpack.c.bf16 %v7778, %v7777
  %v7828 = vpack.c.bf16 %v7780, %v7779
  %v7829 = vpack.c.bf16 %v7782, %v7781
  %v7830 = vpack.c.bf16 %v7784, %v7783
  %v7831 = vpack.c.bf16 %v7786, %v7785
  %v7832 = vpack.c.bf16 %v7788, %v7787
  %v7833 = vpack.c.bf16 %v7790, %v7789
  %v7834 = vpack.c.bf16 %v7792, %v7791
  %v7835 = vpack.c.bf16 %v7794, %v7793
  %v7836 = vpack.c.bf16 %v7796, %v7795
  %v7837 = vpack.c.bf16 %v7798, %v7797
  %v7838 = vpack.c.bf16 %v7800, %v7799
  %v7839 = vpack.c.bf16 %v7802, %v7801
  %v7840 = vpack.c.bf16 %v7804, %v7803
  %v7841 = vpack.c.bf16 %v7806, %v7805
  %v7842 = vpack.c.bf16 %v7808, %v7807
  %v7843 = vpack.c.bf16 %v7810, %v7809
  %v7844 = vpack.c.bf16 %v7812, %v7811
  %v7845 = vld [vmem:[%s4] sm:$0xf]
  %v7846 = vld [vmem:[%s4 + $0x4] sm:$0xf]
  %v7847 = vld [vmem:[%s4 + $0x8] sm:$0xf]
  %v7848 = vld [vmem:[%s4 + $0xc] sm:$0xf]
  %v7849 = vld [vmem:[%s4 + $0x10] sm:$0xf]
  %v7850 = vld [vmem:[%s4 + $0x14] sm:$0xf]
  %v7851 = vld [vmem:[%s4 + $0x18] sm:$0xf]
  %v7852 = vld [vmem:[%s4 + $0x1c] sm:$0xf]
  %v7853 = vld [vmem:[%s4 + $0x20] sm:$0xf]
  %v7863 = vunpack.c.l.b16 %v7845
  %v7864 = vunpack.c.l.b16 %v7846
  %v7865 = vunpack.c.l.b16 %v7847
  %v7866 = vunpack.c.l.b16 %v7848
  %v7867 = vunpack.c.l.b16 %v7849
  %v7868 = vunpack.c.l.b16 %v7850
  %v7869 = vunpack.c.l.b16 %v7851
  %v7870 = vunpack.c.l.b16 %v7852
  %v7871 = vunpack.c.l.b16 %v7853
  %v7872 = vpack.c.b16 %v7864, %v7863
  %v7873 = vpack.c.b16 %v7866, %v7865
  %v7874 = vpack.c.b16 %v7868, %v7867
  %v7875 = vpack.c.b16 %v7870, %v7869
  %v7876 = vpack.c.b16 %v7871, %v7871
  %vm7881 = vcmask 588800
  %v7883 = vsel %vm7881, %v7813, 0
  %v7886 = vsel %vm7881, %v7814, 0
  %v7889 = vsel %vm7881, %v7815, 0
  %v7892 = vsel %vm7881, %v7816, 0
  %v7895 = vsel %vm7881, %v7817, 0
  %v7898 = vsel %vm7881, %v7818, 0
  %v7901 = vsel %vm7881, %v7819, 0
  %v7904 = vsel %vm7881, %v7820, 0
  %v7907 = vsel %vm7881, %v7821, 0
  %v7910 = vsel %vm7881, %v7822, 0
  %v7913 = vsel %vm7881, %v7823, 0
  %v7916 = vsel %vm7881, %v7824, 0
  %v7919 = vsel %vm7881, %v7825, 0
  %v7922 = vsel %vm7881, %v7826, 0
  %v7925 = vsel %vm7881, %v7827, 0
  %v7928 = vsel %vm7881, %v7828, 0
  %v7931 = vsel %vm7881, %v7829, 0
  %v7934 = vsel %vm7881, %v7830, 0
  %v7937 = vsel %vm7881, %v7831, 0
  %v7940 = vsel %vm7881, %v7832, 0
  %v7943 = vsel %vm7881, %v7833, 0
  %v7946 = vsel %vm7881, %v7834, 0
  %v7949 = vsel %vm7881, %v7835, 0
  %v7952 = vsel %vm7881, %v7836, 0
  %v7955 = vsel %vm7881, %v7837, 0
  %v7958 = vsel %vm7881, %v7838, 0
  %v7961 = vsel %vm7881, %v7839, 0
  %v7964 = vsel %vm7881, %v7840, 0
  %v7967 = vsel %vm7881, %v7841, 0
  %v7970 = vsel %vm7881, %v7842, 0
  %v7973 = vsel %vm7881, %v7843, 0
  %v7976 = vsel %vm7881, %v7844, 0
  %vm7978 = vcmask 1043456
  %v7980 = vsel %vm7978, %v7876, 0
  %7982 = vmatpush.bf16.msra.mxu0 0
  %7983 = vmatpush.bf16.msra.mxu0 0
  %7984 = vmatpush.bf16.msra.mxu0 0
  %7985 = vmatpush.bf16.msra.mxu0 %v7980
  %7986 = vmatpush.bf16.msra.mxu0 %v7875
  %7987 = vmatpush.bf16.msra.mxu0 %v7874
  %7988 = vmatpush.bf16.msra.mxu0 %v7873
  %7989 = vmatpush.bf16.msra.mxu0 %v7872
  %7990 = vmatmul.bf16.gmra.mxu0 %v7883
  %v7991 = vpop.f32.mrf.mxu0
  %v7992 = vadd.f32 0.0, %v7991
  %v7993 = vpop.f32.mrf.mxu0
  %v7994 = vadd.f32 0.0, %v7993
  %7995 = vmatmul.bf16.gmra.mxu0 %v7886
  %v7996 = vpop.f32.mrf.mxu0
  %v7997 = vadd.f32 0.0, %v7996
  %v7998 = vpop.f32.mrf.mxu0
  %v7999 = vadd.f32 0.0, %v7998
  %8000 = vmatmul.bf16.gmra.mxu0 %v7889
  %v8001 = vpop.f32.mrf.mxu0
  %v8002 = vadd.f32 0.0, %v8001
  %v8003 = vpop.f32.mrf.mxu0
  %v8004 = vadd.f32 0.0, %v8003
  %8005 = vmatmul.bf16.gmra.mxu0 %v7892
  %v8006 = vpop.f32.mrf.mxu0
  %v8007 = vadd.f32 0.0, %v8006
  %v8008 = vpop.f32.mrf.mxu0
  %v8009 = vadd.f32 0.0, %v8008
  %8010 = vmatmul.bf16.gmra.mxu0 %v7895
  %v8011 = vpop.f32.mrf.mxu0
  %v8012 = vadd.f32 0.0, %v8011
  %v8013 = vpop.f32.mrf.mxu0
  %v8014 = vadd.f32 0.0, %v8013
  %8015 = vmatmul.bf16.gmra.mxu0 %v7898
  %v8016 = vpop.f32.mrf.mxu0
  %v8017 = vadd.f32 0.0, %v8016
  %v8018 = vpop.f32.mrf.mxu0
  %v8019 = vadd.f32 0.0, %v8018
  %8020 = vmatmul.bf16.gmra.mxu0 %v7901
  %v8021 = vpop.f32.mrf.mxu0
  %v8022 = vadd.f32 0.0, %v8021
  %v8023 = vpop.f32.mrf.mxu0
  %v8024 = vadd.f32 0.0, %v8023
  %8025 = vmatmul.bf16.gmra.mxu0 %v7904
  %v8026 = vpop.f32.mrf.mxu0
  %v8027 = vadd.f32 0.0, %v8026
  %v8028 = vpop.f32.mrf.mxu0
  %v8029 = vadd.f32 0.0, %v8028
  %8030 = vmatmul.bf16.gmra.mxu0 %v7907
  %v8031 = vpop.f32.mrf.mxu0
  %v8032 = vadd.f32 0.0, %v8031
  %v8033 = vpop.f32.mrf.mxu0
  %v8034 = vadd.f32 0.0, %v8033
  %8035 = vmatmul.bf16.gmra.mxu0 %v7910
  %v8036 = vpop.f32.mrf.mxu0
  %v8037 = vadd.f32 0.0, %v8036
  %v8038 = vpop.f32.mrf.mxu0
  %v8039 = vadd.f32 0.0, %v8038
  %8040 = vmatmul.bf16.gmra.mxu0 %v7913
  %v8041 = vpop.f32.mrf.mxu0
  %v8042 = vadd.f32 0.0, %v8041
  %v8043 = vpop.f32.mrf.mxu0
  %v8044 = vadd.f32 0.0, %v8043
  %8045 = vmatmul.bf16.gmra.mxu0 %v7916
  %v8046 = vpop.f32.mrf.mxu0
  %v8047 = vadd.f32 0.0, %v8046
  %v8048 = vpop.f32.mrf.mxu0
  %v8049 = vadd.f32 0.0, %v8048
  %8050 = vmatmul.bf16.gmra.mxu0 %v7919
  %v8051 = vpop.f32.mrf.mxu0
  %v8052 = vadd.f32 0.0, %v8051
  %v8053 = vpop.f32.mrf.mxu0
  %v8054 = vadd.f32 0.0, %v8053
  %8055 = vmatmul.bf16.gmra.mxu0 %v7922
  %v8056 = vpop.f32.mrf.mxu0
  %v8057 = vadd.f32 0.0, %v8056
  %v8058 = vpop.f32.mrf.mxu0
  %v8059 = vadd.f32 0.0, %v8058
  %8060 = vmatmul.bf16.gmra.mxu0 %v7925
  %v8061 = vpop.f32.mrf.mxu0
  %v8062 = vadd.f32 0.0, %v8061
  %v8063 = vpop.f32.mrf.mxu0
  %v8064 = vadd.f32 0.0, %v8063
  %8065 = vmatmul.bf16.gmra.mxu0 %v7928
  %v8066 = vpop.f32.mrf.mxu0
  %v8067 = vadd.f32 0.0, %v8066
  %v8068 = vpop.f32.mrf.mxu0
  %v8069 = vadd.f32 0.0, %v8068
  %8070 = vmatmul.bf16.gmra.mxu0 %v7931
  %v8071 = vpop.f32.mrf.mxu0
  %v8072 = vadd.f32 0.0, %v8071
  %v8073 = vpop.f32.mrf.mxu0
  %v8074 = vadd.f32 0.0, %v8073
  %8075 = vmatmul.bf16.gmra.mxu0 %v7934
  %v8076 = vpop.f32.mrf.mxu0
  %v8077 = vadd.f32 0.0, %v8076
  %v8078 = vpop.f32.mrf.mxu0
  %v8079 = vadd.f32 0.0, %v8078
  %8080 = vmatmul.bf16.gmra.mxu0 %v7937
  %v8081 = vpop.f32.mrf.mxu0
  %v8082 = vadd.f32 0.0, %v8081
  %v8083 = vpop.f32.mrf.mxu0
  %v8084 = vadd.f32 0.0, %v8083
  %8085 = vmatmul.bf16.gmra.mxu0 %v7940
  %v8086 = vpop.f32.mrf.mxu0
  %v8087 = vadd.f32 0.0, %v8086
  %v8088 = vpop.f32.mrf.mxu0
  %v8089 = vadd.f32 0.0, %v8088
  %8090 = vmatmul.bf16.gmra.mxu0 %v7943
  %v8091 = vpop.f32.mrf.mxu0
  %v8092 = vadd.f32 0.0, %v8091
  %v8093 = vpop.f32.mrf.mxu0
  %v8094 = vadd.f32 0.0, %v8093
  %8095 = vmatmul.bf16.gmra.mxu0 %v7946
  %v8096 = vpop.f32.mrf.mxu0
  %v8097 = vadd.f32 0.0, %v8096
  %v8098 = vpop.f32.mrf.mxu0
  %v8099 = vadd.f32 0.0, %v8098
  %8100 = vmatmul.bf16.gmra.mxu0 %v7949
  %v8101 = vpop.f32.mrf.mxu0
  %v8102 = vadd.f32 0.0, %v8101
  %v8103 = vpop.f32.mrf.mxu0
  %v8104 = vadd.f32 0.0, %v8103
  %8105 = vmatmul.bf16.gmra.mxu0 %v7952
  %v8106 = vpop.f32.mrf.mxu0
  %v8107 = vadd.f32 0.0, %v8106
  %v8108 = vpop.f32.mrf.mxu0
  %v8109 = vadd.f32 0.0, %v8108
  %8110 = vmatmul.bf16.gmra.mxu0 %v7955
  %v8111 = vpop.f32.mrf.mxu0
  %v8112 = vadd.f32 0.0, %v8111
  %v8113 = vpop.f32.mrf.mxu0
  %v8114 = vadd.f32 0.0, %v8113
  %8115 = vmatmul.bf16.gmra.mxu0 %v7958
  %v8116 = vpop.f32.mrf.mxu0
  %v8117 = vadd.f32 0.0, %v8116
  %v8118 = vpop.f32.mrf.mxu0
  %v8119 = vadd.f32 0.0, %v8118
  %8120 = vmatmul.bf16.gmra.mxu0 %v7961
  %v8121 = vpop.f32.mrf.mxu0
  %v8122 = vadd.f32 0.0, %v8121
  %v8123 = vpop.f32.mrf.mxu0
  %v8124 = vadd.f32 0.0, %v8123
  %8125 = vmatmul.bf16.gmra.mxu0 %v7964
  %v8126 = vpop.f32.mrf.mxu0
  %v8127 = vadd.f32 0.0, %v8126
  %v8128 = vpop.f32.mrf.mxu0
  %v8129 = vadd.f32 0.0, %v8128
  %8130 = vmatmul.bf16.gmra.mxu0 %v7967
  %v8131 = vpop.f32.mrf.mxu0
  %v8132 = vadd.f32 0.0, %v8131
  %v8133 = vpop.f32.mrf.mxu0
  %v8134 = vadd.f32 0.0, %v8133
  %8135 = vmatmul.bf16.gmra.mxu0 %v7970
  %v8136 = vpop.f32.mrf.mxu0
  %v8137 = vadd.f32 0.0, %v8136
  %v8138 = vpop.f32.mrf.mxu0
  %v8139 = vadd.f32 0.0, %v8138
  %8140 = vmatmul.bf16.gmra.mxu0 %v7973
  %v8141 = vpop.f32.mrf.mxu0
  %v8142 = vadd.f32 0.0, %v8141
  %v8143 = vpop.f32.mrf.mxu0
  %v8144 = vadd.f32 0.0, %v8143
  %8145 = vmatmul.bf16.gmra.mxu0 %v7976
  %v8146 = vpop.f32.mrf.mxu0
  %v8147 = vadd.f32 0.0, %v8146
  %v8148 = vpop.f32.mrf.mxu0
  %v8149 = vadd.f32 0.0, %v8148
  %8150 = vdwg.mxu0
  %v8151 = vld [vmem:[%s5] sm:$0x1]
  %v8152 = vld [vmem:[%s6] sm:$0x1]
  %v8153 = vsel %vm3841, %v7992, 0.0
  %v8154 = vsel %vm3841, %v7994, 0.0
  %v8155 = vadd.f32 %v8153, %v8154
  %v8156 = vsel %vm3841, %v7997, 0.0
  %v8157 = vadd.f32 %v8155, %v8156
  %v8158 = vsel %vm3841, %v7999, 0.0
  %v8159 = vadd.f32 %v8157, %v8158
  %v8160 = vsel %vm3841, %v8002, 0.0
  %v8161 = vadd.f32 %v8159, %v8160
  %v8162 = vsel %vm3841, %v8004, 0.0
  %v8163 = vadd.f32 %v8161, %v8162
  %v8164 = vsel %vm3841, %v8007, 0.0
  %v8165 = vadd.f32 %v8163, %v8164
  %v8166 = vsel %vm3841, %v8009, 0.0
  %v8167 = vadd.f32 %v8165, %v8166
  %v8168 = vsel %vm3841, %v8012, 0.0
  %v8169 = vadd.f32 %v8167, %v8168
  %v8170 = vsel %vm3841, %v8014, 0.0
  %v8171 = vadd.f32 %v8169, %v8170
  %v8172 = vsel %vm3841, %v8017, 0.0
  %v8173 = vadd.f32 %v8171, %v8172
  %v8174 = vsel %vm3841, %v8019, 0.0
  %v8175 = vadd.f32 %v8173, %v8174
  %v8176 = vsel %vm3841, %v8022, 0.0
  %v8177 = vadd.f32 %v8175, %v8176
  %v8178 = vsel %vm3841, %v8024, 0.0
  %v8179 = vadd.f32 %v8177, %v8178
  %v8180 = vsel %vm3841, %v8027, 0.0
  %v8181 = vadd.f32 %v8179, %v8180
  %v8182 = vsel %vm3841, %v8029, 0.0
  %v8183 = vadd.f32 %v8181, %v8182
  %v8184 = vsel %vm3841, %v8032, 0.0
  %v8185 = vadd.f32 %v8183, %v8184
  %v8186 = vsel %vm3841, %v8034, 0.0
  %v8187 = vadd.f32 %v8185, %v8186
  %v8188 = vsel %vm3841, %v8037, 0.0
  %v8189 = vadd.f32 %v8187, %v8188
  %v8190 = vsel %vm3841, %v8039, 0.0
  %v8191 = vadd.f32 %v8189, %v8190
  %v8192 = vsel %vm3841, %v8042, 0.0
  %v8193 = vadd.f32 %v8191, %v8192
  %v8194 = vsel %vm3841, %v8044, 0.0
  %v8195 = vadd.f32 %v8193, %v8194
  %v8196 = vsel %vm3841, %v8047, 0.0
  %v8197 = vadd.f32 %v8195, %v8196
  %v8198 = vsel %vm3841, %v8049, 0.0
  %v8199 = vadd.f32 %v8197, %v8198
  %v8200 = vsel %vm3841, %v8052, 0.0
  %v8201 = vadd.f32 %v8199, %v8200
  %v8202 = vsel %vm3841, %v8054, 0.0
  %v8203 = vadd.f32 %v8201, %v8202
  %v8204 = vsel %vm3841, %v8057, 0.0
  %v8205 = vadd.f32 %v8203, %v8204
  %v8206 = vsel %vm3841, %v8059, 0.0
  %v8207 = vadd.f32 %v8205, %v8206
  %v8208 = vsel %vm3841, %v8062, 0.0
  %v8209 = vadd.f32 %v8207, %v8208
  %v8210 = vsel %vm3841, %v8064, 0.0
  %v8211 = vadd.f32 %v8209, %v8210
  %v8212 = vsel %vm3841, %v8067, 0.0
  %v8213 = vadd.f32 %v8211, %v8212
  %v8214 = vsel %vm3841, %v8069, 0.0
  %v8215 = vadd.f32 %v8213, %v8214
  %v8216 = vsel %vm3841, %v8072, 0.0
  %v8217 = vadd.f32 %v8215, %v8216
  %v8218 = vsel %vm3841, %v8074, 0.0
  %v8219 = vadd.f32 %v8217, %v8218
  %v8220 = vsel %vm3841, %v8077, 0.0
  %v8221 = vadd.f32 %v8219, %v8220
  %v8222 = vsel %vm3841, %v8079, 0.0
  %v8223 = vadd.f32 %v8221, %v8222
  %v8224 = vsel %vm3841, %v8082, 0.0
  %v8225 = vadd.f32 %v8223, %v8224
  %v8226 = vsel %vm3841, %v8084, 0.0
  %v8227 = vadd.f32 %v8225, %v8226
  %v8228 = vsel %vm3841, %v8087, 0.0
  %v8229 = vadd.f32 %v8227, %v8228
  %v8230 = vsel %vm3841, %v8089, 0.0
  %v8231 = vadd.f32 %v8229, %v8230
  %v8232 = vsel %vm3841, %v8092, 0.0
  %v8233 = vadd.f32 %v8231, %v8232
  %v8234 = vsel %vm3841, %v8094, 0.0
  %v8235 = vadd.f32 %v8233, %v8234
  %v8236 = vsel %vm3841, %v8097, 0.0
  %v8237 = vadd.f32 %v8235, %v8236
  %v8238 = vsel %vm3841, %v8099, 0.0
  %v8239 = vadd.f32 %v8237, %v8238
  %v8240 = vsel %vm3841, %v8102, 0.0
  %v8241 = vadd.f32 %v8239, %v8240
  %v8242 = vsel %vm3841, %v8104, 0.0
  %v8243 = vadd.f32 %v8241, %v8242
  %v8244 = vsel %vm3841, %v8107, 0.0
  %v8245 = vadd.f32 %v8243, %v8244
  %v8246 = vsel %vm3841, %v8109, 0.0
  %v8247 = vadd.f32 %v8245, %v8246
  %v8248 = vsel %vm3841, %v8112, 0.0
  %v8249 = vadd.f32 %v8247, %v8248
  %v8250 = vsel %vm3841, %v8114, 0.0
  %v8251 = vadd.f32 %v8249, %v8250
  %v8252 = vsel %vm3841, %v8117, 0.0
  %v8253 = vadd.f32 %v8251, %v8252
  %v8254 = vsel %vm3841, %v8119, 0.0
  %v8255 = vadd.f32 %v8253, %v8254
  %v8256 = vsel %vm3841, %v8122, 0.0
  %v8257 = vadd.f32 %v8255, %v8256
  %v8258 = vsel %vm3841, %v8124, 0.0
  %v8259 = vadd.f32 %v8257, %v8258
  %v8260 = vsel %vm3841, %v8127, 0.0
  %v8261 = vadd.f32 %v8259, %v8260
  %v8262 = vsel %vm3841, %v8129, 0.0
  %v8263 = vadd.f32 %v8261, %v8262
  %v8264 = vsel %vm3841, %v8132, 0.0
  %v8265 = vadd.f32 %v8263, %v8264
  %v8266 = vsel %vm3841, %v8134, 0.0
  %v8267 = vadd.f32 %v8265, %v8266
  %v8268 = vsel %vm3841, %v8137, 0.0
  %v8269 = vadd.f32 %v8267, %v8268
  %v8270 = vsel %vm3841, %v8139, 0.0
  %v8271 = vadd.f32 %v8269, %v8270
  %v8272 = vsel %vm3841, %v8142, 0.0
  %v8273 = vadd.f32 %v8271, %v8272
  %v8274 = vsel %vm3841, %v8144, 0.0
  %v8275 = vadd.f32 %v8273, %v8274
  %v8276 = vsel %vm3841, %v8147, 0.0
  %v8277 = vadd.f32 %v8275, %v8276
  %v8278 = vsel %vm3841, %v8149, 0.0
  %v8279 = vadd.f32 %v8277, %v8278
  %v8280 = vrot.slane %v8279, 4
  %v8281 = vadd.f32 %v8279, %v8280
  %v8282 = vrot.slane %v8281, 2
  %v8283 = vadd.f32 %v8281, %v8282
  %v8284 = vrot.slane %v8283, 1
  %v8285 = vadd.f32 %v8283, %v8284
  %v8286 = vmul.f32 %v8285, 0.001953125
  %v8287 = vmul.f32 %v7992, %v7992
  %v8288 = vmul.f32 %v7994, %v7994
  %v8289 = vmul.f32 %v7997, %v7997
  %v8290 = vmul.f32 %v7999, %v7999
  %v8291 = vmul.f32 %v8002, %v8002
  %v8292 = vmul.f32 %v8004, %v8004
  %v8293 = vmul.f32 %v8007, %v8007
  %v8294 = vmul.f32 %v8009, %v8009
  %v8295 = vmul.f32 %v8012, %v8012
  %v8296 = vmul.f32 %v8014, %v8014
  %v8297 = vmul.f32 %v8017, %v8017
  %v8298 = vmul.f32 %v8019, %v8019
  %v8299 = vmul.f32 %v8022, %v8022
  %v8300 = vmul.f32 %v8024, %v8024
  %v8301 = vmul.f32 %v8027, %v8027
  %v8302 = vmul.f32 %v8029, %v8029
  %v8303 = vmul.f32 %v8032, %v8032
  %v8304 = vmul.f32 %v8034, %v8034
  %v8305 = vmul.f32 %v8037, %v8037
  %v8306 = vmul.f32 %v8039, %v8039
  %v8307 = vmul.f32 %v8042, %v8042
  %v8308 = vmul.f32 %v8044, %v8044
  %v8309 = vmul.f32 %v8047, %v8047
  %v8310 = vmul.f32 %v8049, %v8049
  %v8311 = vmul.f32 %v8052, %v8052
  %v8312 = vmul.f32 %v8054, %v8054
  %v8313 = vmul.f32 %v8057, %v8057
  %v8314 = vmul.f32 %v8059, %v8059
  %v8315 = vmul.f32 %v8062, %v8062
  %v8316 = vmul.f32 %v8064, %v8064
  %v8317 = vmul.f32 %v8067, %v8067
  %v8318 = vmul.f32 %v8069, %v8069
  %v8319 = vmul.f32 %v8072, %v8072
  %v8320 = vmul.f32 %v8074, %v8074
  %v8321 = vmul.f32 %v8077, %v8077
  %v8322 = vmul.f32 %v8079, %v8079
  %v8323 = vmul.f32 %v8082, %v8082
  %v8324 = vmul.f32 %v8084, %v8084
  %v8325 = vmul.f32 %v8087, %v8087
  %v8326 = vmul.f32 %v8089, %v8089
  %v8327 = vmul.f32 %v8092, %v8092
  %v8328 = vmul.f32 %v8094, %v8094
  %v8329 = vmul.f32 %v8097, %v8097
  %v8330 = vmul.f32 %v8099, %v8099
  %v8331 = vmul.f32 %v8102, %v8102
  %v8332 = vmul.f32 %v8104, %v8104
  %v8333 = vmul.f32 %v8107, %v8107
  %v8334 = vmul.f32 %v8109, %v8109
  %v8335 = vmul.f32 %v8112, %v8112
  %v8336 = vmul.f32 %v8114, %v8114
  %v8337 = vmul.f32 %v8117, %v8117
  %v8338 = vmul.f32 %v8119, %v8119
  %v8339 = vmul.f32 %v8122, %v8122
  %v8340 = vmul.f32 %v8124, %v8124
  %v8341 = vmul.f32 %v8127, %v8127
  %v8342 = vmul.f32 %v8129, %v8129
  %v8343 = vmul.f32 %v8132, %v8132
  %v8344 = vmul.f32 %v8134, %v8134
  %v8345 = vmul.f32 %v8137, %v8137
  %v8346 = vmul.f32 %v8139, %v8139
  %v8347 = vmul.f32 %v8142, %v8142
  %v8348 = vmul.f32 %v8144, %v8144
  %v8349 = vmul.f32 %v8147, %v8147
  %v8350 = vmul.f32 %v8149, %v8149
  %v8351 = vsel %vm3841, %v8287, 0.0
  %v8352 = vsel %vm3841, %v8288, 0.0
  %v8353 = vadd.f32 %v8351, %v8352
  %v8354 = vsel %vm3841, %v8289, 0.0
  %v8355 = vadd.f32 %v8353, %v8354
  %v8356 = vsel %vm3841, %v8290, 0.0
  %v8357 = vadd.f32 %v8355, %v8356
  %v8358 = vsel %vm3841, %v8291, 0.0
  %v8359 = vadd.f32 %v8357, %v8358
  %v8360 = vsel %vm3841, %v8292, 0.0
  %v8361 = vadd.f32 %v8359, %v8360
  %v8362 = vsel %vm3841, %v8293, 0.0
  %v8363 = vadd.f32 %v8361, %v8362
  %v8364 = vsel %vm3841, %v8294, 0.0
  %v8365 = vadd.f32 %v8363, %v8364
  %v8366 = vsel %vm3841, %v8295, 0.0
  %v8367 = vadd.f32 %v8365, %v8366
  %v8368 = vsel %vm3841, %v8296, 0.0
  %v8369 = vadd.f32 %v8367, %v8368
  %v8370 = vsel %vm3841, %v8297, 0.0
  %v8371 = vadd.f32 %v8369, %v8370
  %v8372 = vsel %vm3841, %v8298, 0.0
  %v8373 = vadd.f32 %v8371, %v8372
  %v8374 = vsel %vm3841, %v8299, 0.0
  %v8375 = vadd.f32 %v8373, %v8374
  %v8376 = vsel %vm3841, %v8300, 0.0
  %v8377 = vadd.f32 %v8375, %v8376
  %v8378 = vsel %vm3841, %v8301, 0.0
  %v8379 = vadd.f32 %v8377, %v8378
  %v8380 = vsel %vm3841, %v8302, 0.0
  %v8381 = vadd.f32 %v8379, %v8380
  %v8382 = vsel %vm3841, %v8303, 0.0
  %v8383 = vadd.f32 %v8381, %v8382
  %v8384 = vsel %vm3841, %v8304, 0.0
  %v8385 = vadd.f32 %v8383, %v8384
  %v8386 = vsel %vm3841, %v8305, 0.0
  %v8387 = vadd.f32 %v8385, %v8386
  %v8388 = vsel %vm3841, %v8306, 0.0
  %v8389 = vadd.f32 %v8387, %v8388
  %v8390 = vsel %vm3841, %v8307, 0.0
  %v8391 = vadd.f32 %v8389, %v8390
  %v8392 = vsel %vm3841, %v8308, 0.0
  %v8393 = vadd.f32 %v8391, %v8392
  %v8394 = vsel %vm3841, %v8309, 0.0
  %v8395 = vadd.f32 %v8393, %v8394
  %v8396 = vsel %vm3841, %v8310, 0.0
  %v8397 = vadd.f32 %v8395, %v8396
  %v8398 = vsel %vm3841, %v8311, 0.0
  %v8399 = vadd.f32 %v8397, %v8398
  %v8400 = vsel %vm3841, %v8312, 0.0
  %v8401 = vadd.f32 %v8399, %v8400
  %v8402 = vsel %vm3841, %v8313, 0.0
  %v8403 = vadd.f32 %v8401, %v8402
  %v8404 = vsel %vm3841, %v8314, 0.0
  %v8405 = vadd.f32 %v8403, %v8404
  %v8406 = vsel %vm3841, %v8315, 0.0
  %v8407 = vadd.f32 %v8405, %v8406
  %v8408 = vsel %vm3841, %v8316, 0.0
  %v8409 = vadd.f32 %v8407, %v8408
  %v8410 = vsel %vm3841, %v8317, 0.0
  %v8411 = vadd.f32 %v8409, %v8410
  %v8412 = vsel %vm3841, %v8318, 0.0
  %v8413 = vadd.f32 %v8411, %v8412
  %v8414 = vsel %vm3841, %v8319, 0.0
  %v8415 = vadd.f32 %v8413, %v8414
  %v8416 = vsel %vm3841, %v8320, 0.0
  %v8417 = vadd.f32 %v8415, %v8416
  %v8418 = vsel %vm3841, %v8321, 0.0
  %v8419 = vadd.f32 %v8417, %v8418
  %v8420 = vsel %vm3841, %v8322, 0.0
  %v8421 = vadd.f32 %v8419, %v8420
  %v8422 = vsel %vm3841, %v8323, 0.0
  %v8423 = vadd.f32 %v8421, %v8422
  %v8424 = vsel %vm3841, %v8324, 0.0
  %v8425 = vadd.f32 %v8423, %v8424
  %v8426 = vsel %vm3841, %v8325, 0.0
  %v8427 = vadd.f32 %v8425, %v8426
  %v8428 = vsel %vm3841, %v8326, 0.0
  %v8429 = vadd.f32 %v8427, %v8428
  %v8430 = vsel %vm3841, %v8327, 0.0
  %v8431 = vadd.f32 %v8429, %v8430
  %v8432 = vsel %vm3841, %v8328, 0.0
  %v8433 = vadd.f32 %v8431, %v8432
  %v8434 = vsel %vm3841, %v8329, 0.0
  %v8435 = vadd.f32 %v8433, %v8434
  %v8436 = vsel %vm3841, %v8330, 0.0
  %v8437 = vadd.f32 %v8435, %v8436
  %v8438 = vsel %vm3841, %v8331, 0.0
  %v8439 = vadd.f32 %v8437, %v8438
  %v8440 = vsel %vm3841, %v8332, 0.0
  %v8441 = vadd.f32 %v8439, %v8440
  %v8442 = vsel %vm3841, %v8333, 0.0
  %v8443 = vadd.f32 %v8441, %v8442
  %v8444 = vsel %vm3841, %v8334, 0.0
  %v8445 = vadd.f32 %v8443, %v8444
  %v8446 = vsel %vm3841, %v8335, 0.0
  %v8447 = vadd.f32 %v8445, %v8446
  %v8448 = vsel %vm3841, %v8336, 0.0
  %v8449 = vadd.f32 %v8447, %v8448
  %v8450 = vsel %vm3841, %v8337, 0.0
  %v8451 = vadd.f32 %v8449, %v8450
  %v8452 = vsel %vm3841, %v8338, 0.0
  %v8453 = vadd.f32 %v8451, %v8452
  %v8454 = vsel %vm3841, %v8339, 0.0
  %v8455 = vadd.f32 %v8453, %v8454
  %v8456 = vsel %vm3841, %v8340, 0.0
  %v8457 = vadd.f32 %v8455, %v8456
  %v8458 = vsel %vm3841, %v8341, 0.0
  %v8459 = vadd.f32 %v8457, %v8458
  %v8460 = vsel %vm3841, %v8342, 0.0
  %v8461 = vadd.f32 %v8459, %v8460
  %v8462 = vsel %vm3841, %v8343, 0.0
  %v8463 = vadd.f32 %v8461, %v8462
  %v8464 = vsel %vm3841, %v8344, 0.0
  %v8465 = vadd.f32 %v8463, %v8464
  %v8466 = vsel %vm3841, %v8345, 0.0
  %v8467 = vadd.f32 %v8465, %v8466
  %v8468 = vsel %vm3841, %v8346, 0.0
  %v8469 = vadd.f32 %v8467, %v8468
  %v8470 = vsel %vm3841, %v8347, 0.0
  %v8471 = vadd.f32 %v8469, %v8470
  %v8472 = vsel %vm3841, %v8348, 0.0
  %v8473 = vadd.f32 %v8471, %v8472
  %v8474 = vsel %vm3841, %v8349, 0.0
  %v8475 = vadd.f32 %v8473, %v8474
  %v8476 = vsel %vm3841, %v8350, 0.0
  %v8477 = vadd.f32 %v8475, %v8476
  %v8478 = vrot.slane %v8477, 4
  %v8479 = vadd.f32 %v8477, %v8478
  %v8480 = vrot.slane %v8479, 2
  %v8481 = vadd.f32 %v8479, %v8480
  %v8482 = vrot.slane %v8481, 1
  %v8483 = vadd.f32 %v8481, %v8482
  %v8484 = vmul.f32 %v8483, 0.001953125
  %v8485 = vmul.f32 %v8286, %v8286
  %v8486 = vsub.f32 %v8484, %v8485
  %v8487 = vadd.f32 %v8486, 1e-05
  %v8488 = vrsqrt.pop %v8487
  %v8489 = vmul.f32 %v8488, %v8487
  %v8490 = vmul.f32 %v8489, %v8488
  %v8491 = vmul.f32 0.5, %v8490
  %v8492 = vsub.f32 1.5, %v8491
  %v8493 = vmul.f32 %v8488, %v8492
  %vm8494 = vweird.f32 %v8487
  %vm8495 = vweird.f32 %v8488
  %vm8496 = vmor %vm8494, %vm8495
  %v8497 = vsel %vm8496, %v8488, %v8493
  %v8498 = vmul.f32 %v8151, %v8497
  %v8499 = vmul.f32 %v8498, %v8286
  %v8500 = vsub.f32 %v8152, %v8499
  %v8502 = vperm.slane %v8498, 0
  %v8504 = vmul.f32 %v7992, %v8502
  %v8505 = vmul.f32 %v7994, %v8502
  %v8506 = vmul.f32 %v7997, %v8502
  %v8507 = vmul.f32 %v7999, %v8502
  %v8508 = vmul.f32 %v8002, %v8502
  %v8509 = vmul.f32 %v8004, %v8502
  %v8510 = vmul.f32 %v8007, %v8502
  %v8511 = vmul.f32 %v8009, %v8502
  %v8512 = vmul.f32 %v8012, %v8502
  %v8513 = vmul.f32 %v8014, %v8502
  %v8514 = vmul.f32 %v8017, %v8502
  %v8515 = vmul.f32 %v8019, %v8502
  %v8516 = vmul.f32 %v8022, %v8502
  %v8517 = vmul.f32 %v8024, %v8502
  %v8518 = vmul.f32 %v8027, %v8502
  %v8519 = vmul.f32 %v8029, %v8502
  %v8520 = vmul.f32 %v8032, %v8502
  %v8521 = vmul.f32 %v8034, %v8502
  %v8522 = vmul.f32 %v8037, %v8502
  %v8523 = vmul.f32 %v8039, %v8502
  %v8524 = vmul.f32 %v8042, %v8502
  %v8525 = vmul.f32 %v8044, %v8502
  %v8526 = vmul.f32 %v8047, %v8502
  %v8527 = vmul.f32 %v8049, %v8502
  %v8528 = vmul.f32 %v8052, %v8502
  %v8529 = vmul.f32 %v8054, %v8502
  %v8530 = vmul.f32 %v8057, %v8502
  %v8531 = vmul.f32 %v8059, %v8502
  %v8532 = vmul.f32 %v8062, %v8502
  %v8533 = vmul.f32 %v8064, %v8502
  %v8534 = vmul.f32 %v8067, %v8502
  %v8535 = vmul.f32 %v8069, %v8502
  %v8536 = vmul.f32 %v8072, %v8502
  %v8537 = vmul.f32 %v8074, %v8502
  %v8538 = vmul.f32 %v8077, %v8502
  %v8539 = vmul.f32 %v8079, %v8502
  %v8540 = vmul.f32 %v8082, %v8502
  %v8541 = vmul.f32 %v8084, %v8502
  %v8542 = vmul.f32 %v8087, %v8502
  %v8543 = vmul.f32 %v8089, %v8502
  %v8544 = vmul.f32 %v8092, %v8502
  %v8545 = vmul.f32 %v8094, %v8502
  %v8546 = vmul.f32 %v8097, %v8502
  %v8547 = vmul.f32 %v8099, %v8502
  %v8548 = vmul.f32 %v8102, %v8502
  %v8549 = vmul.f32 %v8104, %v8502
  %v8550 = vmul.f32 %v8107, %v8502
  %v8551 = vmul.f32 %v8109, %v8502
  %v8552 = vmul.f32 %v8112, %v8502
  %v8553 = vmul.f32 %v8114, %v8502
  %v8554 = vmul.f32 %v8117, %v8502
  %v8555 = vmul.f32 %v8119, %v8502
  %v8556 = vmul.f32 %v8122, %v8502
  %v8557 = vmul.f32 %v8124, %v8502
  %v8558 = vmul.f32 %v8127, %v8502
  %v8559 = vmul.f32 %v8129, %v8502
  %v8560 = vmul.f32 %v8132, %v8502
  %v8561 = vmul.f32 %v8134, %v8502
  %v8562 = vmul.f32 %v8137, %v8502
  %v8563 = vmul.f32 %v8139, %v8502
  %v8564 = vmul.f32 %v8142, %v8502
  %v8565 = vmul.f32 %v8144, %v8502
  %v8566 = vmul.f32 %v8147, %v8502
  %v8567 = vmul.f32 %v8149, %v8502
  %v8569 = vperm.slane %v8500, 0
  %v8571 = vadd.f32 %v8504, %v8569
  %v8572 = vadd.f32 %v8505, %v8569
  %v8573 = vadd.f32 %v8506, %v8569
  %v8574 = vadd.f32 %v8507, %v8569
  %v8575 = vadd.f32 %v8508, %v8569
  %v8576 = vadd.f32 %v8509, %v8569
  %v8577 = vadd.f32 %v8510, %v8569
  %v8578 = vadd.f32 %v8511, %v8569
  %v8579 = vadd.f32 %v8512, %v8569
  %v8580 = vadd.f32 %v8513, %v8569
  %v8581 = vadd.f32 %v8514, %v8569
  %v8582 = vadd.f32 %v8515, %v8569
  %v8583 = vadd.f32 %v8516, %v8569
  %v8584 = vadd.f32 %v8517, %v8569
  %v8585 = vadd.f32 %v8518, %v8569
  %v8586 = vadd.f32 %v8519, %v8569
  %v8587 = vadd.f32 %v8520, %v8569
  %v8588 = vadd.f32 %v8521, %v8569
  %v8589 = vadd.f32 %v8522, %v8569
  %v8590 = vadd.f32 %v8523, %v8569
  %v8591 = vadd.f32 %v8524, %v8569
  %v8592 = vadd.f32 %v8525, %v8569
  %v8593 = vadd.f32 %v8526, %v8569
  %v8594 = vadd.f32 %v8527, %v8569
  %v8595 = vadd.f32 %v8528, %v8569
  %v8596 = vadd.f32 %v8529, %v8569
  %v8597 = vadd.f32 %v8530, %v8569
  %v8598 = vadd.f32 %v8531, %v8569
  %v8599 = vadd.f32 %v8532, %v8569
  %v8600 = vadd.f32 %v8533, %v8569
  %v8601 = vadd.f32 %v8534, %v8569
  %v8602 = vadd.f32 %v8535, %v8569
  %v8603 = vadd.f32 %v8536, %v8569
  %v8604 = vadd.f32 %v8537, %v8569
  %v8605 = vadd.f32 %v8538, %v8569
  %v8606 = vadd.f32 %v8539, %v8569
  %v8607 = vadd.f32 %v8540, %v8569
  %v8608 = vadd.f32 %v8541, %v8569
  %v8609 = vadd.f32 %v8542, %v8569
  %v8610 = vadd.f32 %v8543, %v8569
  %v8611 = vadd.f32 %v8544, %v8569
  %v8612 = vadd.f32 %v8545, %v8569
  %v8613 = vadd.f32 %v8546, %v8569
  %v8614 = vadd.f32 %v8547, %v8569
  %v8615 = vadd.f32 %v8548, %v8569
  %v8616 = vadd.f32 %v8549, %v8569
  %v8617 = vadd.f32 %v8550, %v8569
  %v8618 = vadd.f32 %v8551, %v8569
  %v8619 = vadd.f32 %v8552, %v8569
  %v8620 = vadd.f32 %v8553, %v8569
  %v8621 = vadd.f32 %v8554, %v8569
  %v8622 = vadd.f32 %v8555, %v8569
  %v8623 = vadd.f32 %v8556, %v8569
  %v8624 = vadd.f32 %v8557, %v8569
  %v8625 = vadd.f32 %v8558, %v8569
  %v8626 = vadd.f32 %v8559, %v8569
  %v8627 = vadd.f32 %v8560, %v8569
  %v8628 = vadd.f32 %v8561, %v8569
  %v8629 = vadd.f32 %v8562, %v8569
  %v8630 = vadd.f32 %v8563, %v8569
  %v8631 = vadd.f32 %v8564, %v8569
  %v8632 = vadd.f32 %v8565, %v8569
  %v8633 = vadd.f32 %v8566, %v8569
  %v8634 = vadd.f32 %v8567, %v8569
  %v8635 = vmax.f32 %v8571, 0.0
  %v8636 = vmax.f32 %v8572, 0.0
  %v8637 = vmax.f32 %v8573, 0.0
  %v8638 = vmax.f32 %v8574, 0.0
  %v8639 = vmax.f32 %v8575, 0.0
  %v8640 = vmax.f32 %v8576, 0.0
  %v8641 = vmax.f32 %v8577, 0.0
  %v8642 = vmax.f32 %v8578, 0.0
  %v8643 = vmax.f32 %v8579, 0.0
  %v8644 = vmax.f32 %v8580, 0.0
  %v8645 = vmax.f32 %v8581, 0.0
  %v8646 = vmax.f32 %v8582, 0.0
  %v8647 = vmax.f32 %v8583, 0.0
  %v8648 = vmax.f32 %v8584, 0.0
  %v8649 = vmax.f32 %v8585, 0.0
  %v8650 = vmax.f32 %v8586, 0.0
  %v8651 = vmax.f32 %v8587, 0.0
  %v8652 = vmax.f32 %v8588, 0.0
  %v8653 = vmax.f32 %v8589, 0.0
  %v8654 = vmax.f32 %v8590, 0.0
  %v8655 = vmax.f32 %v8591, 0.0
  %v8656 = vmax.f32 %v8592, 0.0
  %v8657 = vmax.f32 %v8593, 0.0
  %v8658 = vmax.f32 %v8594, 0.0
  %v8659 = vmax.f32 %v8595, 0.0
  %v8660 = vmax.f32 %v8596, 0.0
  %v8661 = vmax.f32 %v8597, 0.0
  %v8662 = vmax.f32 %v8598, 0.0
  %v8663 = vmax.f32 %v8599, 0.0
  %v8664 = vmax.f32 %v8600, 0.0
  %v8665 = vmax.f32 %v8601, 0.0
  %v8666 = vmax.f32 %v8602, 0.0
  %v8667 = vmax.f32 %v8603, 0.0
  %v8668 = vmax.f32 %v8604, 0.0
  %v8669 = vmax.f32 %v8605, 0.0
  %v8670 = vmax.f32 %v8606, 0.0
  %v8671 = vmax.f32 %v8607, 0.0
  %v8672 = vmax.f32 %v8608, 0.0
  %v8673 = vmax.f32 %v8609, 0.0
  %v8674 = vmax.f32 %v8610, 0.0
  %v8675 = vmax.f32 %v8611, 0.0
  %v8676 = vmax.f32 %v8612, 0.0
  %v8677 = vmax.f32 %v8613, 0.0
  %v8678 = vmax.f32 %v8614, 0.0
  %v8679 = vmax.f32 %v8615, 0.0
  %v8680 = vmax.f32 %v8616, 0.0
  %v8681 = vmax.f32 %v8617, 0.0
  %v8682 = vmax.f32 %v8618, 0.0
  %v8683 = vmax.f32 %v8619, 0.0
  %v8684 = vmax.f32 %v8620, 0.0
  %v8685 = vmax.f32 %v8621, 0.0
  %v8686 = vmax.f32 %v8622, 0.0
  %v8687 = vmax.f32 %v8623, 0.0
  %v8688 = vmax.f32 %v8624, 0.0
  %v8689 = vmax.f32 %v8625, 0.0
  %v8690 = vmax.f32 %v8626, 0.0
  %v8691 = vmax.f32 %v8627, 0.0
  %v8692 = vmax.f32 %v8628, 0.0
  %v8693 = vmax.f32 %v8629, 0.0
  %v8694 = vmax.f32 %v8630, 0.0
  %v8695 = vmax.f32 %v8631, 0.0
  %v8696 = vmax.f32 %v8632, 0.0
  %v8697 = vmax.f32 %v8633, 0.0
  %v8698 = vmax.f32 %v8634, 0.0
  %8699 = vst.msk [vmem:[%s7] sm:$0xff] %vm3841, %v8635
  %8700 = vst.msk [vmem:[%s7 + $0x8] sm:$0xff] %vm3841, %v8636
  %8701 = vst.msk [vmem:[%s7 + $0x10] sm:$0xff] %vm3841, %v8637
  %8702 = vst.msk [vmem:[%s7 + $0x18] sm:$0xff] %vm3841, %v8638
  %8703 = vst.msk [vmem:[%s7 + $0x20] sm:$0xff] %vm3841, %v8639
  %8704 = vst.msk [vmem:[%s7 + $0x28] sm:$0xff] %vm3841, %v8640
  %8705 = vst.msk [vmem:[%s7 + $0x30] sm:$0xff] %vm3841, %v8641
  %8706 = vst.msk [vmem:[%s7 + $0x38] sm:$0xff] %vm3841, %v8642
  %8707 = vst.msk [vmem:[%s7 + $0x40] sm:$0xff] %vm3841, %v8643
  %8708 = vst.msk [vmem:[%s7 + $0x48] sm:$0xff] %vm3841, %v8644
  %8709 = vst.msk [vmem:[%s7 + $0x50] sm:$0xff] %vm3841, %v8645
  %8710 = vst.msk [vmem:[%s7 + $0x58] sm:$0xff] %vm3841, %v8646
  %8711 = vst.msk [vmem:[%s7 + $0x60] sm:$0xff] %vm3841, %v8647
  %8712 = vst.msk [vmem:[%s7 + $0x68] sm:$0xff] %vm3841, %v8648
  %8713 = vst.msk [vmem:[%s7 + $0x70] sm:$0xff] %vm3841, %v8649
  %8714 = vst.msk [vmem:[%s7 + $0x78] sm:$0xff] %vm3841, %v8650
  %8715 = vst.msk [vmem:[%s7 + $0x80] sm:$0xff] %vm3841, %v8651
  %8716 = vst.msk [vmem:[%s7 + $0x88] sm:$0xff] %vm3841, %v8652
  %8717 = vst.msk [vmem:[%s7 + $0x90] sm:$0xff] %vm3841, %v8653
  %8718 = vst.msk [vmem:[%s7 + $0x98] sm:$0xff] %vm3841, %v8654
  %8719 = vst.msk [vmem:[%s7 + $0xa0] sm:$0xff] %vm3841, %v8655
  %8720 = vst.msk [vmem:[%s7 + $0xa8] sm:$0xff] %vm3841, %v8656
  %8721 = vst.msk [vmem:[%s7 + $0xb0] sm:$0xff] %vm3841, %v8657
  %8722 = vst.msk [vmem:[%s7 + $0xb8] sm:$0xff] %vm3841, %v8658
  %8723 = vst.msk [vmem:[%s7 + $0xc0] sm:$0xff] %vm3841, %v8659
  %8724 = vst.msk [vmem:[%s7 + $0xc8] sm:$0xff] %vm3841, %v8660
  %8725 = vst.msk [vmem:[%s7 + $0xd0] sm:$0xff] %vm3841, %v8661
  %8726 = vst.msk [vmem:[%s7 + $0xd8] sm:$0xff] %vm3841, %v8662
  %8727 = vst.msk [vmem:[%s7 + $0xe0] sm:$0xff] %vm3841, %v8663
  %8728 = vst.msk [vmem:[%s7 + $0xe8] sm:$0xff] %vm3841, %v8664
  %8729 = vst.msk [vmem:[%s7 + $0xf0] sm:$0xff] %vm3841, %v8665
  %8730 = vst.msk [vmem:[%s7 + $0xf8] sm:$0xff] %vm3841, %v8666
  %8731 = vst.msk [vmem:[%s7 + $0x100] sm:$0xff] %vm3841, %v8667
  %8732 = vst.msk [vmem:[%s7 + $0x108] sm:$0xff] %vm3841, %v8668
  %8733 = vst.msk [vmem:[%s7 + $0x110] sm:$0xff] %vm3841, %v8669
  %8734 = vst.msk [vmem:[%s7 + $0x118] sm:$0xff] %vm3841, %v8670
  %8735 = vst.msk [vmem:[%s7 + $0x120] sm:$0xff] %vm3841, %v8671
  %8736 = vst.msk [vmem:[%s7 + $0x128] sm:$0xff] %vm3841, %v8672
  %8737 = vst.msk [vmem:[%s7 + $0x130] sm:$0xff] %vm3841, %v8673
  %8738 = vst.msk [vmem:[%s7 + $0x138] sm:$0xff] %vm3841, %v8674
  %8739 = vst.msk [vmem:[%s7 + $0x140] sm:$0xff] %vm3841, %v8675
  %8740 = vst.msk [vmem:[%s7 + $0x148] sm:$0xff] %vm3841, %v8676
  %8741 = vst.msk [vmem:[%s7 + $0x150] sm:$0xff] %vm3841, %v8677
  %8742 = vst.msk [vmem:[%s7 + $0x158] sm:$0xff] %vm3841, %v8678
  %8743 = vst.msk [vmem:[%s7 + $0x160] sm:$0xff] %vm3841, %v8679
  %8744 = vst.msk [vmem:[%s7 + $0x168] sm:$0xff] %vm3841, %v8680
  %8745 = vst.msk [vmem:[%s7 + $0x170] sm:$0xff] %vm3841, %v8681
  %8746 = vst.msk [vmem:[%s7 + $0x178] sm:$0xff] %vm3841, %v8682
  %8747 = vst.msk [vmem:[%s7 + $0x180] sm:$0xff] %vm3841, %v8683
  %8748 = vst.msk [vmem:[%s7 + $0x188] sm:$0xff] %vm3841, %v8684
  %8749 = vst.msk [vmem:[%s7 + $0x190] sm:$0xff] %vm3841, %v8685
  %8750 = vst.msk [vmem:[%s7 + $0x198] sm:$0xff] %vm3841, %v8686
  %8751 = vst.msk [vmem:[%s7 + $0x1a0] sm:$0xff] %vm3841, %v8687
  %8752 = vst.msk [vmem:[%s7 + $0x1a8] sm:$0xff] %vm3841, %v8688
  %8753 = vst.msk [vmem:[%s7 + $0x1b0] sm:$0xff] %vm3841, %v8689
  %8754 = vst.msk [vmem:[%s7 + $0x1b8] sm:$0xff] %vm3841, %v8690
  %8755 = vst.msk [vmem:[%s7 + $0x1c0] sm:$0xff] %vm3841, %v8691
  %8756 = vst.msk [vmem:[%s7 + $0x1c8] sm:$0xff] %vm3841, %v8692
  %8757 = vst.msk [vmem:[%s7 + $0x1d0] sm:$0xff] %vm3841, %v8693
  %8758 = vst.msk [vmem:[%s7 + $0x1d8] sm:$0xff] %vm3841, %v8694
  %8759 = vst.msk [vmem:[%s7 + $0x1e0] sm:$0xff] %vm3841, %v8695
  %8760 = vst.msk [vmem:[%s7 + $0x1e8] sm:$0xff] %vm3841, %v8696
  %8761 = vst.msk [vmem:[%s7 + $0x1f0] sm:$0xff] %vm3841, %v8697
  %8762 = vst.msk [vmem:[%s7 + $0x1f8] sm:$0xff] %vm3841, %v8698
  // Predicated region
  $region30: #{double_conv.1} parent=0 // pred_check
    _
  $region31: #{double_conv.1} parent=0 // pred_check_branch
    %8764 = sbr.rel (0) target = $region33
  $region32: #{double_conv.1} parent=0 // pred_region
    _
  $region33: #{double_conv.1} parent=0 // pred_fallthru
    _
  // Predicated region
  $region34: #{double_conv.1} parent=0 // pred_check
    _
  $region35: #{double_conv.1} parent=0 // pred_check_branch
    %8766 = sbr.rel (0) target = $region37
  $region36: #{double_conv.1} parent=0 // pred_region
    _
  $region37: #{double_conv.1} parent=0 // pred_fallthru
    _

</llo_original>
